<compile_context>
chip_gen: v7x
topology: tpu7x:2x2x1
jax: 0.10.0
libtpu: 0.0.40
codegen_flags: <defaults>
</compile_context>

<pallas_src>
import numpy as np
import jax
import jax.numpy as jnp
from jax.experimental import pallas as pl
from jax.experimental.pallas import tpu as pltpu


# ---------------------------------------------------------------------------
# Weight re-packing helpers (tiny, run in the XLA wrapper)
# ---------------------------------------------------------------------------
def _make_toeplitz(w_hwio, width):
    """Banded-Toeplitz conv weights for one conv layer.

    Returns T of shape (10, width*Cin, (width//2)*Cout), indexed t = kh*2+pw:
      T[t, w*Cin + ci, j*Cout + co] = w_hwio[kh, (w+2) - (2j+pw), ci, co]
    (zero when the kw offset is outside [0, 4]).  Width zero-padding is
    absorbed by dropping out-of-range taps (they multiply zeros anyway).
    """
    kh_, kw_, cin, cout = w_hwio.shape
    wh = width // 2
    sel = np.zeros((2, width, wh, kw_), np.float32)
    for pw in range(2):
        for j in range(wh):
            for k in range(kw_):
                w = 2 * j + pw + k - 2
                if 0 <= w < width:
                    sel[pw, w, j, k] = 1.0
    t = jnp.einsum("pwjk,hkio->hpwijo", jnp.asarray(sel, w_hwio.dtype), w_hwio)
    return t.reshape(kh_ * 2, width * cin, wh * cout)


def _pick_batch_tile(batch):
    """Largest of (32,16,8) dividing batch that still gives >=2 grid steps."""
    divisors = [tb for tb in (32, 16, 8) if batch % tb == 0]
    for tb in divisors:
        if batch // tb >= 2:
            return tb
    return divisors[-1] if divisors else batch


# ---------------------------------------------------------------------------
# Fused kernel: conv1 -> relu -> pool -> conv2 -> relu -> pool -> linear
# ---------------------------------------------------------------------------
def _fused_cnn_kernel(x_ref, t1_ref, b1_ref, t2_ref, b2_ref, w3_ref, b3_ref,
                      logits_ref, y2_ref,
                      x1e_ref, x1o_ref, x2e_ref, x2o_ref):
    TB = x_ref.shape[2]          # batch tile (sublane axis of activations)
    H1, H2 = 28, 14              # conv1 / conv2 spatial heights
    C1, C2 = 16, 32              # conv1 / conv2 output channels
    Hh1, Hh2 = H1 // 2, H2 // 2  # pooled heights

    def conv_relu_pool(xpe_ref, xpo_ref, t_ref, b_ref, hh):
        """5x5 conv (pad 2) + bias + ReLU + 2x2 max-pool over one batch tile.

        xpe_ref/xpo_ref: (H/2+2, TB, W*Cin) even/odd padded input rows
        t_ref:           (10, W*Cin, (W/2)*Cout) Toeplitz weights (kh*2+pw)
        b_ref:           (1, (W/2)*Cout) bias tiled over pooled width
        returns          (hh*TB, (W/2)*Cout), row index = i*TB + b
        """
        k = xpe_ref.shape[2]
        n = t_ref.shape[2]
        bufs = (xpe_ref, xpo_ref)
        pooled = None
        for ph in range(2):                 # output-row parity (h-pool half)
            for pw in range(2):             # output-col parity (w-pool half)
                acc = jnp.zeros((hh * TB, n), jnp.float32)
                for kh in range(5):         # conv tap rows
                    src = bufs[(ph + kh) % 2]
                    lhs = src[pl.ds((ph + kh) // 2, hh), :, :]
                    lhs = lhs.reshape(hh * TB, k)
                    acc = acc + jnp.dot(lhs, t_ref[kh * 2 + pw],
                                        preferred_element_type=jnp.float32)
                pooled = acc if pooled is None else jnp.maximum(pooled, acc)
        return jnp.maximum(pooled + b_ref[...], 0.0)

    # ---- in-kernel zero padding (height pad = 2, parity-split buffers) -----
    x1e_ref[...] = jnp.zeros_like(x1e_ref)
    x1o_ref[...] = jnp.zeros_like(x1o_ref)
    x2e_ref[...] = jnp.zeros_like(x2e_ref)
    x2o_ref[...] = jnp.zeros_like(x2o_ref)
    x1e_ref[pl.ds(1, H1 // 2), :, :] = x_ref[0]     # even input rows
    x1o_ref[pl.ds(1, H1 // 2), :, :] = x_ref[1]     # odd  input rows

    # ---- conv1 -> relu -> pool ---------------------------------------------
    y1 = conv_relu_pool(x1e_ref, x1o_ref, t1_ref, b1_ref, Hh1)   # (14*TB, 224)
    y1r = y1.reshape(H2, TB, H2 * C1)                            # (14, TB, 224)

    # scatter pooled rows into the (parity-split, height-padded) conv2 input
    for i in range(H2):
        dst = x2e_ref if i % 2 == 0 else x2o_ref
        dst[i // 2 + 1, :, :] = y1r[i]

    # ---- conv2 -> relu -> pool ---------------------------------------------
    y2 = conv_relu_pool(x2e_ref, x2o_ref, t2_ref, b2_ref, Hh2)   # (7*TB, 224)
    y2r = y2.reshape(Hh2, TB, Hh2 * C2)                          # (7, TB, 224)
    y2_ref[...] = y2r

    # ---- linear (output channels padded to 128 lanes) ----------------------
    logits = jnp.zeros((TB, w3_ref.shape[2]), jnp.float32)
    for i in range(Hh2):
        logits = logits + jnp.dot(y2r[i], w3_ref[i],
                                  preferred_element_type=jnp.float32)
    logits_ref[...] = logits + b3_ref[...]


# ---------------------------------------------------------------------------
# Wrapper
# ---------------------------------------------------------------------------
def cnn_forward(x_nchw, params):
    """Pallas equivalent of CNN.forward -> (logits [B,10], flat [B,1568])."""
    B = x_nchw.shape[0]
    TB = _pick_batch_tile(B)
    grid = (B // TB,)

    # Input NCHW (B,1,28,28) -> parity-split (2, 14, B, 28): batch on sublanes.
    x_par = jnp.transpose(x_nchw.reshape(B, 14, 2, 28), (2, 1, 0, 3))

    # Re-packed weights (tiny one-off XLA work, < 3 MB of constants).
    t1 = _make_toeplitz(params["w1"], 28)                    # (10,  28, 224)
    t2 = _make_toeplitz(params["w2"], 14)                    # (10, 224, 224)
    b1 = jnp.tile(params["b1"], 14).reshape(1, 224)
    b2 = jnp.tile(params["b2"], 7).reshape(1, 224)
    # Linear rows are NCHW-flat (c*49+i*7+j); regroup to [i, j*32+c, n] so it
    # contracts directly against the kernel's y2 layout; pad N 10 -> 128.
    w3r = jnp.transpose(params["w3"].reshape(32, 7, 7, 10), (1, 2, 0, 3))
    w3r = jnp.pad(w3r.reshape(7, 224, 10), ((0, 0), (0, 0), (0, 118)))
    b3p = jnp.pad(params["b3"], (0, 118)).reshape(1, 128)

    logits_pad, y2 = pl.pallas_call(
        _fused_cnn_kernel,
        out_shape=(jax.ShapeDtypeStruct((B, 128), jnp.float32),
                   jax.ShapeDtypeStruct((7, B, 224), jnp.float32)),
        grid=grid,
        in_specs=[
            pl.BlockSpec((2, 14, TB, 28), lambda i: (0, 0, i, 0)),   # input
            pl.BlockSpec((10, 28, 224), lambda i: (0, 0, 0)),        # t1
            pl.BlockSpec((1, 224), lambda i: (0, 0)),                # b1
            pl.BlockSpec((10, 224, 224), lambda i: (0, 0, 0)),       # t2
            pl.BlockSpec((1, 224), lambda i: (0, 0)),                # b2
            pl.BlockSpec((7, 224, 128), lambda i: (0, 0, 0)),        # w3
            pl.BlockSpec((1, 128), lambda i: (0, 0)),                # b3
        ],
        out_specs=(
            pl.BlockSpec((TB, 128), lambda i: (i, 0)),               # logits
            pl.BlockSpec((7, TB, 224), lambda i: (0, i, 0)),         # y2
        ),
        scratch_shapes=[
            pltpu.VMEM((16, TB, 28), jnp.float32),    # conv1 padded even rows
            pltpu.VMEM((16, TB, 28), jnp.float32),    # conv1 padded odd rows
            pltpu.VMEM((9, TB, 224), jnp.float32),    # conv2 padded even rows
            pltpu.VMEM((9, TB, 224), jnp.float32),    # conv2 padded odd rows
        ],
        compiler_params=pltpu.CompilerParams(
            dimension_semantics=("parallel",),
            vmem_limit_bytes=32 * 1024 * 1024),
    )(x_par, t1, b1, t2, b2, w3r, b3p)

    logits = logits_pad[:, :10]
    # PyTorch NCHW flatten order: flat[b, c*49 + i*7 + j] = y2[i, b, j*32 + c]
    flat = jnp.transpose(y2.reshape(7, B, 7, 32), (1, 3, 0, 2)).reshape(B, 1568)
    return logits, flat


# ---------------------------------------------------------------------------
# Pure-JAX reference (for verification)
# ---------------------------------------------------------------------------
def reference_forward(x_nchw, params):
    x = jnp.transpose(x_nchw, (0, 2, 3, 1))

    def block(x, w, b):
        y = jax.lax.conv_general_dilated(
            x, w, window_strides=(1, 1), padding=((2, 2), (2, 2)),
            dimension_numbers=("NHWC", "HWIO", "NHWC"))
        y = jnp.maximum(y + b, 0.0)
        return jax.lax.reduce_window(
            y, -jnp.inf, jax.lax.max, (1, 2, 2, 1), (1, 2, 2, 1), "VALID")

    y = block(x, params["w1"], params["b1"])
    y = block(y, params["w2"], params["b2"])
    flat = jnp.transpose(y, (0, 3, 1, 2)).reshape(x.shape[0], -1)
    logits = flat @ params["w3"] + params["b3"]
    return logits, flat


def init_params(key):
    ks = jax.random.split(key, 6)
    return {
        "w1": 0.1 * jax.random.normal(ks[0], (5, 5, 1, 16), jnp.float32),
        "b1": 0.1 * jax.random.normal(ks[1], (16,), jnp.float32),
        "w2": 0.1 * jax.random.normal(ks[2], (5, 5, 16, 32), jnp.float32),
        "b2": 0.1 * jax.random.normal(ks[3], (32,), jnp.float32),
        "w3": 0.1 * jax.random.normal(ks[4], (32 * 7 * 7, 10), jnp.float32),
        "b3": 0.1 * jax.random.normal(ks[5], (10,), jnp.float32),
    }


if __name__ == "__main__":
    root = jax.random.PRNGKey(0)
    pkey, xkey = jax.random.split(root)
    params = init_params(pkey)
    # 28x28 inputs so the conv/pool stack matches Linear(32*7*7, 10).
    x = jax.random.normal(xkey, (16, 1, 28, 28), jnp.float32)

    fwd = jax.jit(cnn_forward)
    logits, flat = fwd(x, params)
    jax.block_until_ready((logits, flat))

    assert logits.shape == (16, 10) and logits.dtype == jnp.float32
    assert flat.shape == (16, 32 * 7 * 7) and flat.dtype == jnp.float32

    ref_logits, ref_flat = reference_forward(x, params)
    assert jnp.allclose(flat, ref_flat, rtol=1e-4, atol=1e-4), \
        float(jnp.max(jnp.abs(flat - ref_flat)))
    assert jnp.allclose(logits, ref_logits, rtol=1e-4, atol=1e-4), \
        float(jnp.max(jnp.abs(logits - ref_logits)))

    print("KERNEL_OK")
</pallas_src>

<mosaic_0001>
module attributes {stable_mosaic.version = 11 : i64} {
  func.func @_fused_cnn_kernel(%arg0: i32, %arg1: memref<2x14x8x28xf32, #tpu.memory_space<vmem>>, %arg2: memref<10x28x224xf32, #tpu.memory_space<vmem>>, %arg3: memref<1x224xf32, #tpu.memory_space<vmem>>, %arg4: memref<10x224x224xf32, #tpu.memory_space<vmem>>, %arg5: memref<1x224xf32, #tpu.memory_space<vmem>>, %arg6: memref<7x224x128xf32, #tpu.memory_space<vmem>>, %arg7: memref<1x128xf32, #tpu.memory_space<vmem>>, %arg8: memref<8x128xf32, #tpu.memory_space<vmem>>, %arg9: memref<7x8x224xf32, #tpu.memory_space<vmem>>, %arg10: memref<16x8x28xf32, #tpu.memory_space<vmem>>, %arg11: memref<16x8x28xf32, #tpu.memory_space<vmem>>, %arg12: memref<9x8x224xf32, #tpu.memory_space<vmem>>, %arg13: memref<9x8x224xf32, #tpu.memory_space<vmem>>) attributes {dimension_semantics = [#tpu.dimension_semantics<parallel>], iteration_bounds = array<i64: 2>, scalar_prefetch = 0 : i64, scratch_operands = 4 : i64, tpu.core_type = #tpu.core_type<tc>, window_params = [{transform_indices = @transform_0, window_bounds = array<i64: 2, 14, 8, 28>}, {pipeline_mode = #tpu.pipeline_mode<synchronous>, transform_indices = @transform_1, window_bounds = array<i64: 10, 28, 224>}, {pipeline_mode = #tpu.pipeline_mode<synchronous>, transform_indices = @transform_2, window_bounds = array<i64: 1, 224>}, {pipeline_mode = #tpu.pipeline_mode<synchronous>, transform_indices = @transform_3, window_bounds = array<i64: 10, 224, 224>}, {pipeline_mode = #tpu.pipeline_mode<synchronous>, transform_indices = @transform_4, window_bounds = array<i64: 1, 224>}, {pipeline_mode = #tpu.pipeline_mode<synchronous>, transform_indices = @transform_5, window_bounds = array<i64: 7, 224, 128>}, {pipeline_mode = #tpu.pipeline_mode<synchronous>, transform_indices = @transform_6, window_bounds = array<i64: 1, 128>}, {transform_indices = @transform_7, window_bounds = array<i64: 8, 128>}, {transform_indices = @transform_8, window_bounds = array<i64: 7, 8, 224>}]} {
    %cst = arith.constant 0.000000e+00 : f32
    %0 = vector.broadcast %cst : f32 to vector<16x8x28xf32>
    %c0 = arith.constant 0 : index
    %c0_0 = arith.constant 0 : index
    %c0_1 = arith.constant 0 : index
    %1 = vector.load %arg10[%c0, %c0_0, %c0_1] : memref<16x8x28xf32, #tpu.memory_space<vmem>>, vector<16x8x28xf32>
    tpu.vector_store %arg10[%c0, %c0_0, %c0_1], %0 {strides = array<i32>} : memref<16x8x28xf32, #tpu.memory_space<vmem>>, vector<16x8x28xf32>,
    %cst_2 = arith.constant 0.000000e+00 : f32
    %2 = vector.broadcast %cst_2 : f32 to vector<16x8x28xf32>
    %c0_3 = arith.constant 0 : index
    %c0_4 = arith.constant 0 : index
    %c0_5 = arith.constant 0 : index
    %3 = vector.load %arg11[%c0_3, %c0_4, %c0_5] : memref<16x8x28xf32, #tpu.memory_space<vmem>>, vector<16x8x28xf32>
    tpu.vector_store %arg11[%c0_3, %c0_4, %c0_5], %2 {strides = array<i32>} : memref<16x8x28xf32, #tpu.memory_space<vmem>>, vector<16x8x28xf32>,
    %cst_6 = arith.constant 0.000000e+00 : f32
    %4 = vector.broadcast %cst_6 : f32 to vector<9x8x224xf32>
    %c0_7 = arith.constant 0 : index
    %c0_8 = arith.constant 0 : index
    %c0_9 = arith.constant 0 : index
    %5 = vector.load %arg12[%c0_7, %c0_8, %c0_9] : memref<9x8x224xf32, #tpu.memory_space<vmem>>, vector<9x8x224xf32>
    tpu.vector_store %arg12[%c0_7, %c0_8, %c0_9], %4 {strides = array<i32>} : memref<9x8x224xf32, #tpu.memory_space<vmem>>, vector<9x8x224xf32>,
    %cst_10 = arith.constant 0.000000e+00 : f32
    %6 = vector.broadcast %cst_10 : f32 to vector<9x8x224xf32>
    %c0_11 = arith.constant 0 : index
    %c0_12 = arith.constant 0 : index
    %c0_13 = arith.constant 0 : index
    %7 = vector.load %arg13[%c0_11, %c0_12, %c0_13] : memref<9x8x224xf32, #tpu.memory_space<vmem>>, vector<9x8x224xf32>
    tpu.vector_store %arg13[%c0_11, %c0_12, %c0_13], %6 {strides = array<i32>} : memref<9x8x224xf32, #tpu.memory_space<vmem>>, vector<9x8x224xf32>,
    %c0_14 = arith.constant 0 : index
    %c0_15 = arith.constant 0 : index
    %c0_16 = arith.constant 0 : index
    %c0_17 = arith.constant 0 : index
    %8 = vector.load %arg1[%c0_14, %c0_15, %c0_16, %c0_17] : memref<2x14x8x28xf32, #tpu.memory_space<vmem>>, vector<1x14x8x28xf32>
    %9 = vector.shape_cast %8 : vector<1x14x8x28xf32> to vector<14x8x28xf32>
    %c1 = arith.constant 1 : index
    %c0_18 = arith.constant 0 : index
    %c0_19 = arith.constant 0 : index
    %10 = vector.load %arg10[%c1, %c0_18, %c0_19] : memref<16x8x28xf32, #tpu.memory_space<vmem>>, vector<14x8x28xf32>
    tpu.vector_store %arg10[%c1, %c0_18, %c0_19], %9 {strides = array<i32>} : memref<16x8x28xf32, #tpu.memory_space<vmem>>, vector<14x8x28xf32>,
    %c1_20 = arith.constant 1 : index
    %c0_21 = arith.constant 0 : index
    %c0_22 = arith.constant 0 : index
    %c0_23 = arith.constant 0 : index
    %11 = vector.load %arg1[%c1_20, %c0_21, %c0_22, %c0_23] : memref<2x14x8x28xf32, #tpu.memory_space<vmem>>, vector<1x14x8x28xf32>
    %12 = vector.shape_cast %11 : vector<1x14x8x28xf32> to vector<14x8x28xf32>
    %c1_24 = arith.constant 1 : index
    %c0_25 = arith.constant 0 : index
    %c0_26 = arith.constant 0 : index
    %13 = vector.load %arg11[%c1_24, %c0_25, %c0_26] : memref<16x8x28xf32, #tpu.memory_space<vmem>>, vector<14x8x28xf32>
    tpu.vector_store %arg11[%c1_24, %c0_25, %c0_26], %12 {strides = array<i32>} : memref<16x8x28xf32, #tpu.memory_space<vmem>>, vector<14x8x28xf32>,
    %cst_27 = arith.constant 0.000000e+00 : f32
    %14 = vector.broadcast %cst_27 : f32 to vector<112x224xf32>
    %c0_28 = arith.constant 0 : index
    %c0_29 = arith.constant 0 : index
    %c0_30 = arith.constant 0 : index
    %15 = vector.load %arg10[%c0_28, %c0_29, %c0_30] : memref<16x8x28xf32, #tpu.memory_space<vmem>>, vector<14x8x28xf32>
    %16 = vector.shape_cast %15 : vector<14x8x28xf32> to vector<112x28xf32>
    %c0_31 = arith.constant 0 : index
    %c0_32 = arith.constant 0 : index
    %c0_33 = arith.constant 0 : index
    %17 = vector.load %arg2[%c0_31, %c0_32, %c0_33] : memref<10x28x224xf32, #tpu.memory_space<vmem>>, vector<1x28x224xf32>
    %18 = vector.shape_cast %17 : vector<1x28x224xf32> to vector<28x224xf32>
    %cst_34 = arith.constant dense<0.000000e+00> : vector<112x224xf32>
    %19 = tpu.matmul %16, %18, %cst_34 {dimension_numbers = #tpu.dot_dimension_numbers<[1], [0], [0], [1], [0, 0, 1, 1], [], []>} : vector<112x28xf32>, vector<28x224xf32>, vector<112x224xf32> -> vector<112x224xf32>
    %20 = arith.addf %14, %19 : vector<112x224xf32>
    %c0_35 = arith.constant 0 : index
    %c0_36 = arith.constant 0 : index
    %c0_37 = arith.constant 0 : index
    %21 = vector.load %arg11[%c0_35, %c0_36, %c0_37] : memref<16x8x28xf32, #tpu.memory_space<vmem>>, vector<14x8x28xf32>
    %22 = vector.shape_cast %21 : vector<14x8x28xf32> to vector<112x28xf32>
    %c2 = arith.constant 2 : index
    %c0_38 = arith.constant 0 : index
    %c0_39 = arith.constant 0 : index
    %23 = vector.load %arg2[%c2, %c0_38, %c0_39] : memref<10x28x224xf32, #tpu.memory_space<vmem>>, vector<1x28x224xf32>
    %24 = vector.shape_cast %23 : vector<1x28x224xf32> to vector<28x224xf32>
    %cst_40 = arith.constant dense<0.000000e+00> : vector<112x224xf32>
    %25 = tpu.matmul %22, %24, %cst_40 {dimension_numbers = #tpu.dot_dimension_numbers<[1], [0], [0], [1], [0, 0, 1, 1], [], []>} : vector<112x28xf32>, vector<28x224xf32>, vector<112x224xf32> -> vector<112x224xf32>
    %26 = arith.addf %20, %25 : vector<112x224xf32>
    %c1_41 = arith.constant 1 : index
    %c0_42 = arith.constant 0 : index
    %c0_43 = arith.constant 0 : index
    %27 = vector.load %arg10[%c1_41, %c0_42, %c0_43] : memref<16x8x28xf32, #tpu.memory_space<vmem>>, vector<14x8x28xf32>
    %28 = vector.shape_cast %27 : vector<14x8x28xf32> to vector<112x28xf32>
    %c4 = arith.constant 4 : index
    %c0_44 = arith.constant 0 : index
    %c0_45 = arith.constant 0 : index
    %29 = vector.load %arg2[%c4, %c0_44, %c0_45] : memref<10x28x224xf32, #tpu.memory_space<vmem>>, vector<1x28x224xf32>
    %30 = vector.shape_cast %29 : vector<1x28x224xf32> to vector<28x224xf32>
    %cst_46 = arith.constant dense<0.000000e+00> : vector<112x224xf32>
    %31 = tpu.matmul %28, %30, %cst_46 {dimension_numbers = #tpu.dot_dimension_numbers<[1], [0], [0], [1], [0, 0, 1, 1], [], []>} : vector<112x28xf32>, vector<28x224xf32>, vector<112x224xf32> -> vector<112x224xf32>
    %32 = arith.addf %26, %31 : vector<112x224xf32>
    %c1_47 = arith.constant 1 : index
    %c0_48 = arith.constant 0 : index
    %c0_49 = arith.constant 0 : index
    %33 = vector.load %arg11[%c1_47, %c0_48, %c0_49] : memref<16x8x28xf32, #tpu.memory_space<vmem>>, vector<14x8x28xf32>
    %34 = vector.shape_cast %33 : vector<14x8x28xf32> to vector<112x28xf32>
    %c6 = arith.constant 6 : index
    %c0_50 = arith.constant 0 : index
    %c0_51 = arith.constant 0 : index
    %35 = vector.load %arg2[%c6, %c0_50, %c0_51] : memref<10x28x224xf32, #tpu.memory_space<vmem>>, vector<1x28x224xf32>
    %36 = vector.shape_cast %35 : vector<1x28x224xf32> to vector<28x224xf32>
    %cst_52 = arith.constant dense<0.000000e+00> : vector<112x224xf32>
    %37 = tpu.matmul %34, %36, %cst_52 {dimension_numbers = #tpu.dot_dimension_numbers<[1], [0], [0], [1], [0, 0, 1, 1], [], []>} : vector<112x28xf32>, vector<28x224xf32>, vector<112x224xf32> -> vector<112x224xf32>
    %38 = arith.addf %32, %37 : vector<112x224xf32>
    %c2_53 = arith.constant 2 : index
    %c0_54 = arith.constant 0 : index
    %c0_55 = arith.constant 0 : index
    %39 = vector.load %arg10[%c2_53, %c0_54, %c0_55] : memref<16x8x28xf32, #tpu.memory_space<vmem>>, vector<14x8x28xf32>
    %40 = vector.shape_cast %39 : vector<14x8x28xf32> to vector<112x28xf32>
    %c8 = arith.constant 8 : index
    %c0_56 = arith.constant 0 : index
    %c0_57 = arith.constant 0 : index
    %41 = vector.load %arg2[%c8, %c0_56, %c0_57] : memref<10x28x224xf32, #tpu.memory_space<vmem>>, vector<1x28x224xf32>
    %42 = vector.shape_cast %41 : vector<1x28x224xf32> to vector<28x224xf32>
    %cst_58 = arith.constant dense<0.000000e+00> : vector<112x224xf32>
    %43 = tpu.matmul %40, %42, %cst_58 {dimension_numbers = #tpu.dot_dimension_numbers<[1], [0], [0], [1], [0, 0, 1, 1], [], []>} : vector<112x28xf32>, vector<28x224xf32>, vector<112x224xf32> -> vector<112x224xf32>
    %44 = arith.addf %38, %43 : vector<112x224xf32>
    %cst_59 = arith.constant 0.000000e+00 : f32
    %45 = vector.broadcast %cst_59 : f32 to vector<112x224xf32>
    %c0_60 = arith.constant 0 : index
    %c0_61 = arith.constant 0 : index
    %c0_62 = arith.constant 0 : index
    %46 = vector.load %arg10[%c0_60, %c0_61, %c0_62] : memref<16x8x28xf32, #tpu.memory_space<vmem>>, vector<14x8x28xf32>
    %47 = vector.shape_cast %46 : vector<14x8x28xf32> to vector<112x28xf32>
    %c1_63 = arith.constant 1 : index
    %c0_64 = arith.constant 0 : index
    %c0_65 = arith.constant 0 : index
    %48 = vector.load %arg2[%c1_63, %c0_64, %c0_65] : memref<10x28x224xf32, #tpu.memory_space<vmem>>, vector<1x28x224xf32>
    %49 = vector.shape_cast %48 : vector<1x28x224xf32> to vector<28x224xf32>
    %cst_66 = arith.constant dense<0.000000e+00> : vector<112x224xf32>
    %50 = tpu.matmul %47, %49, %cst_66 {dimension_numbers = #tpu.dot_dimension_numbers<[1], [0], [0], [1], [0, 0, 1, 1], [], []>} : vector<112x28xf32>, vector<28x224xf32>, vector<112x224xf32> -> vector<112x224xf32>
    %51 = arith.addf %45, %50 : vector<112x224xf32>
    %c0_67 = arith.constant 0 : index
    %c0_68 = arith.constant 0 : index
    %c0_69 = arith.constant 0 : index
    %52 = vector.load %arg11[%c0_67, %c0_68, %c0_69] : memref<16x8x28xf32, #tpu.memory_space<vmem>>, vector<14x8x28xf32>
    %53 = vector.shape_cast %52 : vector<14x8x28xf32> to vector<112x28xf32>
    %c3 = arith.constant 3 : index
    %c0_70 = arith.constant 0 : index
    %c0_71 = arith.constant 0 : index
    %54 = vector.load %arg2[%c3, %c0_70, %c0_71] : memref<10x28x224xf32, #tpu.memory_space<vmem>>, vector<1x28x224xf32>
    %55 = vector.shape_cast %54 : vector<1x28x224xf32> to vector<28x224xf32>
    %cst_72 = arith.constant dense<0.000000e+00> : vector<112x224xf32>
    %56 = tpu.matmul %53, %55, %cst_72 {dimension_numbers = #tpu.dot_dimension_numbers<[1], [0], [0], [1], [0, 0, 1, 1], [], []>} : vector<112x28xf32>, vector<28x224xf32>, vector<112x224xf32> -> vector<112x224xf32>
    %57 = arith.addf %51, %56 : vector<112x224xf32>
    %c1_73 = arith.constant 1 : index
    %c0_74 = arith.constant 0 : index
    %c0_75 = arith.constant 0 : index
    %58 = vector.load %arg10[%c1_73, %c0_74, %c0_75] : memref<16x8x28xf32, #tpu.memory_space<vmem>>, vector<14x8x28xf32>
    %59 = vector.shape_cast %58 : vector<14x8x28xf32> to vector<112x28xf32>
    %c5 = arith.constant 5 : index
    %c0_76 = arith.constant 0 : index
    %c0_77 = arith.constant 0 : index
    %60 = vector.load %arg2[%c5, %c0_76, %c0_77] : memref<10x28x224xf32, #tpu.memory_space<vmem>>, vector<1x28x224xf32>
    %61 = vector.shape_cast %60 : vector<1x28x224xf32> to vector<28x224xf32>
    %cst_78 = arith.constant dense<0.000000e+00> : vector<112x224xf32>
    %62 = tpu.matmul %59, %61, %cst_78 {dimension_numbers = #tpu.dot_dimension_numbers<[1], [0], [0], [1], [0, 0, 1, 1], [], []>} : vector<112x28xf32>, vector<28x224xf32>, vector<112x224xf32> -> vector<112x224xf32>
    %63 = arith.addf %57, %62 : vector<112x224xf32>
    %c1_79 = arith.constant 1 : index
    %c0_80 = arith.constant 0 : index
    %c0_81 = arith.constant 0 : index
    %64 = vector.load %arg11[%c1_79, %c0_80, %c0_81] : memref<16x8x28xf32, #tpu.memory_space<vmem>>, vector<14x8x28xf32>
    %65 = vector.shape_cast %64 : vector<14x8x28xf32> to vector<112x28xf32>
    %c7 = arith.constant 7 : index
    %c0_82 = arith.constant 0 : index
    %c0_83 = arith.constant 0 : index
    %66 = vector.load %arg2[%c7, %c0_82, %c0_83] : memref<10x28x224xf32, #tpu.memory_space<vmem>>, vector<1x28x224xf32>
    %67 = vector.shape_cast %66 : vector<1x28x224xf32> to vector<28x224xf32>
    %cst_84 = arith.constant dense<0.000000e+00> : vector<112x224xf32>
    %68 = tpu.matmul %65, %67, %cst_84 {dimension_numbers = #tpu.dot_dimension_numbers<[1], [0], [0], [1], [0, 0, 1, 1], [], []>} : vector<112x28xf32>, vector<28x224xf32>, vector<112x224xf32> -> vector<112x224xf32>
    %69 = arith.addf %63, %68 : vector<112x224xf32>
    %c2_85 = arith.constant 2 : index
    %c0_86 = arith.constant 0 : index
    %c0_87 = arith.constant 0 : index
    %70 = vector.load %arg10[%c2_85, %c0_86, %c0_87] : memref<16x8x28xf32, #tpu.memory_space<vmem>>, vector<14x8x28xf32>
    %71 = vector.shape_cast %70 : vector<14x8x28xf32> to vector<112x28xf32>
    %c9 = arith.constant 9 : index
    %c0_88 = arith.constant 0 : index
    %c0_89 = arith.constant 0 : index
    %72 = vector.load %arg2[%c9, %c0_88, %c0_89] : memref<10x28x224xf32, #tpu.memory_space<vmem>>, vector<1x28x224xf32>
    %73 = vector.shape_cast %72 : vector<1x28x224xf32> to vector<28x224xf32>
    %cst_90 = arith.constant dense<0.000000e+00> : vector<112x224xf32>
    %74 = tpu.matmul %71, %73, %cst_90 {dimension_numbers = #tpu.dot_dimension_numbers<[1], [0], [0], [1], [0, 0, 1, 1], [], []>} : vector<112x28xf32>, vector<28x224xf32>, vector<112x224xf32> -> vector<112x224xf32>
    %75 = arith.addf %69, %74 : vector<112x224xf32>
    %76 = arith.maximumf %44, %75 : vector<112x224xf32>
    %cst_91 = arith.constant 0.000000e+00 : f32
    %77 = vector.broadcast %cst_91 : f32 to vector<112x224xf32>
    %c0_92 = arith.constant 0 : index
    %c0_93 = arith.constant 0 : index
    %c0_94 = arith.constant 0 : index
    %78 = vector.load %arg11[%c0_92, %c0_93, %c0_94] : memref<16x8x28xf32, #tpu.memory_space<vmem>>, vector<14x8x28xf32>
    %79 = vector.shape_cast %78 : vector<14x8x28xf32> to vector<112x28xf32>
    %c0_95 = arith.constant 0 : index
    %c0_96 = arith.constant 0 : index
    %c0_97 = arith.constant 0 : index
    %80 = vector.load %arg2[%c0_95, %c0_96, %c0_97] : memref<10x28x224xf32, #tpu.memory_space<vmem>>, vector<1x28x224xf32>
    %81 = vector.shape_cast %80 : vector<1x28x224xf32> to vector<28x224xf32>
    %cst_98 = arith.constant dense<0.000000e+00> : vector<112x224xf32>
    %82 = tpu.matmul %79, %81, %cst_98 {dimension_numbers = #tpu.dot_dimension_numbers<[1], [0], [0], [1], [0, 0, 1, 1], [], []>} : vector<112x28xf32>, vector<28x224xf32>, vector<112x224xf32> -> vector<112x224xf32>
    %83 = arith.addf %77, %82 : vector<112x224xf32>
    %c1_99 = arith.constant 1 : index
    %c0_100 = arith.constant 0 : index
    %c0_101 = arith.constant 0 : index
    %84 = vector.load %arg10[%c1_99, %c0_100, %c0_101] : memref<16x8x28xf32, #tpu.memory_space<vmem>>, vector<14x8x28xf32>
    %85 = vector.shape_cast %84 : vector<14x8x28xf32> to vector<112x28xf32>
    %c2_102 = arith.constant 2 : index
    %c0_103 = arith.constant 0 : index
    %c0_104 = arith.constant 0 : index
    %86 = vector.load %arg2[%c2_102, %c0_103, %c0_104] : memref<10x28x224xf32, #tpu.memory_space<vmem>>, vector<1x28x224xf32>
    %87 = vector.shape_cast %86 : vector<1x28x224xf32> to vector<28x224xf32>
    %cst_105 = arith.constant dense<0.000000e+00> : vector<112x224xf32>
    %88 = tpu.matmul %85, %87, %cst_105 {dimension_numbers = #tpu.dot_dimension_numbers<[1], [0], [0], [1], [0, 0, 1, 1], [], []>} : vector<112x28xf32>, vector<28x224xf32>, vector<112x224xf32> -> vector<112x224xf32>
    %89 = arith.addf %83, %88 : vector<112x224xf32>
    %c1_106 = arith.constant 1 : index
    %c0_107 = arith.constant 0 : index
    %c0_108 = arith.constant 0 : index
    %90 = vector.load %arg11[%c1_106, %c0_107, %c0_108] : memref<16x8x28xf32, #tpu.memory_space<vmem>>, vector<14x8x28xf32>
    %91 = vector.shape_cast %90 : vector<14x8x28xf32> to vector<112x28xf32>
    %c4_109 = arith.constant 4 : index
    %c0_110 = arith.constant 0 : index
    %c0_111 = arith.constant 0 : index
    %92 = vector.load %arg2[%c4_109, %c0_110, %c0_111] : memref<10x28x224xf32, #tpu.memory_space<vmem>>, vector<1x28x224xf32>
    %93 = vector.shape_cast %92 : vector<1x28x224xf32> to vector<28x224xf32>
    %cst_112 = arith.constant dense<0.000000e+00> : vector<112x224xf32>
    %94 = tpu.matmul %91, %93, %cst_112 {dimension_numbers = #tpu.dot_dimension_numbers<[1], [0], [0], [1], [0, 0, 1, 1], [], []>} : vector<112x28xf32>, vector<28x224xf32>, vector<112x224xf32> -> vector<112x224xf32>
    %95 = arith.addf %89, %94 : vector<112x224xf32>
    %c2_113 = arith.constant 2 : index
    %c0_114 = arith.constant 0 : index
    %c0_115 = arith.constant 0 : index
    %96 = vector.load %arg10[%c2_113, %c0_114, %c0_115] : memref<16x8x28xf32, #tpu.memory_space<vmem>>, vector<14x8x28xf32>
    %97 = vector.shape_cast %96 : vector<14x8x28xf32> to vector<112x28xf32>
    %c6_116 = arith.constant 6 : index
    %c0_117 = arith.constant 0 : index
    %c0_118 = arith.constant 0 : index
    %98 = vector.load %arg2[%c6_116, %c0_117, %c0_118] : memref<10x28x224xf32, #tpu.memory_space<vmem>>, vector<1x28x224xf32>
    %99 = vector.shape_cast %98 : vector<1x28x224xf32> to vector<28x224xf32>
    %cst_119 = arith.constant dense<0.000000e+00> : vector<112x224xf32>
    %100 = tpu.matmul %97, %99, %cst_119 {dimension_numbers = #tpu.dot_dimension_numbers<[1], [0], [0], [1], [0, 0, 1, 1], [], []>} : vector<112x28xf32>, vector<28x224xf32>, vector<112x224xf32> -> vector<112x224xf32>
    %101 = arith.addf %95, %100 : vector<112x224xf32>
    %c2_120 = arith.constant 2 : index
    %c0_121 = arith.constant 0 : index
    %c0_122 = arith.constant 0 : index
    %102 = vector.load %arg11[%c2_120, %c0_121, %c0_122] : memref<16x8x28xf32, #tpu.memory_space<vmem>>, vector<14x8x28xf32>
    %103 = vector.shape_cast %102 : vector<14x8x28xf32> to vector<112x28xf32>
    %c8_123 = arith.constant 8 : index
    %c0_124 = arith.constant 0 : index
    %c0_125 = arith.constant 0 : index
    %104 = vector.load %arg2[%c8_123, %c0_124, %c0_125] : memref<10x28x224xf32, #tpu.memory_space<vmem>>, vector<1x28x224xf32>
    %105 = vector.shape_cast %104 : vector<1x28x224xf32> to vector<28x224xf32>
    %cst_126 = arith.constant dense<0.000000e+00> : vector<112x224xf32>
    %106 = tpu.matmul %103, %105, %cst_126 {dimension_numbers = #tpu.dot_dimension_numbers<[1], [0], [0], [1], [0, 0, 1, 1], [], []>} : vector<112x28xf32>, vector<28x224xf32>, vector<112x224xf32> -> vector<112x224xf32>
    %107 = arith.addf %101, %106 : vector<112x224xf32>
    %108 = arith.maximumf %76, %107 : vector<112x224xf32>
    %cst_127 = arith.constant 0.000000e+00 : f32
    %109 = vector.broadcast %cst_127 : f32 to vector<112x224xf32>
    %c0_128 = arith.constant 0 : index
    %c0_129 = arith.constant 0 : index
    %c0_130 = arith.constant 0 : index
    %110 = vector.load %arg11[%c0_128, %c0_129, %c0_130] : memref<16x8x28xf32, #tpu.memory_space<vmem>>, vector<14x8x28xf32>
    %111 = vector.shape_cast %110 : vector<14x8x28xf32> to vector<112x28xf32>
    %c1_131 = arith.constant 1 : index
    %c0_132 = arith.constant 0 : index
    %c0_133 = arith.constant 0 : index
    %112 = vector.load %arg2[%c1_131, %c0_132, %c0_133] : memref<10x28x224xf32, #tpu.memory_space<vmem>>, vector<1x28x224xf32>
    %113 = vector.shape_cast %112 : vector<1x28x224xf32> to vector<28x224xf32>
    %cst_134 = arith.constant dense<0.000000e+00> : vector<112x224xf32>
    %114 = tpu.matmul %111, %113, %cst_134 {dimension_numbers = #tpu.dot_dimension_numbers<[1], [0], [0], [1], [0, 0, 1, 1], [], []>} : vector<112x28xf32>, vector<28x224xf32>, vector<112x224xf32> -> vector<112x224xf32>
    %115 = arith.addf %109, %114 : vector<112x224xf32>
    %c1_135 = arith.constant 1 : index
    %c0_136 = arith.constant 0 : index
    %c0_137 = arith.constant 0 : index
    %116 = vector.load %arg10[%c1_135, %c0_136, %c0_137] : memref<16x8x28xf32, #tpu.memory_space<vmem>>, vector<14x8x28xf32>
    %117 = vector.shape_cast %116 : vector<14x8x28xf32> to vector<112x28xf32>
    %c3_138 = arith.constant 3 : index
    %c0_139 = arith.constant 0 : index
    %c0_140 = arith.constant 0 : index
    %118 = vector.load %arg2[%c3_138, %c0_139, %c0_140] : memref<10x28x224xf32, #tpu.memory_space<vmem>>, vector<1x28x224xf32>
    %119 = vector.shape_cast %118 : vector<1x28x224xf32> to vector<28x224xf32>
    %cst_141 = arith.constant dense<0.000000e+00> : vector<112x224xf32>
    %120 = tpu.matmul %117, %119, %cst_141 {dimension_numbers = #tpu.dot_dimension_numbers<[1], [0], [0], [1], [0, 0, 1, 1], [], []>} : vector<112x28xf32>, vector<28x224xf32>, vector<112x224xf32> -> vector<112x224xf32>
    %121 = arith.addf %115, %120 : vector<112x224xf32>
    %c1_142 = arith.constant 1 : index
    %c0_143 = arith.constant 0 : index
    %c0_144 = arith.constant 0 : index
    %122 = vector.load %arg11[%c1_142, %c0_143, %c0_144] : memref<16x8x28xf32, #tpu.memory_space<vmem>>, vector<14x8x28xf32>
    %123 = vector.shape_cast %122 : vector<14x8x28xf32> to vector<112x28xf32>
    %c5_145 = arith.constant 5 : index
    %c0_146 = arith.constant 0 : index
    %c0_147 = arith.constant 0 : index
    %124 = vector.load %arg2[%c5_145, %c0_146, %c0_147] : memref<10x28x224xf32, #tpu.memory_space<vmem>>, vector<1x28x224xf32>
    %125 = vector.shape_cast %124 : vector<1x28x224xf32> to vector<28x224xf32>
    %cst_148 = arith.constant dense<0.000000e+00> : vector<112x224xf32>
    %126 = tpu.matmul %123, %125, %cst_148 {dimension_numbers = #tpu.dot_dimension_numbers<[1], [0], [0], [1], [0, 0, 1, 1], [], []>} : vector<112x28xf32>, vector<28x224xf32>, vector<112x224xf32> -> vector<112x224xf32>
    %127 = arith.addf %121, %126 : vector<112x224xf32>
    %c2_149 = arith.constant 2 : index
    %c0_150 = arith.constant 0 : index
    %c0_151 = arith.constant 0 : index
    %128 = vector.load %arg10[%c2_149, %c0_150, %c0_151] : memref<16x8x28xf32, #tpu.memory_space<vmem>>, vector<14x8x28xf32>
    %129 = vector.shape_cast %128 : vector<14x8x28xf32> to vector<112x28xf32>
    %c7_152 = arith.constant 7 : index
    %c0_153 = arith.constant 0 : index
    %c0_154 = arith.constant 0 : index
    %130 = vector.load %arg2[%c7_152, %c0_153, %c0_154] : memref<10x28x224xf32, #tpu.memory_space<vmem>>, vector<1x28x224xf32>
    %131 = vector.shape_cast %130 : vector<1x28x224xf32> to vector<28x224xf32>
    %cst_155 = arith.constant dense<0.000000e+00> : vector<112x224xf32>
    %132 = tpu.matmul %129, %131, %cst_155 {dimension_numbers = #tpu.dot_dimension_numbers<[1], [0], [0], [1], [0, 0, 1, 1], [], []>} : vector<112x28xf32>, vector<28x224xf32>, vector<112x224xf32> -> vector<112x224xf32>
    %133 = arith.addf %127, %132 : vector<112x224xf32>
    %c2_156 = arith.constant 2 : index
    %c0_157 = arith.constant 0 : index
    %c0_158 = arith.constant 0 : index
    %134 = vector.load %arg11[%c2_156, %c0_157, %c0_158] : memref<16x8x28xf32, #tpu.memory_space<vmem>>, vector<14x8x28xf32>
    %135 = vector.shape_cast %134 : vector<14x8x28xf32> to vector<112x28xf32>
    %c9_159 = arith.constant 9 : index
    %c0_160 = arith.constant 0 : index
    %c0_161 = arith.constant 0 : index
    %136 = vector.load %arg2[%c9_159, %c0_160, %c0_161] : memref<10x28x224xf32, #tpu.memory_space<vmem>>, vector<1x28x224xf32>
    %137 = vector.shape_cast %136 : vector<1x28x224xf32> to vector<28x224xf32>
    %cst_162 = arith.constant dense<0.000000e+00> : vector<112x224xf32>
    %138 = tpu.matmul %135, %137, %cst_162 {dimension_numbers = #tpu.dot_dimension_numbers<[1], [0], [0], [1], [0, 0, 1, 1], [], []>} : vector<112x28xf32>, vector<28x224xf32>, vector<112x224xf32> -> vector<112x224xf32>
    %139 = arith.addf %133, %138 : vector<112x224xf32>
    %140 = arith.maximumf %108, %139 : vector<112x224xf32>
    %c0_163 = arith.constant 0 : index
    %c0_164 = arith.constant 0 : index
    %141 = vector.load %arg3[%c0_163, %c0_164] : memref<1x224xf32, #tpu.memory_space<vmem>>, vector<1x224xf32>
    %142 = vector.broadcast %141 : vector<1x224xf32> to vector<112x224xf32>
    %143 = arith.addf %140, %142 : vector<112x224xf32>
    %cst_165 = arith.constant 0.000000e+00 : f32
    %144 = vector.broadcast %cst_165 : f32 to vector<112x224xf32>
    %145 = arith.maximumf %143, %144 : vector<112x224xf32>
    %146 = vector.shape_cast %145 : vector<112x224xf32> to vector<14x8x224xf32>
    %147 = vector.extract_strided_slice %146 {offsets = [0, 0, 0], sizes = [1, 8, 224], strides = [1, 1, 1]} : vector<14x8x224xf32> to vector<1x8x224xf32>
    %148 = vector.shape_cast %147 : vector<1x8x224xf32> to vector<8x224xf32>
    %c1_166 = arith.constant 1 : index
    %c0_167 = arith.constant 0 : index
    %c0_168 = arith.constant 0 : index
    %149 = vector.load %arg12[%c1_166, %c0_167, %c0_168] : memref<9x8x224xf32, #tpu.memory_space<vmem>>, vector<1x8x224xf32>
    %150 = vector.shape_cast %149 : vector<1x8x224xf32> to vector<8x224xf32>
    %151 = vector.shape_cast %148 : vector<8x224xf32> to vector<1x8x224xf32>
    tpu.vector_store %arg12[%c1_166, %c0_167, %c0_168], %151 {strides = array<i32>} : memref<9x8x224xf32, #tpu.memory_space<vmem>>, vector<1x8x224xf32>,
    %152 = vector.extract_strided_slice %146 {offsets = [1, 0, 0], sizes = [1, 8, 224], strides = [1, 1, 1]} : vector<14x8x224xf32> to vector<1x8x224xf32>
    %153 = vector.shape_cast %152 : vector<1x8x224xf32> to vector<8x224xf32>
    %c1_169 = arith.constant 1 : index
    %c0_170 = arith.constant 0 : index
    %c0_171 = arith.constant 0 : index
    %154 = vector.load %arg13[%c1_169, %c0_170, %c0_171] : memref<9x8x224xf32, #tpu.memory_space<vmem>>, vector<1x8x224xf32>
    %155 = vector.shape_cast %154 : vector<1x8x224xf32> to vector<8x224xf32>
    %156 = vector.shape_cast %153 : vector<8x224xf32> to vector<1x8x224xf32>
    tpu.vector_store %arg13[%c1_169, %c0_170, %c0_171], %156 {strides = array<i32>} : memref<9x8x224xf32, #tpu.memory_space<vmem>>, vector<1x8x224xf32>,
    %157 = vector.extract_strided_slice %146 {offsets = [2, 0, 0], sizes = [1, 8, 224], strides = [1, 1, 1]} : vector<14x8x224xf32> to vector<1x8x224xf32>
    %158 = vector.shape_cast %157 : vector<1x8x224xf32> to vector<8x224xf32>
    %c2_172 = arith.constant 2 : index
    %c0_173 = arith.constant 0 : index
    %c0_174 = arith.constant 0 : index
    %159 = vector.load %arg12[%c2_172, %c0_173, %c0_174] : memref<9x8x224xf32, #tpu.memory_space<vmem>>, vector<1x8x224xf32>
    %160 = vector.shape_cast %159 : vector<1x8x224xf32> to vector<8x224xf32>
    %161 = vector.shape_cast %158 : vector<8x224xf32> to vector<1x8x224xf32>
    tpu.vector_store %arg12[%c2_172, %c0_173, %c0_174], %161 {strides = array<i32>} : memref<9x8x224xf32, #tpu.memory_space<vmem>>, vector<1x8x224xf32>,
    %162 = vector.extract_strided_slice %146 {offsets = [3, 0, 0], sizes = [1, 8, 224], strides = [1, 1, 1]} : vector<14x8x224xf32> to vector<1x8x224xf32>
    %163 = vector.shape_cast %162 : vector<1x8x224xf32> to vector<8x224xf32>
    %c2_175 = arith.constant 2 : index
    %c0_176 = arith.constant 0 : index
    %c0_177 = arith.constant 0 : index
    %164 = vector.load %arg13[%c2_175, %c0_176, %c0_177] : memref<9x8x224xf32, #tpu.memory_space<vmem>>, vector<1x8x224xf32>
    %165 = vector.shape_cast %164 : vector<1x8x224xf32> to vector<8x224xf32>
    %166 = vector.shape_cast %163 : vector<8x224xf32> to vector<1x8x224xf32>
    tpu.vector_store %arg13[%c2_175, %c0_176, %c0_177], %166 {strides = array<i32>} : memref<9x8x224xf32, #tpu.memory_space<vmem>>, vector<1x8x224xf32>,
    %167 = vector.extract_strided_slice %146 {offsets = [4, 0, 0], sizes = [1, 8, 224], strides = [1, 1, 1]} : vector<14x8x224xf32> to vector<1x8x224xf32>
    %168 = vector.shape_cast %167 : vector<1x8x224xf32> to vector<8x224xf32>
    %c3_178 = arith.constant 3 : index
    %c0_179 = arith.constant 0 : index
    %c0_180 = arith.constant 0 : index
    %169 = vector.load %arg12[%c3_178, %c0_179, %c0_180] : memref<9x8x224xf32, #tpu.memory_space<vmem>>, vector<1x8x224xf32>
    %170 = vector.shape_cast %169 : vector<1x8x224xf32> to vector<8x224xf32>
    %171 = vector.shape_cast %168 : vector<8x224xf32> to vector<1x8x224xf32>
    tpu.vector_store %arg12[%c3_178, %c0_179, %c0_180], %171 {strides = array<i32>} : memref<9x8x224xf32, #tpu.memory_space<vmem>>, vector<1x8x224xf32>,
    %172 = vector.extract_strided_slice %146 {offsets = [5, 0, 0], sizes = [1, 8, 224], strides = [1, 1, 1]} : vector<14x8x224xf32> to vector<1x8x224xf32>
    %173 = vector.shape_cast %172 : vector<1x8x224xf32> to vector<8x224xf32>
    %c3_181 = arith.constant 3 : index
    %c0_182 = arith.constant 0 : index
    %c0_183 = arith.constant 0 : index
    %174 = vector.load %arg13[%c3_181, %c0_182, %c0_183] : memref<9x8x224xf32, #tpu.memory_space<vmem>>, vector<1x8x224xf32>
    %175 = vector.shape_cast %174 : vector<1x8x224xf32> to vector<8x224xf32>
    %176 = vector.shape_cast %173 : vector<8x224xf32> to vector<1x8x224xf32>
    tpu.vector_store %arg13[%c3_181, %c0_182, %c0_183], %176 {strides = array<i32>} : memref<9x8x224xf32, #tpu.memory_space<vmem>>, vector<1x8x224xf32>,
    %177 = vector.extract_strided_slice %146 {offsets = [6, 0, 0], sizes = [1, 8, 224], strides = [1, 1, 1]} : vector<14x8x224xf32> to vector<1x8x224xf32>
    %178 = vector.shape_cast %177 : vector<1x8x224xf32> to vector<8x224xf32>
    %c4_184 = arith.constant 4 : index
    %c0_185 = arith.constant 0 : index
    %c0_186 = arith.constant 0 : index
    %179 = vector.load %arg12[%c4_184, %c0_185, %c0_186] : memref<9x8x224xf32, #tpu.memory_space<vmem>>, vector<1x8x224xf32>
    %180 = vector.shape_cast %179 : vector<1x8x224xf32> to vector<8x224xf32>
    %181 = vector.shape_cast %178 : vector<8x224xf32> to vector<1x8x224xf32>
    tpu.vector_store %arg12[%c4_184, %c0_185, %c0_186], %181 {strides = array<i32>} : memref<9x8x224xf32, #tpu.memory_space<vmem>>, vector<1x8x224xf32>,
    %182 = vector.extract_strided_slice %146 {offsets = [7, 0, 0], sizes = [1, 8, 224], strides = [1, 1, 1]} : vector<14x8x224xf32> to vector<1x8x224xf32>
    %183 = vector.shape_cast %182 : vector<1x8x224xf32> to vector<8x224xf32>
    %c4_187 = arith.constant 4 : index
    %c0_188 = arith.constant 0 : index
    %c0_189 = arith.constant 0 : index
    %184 = vector.load %arg13[%c4_187, %c0_188, %c0_189] : memref<9x8x224xf32, #tpu.memory_space<vmem>>, vector<1x8x224xf32>
    %185 = vector.shape_cast %184 : vector<1x8x224xf32> to vector<8x224xf32>
    %186 = vector.shape_cast %183 : vector<8x224xf32> to vector<1x8x224xf32>
    tpu.vector_store %arg13[%c4_187, %c0_188, %c0_189], %186 {strides = array<i32>} : memref<9x8x224xf32, #tpu.memory_space<vmem>>, vector<1x8x224xf32>,
    %187 = vector.extract_strided_slice %146 {offsets = [8, 0, 0], sizes = [1, 8, 224], strides = [1, 1, 1]} : vector<14x8x224xf32> to vector<1x8x224xf32>
    %188 = vector.shape_cast %187 : vector<1x8x224xf32> to vector<8x224xf32>
    %c5_190 = arith.constant 5 : index
    %c0_191 = arith.constant 0 : index
    %c0_192 = arith.constant 0 : index
    %189 = vector.load %arg12[%c5_190, %c0_191, %c0_192] : memref<9x8x224xf32, #tpu.memory_space<vmem>>, vector<1x8x224xf32>
    %190 = vector.shape_cast %189 : vector<1x8x224xf32> to vector<8x224xf32>
    %191 = vector.shape_cast %188 : vector<8x224xf32> to vector<1x8x224xf32>
    tpu.vector_store %arg12[%c5_190, %c0_191, %c0_192], %191 {strides = array<i32>} : memref<9x8x224xf32, #tpu.memory_space<vmem>>, vector<1x8x224xf32>,
    %192 = vector.extract_strided_slice %146 {offsets = [9, 0, 0], sizes = [1, 8, 224], strides = [1, 1, 1]} : vector<14x8x224xf32> to vector<1x8x224xf32>
    %193 = vector.shape_cast %192 : vector<1x8x224xf32> to vector<8x224xf32>
    %c5_193 = arith.constant 5 : index
    %c0_194 = arith.constant 0 : index
    %c0_195 = arith.constant 0 : index
    %194 = vector.load %arg13[%c5_193, %c0_194, %c0_195] : memref<9x8x224xf32, #tpu.memory_space<vmem>>, vector<1x8x224xf32>
    %195 = vector.shape_cast %194 : vector<1x8x224xf32> to vector<8x224xf32>
    %196 = vector.shape_cast %193 : vector<8x224xf32> to vector<1x8x224xf32>
    tpu.vector_store %arg13[%c5_193, %c0_194, %c0_195], %196 {strides = array<i32>} : memref<9x8x224xf32, #tpu.memory_space<vmem>>, vector<1x8x224xf32>,
    %197 = vector.extract_strided_slice %146 {offsets = [10, 0, 0], sizes = [1, 8, 224], strides = [1, 1, 1]} : vector<14x8x224xf32> to vector<1x8x224xf32>
    %198 = vector.shape_cast %197 : vector<1x8x224xf32> to vector<8x224xf32>
    %c6_196 = arith.constant 6 : index
    %c0_197 = arith.constant 0 : index
    %c0_198 = arith.constant 0 : index
    %199 = vector.load %arg12[%c6_196, %c0_197, %c0_198] : memref<9x8x224xf32, #tpu.memory_space<vmem>>, vector<1x8x224xf32>
    %200 = vector.shape_cast %199 : vector<1x8x224xf32> to vector<8x224xf32>
    %201 = vector.shape_cast %198 : vector<8x224xf32> to vector<1x8x224xf32>
    tpu.vector_store %arg12[%c6_196, %c0_197, %c0_198], %201 {strides = array<i32>} : memref<9x8x224xf32, #tpu.memory_space<vmem>>, vector<1x8x224xf32>,
    %202 = vector.extract_strided_slice %146 {offsets = [11, 0, 0], sizes = [1, 8, 224], strides = [1, 1, 1]} : vector<14x8x224xf32> to vector<1x8x224xf32>
    %203 = vector.shape_cast %202 : vector<1x8x224xf32> to vector<8x224xf32>
    %c6_199 = arith.constant 6 : index
    %c0_200 = arith.constant 0 : index
    %c0_201 = arith.constant 0 : index
    %204 = vector.load %arg13[%c6_199, %c0_200, %c0_201] : memref<9x8x224xf32, #tpu.memory_space<vmem>>, vector<1x8x224xf32>
    %205 = vector.shape_cast %204 : vector<1x8x224xf32> to vector<8x224xf32>
    %206 = vector.shape_cast %203 : vector<8x224xf32> to vector<1x8x224xf32>
    tpu.vector_store %arg13[%c6_199, %c0_200, %c0_201], %206 {strides = array<i32>} : memref<9x8x224xf32, #tpu.memory_space<vmem>>, vector<1x8x224xf32>,
    %207 = vector.extract_strided_slice %146 {offsets = [12, 0, 0], sizes = [1, 8, 224], strides = [1, 1, 1]} : vector<14x8x224xf32> to vector<1x8x224xf32>
    %208 = vector.shape_cast %207 : vector<1x8x224xf32> to vector<8x224xf32>
    %c7_202 = arith.constant 7 : index
    %c0_203 = arith.constant 0 : index
    %c0_204 = arith.constant 0 : index
    %209 = vector.load %arg12[%c7_202, %c0_203, %c0_204] : memref<9x8x224xf32, #tpu.memory_space<vmem>>, vector<1x8x224xf32>
    %210 = vector.shape_cast %209 : vector<1x8x224xf32> to vector<8x224xf32>
    %211 = vector.shape_cast %208 : vector<8x224xf32> to vector<1x8x224xf32>
    tpu.vector_store %arg12[%c7_202, %c0_203, %c0_204], %211 {strides = array<i32>} : memref<9x8x224xf32, #tpu.memory_space<vmem>>, vector<1x8x224xf32>,
    %212 = vector.extract_strided_slice %146 {offsets = [13, 0, 0], sizes = [1, 8, 224], strides = [1, 1, 1]} : vector<14x8x224xf32> to vector<1x8x224xf32>
    %213 = vector.shape_cast %212 : vector<1x8x224xf32> to vector<8x224xf32>
    %c7_205 = arith.constant 7 : index
    %c0_206 = arith.constant 0 : index
    %c0_207 = arith.constant 0 : index
    %214 = vector.load %arg13[%c7_205, %c0_206, %c0_207] : memref<9x8x224xf32, #tpu.memory_space<vmem>>, vector<1x8x224xf32>
    %215 = vector.shape_cast %214 : vector<1x8x224xf32> to vector<8x224xf32>
    %216 = vector.shape_cast %213 : vector<8x224xf32> to vector<1x8x224xf32>
    tpu.vector_store %arg13[%c7_205, %c0_206, %c0_207], %216 {strides = array<i32>} : memref<9x8x224xf32, #tpu.memory_space<vmem>>, vector<1x8x224xf32>,
    %cst_208 = arith.constant 0.000000e+00 : f32
    %217 = vector.broadcast %cst_208 : f32 to vector<56x224xf32>
    %c0_209 = arith.constant 0 : index
    %c0_210 = arith.constant 0 : index
    %c0_211 = arith.constant 0 : index
    %218 = vector.load %arg12[%c0_209, %c0_210, %c0_211] : memref<9x8x224xf32, #tpu.memory_space<vmem>>, vector<7x8x224xf32>
    %219 = vector.shape_cast %218 : vector<7x8x224xf32> to vector<56x224xf32>
    %c0_212 = arith.constant 0 : index
    %c0_213 = arith.constant 0 : index
    %c0_214 = arith.constant 0 : index
    %220 = vector.load %arg4[%c0_212, %c0_213, %c0_214] : memref<10x224x224xf32, #tpu.memory_space<vmem>>, vector<1x224x224xf32>
    %221 = vector.shape_cast %220 : vector<1x224x224xf32> to vector<224x224xf32>
    %cst_215 = arith.constant dense<0.000000e+00> : vector<56x224xf32>
    %222 = tpu.matmul %219, %221, %cst_215 {dimension_numbers = #tpu.dot_dimension_numbers<[1], [0], [0], [1], [0, 0, 1, 1], [], []>} : vector<56x224xf32>, vector<224x224xf32>, vector<56x224xf32> -> vector<56x224xf32>
    %223 = arith.addf %217, %222 : vector<56x224xf32>
    %c0_216 = arith.constant 0 : index
    %c0_217 = arith.constant 0 : index
    %c0_218 = arith.constant 0 : index
    %224 = vector.load %arg13[%c0_216, %c0_217, %c0_218] : memref<9x8x224xf32, #tpu.memory_space<vmem>>, vector<7x8x224xf32>
    %225 = vector.shape_cast %224 : vector<7x8x224xf32> to vector<56x224xf32>
    %c2_219 = arith.constant 2 : index
    %c0_220 = arith.constant 0 : index
    %c0_221 = arith.constant 0 : index
    %226 = vector.load %arg4[%c2_219, %c0_220, %c0_221] : memref<10x224x224xf32, #tpu.memory_space<vmem>>, vector<1x224x224xf32>
    %227 = vector.shape_cast %226 : vector<1x224x224xf32> to vector<224x224xf32>
    %cst_222 = arith.constant dense<0.000000e+00> : vector<56x224xf32>
    %228 = tpu.matmul %225, %227, %cst_222 {dimension_numbers = #tpu.dot_dimension_numbers<[1], [0], [0], [1], [0, 0, 1, 1], [], []>} : vector<56x224xf32>, vector<224x224xf32>, vector<56x224xf32> -> vector<56x224xf32>
    %229 = arith.addf %223, %228 : vector<56x224xf32>
    %c1_223 = arith.constant 1 : index
    %c0_224 = arith.constant 0 : index
    %c0_225 = arith.constant 0 : index
    %230 = vector.load %arg12[%c1_223, %c0_224, %c0_225] : memref<9x8x224xf32, #tpu.memory_space<vmem>>, vector<7x8x224xf32>
    %231 = vector.shape_cast %230 : vector<7x8x224xf32> to vector<56x224xf32>
    %c4_226 = arith.constant 4 : index
    %c0_227 = arith.constant 0 : index
    %c0_228 = arith.constant 0 : index
    %232 = vector.load %arg4[%c4_226, %c0_227, %c0_228] : memref<10x224x224xf32, #tpu.memory_space<vmem>>, vector<1x224x224xf32>
    %233 = vector.shape_cast %232 : vector<1x224x224xf32> to vector<224x224xf32>
    %cst_229 = arith.constant dense<0.000000e+00> : vector<56x224xf32>
    %234 = tpu.matmul %231, %233, %cst_229 {dimension_numbers = #tpu.dot_dimension_numbers<[1], [0], [0], [1], [0, 0, 1, 1], [], []>} : vector<56x224xf32>, vector<224x224xf32>, vector<56x224xf32> -> vector<56x224xf32>
    %235 = arith.addf %229, %234 : vector<56x224xf32>
    %c1_230 = arith.constant 1 : index
    %c0_231 = arith.constant 0 : index
    %c0_232 = arith.constant 0 : index
    %236 = vector.load %arg13[%c1_230, %c0_231, %c0_232] : memref<9x8x224xf32, #tpu.memory_space<vmem>>, vector<7x8x224xf32>
    %237 = vector.shape_cast %236 : vector<7x8x224xf32> to vector<56x224xf32>
    %c6_233 = arith.constant 6 : index
    %c0_234 = arith.constant 0 : index
    %c0_235 = arith.constant 0 : index
    %238 = vector.load %arg4[%c6_233, %c0_234, %c0_235] : memref<10x224x224xf32, #tpu.memory_space<vmem>>, vector<1x224x224xf32>
    %239 = vector.shape_cast %238 : vector<1x224x224xf32> to vector<224x224xf32>
    %cst_236 = arith.constant dense<0.000000e+00> : vector<56x224xf32>
    %240 = tpu.matmul %237, %239, %cst_236 {dimension_numbers = #tpu.dot_dimension_numbers<[1], [0], [0], [1], [0, 0, 1, 1], [], []>} : vector<56x224xf32>, vector<224x224xf32>, vector<56x224xf32> -> vector<56x224xf32>
    %241 = arith.addf %235, %240 : vector<56x224xf32>
    %c2_237 = arith.constant 2 : index
    %c0_238 = arith.constant 0 : index
    %c0_239 = arith.constant 0 : index
    %242 = vector.load %arg12[%c2_237, %c0_238, %c0_239] : memref<9x8x224xf32, #tpu.memory_space<vmem>>, vector<7x8x224xf32>
    %243 = vector.shape_cast %242 : vector<7x8x224xf32> to vector<56x224xf32>
    %c8_240 = arith.constant 8 : index
    %c0_241 = arith.constant 0 : index
    %c0_242 = arith.constant 0 : index
    %244 = vector.load %arg4[%c8_240, %c0_241, %c0_242] : memref<10x224x224xf32, #tpu.memory_space<vmem>>, vector<1x224x224xf32>
    %245 = vector.shape_cast %244 : vector<1x224x224xf32> to vector<224x224xf32>
    %cst_243 = arith.constant dense<0.000000e+00> : vector<56x224xf32>
    %246 = tpu.matmul %243, %245, %cst_243 {dimension_numbers = #tpu.dot_dimension_numbers<[1], [0], [0], [1], [0, 0, 1, 1], [], []>} : vector<56x224xf32>, vector<224x224xf32>, vector<56x224xf32> -> vector<56x224xf32>
    %247 = arith.addf %241, %246 : vector<56x224xf32>
    %cst_244 = arith.constant 0.000000e+00 : f32
    %248 = vector.broadcast %cst_244 : f32 to vector<56x224xf32>
    %c0_245 = arith.constant 0 : index
    %c0_246 = arith.constant 0 : index
    %c0_247 = arith.constant 0 : index
    %249 = vector.load %arg12[%c0_245, %c0_246, %c0_247] : memref<9x8x224xf32, #tpu.memory_space<vmem>>, vector<7x8x224xf32>
    %250 = vector.shape_cast %249 : vector<7x8x224xf32> to vector<56x224xf32>
    %c1_248 = arith.constant 1 : index
    %c0_249 = arith.constant 0 : index
    %c0_250 = arith.constant 0 : index
    %251 = vector.load %arg4[%c1_248, %c0_249, %c0_250] : memref<10x224x224xf32, #tpu.memory_space<vmem>>, vector<1x224x224xf32>
    %252 = vector.shape_cast %251 : vector<1x224x224xf32> to vector<224x224xf32>
    %cst_251 = arith.constant dense<0.000000e+00> : vector<56x224xf32>
    %253 = tpu.matmul %250, %252, %cst_251 {dimension_numbers = #tpu.dot_dimension_numbers<[1], [0], [0], [1], [0, 0, 1, 1], [], []>} : vector<56x224xf32>, vector<224x224xf32>, vector<56x224xf32> -> vector<56x224xf32>
    %254 = arith.addf %248, %253 : vector<56x224xf32>
    %c0_252 = arith.constant 0 : index
    %c0_253 = arith.constant 0 : index
    %c0_254 = arith.constant 0 : index
    %255 = vector.load %arg13[%c0_252, %c0_253, %c0_254] : memref<9x8x224xf32, #tpu.memory_space<vmem>>, vector<7x8x224xf32>
    %256 = vector.shape_cast %255 : vector<7x8x224xf32> to vector<56x224xf32>
    %c3_255 = arith.constant 3 : index
    %c0_256 = arith.constant 0 : index
    %c0_257 = arith.constant 0 : index
    %257 = vector.load %arg4[%c3_255, %c0_256, %c0_257] : memref<10x224x224xf32, #tpu.memory_space<vmem>>, vector<1x224x224xf32>
    %258 = vector.shape_cast %257 : vector<1x224x224xf32> to vector<224x224xf32>
    %cst_258 = arith.constant dense<0.000000e+00> : vector<56x224xf32>
    %259 = tpu.matmul %256, %258, %cst_258 {dimension_numbers = #tpu.dot_dimension_numbers<[1], [0], [0], [1], [0, 0, 1, 1], [], []>} : vector<56x224xf32>, vector<224x224xf32>, vector<56x224xf32> -> vector<56x224xf32>
    %260 = arith.addf %254, %259 : vector<56x224xf32>
    %c1_259 = arith.constant 1 : index
    %c0_260 = arith.constant 0 : index
    %c0_261 = arith.constant 0 : index
    %261 = vector.load %arg12[%c1_259, %c0_260, %c0_261] : memref<9x8x224xf32, #tpu.memory_space<vmem>>, vector<7x8x224xf32>
    %262 = vector.shape_cast %261 : vector<7x8x224xf32> to vector<56x224xf32>
    %c5_262 = arith.constant 5 : index
    %c0_263 = arith.constant 0 : index
    %c0_264 = arith.constant 0 : index
    %263 = vector.load %arg4[%c5_262, %c0_263, %c0_264] : memref<10x224x224xf32, #tpu.memory_space<vmem>>, vector<1x224x224xf32>
    %264 = vector.shape_cast %263 : vector<1x224x224xf32> to vector<224x224xf32>
    %cst_265 = arith.constant dense<0.000000e+00> : vector<56x224xf32>
    %265 = tpu.matmul %262, %264, %cst_265 {dimension_numbers = #tpu.dot_dimension_numbers<[1], [0], [0], [1], [0, 0, 1, 1], [], []>} : vector<56x224xf32>, vector<224x224xf32>, vector<56x224xf32> -> vector<56x224xf32>
    %266 = arith.addf %260, %265 : vector<56x224xf32>
    %c1_266 = arith.constant 1 : index
    %c0_267 = arith.constant 0 : index
    %c0_268 = arith.constant 0 : index
    %267 = vector.load %arg13[%c1_266, %c0_267, %c0_268] : memref<9x8x224xf32, #tpu.memory_space<vmem>>, vector<7x8x224xf32>
    %268 = vector.shape_cast %267 : vector<7x8x224xf32> to vector<56x224xf32>
    %c7_269 = arith.constant 7 : index
    %c0_270 = arith.constant 0 : index
    %c0_271 = arith.constant 0 : index
    %269 = vector.load %arg4[%c7_269, %c0_270, %c0_271] : memref<10x224x224xf32, #tpu.memory_space<vmem>>, vector<1x224x224xf32>
    %270 = vector.shape_cast %269 : vector<1x224x224xf32> to vector<224x224xf32>
    %cst_272 = arith.constant dense<0.000000e+00> : vector<56x224xf32>
    %271 = tpu.matmul %268, %270, %cst_272 {dimension_numbers = #tpu.dot_dimension_numbers<[1], [0], [0], [1], [0, 0, 1, 1], [], []>} : vector<56x224xf32>, vector<224x224xf32>, vector<56x224xf32> -> vector<56x224xf32>
    %272 = arith.addf %266, %271 : vector<56x224xf32>
    %c2_273 = arith.constant 2 : index
    %c0_274 = arith.constant 0 : index
    %c0_275 = arith.constant 0 : index
    %273 = vector.load %arg12[%c2_273, %c0_274, %c0_275] : memref<9x8x224xf32, #tpu.memory_space<vmem>>, vector<7x8x224xf32>
    %274 = vector.shape_cast %273 : vector<7x8x224xf32> to vector<56x224xf32>
    %c9_276 = arith.constant 9 : index
    %c0_277 = arith.constant 0 : index
    %c0_278 = arith.constant 0 : index
    %275 = vector.load %arg4[%c9_276, %c0_277, %c0_278] : memref<10x224x224xf32, #tpu.memory_space<vmem>>, vector<1x224x224xf32>
    %276 = vector.shape_cast %275 : vector<1x224x224xf32> to vector<224x224xf32>
    %cst_279 = arith.constant dense<0.000000e+00> : vector<56x224xf32>
    %277 = tpu.matmul %274, %276, %cst_279 {dimension_numbers = #tpu.dot_dimension_numbers<[1], [0], [0], [1], [0, 0, 1, 1], [], []>} : vector<56x224xf32>, vector<224x224xf32>, vector<56x224xf32> -> vector<56x224xf32>
    %278 = arith.addf %272, %277 : vector<56x224xf32>
    %279 = arith.maximumf %247, %278 : vector<56x224xf32>
    %cst_280 = arith.constant 0.000000e+00 : f32
    %280 = vector.broadcast %cst_280 : f32 to vector<56x224xf32>
    %c0_281 = arith.constant 0 : index
    %c0_282 = arith.constant 0 : index
    %c0_283 = arith.constant 0 : index
    %281 = vector.load %arg13[%c0_281, %c0_282, %c0_283] : memref<9x8x224xf32, #tpu.memory_space<vmem>>, vector<7x8x224xf32>
    %282 = vector.shape_cast %281 : vector<7x8x224xf32> to vector<56x224xf32>
    %c0_284 = arith.constant 0 : index
    %c0_285 = arith.constant 0 : index
    %c0_286 = arith.constant 0 : index
    %283 = vector.load %arg4[%c0_284, %c0_285, %c0_286] : memref<10x224x224xf32, #tpu.memory_space<vmem>>, vector<1x224x224xf32>
    %284 = vector.shape_cast %283 : vector<1x224x224xf32> to vector<224x224xf32>
    %cst_287 = arith.constant dense<0.000000e+00> : vector<56x224xf32>
    %285 = tpu.matmul %282, %284, %cst_287 {dimension_numbers = #tpu.dot_dimension_numbers<[1], [0], [0], [1], [0, 0, 1, 1], [], []>} : vector<56x224xf32>, vector<224x224xf32>, vector<56x224xf32> -> vector<56x224xf32>
    %286 = arith.addf %280, %285 : vector<56x224xf32>
    %c1_288 = arith.constant 1 : index
    %c0_289 = arith.constant 0 : index
    %c0_290 = arith.constant 0 : index
    %287 = vector.load %arg12[%c1_288, %c0_289, %c0_290] : memref<9x8x224xf32, #tpu.memory_space<vmem>>, vector<7x8x224xf32>
    %288 = vector.shape_cast %287 : vector<7x8x224xf32> to vector<56x224xf32>
    %c2_291 = arith.constant 2 : index
    %c0_292 = arith.constant 0 : index
    %c0_293 = arith.constant 0 : index
    %289 = vector.load %arg4[%c2_291, %c0_292, %c0_293] : memref<10x224x224xf32, #tpu.memory_space<vmem>>, vector<1x224x224xf32>
    %290 = vector.shape_cast %289 : vector<1x224x224xf32> to vector<224x224xf32>
    %cst_294 = arith.constant dense<0.000000e+00> : vector<56x224xf32>
    %291 = tpu.matmul %288, %290, %cst_294 {dimension_numbers = #tpu.dot_dimension_numbers<[1], [0], [0], [1], [0, 0, 1, 1], [], []>} : vector<56x224xf32>, vector<224x224xf32>, vector<56x224xf32> -> vector<56x224xf32>
    %292 = arith.addf %286, %291 : vector<56x224xf32>
    %c1_295 = arith.constant 1 : index
    %c0_296 = arith.constant 0 : index
    %c0_297 = arith.constant 0 : index
    %293 = vector.load %arg13[%c1_295, %c0_296, %c0_297] : memref<9x8x224xf32, #tpu.memory_space<vmem>>, vector<7x8x224xf32>
    %294 = vector.shape_cast %293 : vector<7x8x224xf32> to vector<56x224xf32>
    %c4_298 = arith.constant 4 : index
    %c0_299 = arith.constant 0 : index
    %c0_300 = arith.constant 0 : index
    %295 = vector.load %arg4[%c4_298, %c0_299, %c0_300] : memref<10x224x224xf32, #tpu.memory_space<vmem>>, vector<1x224x224xf32>
    %296 = vector.shape_cast %295 : vector<1x224x224xf32> to vector<224x224xf32>
    %cst_301 = arith.constant dense<0.000000e+00> : vector<56x224xf32>
    %297 = tpu.matmul %294, %296, %cst_301 {dimension_numbers = #tpu.dot_dimension_numbers<[1], [0], [0], [1], [0, 0, 1, 1], [], []>} : vector<56x224xf32>, vector<224x224xf32>, vector<56x224xf32> -> vector<56x224xf32>
    %298 = arith.addf %292, %297 : vector<56x224xf32>
    %c2_302 = arith.constant 2 : index
    %c0_303 = arith.constant 0 : index
    %c0_304 = arith.constant 0 : index
    %299 = vector.load %arg12[%c2_302, %c0_303, %c0_304] : memref<9x8x224xf32, #tpu.memory_space<vmem>>, vector<7x8x224xf32>
    %300 = vector.shape_cast %299 : vector<7x8x224xf32> to vector<56x224xf32>
    %c6_305 = arith.constant 6 : index
    %c0_306 = arith.constant 0 : index
    %c0_307 = arith.constant 0 : index
    %301 = vector.load %arg4[%c6_305, %c0_306, %c0_307] : memref<10x224x224xf32, #tpu.memory_space<vmem>>, vector<1x224x224xf32>
    %302 = vector.shape_cast %301 : vector<1x224x224xf32> to vector<224x224xf32>
    %cst_308 = arith.constant dense<0.000000e+00> : vector<56x224xf32>
    %303 = tpu.matmul %300, %302, %cst_308 {dimension_numbers = #tpu.dot_dimension_numbers<[1], [0], [0], [1], [0, 0, 1, 1], [], []>} : vector<56x224xf32>, vector<224x224xf32>, vector<56x224xf32> -> vector<56x224xf32>
    %304 = arith.addf %298, %303 : vector<56x224xf32>
    %c2_309 = arith.constant 2 : index
    %c0_310 = arith.constant 0 : index
    %c0_311 = arith.constant 0 : index
    %305 = vector.load %arg13[%c2_309, %c0_310, %c0_311] : memref<9x8x224xf32, #tpu.memory_space<vmem>>, vector<7x8x224xf32>
    %306 = vector.shape_cast %305 : vector<7x8x224xf32> to vector<56x224xf32>
    %c8_312 = arith.constant 8 : index
    %c0_313 = arith.constant 0 : index
    %c0_314 = arith.constant 0 : index
    %307 = vector.load %arg4[%c8_312, %c0_313, %c0_314] : memref<10x224x224xf32, #tpu.memory_space<vmem>>, vector<1x224x224xf32>
    %308 = vector.shape_cast %307 : vector<1x224x224xf32> to vector<224x224xf32>
    %cst_315 = arith.constant dense<0.000000e+00> : vector<56x224xf32>
    %309 = tpu.matmul %306, %308, %cst_315 {dimension_numbers = #tpu.dot_dimension_numbers<[1], [0], [0], [1], [0, 0, 1, 1], [], []>} : vector<56x224xf32>, vector<224x224xf32>, vector<56x224xf32> -> vector<56x224xf32>
    %310 = arith.addf %304, %309 : vector<56x224xf32>
    %311 = arith.maximumf %279, %310 : vector<56x224xf32>
    %cst_316 = arith.constant 0.000000e+00 : f32
    %312 = vector.broadcast %cst_316 : f32 to vector<56x224xf32>
    %c0_317 = arith.constant 0 : index
    %c0_318 = arith.constant 0 : index
    %c0_319 = arith.constant 0 : index
    %313 = vector.load %arg13[%c0_317, %c0_318, %c0_319] : memref<9x8x224xf32, #tpu.memory_space<vmem>>, vector<7x8x224xf32>
    %314 = vector.shape_cast %313 : vector<7x8x224xf32> to vector<56x224xf32>
    %c1_320 = arith.constant 1 : index
    %c0_321 = arith.constant 0 : index
    %c0_322 = arith.constant 0 : index
    %315 = vector.load %arg4[%c1_320, %c0_321, %c0_322] : memref<10x224x224xf32, #tpu.memory_space<vmem>>, vector<1x224x224xf32>
    %316 = vector.shape_cast %315 : vector<1x224x224xf32> to vector<224x224xf32>
    %cst_323 = arith.constant dense<0.000000e+00> : vector<56x224xf32>
    %317 = tpu.matmul %314, %316, %cst_323 {dimension_numbers = #tpu.dot_dimension_numbers<[1], [0], [0], [1], [0, 0, 1, 1], [], []>} : vector<56x224xf32>, vector<224x224xf32>, vector<56x224xf32> -> vector<56x224xf32>
    %318 = arith.addf %312, %317 : vector<56x224xf32>
    %c1_324 = arith.constant 1 : index
    %c0_325 = arith.constant 0 : index
    %c0_326 = arith.constant 0 : index
    %319 = vector.load %arg12[%c1_324, %c0_325, %c0_326] : memref<9x8x224xf32, #tpu.memory_space<vmem>>, vector<7x8x224xf32>
    %320 = vector.shape_cast %319 : vector<7x8x224xf32> to vector<56x224xf32>
    %c3_327 = arith.constant 3 : index
    %c0_328 = arith.constant 0 : index
    %c0_329 = arith.constant 0 : index
    %321 = vector.load %arg4[%c3_327, %c0_328, %c0_329] : memref<10x224x224xf32, #tpu.memory_space<vmem>>, vector<1x224x224xf32>
    %322 = vector.shape_cast %321 : vector<1x224x224xf32> to vector<224x224xf32>
    %cst_330 = arith.constant dense<0.000000e+00> : vector<56x224xf32>
    %323 = tpu.matmul %320, %322, %cst_330 {dimension_numbers = #tpu.dot_dimension_numbers<[1], [0], [0], [1], [0, 0, 1, 1], [], []>} : vector<56x224xf32>, vector<224x224xf32>, vector<56x224xf32> -> vector<56x224xf32>
    %324 = arith.addf %318, %323 : vector<56x224xf32>
    %c1_331 = arith.constant 1 : index
    %c0_332 = arith.constant 0 : index
    %c0_333 = arith.constant 0 : index
    %325 = vector.load %arg13[%c1_331, %c0_332, %c0_333] : memref<9x8x224xf32, #tpu.memory_space<vmem>>, vector<7x8x224xf32>
    %326 = vector.shape_cast %325 : vector<7x8x224xf32> to vector<56x224xf32>
    %c5_334 = arith.constant 5 : index
    %c0_335 = arith.constant 0 : index
    %c0_336 = arith.constant 0 : index
    %327 = vector.load %arg4[%c5_334, %c0_335, %c0_336] : memref<10x224x224xf32, #tpu.memory_space<vmem>>, vector<1x224x224xf32>
    %328 = vector.shape_cast %327 : vector<1x224x224xf32> to vector<224x224xf32>
    %cst_337 = arith.constant dense<0.000000e+00> : vector<56x224xf32>
    %329 = tpu.matmul %326, %328, %cst_337 {dimension_numbers = #tpu.dot_dimension_numbers<[1], [0], [0], [1], [0, 0, 1, 1], [], []>} : vector<56x224xf32>, vector<224x224xf32>, vector<56x224xf32> -> vector<56x224xf32>
    %330 = arith.addf %324, %329 : vector<56x224xf32>
    %c2_338 = arith.constant 2 : index
    %c0_339 = arith.constant 0 : index
    %c0_340 = arith.constant 0 : index
    %331 = vector.load %arg12[%c2_338, %c0_339, %c0_340] : memref<9x8x224xf32, #tpu.memory_space<vmem>>, vector<7x8x224xf32>
    %332 = vector.shape_cast %331 : vector<7x8x224xf32> to vector<56x224xf32>
    %c7_341 = arith.constant 7 : index
    %c0_342 = arith.constant 0 : index
    %c0_343 = arith.constant 0 : index
    %333 = vector.load %arg4[%c7_341, %c0_342, %c0_343] : memref<10x224x224xf32, #tpu.memory_space<vmem>>, vector<1x224x224xf32>
    %334 = vector.shape_cast %333 : vector<1x224x224xf32> to vector<224x224xf32>
    %cst_344 = arith.constant dense<0.000000e+00> : vector<56x224xf32>
    %335 = tpu.matmul %332, %334, %cst_344 {dimension_numbers = #tpu.dot_dimension_numbers<[1], [0], [0], [1], [0, 0, 1, 1], [], []>} : vector<56x224xf32>, vector<224x224xf32>, vector<56x224xf32> -> vector<56x224xf32>
    %336 = arith.addf %330, %335 : vector<56x224xf32>
    %c2_345 = arith.constant 2 : index
    %c0_346 = arith.constant 0 : index
    %c0_347 = arith.constant 0 : index
    %337 = vector.load %arg13[%c2_345, %c0_346, %c0_347] : memref<9x8x224xf32, #tpu.memory_space<vmem>>, vector<7x8x224xf32>
    %338 = vector.shape_cast %337 : vector<7x8x224xf32> to vector<56x224xf32>
    %c9_348 = arith.constant 9 : index
    %c0_349 = arith.constant 0 : index
    %c0_350 = arith.constant 0 : index
    %339 = vector.load %arg4[%c9_348, %c0_349, %c0_350] : memref<10x224x224xf32, #tpu.memory_space<vmem>>, vector<1x224x224xf32>
    %340 = vector.shape_cast %339 : vector<1x224x224xf32> to vector<224x224xf32>
    %cst_351 = arith.constant dense<0.000000e+00> : vector<56x224xf32>
    %341 = tpu.matmul %338, %340, %cst_351 {dimension_numbers = #tpu.dot_dimension_numbers<[1], [0], [0], [1], [0, 0, 1, 1], [], []>} : vector<56x224xf32>, vector<224x224xf32>, vector<56x224xf32> -> vector<56x224xf32>
    %342 = arith.addf %336, %341 : vector<56x224xf32>
    %343 = arith.maximumf %311, %342 : vector<56x224xf32>
    %c0_352 = arith.constant 0 : index
    %c0_353 = arith.constant 0 : index
    %344 = vector.load %arg5[%c0_352, %c0_353] : memref<1x224xf32, #tpu.memory_space<vmem>>, vector<1x224xf32>
    %345 = vector.broadcast %344 : vector<1x224xf32> to vector<56x224xf32>
    %346 = arith.addf %343, %345 : vector<56x224xf32>
    %cst_354 = arith.constant 0.000000e+00 : f32
    %347 = vector.broadcast %cst_354 : f32 to vector<56x224xf32>
    %348 = arith.maximumf %346, %347 : vector<56x224xf32>
    %349 = vector.shape_cast %348 : vector<56x224xf32> to vector<7x8x224xf32>
    %c0_355 = arith.constant 0 : index
    %c0_356 = arith.constant 0 : index
    %c0_357 = arith.constant 0 : index
    %350 = vector.load %arg9[%c0_355, %c0_356, %c0_357] : memref<7x8x224xf32, #tpu.memory_space<vmem>>, vector<7x8x224xf32>
    tpu.vector_store %arg9[%c0_355, %c0_356, %c0_357], %349 {strides = array<i32>} : memref<7x8x224xf32, #tpu.memory_space<vmem>>, vector<7x8x224xf32>,
    %cst_358 = arith.constant 0.000000e+00 : f32
    %351 = vector.broadcast %cst_358 : f32 to vector<8x128xf32>
    %352 = vector.extract_strided_slice %349 {offsets = [0, 0, 0], sizes = [1, 8, 224], strides = [1, 1, 1]} : vector<7x8x224xf32> to vector<1x8x224xf32>
    %353 = vector.shape_cast %352 : vector<1x8x224xf32> to vector<8x224xf32>
    %c0_359 = arith.constant 0 : index
    %c0_360 = arith.constant 0 : index
    %c0_361 = arith.constant 0 : index
    %354 = vector.load %arg6[%c0_359, %c0_360, %c0_361] : memref<7x224x128xf32, #tpu.memory_space<vmem>>, vector<1x224x128xf32>
    %355 = vector.shape_cast %354 : vector<1x224x128xf32> to vector<224x128xf32>
    %cst_362 = arith.constant dense<0.000000e+00> : vector<8x128xf32>
    %356 = tpu.matmul %353, %355, %cst_362 {dimension_numbers = #tpu.dot_dimension_numbers<[1], [0], [0], [1], [0, 0, 1, 1], [], []>} : vector<8x224xf32>, vector<224x128xf32>, vector<8x128xf32> -> vector<8x128xf32>
    %357 = arith.addf %351, %356 : vector<8x128xf32>
    %358 = vector.extract_strided_slice %349 {offsets = [1, 0, 0], sizes = [1, 8, 224], strides = [1, 1, 1]} : vector<7x8x224xf32> to vector<1x8x224xf32>
    %359 = vector.shape_cast %358 : vector<1x8x224xf32> to vector<8x224xf32>
    %c1_363 = arith.constant 1 : index
    %c0_364 = arith.constant 0 : index
    %c0_365 = arith.constant 0 : index
    %360 = vector.load %arg6[%c1_363, %c0_364, %c0_365] : memref<7x224x128xf32, #tpu.memory_space<vmem>>, vector<1x224x128xf32>
    %361 = vector.shape_cast %360 : vector<1x224x128xf32> to vector<224x128xf32>
    %cst_366 = arith.constant dense<0.000000e+00> : vector<8x128xf32>
    %362 = tpu.matmul %359, %361, %cst_366 {dimension_numbers = #tpu.dot_dimension_numbers<[1], [0], [0], [1], [0, 0, 1, 1], [], []>} : vector<8x224xf32>, vector<224x128xf32>, vector<8x128xf32> -> vector<8x128xf32>
    %363 = arith.addf %357, %362 : vector<8x128xf32>
    %364 = vector.extract_strided_slice %349 {offsets = [2, 0, 0], sizes = [1, 8, 224], strides = [1, 1, 1]} : vector<7x8x224xf32> to vector<1x8x224xf32>
    %365 = vector.shape_cast %364 : vector<1x8x224xf32> to vector<8x224xf32>
    %c2_367 = arith.constant 2 : index
    %c0_368 = arith.constant 0 : index
    %c0_369 = arith.constant 0 : index
    %366 = vector.load %arg6[%c2_367, %c0_368, %c0_369] : memref<7x224x128xf32, #tpu.memory_space<vmem>>, vector<1x224x128xf32>
    %367 = vector.shape_cast %366 : vector<1x224x128xf32> to vector<224x128xf32>
    %cst_370 = arith.constant dense<0.000000e+00> : vector<8x128xf32>
    %368 = tpu.matmul %365, %367, %cst_370 {dimension_numbers = #tpu.dot_dimension_numbers<[1], [0], [0], [1], [0, 0, 1, 1], [], []>} : vector<8x224xf32>, vector<224x128xf32>, vector<8x128xf32> -> vector<8x128xf32>
    %369 = arith.addf %363, %368 : vector<8x128xf32>
    %370 = vector.extract_strided_slice %349 {offsets = [3, 0, 0], sizes = [1, 8, 224], strides = [1, 1, 1]} : vector<7x8x224xf32> to vector<1x8x224xf32>
    %371 = vector.shape_cast %370 : vector<1x8x224xf32> to vector<8x224xf32>
    %c3_371 = arith.constant 3 : index
    %c0_372 = arith.constant 0 : index
    %c0_373 = arith.constant 0 : index
    %372 = vector.load %arg6[%c3_371, %c0_372, %c0_373] : memref<7x224x128xf32, #tpu.memory_space<vmem>>, vector<1x224x128xf32>
    %373 = vector.shape_cast %372 : vector<1x224x128xf32> to vector<224x128xf32>
    %cst_374 = arith.constant dense<0.000000e+00> : vector<8x128xf32>
    %374 = tpu.matmul %371, %373, %cst_374 {dimension_numbers = #tpu.dot_dimension_numbers<[1], [0], [0], [1], [0, 0, 1, 1], [], []>} : vector<8x224xf32>, vector<224x128xf32>, vector<8x128xf32> -> vector<8x128xf32>
    %375 = arith.addf %369, %374 : vector<8x128xf32>
    %376 = vector.extract_strided_slice %349 {offsets = [4, 0, 0], sizes = [1, 8, 224], strides = [1, 1, 1]} : vector<7x8x224xf32> to vector<1x8x224xf32>
    %377 = vector.shape_cast %376 : vector<1x8x224xf32> to vector<8x224xf32>
    %c4_375 = arith.constant 4 : index
    %c0_376 = arith.constant 0 : index
    %c0_377 = arith.constant 0 : index
    %378 = vector.load %arg6[%c4_375, %c0_376, %c0_377] : memref<7x224x128xf32, #tpu.memory_space<vmem>>, vector<1x224x128xf32>
    %379 = vector.shape_cast %378 : vector<1x224x128xf32> to vector<224x128xf32>
    %cst_378 = arith.constant dense<0.000000e+00> : vector<8x128xf32>
    %380 = tpu.matmul %377, %379, %cst_378 {dimension_numbers = #tpu.dot_dimension_numbers<[1], [0], [0], [1], [0, 0, 1, 1], [], []>} : vector<8x224xf32>, vector<224x128xf32>, vector<8x128xf32> -> vector<8x128xf32>
    %381 = arith.addf %375, %380 : vector<8x128xf32>
    %382 = vector.extract_strided_slice %349 {offsets = [5, 0, 0], sizes = [1, 8, 224], strides = [1, 1, 1]} : vector<7x8x224xf32> to vector<1x8x224xf32>
    %383 = vector.shape_cast %382 : vector<1x8x224xf32> to vector<8x224xf32>
    %c5_379 = arith.constant 5 : index
    %c0_380 = arith.constant 0 : index
    %c0_381 = arith.constant 0 : index
    %384 = vector.load %arg6[%c5_379, %c0_380, %c0_381] : memref<7x224x128xf32, #tpu.memory_space<vmem>>, vector<1x224x128xf32>
    %385 = vector.shape_cast %384 : vector<1x224x128xf32> to vector<224x128xf32>
    %cst_382 = arith.constant dense<0.000000e+00> : vector<8x128xf32>
    %386 = tpu.matmul %383, %385, %cst_382 {dimension_numbers = #tpu.dot_dimension_numbers<[1], [0], [0], [1], [0, 0, 1, 1], [], []>} : vector<8x224xf32>, vector<224x128xf32>, vector<8x128xf32> -> vector<8x128xf32>
    %387 = arith.addf %381, %386 : vector<8x128xf32>
    %388 = vector.extract_strided_slice %349 {offsets = [6, 0, 0], sizes = [1, 8, 224], strides = [1, 1, 1]} : vector<7x8x224xf32> to vector<1x8x224xf32>
    %389 = vector.shape_cast %388 : vector<1x8x224xf32> to vector<8x224xf32>
    %c6_383 = arith.constant 6 : index
    %c0_384 = arith.constant 0 : index
    %c0_385 = arith.constant 0 : index
    %390 = vector.load %arg6[%c6_383, %c0_384, %c0_385] : memref<7x224x128xf32, #tpu.memory_space<vmem>>, vector<1x224x128xf32>
    %391 = vector.shape_cast %390 : vector<1x224x128xf32> to vector<224x128xf32>
    %cst_386 = arith.constant dense<0.000000e+00> : vector<8x128xf32>
    %392 = tpu.matmul %389, %391, %cst_386 {dimension_numbers = #tpu.dot_dimension_numbers<[1], [0], [0], [1], [0, 0, 1, 1], [], []>} : vector<8x224xf32>, vector<224x128xf32>, vector<8x128xf32> -> vector<8x128xf32>
    %393 = arith.addf %387, %392 : vector<8x128xf32>
    %c0_387 = arith.constant 0 : index
    %c0_388 = arith.constant 0 : index
    %394 = vector.load %arg7[%c0_387, %c0_388] : memref<1x128xf32, #tpu.memory_space<vmem>>, vector<1x128xf32>
    %395 = vector.broadcast %394 : vector<1x128xf32> to vector<8x128xf32>
    %396 = arith.addf %393, %395 : vector<8x128xf32>
    %c0_389 = arith.constant 0 : index
    %c0_390 = arith.constant 0 : index
    %397 = vector.load %arg8[%c0_389, %c0_390] : memref<8x128xf32, #tpu.memory_space<vmem>>, vector<8x128xf32>
    tpu.vector_store %arg8[%c0_389, %c0_390], %396 {strides = array<i32>} : memref<8x128xf32, #tpu.memory_space<vmem>>, vector<8x128xf32>,
    return
  }
  func.func @transform_0(%arg0: i32) -> (i32, i32, i32, i32) {
    %c0_i32 = arith.constant 0 : i32
    %c0_i32_0 = arith.constant 0 : i32
    %c0_i32_1 = arith.constant 0 : i32
    %c0_i32_2 = arith.constant 0 : i32
    return %c0_i32, %c0_i32_0, %arg0, %c0_i32_1 : i32, i32, i32, i32
  }
  func.func @transform_1(%arg0: i32) -> (i32, i32, i32) {
    %c0_i32 = arith.constant 0 : i32
    %c0_i32_0 = arith.constant 0 : i32
    %c0_i32_1 = arith.constant 0 : i32
    %c0_i32_2 = arith.constant 0 : i32
    return %c0_i32, %c0_i32_0, %c0_i32_1 : i32, i32, i32
  }
  func.func @transform_2(%arg0: i32) -> (i32, i32) {
    %c0_i32 = arith.constant 0 : i32
    %c0_i32_0 = arith.constant 0 : i32
    %c0_i32_1 = arith.constant 0 : i32
    return %c0_i32, %c0_i32_0 : i32, i32
  }
  func.func @transform_3(%arg0: i32) -> (i32, i32, i32) {
    %c0_i32 = arith.constant 0 : i32
    %c0_i32_0 = arith.constant 0 : i32
    %c0_i32_1 = arith.constant 0 : i32
    %c0_i32_2 = arith.constant 0 : i32
    return %c0_i32, %c0_i32_0, %c0_i32_1 : i32, i32, i32
  }
  func.func @transform_4(%arg0: i32) -> (i32, i32) {
    %c0_i32 = arith.constant 0 : i32
    %c0_i32_0 = arith.constant 0 : i32
    %c0_i32_1 = arith.constant 0 : i32
    return %c0_i32, %c0_i32_0 : i32, i32
  }
  func.func @transform_5(%arg0: i32) -> (i32, i32, i32) {
    %c0_i32 = arith.constant 0 : i32
    %c0_i32_0 = arith.constant 0 : i32
    %c0_i32_1 = arith.constant 0 : i32
    %c0_i32_2 = arith.constant 0 : i32
    return %c0_i32, %c0_i32_0, %c0_i32_1 : i32, i32, i32
  }
  func.func @transform_6(%arg0: i32) -> (i32, i32) {
    %c0_i32 = arith.constant 0 : i32
    %c0_i32_0 = arith.constant 0 : i32
    %c0_i32_1 = arith.constant 0 : i32
    return %c0_i32, %c0_i32_0 : i32, i32
  }
  func.func @transform_7(%arg0: i32) -> (i32, i32) {
    %c0_i32 = arith.constant 0 : i32
    %c0_i32_0 = arith.constant 0 : i32
    return %arg0, %c0_i32 : i32, i32
  }
  func.func @transform_8(%arg0: i32) -> (i32, i32, i32) {
    %c0_i32 = arith.constant 0 : i32
    %c0_i32_0 = arith.constant 0 : i32
    %c0_i32_1 = arith.constant 0 : i32
    return %c0_i32, %arg0, %c0_i32_0 : i32, i32, i32
  }
}

</mosaic_0001>

<llo_original>
// kernel: tile.13
$region0: #{tile.13}
  #allocation0 [shape = 's32[1]{0}', space=sflag, size = 0x4, scoped, tag = 'scoped memory for tile.13']
  %s0 = inlined_call_operand.vmem [shape: f32[16], index: 0, kind: input, shape index: {}]
  %s1 = inlined_call_operand.vmem [shape: f32[14,16], index: 1, kind: output, shape index: {}]
  // Predicated region
  $region2: #{tile.13} parent=0 // pred_check
    _
  $region3: #{tile.13} parent=0 // pred_check_branch
    %3 = sbr.rel (0) target = $region5
  $region4: #{tile.13} parent=0 // pred_region
    _
  $region5: #{tile.13} parent=0 // pred_fallthru
    _
  %v4 = vld [vmem:[%s0] ss:$0 sm:$0xff]
  %5 = vst [vmem:[%s1] sm:$0xff] %v4
  %s6 = scalar_lea.vmem %s1, 8
  %7 = vst [vmem:[%s6] sm:$0xff] %v4

// kernel: tile.14
$region0: #{tile.14}
  %s0 = inlined_call_operand.vmem [shape: f32[14,16], index: 0, kind: input, shape index: {}]
  %s1 = inlined_call_operand.vmem [shape: f32[1,224], index: 1, kind: output, shape index: {}]
  $region1: #{tile.14} parent=0
    #allocation0 [shape = 'u8[8192]{0}', space=vmem, size = 0x2000, scoped, tag = 'scoped mem for output reshape']
    %s2 = smov 3
    %v3 = vld [vmem:[%s0] ss:$8 sm:%s2]
    %vm4 = vcmask 130048
    %5 = vst.msk [vmem:[#allocation0] ss:$8 sm:$0x3] %vm4, %v3
    %s6 = scalar_lea.vmem %s0, 7
    %v7 = vld [vmem:[%s6] sm:$0x1]
    %8 = vrot.lane.b32.xlu0 %v7, 112
    %v9 = vpop.permute.xlu0 %8
    %vm10 = vcmask 1048448
    %11 = vst.msk [vmem:[#allocation0] sm:$0x1] %vm10, %v9
    %s12 = scalar_lea.vmem %s0, 6
    %v13 = vld [vmem:[%s12] sm:$0x1]
    %14 = vrot.lane.b32.xlu0 %v13, 96
    %v15 = vpop.permute.xlu0 %14
    %vm16 = vcmask 917248
    %17 = vst.msk [vmem:[#allocation0] sm:$0x1] %vm16, %v15
    %s18 = scalar_lea.vmem %s0, 5
    %s19 = smov 3
    %v20 = vld [vmem:[%s18] ss:$8 sm:%s19]
    %21 = vrot.lane.b32.xlu0 %v20, 80
    %v22 = vpop.permute.xlu0 %21
    %vm23 = vcmask 786048
    %24 = vst.msk [vmem:[#allocation0] ss:$8 sm:$0x3] %vm23, %v22
    %s25 = scalar_lea.vmem %s0, 4
    %s26 = smov 3
    %v27 = vld [vmem:[%s25] ss:$8 sm:%s26]
    %28 = vrot.lane.b32.xlu0 %v27, 64
    %v29 = vpop.permute.xlu0 %28
    %vm30 = vcmask 654848
    %31 = vst.msk [vmem:[#allocation0] ss:$8 sm:$0x3] %vm30, %v29
    %s32 = scalar_lea.vmem %s0, 3
    %s33 = smov 3
    %v34 = vld [vmem:[%s32] ss:$8 sm:%s33]
    %35 = vrot.lane.b32.xlu0 %v34, 48
    %v36 = vpop.permute.xlu0 %35
    %vm37 = vcmask 523648
    %38 = vst.msk [vmem:[#allocation0] ss:$8 sm:$0x3] %vm37, %v36
    %s39 = scalar_lea.vmem %s0, 2
    %s40 = smov 3
    %v41 = vld [vmem:[%s39] ss:$8 sm:%s40]
    %42 = vrot.lane.b32.xlu0 %v41, 32
    %v43 = vpop.permute.xlu0 %42
    %vm44 = vcmask 392448
    %45 = vst.msk [vmem:[#allocation0] ss:$8 sm:$0x3] %vm44, %v43
    %s46 = scalar_lea.vmem %s0, 1
    %s47 = smov 3
    %v48 = vld [vmem:[%s46] ss:$8 sm:%s47]
    %49 = vrot.lane.b32.xlu0 %v48, 16
    %v50 = vpop.permute.xlu0 %49
    %vm51 = vcmask 261248
    %52 = vst.msk [vmem:[#allocation0] ss:$8 sm:$0x3] %vm51, %v50
    %s54 = sshllo.u32 0, 1
    %v56 = vld [vmem:[#allocation0] sm:%s54]
    %s57 = sshllo.u32 0, 1
    %58 = vst [vmem:[%s1] sm:%s57] %v56
    %s59 = scalar_lea.vmem [#allocation0], 8
    %v60 = vld [vmem:[%s59] sm:%s54]
    %s61 = sshllo.u32 0, 1
    %s62 = scalar_lea.vmem %s1, 1
    %63 = vst [vmem:[%s62] sm:%s61] %v60

// kernel: tile.18
$region0: #{tile.18}
  #allocation0 [shape = 's32[1]{0}', space=sflag, size = 0x4, scoped, tag = 'scoped memory for tile.18']
  %s0 = inlined_call_operand.vmem [shape: f32[32], index: 0, kind: input, shape index: {}]
  %s1 = inlined_call_operand.vmem [shape: f32[7,32], index: 1, kind: output, shape index: {}]
  // Predicated region
  $region2: #{tile.18} parent=0 // pred_check
    _
  $region3: #{tile.18} parent=0 // pred_check_branch
    %3 = sbr.rel (0) target = $region5
  $region4: #{tile.18} parent=0 // pred_region
    _
  $region5: #{tile.18} parent=0 // pred_fallthru
    _
  %v4 = vld [vmem:[%s0] ss:$0 sm:$0xff]
  %5 = vst [vmem:[%s1] sm:$0xff] %v4

// kernel: tile.19
$region0: #{tile.19}
  %s0 = inlined_call_operand.vmem [shape: f32[7,32], index: 0, kind: input, shape index: {}]
  %s1 = inlined_call_operand.vmem [shape: f32[1,224], index: 1, kind: output, shape index: {}]
  $region1: #{tile.19} parent=0
    #allocation0 [shape = 'u8[8192]{0}', space=vmem, size = 0x2000, scoped, tag = 'scoped mem for output reshape']
    %s2 = smov 3
    %v3 = vld [vmem:[%s0] ss:$4 sm:%s2]
    %vm4 = vcmask 261120
    %5 = vst.msk [vmem:[#allocation0] ss:$8 sm:$0x3] %vm4, %v3
    %s6 = scalar_lea.vmem %s0, 3
    %v7 = vld [vmem:[%s6] sm:$0x1]
    %8 = vrot.lane.b32.xlu0 %v7, 96
    %v9 = vpop.permute.xlu0 %8
    %vm10 = vcmask 1048320
    %11 = vst.msk [vmem:[#allocation0] sm:$0x1] %vm10, %v9
    %s12 = scalar_lea.vmem %s0, 2
    %s13 = smov 3
    %v14 = vld [vmem:[%s12] ss:$4 sm:%s13]
    %15 = vrot.lane.b32.xlu0 %v14, 64
    %v16 = vpop.permute.xlu0 %15
    %vm17 = vcmask 785920
    %18 = vst.msk [vmem:[#allocation0] ss:$8 sm:$0x3] %vm17, %v16
    %s19 = scalar_lea.vmem %s0, 1
    %s20 = smov 3
    %v21 = vld [vmem:[%s19] ss:$4 sm:%s20]
    %22 = vrot.lane.b32.xlu0 %v21, 32
    %v23 = vpop.permute.xlu0 %22
    %vm24 = vcmask 523520
    %25 = vst.msk [vmem:[#allocation0] ss:$8 sm:$0x3] %vm24, %v23
    %s27 = sshllo.u32 0, 1
    %v29 = vld [vmem:[#allocation0] sm:%s27]
    %s30 = sshllo.u32 0, 1
    %31 = vst [vmem:[%s1] sm:%s30] %v29
    %s32 = scalar_lea.vmem [#allocation0], 8
    %v33 = vld [vmem:[%s32] sm:%s27]
    %s34 = sshllo.u32 0, 1
    %s35 = scalar_lea.vmem %s1, 1
    %36 = vst [vmem:[%s35] sm:%s34] %v33

// kernel: cnn_forward.1
$region0: #{cnn_forward.1}
  #allocation0 [shape = 'u32[]', space=smem, size = 0x4, offset = 0x4, fixed_abs, tag = 'smem constant byte address 0x4 - core index']
  #allocation1 [shape = 'u32[144,128]{1,0:T(1,128)}', space=vmem, size = 0x12000, scoped, tag = 'internal scratch']
  #allocation2 [shape = 'f32[16,8,28]{2,1,0:T(8,128)}', space=vmem, size = 0x10000, scoped, tag = 'scratch operand']
  #allocation3 [shape = 'f32[16,8,28]{2,1,0:T(8,128)}', space=vmem, size = 0x10000, scoped, tag = 'scratch operand']
  #allocation4 [shape = 'f32[9,8,224]{2,1,0:T(8,128)}', space=vmem, size = 0x12000, scoped, tag = 'scratch operand']
  #allocation5 [shape = 'f32[9,8,224]{2,1,0:T(8,128)}', space=vmem, size = 0x12000, scoped, tag = 'scratch operand']
  %s0 = inlined_call_operand.vmem [shape: f32[2,14,16,28], index: 0, kind: input, shape index: {}]
  %s1 = inlined_call_operand.vmem [shape: f32[10,28,224], index: 1, kind: input, shape index: {}]
  %s2 = inlined_call_operand.vmem [shape: f32[1,224], index: 2, kind: input, shape index: {}]
  %s3 = inlined_call_operand.vmem [shape: f32[10,224,224], index: 3, kind: input, shape index: {}]
  %s4 = inlined_call_operand.vmem [shape: f32[1,224], index: 4, kind: input, shape index: {}]
  %s5 = inlined_call_operand.vmem [shape: f32[7,224,128], index: 5, kind: input, shape index: {}]
  %s6 = inlined_call_operand.vmem [shape: f32[1,128], index: 6, kind: input, shape index: {}]
  %s7 = inlined_call_operand.hbm [shape: f32[16,128], index: 7, kind: output, shape index: {0}]
  %s8 = inlined_call_operand.vmem [shape: f32[7,16,224], index: 8, kind: output, shape index: {1}]
  %9 = xla_tuple %s7, %s8
  %s10 = sld [smem:[#allocation0]]
  $region126: #{cnn_forward.1} parent=0
    _
  %s12 = ssub.s32 1, %s10
  %s13 = scalar_select 0, %s12, %s10
  $region1: #{cnn_forward.1} parent=0
    #allocation6 [shape = 'u8[229376]{0}', space=vmem, size = 0x38000, scoped, tag = 'input window, operand 0']
    #allocation7 [shape = 'u8[8192]{0}', space=vmem, size = 0x2000, scoped, tag = 'output window, operand 0']
    #allocation8 [shape = 's32[2]{0}', space=sflag, size = 0x8, scoped, tag = 'scoped memory for cnn_forward.1']
    #allocation9 [shape = 'u8[114688]{0}', space=vmem, size = 0x1c000, scoped, tag = 'output window, operand 1']
    %14 = vsyncpa [#allocation8], 0
    %s15 = scalar_lea.sflag [#allocation8], 1
    %16 = vsyncpa %s15, 0
    loop: start=0, step=1, limit=4
    $region2: #{cnn_forward.1} parent=1 // loop_pre_header
      _
    $region3: #{cnn_forward.1} parent=1 // loop_header
      %s18 = sphi 0, %s22
      %p19 = scmp.ge.s32.totalorder %s18, 4
      %s28 = sphi 0, %s30
      %s31 = sphi 0, %s28
      %s32 = sphi 0, %s31
      %s48 = sphi 0, %s32
      %s52 = sphi 0, %s52
      %s54 = sphi 0, %s52
      %s55 = sphi 0, %s54
      %s69 = sphi 0, %s55
      %s73 = sphi 0, %s73
      %s75 = sphi 0, %s73
      %s76 = sphi 0, %s75
      %s90 = sphi 0, %s76
      %s94 = sphi 0, %s94
      %s96 = sphi 0, %s94
      %s97 = sphi 0, %s96
      %s111 = sphi 0, %s97
      %s115 = sphi 0, %s115
      %s117 = sphi 0, %s115
      %s118 = sphi 0, %s117
      %s132 = sphi 0, %s118
      %s136 = sphi 0, %s136
      %s138 = sphi 0, %s136
      %s139 = sphi 0, %s138
      %s153 = sphi 0, %s139
      %s157 = sphi 0, %s157
      %s159 = sphi 0, %s157
      %s160 = sphi 0, %s159
      %s174 = sphi 0, %s160
      %s180 = sphi 0, %s182
      %s183 = sphi 0, %s180
      %s184 = sphi 0, %s183
      %s200 = sphi 0, %s184
      %s206 = sphi 0, %s208
      %s209 = sphi 0, %s206
      %s210 = sphi 0, %s209
      %s226 = sphi 0, %s210
    $region4: #{cnn_forward.1} parent=1 // loop_header_branch
      %21 = sbr.rel (%p19) target = $region8
    $region5: #{cnn_forward.1} parent=1 // loop_body
      %s23 = ssub.s32 %s18, 1
      %s24 = ssub.s32 %s18, 2
      %s25 = sadd.s32 %s18, 1
      %s26 = ssub.s32 %s18, %s25
      %p27 = scmp.eq.s32.totalorder %s26, 0
      %s29 = sadd.s32 %s28, 1
      %s30 = scalar_select %p27, %s28, %s29
      %p33 = pneg %p27
      %p34 = scmp.eq.s32.totalorder %s18, 1
      %p35 = por %p33, %p34
      %p36 = scmp.ne.s32.totalorder %s28, %s31
      %p37 = scmp.eq.s32.totalorder %s18, 0
      %p38 = por %p36, %p37
      %p39 = scmp.ne.s32.totalorder %s28, %s31
      %p40 = scmp.eq.s32.totalorder %s23, 1
      %p41 = por %p39, %p40
      %p42 = scmp.ne.s32.totalorder %s31, %s32
      %p43 = scmp.eq.s32.totalorder %s23, 0
      %p44 = por %p42, %p43
      %p45 = scmp.ne.s32.totalorder %s31, %s32
      %p46 = scmp.eq.s32.totalorder %s24, 1
      %p47 = por %p45, %p46
      %p49 = scmp.ne.s32.totalorder %s32, %s48
      %p50 = scmp.eq.s32.totalorder %s24, 0
      %p51 = por %p49, %p50
      %s53 = sadd.s32 %s52, 1
      %p56 = scmp.eq.s32.totalorder %s18, 1
      %p57 = scmp.ne.s32.totalorder %s52, %s54
      %p58 = scmp.eq.s32.totalorder %s18, 0
      %p59 = por %p57, %p58
      %p60 = scmp.ne.s32.totalorder %s52, %s54
      %p61 = scmp.eq.s32.totalorder %s23, 1
      %p62 = por %p60, %p61
      %p63 = scmp.ne.s32.totalorder %s54, %s55
      %p64 = scmp.eq.s32.totalorder %s23, 0
      %p65 = por %p63, %p64
      %p66 = scmp.ne.s32.totalorder %s54, %s55
      %p67 = scmp.eq.s32.totalorder %s24, 1
      %p68 = por %p66, %p67
      %p70 = scmp.ne.s32.totalorder %s55, %s69
      %p71 = scmp.eq.s32.totalorder %s24, 0
      %p72 = por %p70, %p71
      %s74 = sadd.s32 %s73, 1
      %p77 = scmp.eq.s32.totalorder %s18, 1
      %p78 = scmp.ne.s32.totalorder %s73, %s75
      %p79 = scmp.eq.s32.totalorder %s18, 0
      %p80 = por %p78, %p79
      %p81 = scmp.ne.s32.totalorder %s73, %s75
      %p82 = scmp.eq.s32.totalorder %s23, 1
      %p83 = por %p81, %p82
      %p84 = scmp.ne.s32.totalorder %s75, %s76
      %p85 = scmp.eq.s32.totalorder %s23, 0
      %p86 = por %p84, %p85
      %p87 = scmp.ne.s32.totalorder %s75, %s76
      %p88 = scmp.eq.s32.totalorder %s24, 1
      %p89 = por %p87, %p88
      %p91 = scmp.ne.s32.totalorder %s76, %s90
      %p92 = scmp.eq.s32.totalorder %s24, 0
      %p93 = por %p91, %p92
      %s95 = sadd.s32 %s94, 1
      %p98 = scmp.eq.s32.totalorder %s18, 1
      %p99 = scmp.ne.s32.totalorder %s94, %s96
      %p100 = scmp.eq.s32.totalorder %s18, 0
      %p101 = por %p99, %p100
      %p102 = scmp.ne.s32.totalorder %s94, %s96
      %p103 = scmp.eq.s32.totalorder %s23, 1
      %p104 = por %p102, %p103
      %p105 = scmp.ne.s32.totalorder %s96, %s97
      %p106 = scmp.eq.s32.totalorder %s23, 0
      %p107 = por %p105, %p106
      %p108 = scmp.ne.s32.totalorder %s96, %s97
      %p109 = scmp.eq.s32.totalorder %s24, 1
      %p110 = por %p108, %p109
      %p112 = scmp.ne.s32.totalorder %s97, %s111
      %p113 = scmp.eq.s32.totalorder %s24, 0
      %p114 = por %p112, %p113
      %s116 = sadd.s32 %s115, 1
      %p119 = scmp.eq.s32.totalorder %s18, 1
      %p120 = scmp.ne.s32.totalorder %s115, %s117
      %p121 = scmp.eq.s32.totalorder %s18, 0
      %p122 = por %p120, %p121
      %p123 = scmp.ne.s32.totalorder %s115, %s117
      %p124 = scmp.eq.s32.totalorder %s23, 1
      %p125 = por %p123, %p124
      %p126 = scmp.ne.s32.totalorder %s117, %s118
      %p127 = scmp.eq.s32.totalorder %s23, 0
      %p128 = por %p126, %p127
      %p129 = scmp.ne.s32.totalorder %s117, %s118
      %p130 = scmp.eq.s32.totalorder %s24, 1
      %p131 = por %p129, %p130
      %p133 = scmp.ne.s32.totalorder %s118, %s132
      %p134 = scmp.eq.s32.totalorder %s24, 0
      %p135 = por %p133, %p134
      %s137 = sadd.s32 %s136, 1
      %p140 = scmp.eq.s32.totalorder %s18, 1
      %p141 = scmp.ne.s32.totalorder %s136, %s138
      %p142 = scmp.eq.s32.totalorder %s18, 0
      %p143 = por %p141, %p142
      %p144 = scmp.ne.s32.totalorder %s136, %s138
      %p145 = scmp.eq.s32.totalorder %s23, 1
      %p146 = por %p144, %p145
      %p147 = scmp.ne.s32.totalorder %s138, %s139
      %p148 = scmp.eq.s32.totalorder %s23, 0
      %p149 = por %p147, %p148
      %p150 = scmp.ne.s32.totalorder %s138, %s139
      %p151 = scmp.eq.s32.totalorder %s24, 1
      %p152 = por %p150, %p151
      %p154 = scmp.ne.s32.totalorder %s139, %s153
      %p155 = scmp.eq.s32.totalorder %s24, 0
      %p156 = por %p154, %p155
      %s158 = sadd.s32 %s157, 1
      %p161 = scmp.eq.s32.totalorder %s18, 1
      %p162 = scmp.ne.s32.totalorder %s157, %s159
      %p163 = scmp.eq.s32.totalorder %s18, 0
      %p164 = por %p162, %p163
      %p165 = scmp.ne.s32.totalorder %s157, %s159
      %p166 = scmp.eq.s32.totalorder %s23, 1
      %p167 = por %p165, %p166
      %p168 = scmp.ne.s32.totalorder %s159, %s160
      %p169 = scmp.eq.s32.totalorder %s23, 0
      %p170 = por %p168, %p169
      %p171 = scmp.ne.s32.totalorder %s159, %s160
      %p172 = scmp.eq.s32.totalorder %s24, 1
      %p173 = por %p171, %p172
      %p175 = scmp.ne.s32.totalorder %s160, %s174
      %p176 = scmp.eq.s32.totalorder %s24, 0
      %p177 = por %p175, %p176
      %s178 = ssub.s32 %s18, %s25
      %p179 = scmp.eq.s32.totalorder %s178, 0
      %s181 = sadd.s32 %s180, 1
      %s182 = scalar_select %p179, %s180, %s181
      %p185 = pneg %p179
      %p186 = scmp.eq.s32.totalorder %s18, 1
      %p187 = por %p185, %p186
      %p188 = scmp.ne.s32.totalorder %s180, %s183
      %p189 = scmp.eq.s32.totalorder %s18, 0
      %p190 = por %p188, %p189
      %p191 = scmp.ne.s32.totalorder %s180, %s183
      %p192 = scmp.eq.s32.totalorder %s23, 1
      %p193 = por %p191, %p192
      %p194 = scmp.ne.s32.totalorder %s183, %s184
      %p195 = scmp.eq.s32.totalorder %s23, 0
      %p196 = por %p194, %p195
      %p197 = scmp.ne.s32.totalorder %s183, %s184
      %p198 = scmp.eq.s32.totalorder %s24, 1
      %p199 = por %p197, %p198
      %p201 = scmp.ne.s32.totalorder %s184, %s200
      %p202 = scmp.eq.s32.totalorder %s24, 0
      %p203 = por %p201, %p202
      %s204 = ssub.s32 %s18, %s25
      %p205 = scmp.eq.s32.totalorder %s204, 0
      %s207 = sadd.s32 %s206, 1
      %s208 = scalar_select %p205, %s206, %s207
      %p211 = pneg %p205
      %p212 = scmp.eq.s32.totalorder %s18, 1
      %p213 = por %p211, %p212
      %p214 = scmp.ne.s32.totalorder %s206, %s209
      %p215 = scmp.eq.s32.totalorder %s18, 0
      %p216 = por %p214, %p215
      %p217 = scmp.ne.s32.totalorder %s206, %s209
      %p218 = scmp.eq.s32.totalorder %s23, 1
      %p219 = por %p217, %p218
      %p220 = scmp.ne.s32.totalorder %s209, %s210
      %p221 = scmp.eq.s32.totalorder %s23, 0
      %p222 = por %p220, %p221
      %p223 = scmp.ne.s32.totalorder %s209, %s210
      %p224 = scmp.eq.s32.totalorder %s24, 1
      %p225 = por %p223, %p224
      %p227 = scmp.ne.s32.totalorder %s210, %s226
      %p228 = scmp.eq.s32.totalorder %s24, 0
      %p229 = por %p227, %p228
      %p230 = scmp.le.s32.totalorder 1, %s18
      %p231 = scmp.lt.s32.totalorder %s18, 3
      %p232 = pnand %p230, %p231
      %p233 = pneg %p232
      // Predicated region
      $region9: #{cnn_forward.1} parent=5 // pred_check
        _
      $region10: #{cnn_forward.1} parent=5 // pred_check_branch
        %235 = sbr.rel (%p232) target = $region12
      $region11: #{cnn_forward.1} parent=5 // pred_region
        %s236 = ssub.s32 %s18, 1
        // Predicated region
        $region13: #{cnn_forward.1} parent=11 // pred_check
          %p237 = pneg %p65
        $region14: #{cnn_forward.1} parent=11 // pred_check_branch
          %239 = sbr.rel (%p237) target = $region16
        $region15: #{cnn_forward.1} parent=11 // pred_region
          _
        $region16: #{cnn_forward.1} parent=11 // pred_fallthru
          _
        // Predicated region
        $region17: #{cnn_forward.1} parent=11 // pred_check
          %p240 = pneg %p86
        $region18: #{cnn_forward.1} parent=11 // pred_check_branch
          %242 = sbr.rel (%p240) target = $region20
        $region19: #{cnn_forward.1} parent=11 // pred_region
          _
        $region20: #{cnn_forward.1} parent=11 // pred_fallthru
          _
        // Predicated region
        $region21: #{cnn_forward.1} parent=11 // pred_check
          %p243 = pneg %p107
        $region22: #{cnn_forward.1} parent=11 // pred_check_branch
          %245 = sbr.rel (%p243) target = $region24
        $region23: #{cnn_forward.1} parent=11 // pred_region
          _
        $region24: #{cnn_forward.1} parent=11 // pred_fallthru
          _
        // Predicated region
        $region25: #{cnn_forward.1} parent=11 // pred_check
          %p246 = pneg %p128
        $region26: #{cnn_forward.1} parent=11 // pred_check_branch
          %248 = sbr.rel (%p246) target = $region28
        $region27: #{cnn_forward.1} parent=11 // pred_region
          _
        $region28: #{cnn_forward.1} parent=11 // pred_fallthru
          _
        // Predicated region
        $region29: #{cnn_forward.1} parent=11 // pred_check
          %p249 = pneg %p149
        $region30: #{cnn_forward.1} parent=11 // pred_check_branch
          %251 = sbr.rel (%p249) target = $region32
        $region31: #{cnn_forward.1} parent=11 // pred_region
          _
        $region32: #{cnn_forward.1} parent=11 // pred_fallthru
          _
        // Predicated region
        $region33: #{cnn_forward.1} parent=11 // pred_check
          %p252 = pneg %p170
        $region34: #{cnn_forward.1} parent=11 // pred_check_branch
          %254 = sbr.rel (%p252) target = $region36
        $region35: #{cnn_forward.1} parent=11 // pred_region
          _
        $region36: #{cnn_forward.1} parent=11 // pred_fallthru
          _
      $region12: #{cnn_forward.1} parent=5 // pred_fallthru
        _
      %p255 = scmp.lt.s32.totalorder %s18, 2
      // Predicated region
      $region37: #{cnn_forward.1} parent=5 // pred_check
        %p256 = pneg %p255
      $region38: #{cnn_forward.1} parent=5 // pred_check_branch
        %258 = sbr.rel (%p256) target = $region40
      $region39: #{cnn_forward.1} parent=5 // pred_region
        // Predicated region
        $region41: #{cnn_forward.1} parent=39 // pred_check
          %p259 = pneg %p38
        $region42: #{cnn_forward.1} parent=39 // pred_check_branch
          %261 = sbr.rel (%p259) target = $region44
        $region43: #{cnn_forward.1} parent=39 // pred_region
          %s262 = sand.u32 %s28, 1
          %s263 = sand.u32 %s28, 1
          %s264 = smul.addr %s263, 224
          %s265 = scalar_lea.vmem [#allocation6], %s264
          %s266 = smul.addr %s18, 8
          %s267 = scalar_lea.vmem %s0, %s266
          // Predicated region
          $region45: #{cnn_forward.1} parent=43 // pred_check
            _
          $region46: #{cnn_forward.1} parent=43 // pred_check_branch
            %269 = sbr.rel (0) target = $region48
          $region47: #{cnn_forward.1} parent=43 // pred_region
            // Predicated region
            $region49: #{cnn_forward.1} parent=47 // pred_check
              _
            $region50: #{cnn_forward.1} parent=47 // pred_check_branch
              %271 = sbr.rel (0) target = $region52
            $region51: #{cnn_forward.1} parent=47 // pred_region
              // Predicated region
              $region64: #{cnn_forward.1} parent=51 // pred_check
                _
              $region65: #{cnn_forward.1} parent=51 // pred_check_branch
                %340 = sbr.rel (0) target = $region67
              $region66: #{cnn_forward.1} parent=51 // pred_region
                loop: start=0, step=1, limit=1
                $region68: #{cnn_forward.1} parent=66 // loop_pre_header
                  _
                $region69: #{cnn_forward.1} parent=66 // loop_header
                  %s342 = sphi 0, %s346
                  %p343 = scmp.ge.s32.totalorder %s342, 1
                  %s347 = sphi %s267, %s267
                  %s348 = sphi %s265, %s265
                $region70: #{cnn_forward.1} parent=66 // loop_header_branch
                  %345 = sbr.rel (%p343) target = $region74
                $region71: #{cnn_forward.1} parent=66 // loop_body
                  %v349 = vld [vmem:[%s347] sm:$0xff]
                  %350 = vst [vmem:[%s348] sm:$0xff] %v349
                  %v351 = vld [vmem:[%s347 + $0x10] sm:$0xff]
                  %352 = vst [vmem:[%s348 + $0x8] sm:$0xff] %v351
                  %v353 = vld [vmem:[%s347 + $0x20] sm:$0xff]
                  %354 = vst [vmem:[%s348 + $0x10] sm:$0xff] %v353
                  %v355 = vld [vmem:[%s347 + $0x30] sm:$0xff]
                  %356 = vst [vmem:[%s348 + $0x18] sm:$0xff] %v355
                  %v357 = vld [vmem:[%s347 + $0x40] sm:$0xff]
                  %358 = vst [vmem:[%s348 + $0x20] sm:$0xff] %v357
                  %v359 = vld [vmem:[%s347 + $0x50] sm:$0xff]
                  %360 = vst [vmem:[%s348 + $0x28] sm:$0xff] %v359
                  %v361 = vld [vmem:[%s347 + $0x60] sm:$0xff]
                  %362 = vst [vmem:[%s348 + $0x30] sm:$0xff] %v361
                  %v363 = vld [vmem:[%s347 + $0x70] sm:$0xff]
                  %364 = vst [vmem:[%s348 + $0x38] sm:$0xff] %v363
                  %v365 = vld [vmem:[%s347 + $0x80] sm:$0xff]
                  %366 = vst [vmem:[%s348 + $0x40] sm:$0xff] %v365
                  %v367 = vld [vmem:[%s347 + $0x90] sm:$0xff]
                  %368 = vst [vmem:[%s348 + $0x48] sm:$0xff] %v367
                  %v369 = vld [vmem:[%s347 + $0xa0] sm:$0xff]
                  %370 = vst [vmem:[%s348 + $0x50] sm:$0xff] %v369
                  %v371 = vld [vmem:[%s347 + $0xb0] sm:$0xff]
                  %372 = vst [vmem:[%s348 + $0x58] sm:$0xff] %v371
                  %v373 = vld [vmem:[%s347 + $0xc0] sm:$0xff]
                  %374 = vst [vmem:[%s348 + $0x60] sm:$0xff] %v373
                  %v375 = vld [vmem:[%s347 + $0xd0] sm:$0xff]
                  %376 = vst [vmem:[%s348 + $0x68] sm:$0xff] %v375
                  %v377 = vld [vmem:[%s347 + $0xe0] sm:$0xff]
                  %378 = vst [vmem:[%s348 + $0x70] sm:$0xff] %v377
                  %v379 = vld [vmem:[%s347 + $0xf0] sm:$0xff]
                  %380 = vst [vmem:[%s348 + $0x78] sm:$0xff] %v379
                  %v381 = vld [vmem:[%s347 + $0x100] sm:$0xff]
                  %382 = vst [vmem:[%s348 + $0x80] sm:$0xff] %v381
                  %v383 = vld [vmem:[%s347 + $0x110] sm:$0xff]
                  %384 = vst [vmem:[%s348 + $0x88] sm:$0xff] %v383
                  %v385 = vld [vmem:[%s347 + $0x120] sm:$0xff]
                  %386 = vst [vmem:[%s348 + $0x90] sm:$0xff] %v385
                  %v387 = vld [vmem:[%s347 + $0x130] sm:$0xff]
                  %388 = vst [vmem:[%s348 + $0x98] sm:$0xff] %v387
                  %v389 = vld [vmem:[%s347 + $0x140] sm:$0xff]
                  %390 = vst [vmem:[%s348 + $0xa0] sm:$0xff] %v389
                  %v391 = vld [vmem:[%s347 + $0x150] sm:$0xff]
                  %392 = vst [vmem:[%s348 + $0xa8] sm:$0xff] %v391
                  %v393 = vld [vmem:[%s347 + $0x160] sm:$0xff]
                  %394 = vst [vmem:[%s348 + $0xb0] sm:$0xff] %v393
                  %v395 = vld [vmem:[%s347 + $0x170] sm:$0xff]
                  %396 = vst [vmem:[%s348 + $0xb8] sm:$0xff] %v395
                  %v397 = vld [vmem:[%s347 + $0x180] sm:$0xff]
                  %398 = vst [vmem:[%s348 + $0xc0] sm:$0xff] %v397
                  %v399 = vld [vmem:[%s347 + $0x190] sm:$0xff]
                  %400 = vst [vmem:[%s348 + $0xc8] sm:$0xff] %v399
                  %v401 = vld [vmem:[%s347 + $0x1a0] sm:$0xff]
                  %402 = vst [vmem:[%s348 + $0xd0] sm:$0xff] %v401
                  %v403 = vld [vmem:[%s347 + $0x1b0] sm:$0xff]
                  %404 = vst [vmem:[%s348 + $0xd8] sm:$0xff] %v403
                $region72: #{cnn_forward.1} parent=66 // loop_footer
                  %s346 = sadd.s32 1, %s342
                $region73: #{cnn_forward.1} parent=66 // loop_footer_branch
                  %341 = sbr.rel target = $region69
                $region74: #{cnn_forward.1} parent=66 // loop_exit
                  _
              $region67: #{cnn_forward.1} parent=51 // pred_fallthru
                _
              // Predicated region
              $region75: #{cnn_forward.1} parent=51 // pred_check
                _
              $region76: #{cnn_forward.1} parent=51 // pred_check_branch
                %406 = sbr.rel target = $region78
              $region77: #{cnn_forward.1} parent=51 // pred_region
                _
              $region78: #{cnn_forward.1} parent=51 // pred_fallthru
                _
            $region52: #{cnn_forward.1} parent=47 // pred_fallthru
              _
            // Predicated region
            $region53: #{cnn_forward.1} parent=47 // pred_check
              _
            $region54: #{cnn_forward.1} parent=47 // pred_check_branch
              %273 = sbr.rel target = $region56
            $region55: #{cnn_forward.1} parent=47 // pred_region
              loop: start=0, step=1, limit=1
              $region57: #{cnn_forward.1} parent=55 // loop_pre_header
                _
              $region58: #{cnn_forward.1} parent=55 // loop_header
                %s276 = sphi 0, %s280
                %p277 = scmp.ge.s32.totalorder %s276, 1
                %s281 = sphi %s267, %s267
                %s282 = sphi %s265, %s265
              $region59: #{cnn_forward.1} parent=55 // loop_header_branch
                %279 = sbr.rel (%p277) target = $region63
              $region60: #{cnn_forward.1} parent=55 // loop_body
                %v283 = vld [vmem:[%s281] sm:$0xff]
                %284 = vst [vmem:[%s282] sm:$0xff] %v283
                %v285 = vld [vmem:[%s281 + $0x10] sm:$0xff]
                %286 = vst [vmem:[%s282 + $0x8] sm:$0xff] %v285
                %v287 = vld [vmem:[%s281 + $0x20] sm:$0xff]
                %288 = vst [vmem:[%s282 + $0x10] sm:$0xff] %v287
                %v289 = vld [vmem:[%s281 + $0x30] sm:$0xff]
                %290 = vst [vmem:[%s282 + $0x18] sm:$0xff] %v289
                %v291 = vld [vmem:[%s281 + $0x40] sm:$0xff]
                %292 = vst [vmem:[%s282 + $0x20] sm:$0xff] %v291
                %v293 = vld [vmem:[%s281 + $0x50] sm:$0xff]
                %294 = vst [vmem:[%s282 + $0x28] sm:$0xff] %v293
                %v295 = vld [vmem:[%s281 + $0x60] sm:$0xff]
                %296 = vst [vmem:[%s282 + $0x30] sm:$0xff] %v295
                %v297 = vld [vmem:[%s281 + $0x70] sm:$0xff]
                %298 = vst [vmem:[%s282 + $0x38] sm:$0xff] %v297
                %v299 = vld [vmem:[%s281 + $0x80] sm:$0xff]
                %300 = vst [vmem:[%s282 + $0x40] sm:$0xff] %v299
                %v301 = vld [vmem:[%s281 + $0x90] sm:$0xff]
                %302 = vst [vmem:[%s282 + $0x48] sm:$0xff] %v301
                %v303 = vld [vmem:[%s281 + $0xa0] sm:$0xff]
                %304 = vst [vmem:[%s282 + $0x50] sm:$0xff] %v303
                %v305 = vld [vmem:[%s281 + $0xb0] sm:$0xff]
                %306 = vst [vmem:[%s282 + $0x58] sm:$0xff] %v305
                %v307 = vld [vmem:[%s281 + $0xc0] sm:$0xff]
                %308 = vst [vmem:[%s282 + $0x60] sm:$0xff] %v307
                %v309 = vld [vmem:[%s281 + $0xd0] sm:$0xff]
                %310 = vst [vmem:[%s282 + $0x68] sm:$0xff] %v309
                %v311 = vld [vmem:[%s281 + $0xe0] sm:$0xff]
                %312 = vst [vmem:[%s282 + $0x70] sm:$0xff] %v311
                %v313 = vld [vmem:[%s281 + $0xf0] sm:$0xff]
                %314 = vst [vmem:[%s282 + $0x78] sm:$0xff] %v313
                %v315 = vld [vmem:[%s281 + $0x100] sm:$0xff]
                %316 = vst [vmem:[%s282 + $0x80] sm:$0xff] %v315
                %v317 = vld [vmem:[%s281 + $0x110] sm:$0xff]
                %318 = vst [vmem:[%s282 + $0x88] sm:$0xff] %v317
                %v319 = vld [vmem:[%s281 + $0x120] sm:$0xff]
                %320 = vst [vmem:[%s282 + $0x90] sm:$0xff] %v319
                %v321 = vld [vmem:[%s281 + $0x130] sm:$0xff]
                %322 = vst [vmem:[%s282 + $0x98] sm:$0xff] %v321
                %v323 = vld [vmem:[%s281 + $0x140] sm:$0xff]
                %324 = vst [vmem:[%s282 + $0xa0] sm:$0xff] %v323
                %v325 = vld [vmem:[%s281 + $0x150] sm:$0xff]
                %326 = vst [vmem:[%s282 + $0xa8] sm:$0xff] %v325
                %v327 = vld [vmem:[%s281 + $0x160] sm:$0xff]
                %328 = vst [vmem:[%s282 + $0xb0] sm:$0xff] %v327
                %v329 = vld [vmem:[%s281 + $0x170] sm:$0xff]
                %330 = vst [vmem:[%s282 + $0xb8] sm:$0xff] %v329
                %v331 = vld [vmem:[%s281 + $0x180] sm:$0xff]
                %332 = vst [vmem:[%s282 + $0xc0] sm:$0xff] %v331
                %v333 = vld [vmem:[%s281 + $0x190] sm:$0xff]
                %334 = vst [vmem:[%s282 + $0xc8] sm:$0xff] %v333
                %v335 = vld [vmem:[%s281 + $0x1a0] sm:$0xff]
                %336 = vst [vmem:[%s282 + $0xd0] sm:$0xff] %v335
                %v337 = vld [vmem:[%s281 + $0x1b0] sm:$0xff]
                %338 = vst [vmem:[%s282 + $0xd8] sm:$0xff] %v337
              $region61: #{cnn_forward.1} parent=55 // loop_footer
                %s280 = sadd.s32 1, %s276
              $region62: #{cnn_forward.1} parent=55 // loop_footer_branch
                %275 = sbr.rel target = $region58
              $region63: #{cnn_forward.1} parent=55 // loop_exit
                _
            $region56: #{cnn_forward.1} parent=47 // pred_fallthru
              _
          $region48: #{cnn_forward.1} parent=43 // pred_fallthru
            _
          %407 = vnop
        $region44: #{cnn_forward.1} parent=39 // pred_fallthru
          _
      $region40: #{cnn_forward.1} parent=5 // pred_fallthru
        _
      %p408 = scmp.le.s32.totalorder 1, %s18
      %p409 = scmp.lt.s32.totalorder %s18, 3
      %p410 = pnand %p408, %p409
      %p411 = pneg %p410
      // Predicated region
      $region79: #{cnn_forward.1} parent=5 // pred_check
        _
      $region80: #{cnn_forward.1} parent=5 // pred_check_branch
        %413 = sbr.rel (%p410) target = $region82
      $region81: #{cnn_forward.1} parent=5 // pred_region
        %s414 = ssub.s32 %s18, 1
        %s415 = sand.u32 %s31, 1
        %s416 = sand.u32 %s31, 1
        %s417 = smul.addr %s416, 224
        %s418 = scalar_lea.vmem [#allocation6], %s417
        // Predicated region
        $region83: #{cnn_forward.1} parent=81 // pred_check
          %p419 = pneg %p44
        $region84: #{cnn_forward.1} parent=81 // pred_check_branch
          %421 = sbr.rel (%p419) target = $region86
        $region85: #{cnn_forward.1} parent=81 // pred_region
          _
        $region86: #{cnn_forward.1} parent=81 // pred_fallthru
          _
        %s422 = sand.u32 %s31, 1
        %s423 = sand.u32 %s31, 1
        %s424 = smul.addr %s423, 224
        %s425 = scalar_lea.vmem [#allocation6], %s424
        %p426 = pneg %p44
        %p427 = pneg %p41
        %p428 = pneg %p65
        %p429 = pneg %p62
        %p430 = pneg %p86
        %p431 = pneg %p83
        %p432 = pneg %p107
        %p433 = pneg %p104
        %p434 = pneg %p128
        %p435 = pneg %p125
        %p436 = pneg %p149
        %p437 = pneg %p146
        %p438 = pneg %p170
        %p439 = pneg %p167
        %p440 = pneg %p196
        %p441 = pneg %p193
        %s442 = sand.u32 %s183, 1
        %s443 = scalar_lea.sflag [#allocation8], %s442
        %s444 = sand.u32 %s183, 1
        %s445 = smul.addr %s444, 8
        %s446 = scalar_lea.vmem [#allocation7], %s445
        %p447 = pneg %p222
        %p448 = pneg %p219
        %s449 = sand.u32 %s209, 1
        %s450 = sand.u32 %s209, 1
        %s451 = smul.addr %s450, 112
        %s452 = scalar_lea.vmem [#allocation9], %s451
        %vm453 = vcmask 228352
        %454 = vst.msk [vmem:[#allocation2] sm:$0xff] %vm453, 0.0
        %455 = vst.msk [vmem:[#allocation2 + $0x8] sm:$0xff] %vm453, 0.0
        %456 = vst.msk [vmem:[#allocation2 + $0x10] sm:$0xff] %vm453, 0.0
        %457 = vst.msk [vmem:[#allocation2 + $0x18] sm:$0xff] %vm453, 0.0
        %458 = vst.msk [vmem:[#allocation2 + $0x20] sm:$0xff] %vm453, 0.0
        %459 = vst.msk [vmem:[#allocation2 + $0x28] sm:$0xff] %vm453, 0.0
        %460 = vst.msk [vmem:[#allocation2 + $0x30] sm:$0xff] %vm453, 0.0
        %461 = vst.msk [vmem:[#allocation2 + $0x38] sm:$0xff] %vm453, 0.0
        %462 = vst.msk [vmem:[#allocation2 + $0x40] sm:$0xff] %vm453, 0.0
        %463 = vst.msk [vmem:[#allocation2 + $0x48] sm:$0xff] %vm453, 0.0
        %464 = vst.msk [vmem:[#allocation2 + $0x50] sm:$0xff] %vm453, 0.0
        %465 = vst.msk [vmem:[#allocation2 + $0x58] sm:$0xff] %vm453, 0.0
        %466 = vst.msk [vmem:[#allocation2 + $0x60] sm:$0xff] %vm453, 0.0
        %467 = vst.msk [vmem:[#allocation2 + $0x68] sm:$0xff] %vm453, 0.0
        %468 = vst.msk [vmem:[#allocation2 + $0x70] sm:$0xff] %vm453, 0.0
        %469 = vst.msk [vmem:[#allocation2 + $0x78] sm:$0xff] %vm453, 0.0
        %470 = vst.msk [vmem:[#allocation3] sm:$0xff] %vm453, 0.0
        %471 = vst.msk [vmem:[#allocation3 + $0x8] sm:$0xff] %vm453, 0.0
        %472 = vst.msk [vmem:[#allocation3 + $0x10] sm:$0xff] %vm453, 0.0
        %473 = vst.msk [vmem:[#allocation3 + $0x18] sm:$0xff] %vm453, 0.0
        %474 = vst.msk [vmem:[#allocation3 + $0x20] sm:$0xff] %vm453, 0.0
        %475 = vst.msk [vmem:[#allocation3 + $0x28] sm:$0xff] %vm453, 0.0
        %476 = vst.msk [vmem:[#allocation3 + $0x30] sm:$0xff] %vm453, 0.0
        %477 = vst.msk [vmem:[#allocation3 + $0x38] sm:$0xff] %vm453, 0.0
        %478 = vst.msk [vmem:[#allocation3 + $0x40] sm:$0xff] %vm453, 0.0
        %479 = vst.msk [vmem:[#allocation3 + $0x48] sm:$0xff] %vm453, 0.0
        %480 = vst.msk [vmem:[#allocation3 + $0x50] sm:$0xff] %vm453, 0.0
        %481 = vst.msk [vmem:[#allocation3 + $0x58] sm:$0xff] %vm453, 0.0
        %482 = vst.msk [vmem:[#allocation3 + $0x60] sm:$0xff] %vm453, 0.0
        %483 = vst.msk [vmem:[#allocation3 + $0x68] sm:$0xff] %vm453, 0.0
        %484 = vst.msk [vmem:[#allocation3 + $0x70] sm:$0xff] %vm453, 0.0
        %485 = vst.msk [vmem:[#allocation3 + $0x78] sm:$0xff] %vm453, 0.0
        %486 = vst [vmem:[#allocation4] sm:$0xff] 0.0
        %vm487 = vcmask 785408
        %488 = vst.msk [vmem:[#allocation4 + $0x8] sm:$0xff] %vm487, 0.0
        %489 = vst [vmem:[#allocation4 + $0x10] sm:$0xff] 0.0
        %490 = vst.msk [vmem:[#allocation4 + $0x18] sm:$0xff] %vm487, 0.0
        %491 = vst [vmem:[#allocation4 + $0x20] sm:$0xff] 0.0
        %492 = vst.msk [vmem:[#allocation4 + $0x28] sm:$0xff] %vm487, 0.0
        %493 = vst [vmem:[#allocation4 + $0x30] sm:$0xff] 0.0
        %494 = vst.msk [vmem:[#allocation4 + $0x38] sm:$0xff] %vm487, 0.0
        %495 = vst [vmem:[#allocation4 + $0x40] sm:$0xff] 0.0
        %496 = vst.msk [vmem:[#allocation4 + $0x48] sm:$0xff] %vm487, 0.0
        %497 = vst [vmem:[#allocation4 + $0x50] sm:$0xff] 0.0
        %498 = vst.msk [vmem:[#allocation4 + $0x58] sm:$0xff] %vm487, 0.0
        %499 = vst [vmem:[#allocation4 + $0x60] sm:$0xff] 0.0
        %500 = vst.msk [vmem:[#allocation4 + $0x68] sm:$0xff] %vm487, 0.0
        %501 = vst [vmem:[#allocation4 + $0x70] sm:$0xff] 0.0
        %502 = vst.msk [vmem:[#allocation4 + $0x78] sm:$0xff] %vm487, 0.0
        %503 = vst [vmem:[#allocation4 + $0x80] sm:$0xff] 0.0
        %504 = vst.msk [vmem:[#allocation4 + $0x88] sm:$0xff] %vm487, 0.0
        %505 = vst [vmem:[#allocation5] sm:$0xff] 0.0
        %506 = vst.msk [vmem:[#allocation5 + $0x8] sm:$0xff] %vm487, 0.0
        %507 = vst [vmem:[#allocation5 + $0x10] sm:$0xff] 0.0
        %508 = vst.msk [vmem:[#allocation5 + $0x18] sm:$0xff] %vm487, 0.0
        %509 = vst [vmem:[#allocation5 + $0x20] sm:$0xff] 0.0
        %510 = vst.msk [vmem:[#allocation5 + $0x28] sm:$0xff] %vm487, 0.0
        %511 = vst [vmem:[#allocation5 + $0x30] sm:$0xff] 0.0
        %512 = vst.msk [vmem:[#allocation5 + $0x38] sm:$0xff] %vm487, 0.0
        %513 = vst [vmem:[#allocation5 + $0x40] sm:$0xff] 0.0
        %514 = vst.msk [vmem:[#allocation5 + $0x48] sm:$0xff] %vm487, 0.0
        %515 = vst [vmem:[#allocation5 + $0x50] sm:$0xff] 0.0
        %516 = vst.msk [vmem:[#allocation5 + $0x58] sm:$0xff] %vm487, 0.0
        %517 = vst [vmem:[#allocation5 + $0x60] sm:$0xff] 0.0
        %518 = vst.msk [vmem:[#allocation5 + $0x68] sm:$0xff] %vm487, 0.0
        %519 = vst [vmem:[#allocation5 + $0x70] sm:$0xff] 0.0
        %520 = vst.msk [vmem:[#allocation5 + $0x78] sm:$0xff] %vm487, 0.0
        %521 = vst [vmem:[#allocation5 + $0x80] sm:$0xff] 0.0
        %522 = vst.msk [vmem:[#allocation5 + $0x88] sm:$0xff] %vm487, 0.0
        %v523 = vld [vmem:[%s418] sm:$0xff]
        %v524 = vld [vmem:[%s418 + $0x8] sm:$0xff]
        %v525 = vld [vmem:[%s418 + $0x10] sm:$0xff]
        %v526 = vld [vmem:[%s418 + $0x18] sm:$0xff]
        %v527 = vld [vmem:[%s418 + $0x20] sm:$0xff]
        %v528 = vld [vmem:[%s418 + $0x28] sm:$0xff]
        %v529 = vld [vmem:[%s418 + $0x30] sm:$0xff]
        %v530 = vld [vmem:[%s418 + $0x38] sm:$0xff]
        %v531 = vld [vmem:[%s418 + $0x40] sm:$0xff]
        %v532 = vld [vmem:[%s418 + $0x48] sm:$0xff]
        %v533 = vld [vmem:[%s418 + $0x50] sm:$0xff]
        %v534 = vld [vmem:[%s418 + $0x58] sm:$0xff]
        %v535 = vld [vmem:[%s418 + $0x60] sm:$0xff]
        %v536 = vld [vmem:[%s418 + $0x68] sm:$0xff]
        %s537 = scalar_lea.vmem [#allocation2], 8
        %538 = vst.msk [vmem:[%s537] sm:$0xff] %vm453, %v523
        %539 = vst.msk [vmem:[%s537 + $0x8] sm:$0xff] %vm453, %v524
        %540 = vst.msk [vmem:[%s537 + $0x10] sm:$0xff] %vm453, %v525
        %541 = vst.msk [vmem:[%s537 + $0x18] sm:$0xff] %vm453, %v526
        %542 = vst.msk [vmem:[%s537 + $0x20] sm:$0xff] %vm453, %v527
        %543 = vst.msk [vmem:[%s537 + $0x28] sm:$0xff] %vm453, %v528
        %544 = vst.msk [vmem:[%s537 + $0x30] sm:$0xff] %vm453, %v529
        %545 = vst.msk [vmem:[%s537 + $0x38] sm:$0xff] %vm453, %v530
        %546 = vst.msk [vmem:[%s537 + $0x40] sm:$0xff] %vm453, %v531
        %547 = vst.msk [vmem:[%s537 + $0x48] sm:$0xff] %vm453, %v532
        %548 = vst.msk [vmem:[%s537 + $0x50] sm:$0xff] %vm453, %v533
        %549 = vst.msk [vmem:[%s537 + $0x58] sm:$0xff] %vm453, %v534
        %550 = vst.msk [vmem:[%s537 + $0x60] sm:$0xff] %vm453, %v535
        %551 = vst.msk [vmem:[%s537 + $0x68] sm:$0xff] %vm453, %v536
        %s552 = scalar_lea.vmem %s418, 112 [#allocation6]
        %v553 = vld [vmem:[%s552] sm:$0xff]
        %v554 = vld [vmem:[%s552 + $0x8] sm:$0xff]
        %v555 = vld [vmem:[%s552 + $0x10] sm:$0xff]
        %v556 = vld [vmem:[%s552 + $0x18] sm:$0xff]
        %v557 = vld [vmem:[%s552 + $0x20] sm:$0xff]
        %v558 = vld [vmem:[%s552 + $0x28] sm:$0xff]
        %v559 = vld [vmem:[%s552 + $0x30] sm:$0xff]
        %v560 = vld [vmem:[%s552 + $0x38] sm:$0xff]
        %v561 = vld [vmem:[%s552 + $0x40] sm:$0xff]
        %v562 = vld [vmem:[%s552 + $0x48] sm:$0xff]
        %v563 = vld [vmem:[%s552 + $0x50] sm:$0xff]
        %v564 = vld [vmem:[%s552 + $0x58] sm:$0xff]
        %v565 = vld [vmem:[%s552 + $0x60] sm:$0xff]
        %v566 = vld [vmem:[%s552 + $0x68] sm:$0xff]
        %s567 = scalar_lea.vmem [#allocation3], 8
        %568 = vst.msk [vmem:[%s567] sm:$0xff] %vm453, %v553
        %569 = vst.msk [vmem:[%s567 + $0x8] sm:$0xff] %vm453, %v554
        %570 = vst.msk [vmem:[%s567 + $0x10] sm:$0xff] %vm453, %v555
        %571 = vst.msk [vmem:[%s567 + $0x18] sm:$0xff] %vm453, %v556
        %572 = vst.msk [vmem:[%s567 + $0x20] sm:$0xff] %vm453, %v557
        %573 = vst.msk [vmem:[%s567 + $0x28] sm:$0xff] %vm453, %v558
        %574 = vst.msk [vmem:[%s567 + $0x30] sm:$0xff] %vm453, %v559
        %575 = vst.msk [vmem:[%s567 + $0x38] sm:$0xff] %vm453, %v560
        %576 = vst.msk [vmem:[%s567 + $0x40] sm:$0xff] %vm453, %v561
        %577 = vst.msk [vmem:[%s567 + $0x48] sm:$0xff] %vm453, %v562
        %578 = vst.msk [vmem:[%s567 + $0x50] sm:$0xff] %vm453, %v563
        %579 = vst.msk [vmem:[%s567 + $0x58] sm:$0xff] %vm453, %v564
        %580 = vst.msk [vmem:[%s567 + $0x60] sm:$0xff] %vm453, %v565
        %581 = vst.msk [vmem:[%s567 + $0x68] sm:$0xff] %vm453, %v566
        %v582 = vld [vmem:[#allocation2] sm:$0xff]
        %v583 = vld [vmem:[#allocation2 + $0x8] sm:$0xff]
        %v584 = vld [vmem:[#allocation2 + $0x10] sm:$0xff]
        %v585 = vld [vmem:[#allocation2 + $0x18] sm:$0xff]
        %v586 = vld [vmem:[#allocation2 + $0x20] sm:$0xff]
        %v587 = vld [vmem:[#allocation2 + $0x28] sm:$0xff]
        %v588 = vld [vmem:[#allocation2 + $0x30] sm:$0xff]
        %v589 = vld [vmem:[#allocation2 + $0x38] sm:$0xff]
        %v590 = vld [vmem:[#allocation2 + $0x40] sm:$0xff]
        %v591 = vld [vmem:[#allocation2 + $0x48] sm:$0xff]
        %v592 = vld [vmem:[#allocation2 + $0x50] sm:$0xff]
        %v593 = vld [vmem:[#allocation2 + $0x58] sm:$0xff]
        %v594 = vld [vmem:[#allocation2 + $0x60] sm:$0xff]
        %v595 = vld [vmem:[#allocation2 + $0x68] sm:$0xff]
        %v596 = vld [vmem:[%s1] sm:$0xff]
        %v597 = vld [vmem:[%s1 + $0x8] sm:$0xff]
        %v598 = vld [vmem:[%s1 + $0x10] sm:$0xff]
        %v599 = vld [vmem:[%s1 + $0x18] sm:$0xff]
        %v600 = vld [vmem:[%s1 + $0x20] sm:$0xff]
        %v601 = vld [vmem:[%s1 + $0x28] sm:$0xff]
        %v602 = vld [vmem:[%s1 + $0x30] sm:$0xf]
        %v603 = vld [vmem:[%s1 + $0x38] sm:$0xf]
        %v604 = vld [vmem:[#allocation3] sm:$0xff]
        %v605 = vld [vmem:[#allocation3 + $0x8] sm:$0xff]
        %v606 = vld [vmem:[#allocation3 + $0x10] sm:$0xff]
        %v607 = vld [vmem:[#allocation3 + $0x18] sm:$0xff]
        %v608 = vld [vmem:[#allocation3 + $0x20] sm:$0xff]
        %v609 = vld [vmem:[#allocation3 + $0x28] sm:$0xff]
        %v610 = vld [vmem:[#allocation3 + $0x30] sm:$0xff]
        %v611 = vld [vmem:[#allocation3 + $0x38] sm:$0xff]
        %v612 = vld [vmem:[#allocation3 + $0x40] sm:$0xff]
        %v613 = vld [vmem:[#allocation3 + $0x48] sm:$0xff]
        %v614 = vld [vmem:[#allocation3 + $0x50] sm:$0xff]
        %v615 = vld [vmem:[#allocation3 + $0x58] sm:$0xff]
        %v616 = vld [vmem:[#allocation3 + $0x60] sm:$0xff]
        %v617 = vld [vmem:[#allocation3 + $0x68] sm:$0xff]
        %s618 = scalar_lea.vmem %s1, 128
        %v619 = vld [vmem:[%s618] sm:$0xff]
        %v620 = vld [vmem:[%s618 + $0x8] sm:$0xff]
        %v621 = vld [vmem:[%s618 + $0x10] sm:$0xff]
        %v622 = vld [vmem:[%s618 + $0x18] sm:$0xff]
        %v623 = vld [vmem:[%s618 + $0x20] sm:$0xff]
        %v624 = vld [vmem:[%s618 + $0x28] sm:$0xff]
        %v625 = vld [vmem:[%s618 + $0x30] sm:$0xf]
        %v626 = vld [vmem:[%s618 + $0x38] sm:$0xf]
        %v628 = vsel %vm453, %v604, 0
        %v631 = vsel %vm453, %v605, 0
        %v634 = vsel %vm453, %v606, 0
        %v637 = vsel %vm453, %v607, 0
        %v640 = vsel %vm453, %v608, 0
        %v643 = vsel %vm453, %v609, 0
        %v646 = vsel %vm453, %v610, 0
        %v649 = vsel %vm453, %v611, 0
        %v652 = vsel %vm453, %v612, 0
        %v655 = vsel %vm453, %v613, 0
        %v658 = vsel %vm453, %v614, 0
        %v661 = vsel %vm453, %v615, 0
        %v664 = vsel %vm453, %v616, 0
        %v667 = vsel %vm453, %v617, 0
        %vm669 = vcmask 1043456
        %v671 = vsel %vm669, %v625, 0
        %v674 = vsel %vm669, %v626, 0
        %676 = vmatprep.subr.mxu0 %v620
        %677 = vmatpush1.msra.mxu0 %v619
        %678 = vmatprep.subr.mxu0 %v622
        %679 = vmatpush1.msra.mxu0 %v621
        %680 = vmatprep.subr.mxu0 %v624
        %681 = vmatpush1.msra.mxu0 %v623
        %682 = vmatprep.subr.mxu0 %v674
        %683 = vmatpush1.msra.mxu0 %v671
        %684 = vmatprep.subr.mxu0 0.0
        %685 = vmatpush1.msra.mxu0 0.0
        %686 = vmatprep.subr.mxu0 0.0
        %687 = vmatpush1.msra.mxu0 0.0
        %688 = vmatprep.subr.mxu0 0.0
        %689 = vmatpush1.msra.mxu0 0.0
        %690 = vmatprep.subr.mxu0 0.0
        %691 = vmatpush1.msra.mxu0 0.0
        %692 = vmatprep.subr.mxu0 0.0
        %693 = vmatpush1.msra.mxu0 0.0
        %694 = vmatprep.subr.mxu0 0.0
        %695 = vmatpush1.msra.mxu0 0.0
        %696 = vmatprep.subr.mxu0 0.0
        %697 = vmatpush1.msra.mxu0 0.0
        %698 = vmatprep.subr.mxu0 0.0
        %699 = vmatpush1.msra.mxu0 0.0
        %700 = vmatprep.subr.mxu0 0.0
        %701 = vmatpush1.msra.mxu0 0.0
        %702 = vmatprep.subr.mxu0 0.0
        %703 = vmatpush1.msra.mxu0 0.0
        %704 = vmatprep.subr.mxu0 0.0
        %705 = vmatpush1.msra.mxu0 0.0
        %706 = vmatprep.subr.mxu0 0.0
        %707 = vmatpush1.msra.mxu0 0.0
        %708 = vmatprep.subr.mxu0 0.0
        %709 = vmatpush1.msra.mxu0 0.0
        %710 = vmatprep.subr.mxu0 0.0
        %711 = vmatpush1.msra.mxu0 0.0
        %712 = vmatprep.subr.mxu0 0.0
        %713 = vmatpush1.msra.mxu0 0.0
        %714 = vmatprep.subr.mxu0 0.0
        %715 = vmatpush1.msra.mxu0 0.0
        %716 = vmatprep.subr.mxu0 0.0
        %717 = vmatpush1.msra.mxu0 0.0
        %718 = vmatprep.subr.mxu0 0.0
        %719 = vmatpush1.msra.mxu0 0.0
        %720 = vmatprep.subr.mxu0 0.0
        %721 = vmatpush1.msra.mxu0 0.0
        %722 = vmatprep.subr.mxu0 0.0
        %723 = vmatpush1.msra.mxu0 0.0
        %724 = vmatprep.subr.mxu0 0.0
        %725 = vmatpush1.msra.mxu0 0.0
        %726 = vmatprep.subr.mxu0 0.0
        %727 = vmatpush1.msra.mxu0 0.0
        %728 = vmatprep.subr.mxu0 0.0
        %729 = vmatpush1.msra.mxu0 0.0
        %730 = vmatprep.subr.mxu0 0.0
        %731 = vmatpush1.msra.mxu0 0.0
        %732 = vmatprep.subr.mxu0 0.0
        %733 = vmatpush1.msra.mxu0 0.0
        %734 = vmatprep.subr.mxu0 0.0
        %735 = vmatpush1.msra.mxu0 0.0
        %736 = vmatprep.subr.mxu0 0.0
        %737 = vmatpush1.msra.mxu0 0.0
        %738 = vmatprep.subr.mxu0 0.0
        %739 = vmatpush1.msra.mxu0 0.0
        %740 = vmatprep.mubr.f32.mxu0 0.0
        %741 = vmatmul.mubr.f32.gmra.mrb[0].mxu0 %v628
        %v742 = vpop.f32.mrb[0].mxu0
        %v743 = vadd.f32 0.0, %v742
        %v744 = vpop.f32.mrb[0].mxu0
        %v745 = vadd.f32 0.0, %v744
        %746 = vmatprep.mubr.f32.mxu0 0.0
        %747 = vmatmul.mubr.f32.gmra.mrb[0].mxu0 %v631
        %v748 = vpop.f32.mrb[0].mxu0
        %v749 = vadd.f32 0.0, %v748
        %v750 = vpop.f32.mrb[0].mxu0
        %v751 = vadd.f32 0.0, %v750
        %752 = vmatprep.mubr.f32.mxu0 0.0
        %753 = vmatmul.mubr.f32.gmra.mrb[0].mxu0 %v634
        %v754 = vpop.f32.mrb[0].mxu0
        %v755 = vadd.f32 0.0, %v754
        %v756 = vpop.f32.mrb[0].mxu0
        %v757 = vadd.f32 0.0, %v756
        %758 = vmatprep.mubr.f32.mxu0 0.0
        %759 = vmatmul.mubr.f32.gmra.mrb[0].mxu0 %v637
        %v760 = vpop.f32.mrb[0].mxu0
        %v761 = vadd.f32 0.0, %v760
        %v762 = vpop.f32.mrb[0].mxu0
        %v763 = vadd.f32 0.0, %v762
        %764 = vmatprep.mubr.f32.mxu0 0.0
        %765 = vmatmul.mubr.f32.gmra.mrb[0].mxu0 %v640
        %v766 = vpop.f32.mrb[0].mxu0
        %v767 = vadd.f32 0.0, %v766
        %v768 = vpop.f32.mrb[0].mxu0
        %v769 = vadd.f32 0.0, %v768
        %770 = vmatprep.mubr.f32.mxu0 0.0
        %771 = vmatmul.mubr.f32.gmra.mrb[0].mxu0 %v643
        %v772 = vpop.f32.mrb[0].mxu0
        %v773 = vadd.f32 0.0, %v772
        %v774 = vpop.f32.mrb[0].mxu0
        %v775 = vadd.f32 0.0, %v774
        %776 = vmatprep.mubr.f32.mxu0 0.0
        %777 = vmatmul.mubr.f32.gmra.mrb[0].mxu0 %v646
        %v778 = vpop.f32.mrb[0].mxu0
        %v779 = vadd.f32 0.0, %v778
        %v780 = vpop.f32.mrb[0].mxu0
        %v781 = vadd.f32 0.0, %v780
        %782 = vmatprep.mubr.f32.mxu0 0.0
        %783 = vmatmul.mubr.f32.gmra.mrb[0].mxu0 %v649
        %v784 = vpop.f32.mrb[0].mxu0
        %v785 = vadd.f32 0.0, %v784
        %v786 = vpop.f32.mrb[0].mxu0
        %v787 = vadd.f32 0.0, %v786
        %788 = vmatprep.mubr.f32.mxu0 0.0
        %789 = vmatmul.mubr.f32.gmra.mrb[0].mxu0 %v652
        %v790 = vpop.f32.mrb[0].mxu0
        %v791 = vadd.f32 0.0, %v790
        %v792 = vpop.f32.mrb[0].mxu0
        %v793 = vadd.f32 0.0, %v792
        %794 = vmatprep.mubr.f32.mxu0 0.0
        %795 = vmatmul.mubr.f32.gmra.mrb[0].mxu0 %v655
        %v796 = vpop.f32.mrb[0].mxu0
        %v797 = vadd.f32 0.0, %v796
        %v798 = vpop.f32.mrb[0].mxu0
        %v799 = vadd.f32 0.0, %v798
        %800 = vmatprep.mubr.f32.mxu0 0.0
        %801 = vmatmul.mubr.f32.gmra.mrb[0].mxu0 %v658
        %v802 = vpop.f32.mrb[0].mxu0
        %v803 = vadd.f32 0.0, %v802
        %v804 = vpop.f32.mrb[0].mxu0
        %v805 = vadd.f32 0.0, %v804
        %806 = vmatprep.mubr.f32.mxu0 0.0
        %807 = vmatmul.mubr.f32.gmra.mrb[0].mxu0 %v661
        %v808 = vpop.f32.mrb[0].mxu0
        %v809 = vadd.f32 0.0, %v808
        %v810 = vpop.f32.mrb[0].mxu0
        %v811 = vadd.f32 0.0, %v810
        %812 = vmatprep.mubr.f32.mxu0 0.0
        %813 = vmatmul.mubr.f32.gmra.mrb[0].mxu0 %v664
        %v814 = vpop.f32.mrb[0].mxu0
        %v815 = vadd.f32 0.0, %v814
        %v816 = vpop.f32.mrb[0].mxu0
        %v817 = vadd.f32 0.0, %v816
        %818 = vmatprep.mubr.f32.mxu0 0.0
        %819 = vmatmul.mubr.f32.gmra.mrb[0].mxu0 %v667
        %v820 = vpop.f32.mrb[0].mxu0
        %v821 = vadd.f32 0.0, %v820
        %v822 = vpop.f32.mrb[0].mxu0
        %v823 = vadd.f32 0.0, %v822
        %824 = vdwg.mxu0
        %v826 = vsel %vm453, %v582, 0
        %v829 = vsel %vm453, %v583, 0
        %v832 = vsel %vm453, %v584, 0
        %v835 = vsel %vm453, %v585, 0
        %v838 = vsel %vm453, %v586, 0
        %v841 = vsel %vm453, %v587, 0
        %v844 = vsel %vm453, %v588, 0
        %v847 = vsel %vm453, %v589, 0
        %v850 = vsel %vm453, %v590, 0
        %v853 = vsel %vm453, %v591, 0
        %v856 = vsel %vm453, %v592, 0
        %v859 = vsel %vm453, %v593, 0
        %v862 = vsel %vm453, %v594, 0
        %v865 = vsel %vm453, %v595, 0
        %v868 = vsel %vm669, %v602, 0
        %v871 = vsel %vm669, %v603, 0
        %873 = vmatprep.subr.mxu0 %v597
        %874 = vmatpush1.msra.mxu0 %v596
        %875 = vmatprep.subr.mxu0 %v599
        %876 = vmatpush1.msra.mxu0 %v598
        %877 = vmatprep.subr.mxu0 %v601
        %878 = vmatpush1.msra.mxu0 %v600
        %879 = vmatprep.subr.mxu0 %v871
        %880 = vmatpush1.msra.mxu0 %v868
        %881 = vmatprep.subr.mxu0 0.0
        %882 = vmatpush1.msra.mxu0 0.0
        %883 = vmatprep.subr.mxu0 0.0
        %884 = vmatpush1.msra.mxu0 0.0
        %885 = vmatprep.subr.mxu0 0.0
        %886 = vmatpush1.msra.mxu0 0.0
        %887 = vmatprep.subr.mxu0 0.0
        %888 = vmatpush1.msra.mxu0 0.0
        %889 = vmatprep.subr.mxu0 0.0
        %890 = vmatpush1.msra.mxu0 0.0
        %891 = vmatprep.subr.mxu0 0.0
        %892 = vmatpush1.msra.mxu0 0.0
        %893 = vmatprep.subr.mxu0 0.0
        %894 = vmatpush1.msra.mxu0 0.0
        %895 = vmatprep.subr.mxu0 0.0
        %896 = vmatpush1.msra.mxu0 0.0
        %897 = vmatprep.subr.mxu0 0.0
        %898 = vmatpush1.msra.mxu0 0.0
        %899 = vmatprep.subr.mxu0 0.0
        %900 = vmatpush1.msra.mxu0 0.0
        %901 = vmatprep.subr.mxu0 0.0
        %902 = vmatpush1.msra.mxu0 0.0
        %903 = vmatprep.subr.mxu0 0.0
        %904 = vmatpush1.msra.mxu0 0.0
        %905 = vmatprep.subr.mxu0 0.0
        %906 = vmatpush1.msra.mxu0 0.0
        %907 = vmatprep.subr.mxu0 0.0
        %908 = vmatpush1.msra.mxu0 0.0
        %909 = vmatprep.subr.mxu0 0.0
        %910 = vmatpush1.msra.mxu0 0.0
        %911 = vmatprep.subr.mxu0 0.0
        %912 = vmatpush1.msra.mxu0 0.0
        %913 = vmatprep.subr.mxu0 0.0
        %914 = vmatpush1.msra.mxu0 0.0
        %915 = vmatprep.subr.mxu0 0.0
        %916 = vmatpush1.msra.mxu0 0.0
        %917 = vmatprep.subr.mxu0 0.0
        %918 = vmatpush1.msra.mxu0 0.0
        %919 = vmatprep.subr.mxu0 0.0
        %920 = vmatpush1.msra.mxu0 0.0
        %921 = vmatprep.subr.mxu0 0.0
        %922 = vmatpush1.msra.mxu0 0.0
        %923 = vmatprep.subr.mxu0 0.0
        %924 = vmatpush1.msra.mxu0 0.0
        %925 = vmatprep.subr.mxu0 0.0
        %926 = vmatpush1.msra.mxu0 0.0
        %927 = vmatprep.subr.mxu0 0.0
        %928 = vmatpush1.msra.mxu0 0.0
        %929 = vmatprep.subr.mxu0 0.0
        %930 = vmatpush1.msra.mxu0 0.0
        %931 = vmatprep.subr.mxu0 0.0
        %932 = vmatpush1.msra.mxu0 0.0
        %933 = vmatprep.subr.mxu0 0.0
        %934 = vmatpush1.msra.mxu0 0.0
        %935 = vmatprep.subr.mxu0 0.0
        %936 = vmatpush1.msra.mxu0 0.0
        %937 = vmatprep.mubr.f32.mxu0 0.0
        %938 = vmatmul.mubr.f32.gmra.mrb[0].mxu0 %v826
        %v939 = vpop.f32.mrb[0].mxu0
        %v940 = vadd.f32 %v743, %v939
        %v941 = vpop.f32.mrb[0].mxu0
        %v942 = vadd.f32 %v745, %v941
        %943 = vmatprep.mubr.f32.mxu0 0.0
        %944 = vmatmul.mubr.f32.gmra.mrb[0].mxu0 %v829
        %v945 = vpop.f32.mrb[0].mxu0
        %v946 = vadd.f32 %v749, %v945
        %v947 = vpop.f32.mrb[0].mxu0
        %v948 = vadd.f32 %v751, %v947
        %949 = vmatprep.mubr.f32.mxu0 0.0
        %950 = vmatmul.mubr.f32.gmra.mrb[0].mxu0 %v832
        %v951 = vpop.f32.mrb[0].mxu0
        %v952 = vadd.f32 %v755, %v951
        %v953 = vpop.f32.mrb[0].mxu0
        %v954 = vadd.f32 %v757, %v953
        %955 = vmatprep.mubr.f32.mxu0 0.0
        %956 = vmatmul.mubr.f32.gmra.mrb[0].mxu0 %v835
        %v957 = vpop.f32.mrb[0].mxu0
        %v958 = vadd.f32 %v761, %v957
        %v959 = vpop.f32.mrb[0].mxu0
        %v960 = vadd.f32 %v763, %v959
        %961 = vmatprep.mubr.f32.mxu0 0.0
        %962 = vmatmul.mubr.f32.gmra.mrb[0].mxu0 %v838
        %v963 = vpop.f32.mrb[0].mxu0
        %v964 = vadd.f32 %v767, %v963
        %v965 = vpop.f32.mrb[0].mxu0
        %v966 = vadd.f32 %v769, %v965
        %967 = vmatprep.mubr.f32.mxu0 0.0
        %968 = vmatmul.mubr.f32.gmra.mrb[0].mxu0 %v841
        %v969 = vpop.f32.mrb[0].mxu0
        %v970 = vadd.f32 %v773, %v969
        %v971 = vpop.f32.mrb[0].mxu0
        %v972 = vadd.f32 %v775, %v971
        %973 = vmatprep.mubr.f32.mxu0 0.0
        %974 = vmatmul.mubr.f32.gmra.mrb[0].mxu0 %v844
        %v975 = vpop.f32.mrb[0].mxu0
        %v976 = vadd.f32 %v779, %v975
        %v977 = vpop.f32.mrb[0].mxu0
        %v978 = vadd.f32 %v781, %v977
        %979 = vmatprep.mubr.f32.mxu0 0.0
        %980 = vmatmul.mubr.f32.gmra.mrb[0].mxu0 %v847
        %v981 = vpop.f32.mrb[0].mxu0
        %v982 = vadd.f32 %v785, %v981
        %v983 = vpop.f32.mrb[0].mxu0
        %v984 = vadd.f32 %v787, %v983
        %985 = vmatprep.mubr.f32.mxu0 0.0
        %986 = vmatmul.mubr.f32.gmra.mrb[0].mxu0 %v850
        %v987 = vpop.f32.mrb[0].mxu0
        %v988 = vadd.f32 %v791, %v987
        %v989 = vpop.f32.mrb[0].mxu0
        %v990 = vadd.f32 %v793, %v989
        %991 = vmatprep.mubr.f32.mxu0 0.0
        %992 = vmatmul.mubr.f32.gmra.mrb[0].mxu0 %v853
        %v993 = vpop.f32.mrb[0].mxu0
        %v994 = vadd.f32 %v797, %v993
        %v995 = vpop.f32.mrb[0].mxu0
        %v996 = vadd.f32 %v799, %v995
        %997 = vmatprep.mubr.f32.mxu0 0.0
        %998 = vmatmul.mubr.f32.gmra.mrb[0].mxu0 %v856
        %v999 = vpop.f32.mrb[0].mxu0
        %v1000 = vadd.f32 %v803, %v999
        %v1001 = vpop.f32.mrb[0].mxu0
        %v1002 = vadd.f32 %v805, %v1001
        %1003 = vmatprep.mubr.f32.mxu0 0.0
        %1004 = vmatmul.mubr.f32.gmra.mrb[0].mxu0 %v859
        %v1005 = vpop.f32.mrb[0].mxu0
        %v1006 = vadd.f32 %v809, %v1005
        %v1007 = vpop.f32.mrb[0].mxu0
        %v1008 = vadd.f32 %v811, %v1007
        %1009 = vmatprep.mubr.f32.mxu0 0.0
        %1010 = vmatmul.mubr.f32.gmra.mrb[0].mxu0 %v862
        %v1011 = vpop.f32.mrb[0].mxu0
        %v1012 = vadd.f32 %v815, %v1011
        %v1013 = vpop.f32.mrb[0].mxu0
        %v1014 = vadd.f32 %v817, %v1013
        %1015 = vmatprep.mubr.f32.mxu0 0.0
        %1016 = vmatmul.mubr.f32.gmra.mrb[0].mxu0 %v865
        %v1017 = vpop.f32.mrb[0].mxu0
        %v1018 = vadd.f32 %v821, %v1017
        %v1019 = vpop.f32.mrb[0].mxu0
        %v1020 = vadd.f32 %v823, %v1019
        %1021 = vdwg.mxu0
        %v1022 = vld [vmem:[%s537] sm:$0xff]
        %v1023 = vld [vmem:[%s537 + $0x8] sm:$0xff]
        %v1024 = vld [vmem:[%s537 + $0x10] sm:$0xff]
        %v1025 = vld [vmem:[%s537 + $0x18] sm:$0xff]
        %v1026 = vld [vmem:[%s537 + $0x20] sm:$0xff]
        %v1027 = vld [vmem:[%s537 + $0x28] sm:$0xff]
        %v1028 = vld [vmem:[%s537 + $0x30] sm:$0xff]
        %v1029 = vld [vmem:[%s537 + $0x38] sm:$0xff]
        %v1030 = vld [vmem:[%s537 + $0x40] sm:$0xff]
        %v1031 = vld [vmem:[%s537 + $0x48] sm:$0xff]
        %v1032 = vld [vmem:[%s537 + $0x50] sm:$0xff]
        %v1033 = vld [vmem:[%s537 + $0x58] sm:$0xff]
        %v1034 = vld [vmem:[%s537 + $0x60] sm:$0xff]
        %v1035 = vld [vmem:[%s537 + $0x68] sm:$0xff]
        %s1036 = scalar_lea.vmem %s1, 256
        %v1037 = vld [vmem:[%s1036] sm:$0xff]
        %v1038 = vld [vmem:[%s1036 + $0x8] sm:$0xff]
        %v1039 = vld [vmem:[%s1036 + $0x10] sm:$0xff]
        %v1040 = vld [vmem:[%s1036 + $0x18] sm:$0xff]
        %v1041 = vld [vmem:[%s1036 + $0x20] sm:$0xff]
        %v1042 = vld [vmem:[%s1036 + $0x28] sm:$0xff]
        %v1043 = vld [vmem:[%s1036 + $0x30] sm:$0xf]
        %v1044 = vld [vmem:[%s1036 + $0x38] sm:$0xf]
        %v1046 = vsel %vm453, %v1022, 0
        %v1049 = vsel %vm453, %v1023, 0
        %v1052 = vsel %vm453, %v1024, 0
        %v1055 = vsel %vm453, %v1025, 0
        %v1058 = vsel %vm453, %v1026, 0
        %v1061 = vsel %vm453, %v1027, 0
        %v1064 = vsel %vm453, %v1028, 0
        %v1067 = vsel %vm453, %v1029, 0
        %v1070 = vsel %vm453, %v1030, 0
        %v1073 = vsel %vm453, %v1031, 0
        %v1076 = vsel %vm453, %v1032, 0
        %v1079 = vsel %vm453, %v1033, 0
        %v1082 = vsel %vm453, %v1034, 0
        %v1085 = vsel %vm453, %v1035, 0
        %v1088 = vsel %vm669, %v1043, 0
        %v1091 = vsel %vm669, %v1044, 0
        %1093 = vmatprep.subr.mxu0 %v1038
        %1094 = vmatpush1.msra.mxu0 %v1037
        %1095 = vmatprep.subr.mxu0 %v1040
        %1096 = vmatpush1.msra.mxu0 %v1039
        %1097 = vmatprep.subr.mxu0 %v1042
        %1098 = vmatpush1.msra.mxu0 %v1041
        %1099 = vmatprep.subr.mxu0 %v1091
        %1100 = vmatpush1.msra.mxu0 %v1088
        %1101 = vmatprep.subr.mxu0 0.0
        %1102 = vmatpush1.msra.mxu0 0.0
        %1103 = vmatprep.subr.mxu0 0.0
        %1104 = vmatpush1.msra.mxu0 0.0
        %1105 = vmatprep.subr.mxu0 0.0
        %1106 = vmatpush1.msra.mxu0 0.0
        %1107 = vmatprep.subr.mxu0 0.0
        %1108 = vmatpush1.msra.mxu0 0.0
        %1109 = vmatprep.subr.mxu0 0.0
        %1110 = vmatpush1.msra.mxu0 0.0
        %1111 = vmatprep.subr.mxu0 0.0
        %1112 = vmatpush1.msra.mxu0 0.0
        %1113 = vmatprep.subr.mxu0 0.0
        %1114 = vmatpush1.msra.mxu0 0.0
        %1115 = vmatprep.subr.mxu0 0.0
        %1116 = vmatpush1.msra.mxu0 0.0
        %1117 = vmatprep.subr.mxu0 0.0
        %1118 = vmatpush1.msra.mxu0 0.0
        %1119 = vmatprep.subr.mxu0 0.0
        %1120 = vmatpush1.msra.mxu0 0.0
        %1121 = vmatprep.subr.mxu0 0.0
        %1122 = vmatpush1.msra.mxu0 0.0
        %1123 = vmatprep.subr.mxu0 0.0
        %1124 = vmatpush1.msra.mxu0 0.0
        %1125 = vmatprep.subr.mxu0 0.0
        %1126 = vmatpush1.msra.mxu0 0.0
        %1127 = vmatprep.subr.mxu0 0.0
        %1128 = vmatpush1.msra.mxu0 0.0
        %1129 = vmatprep.subr.mxu0 0.0
        %1130 = vmatpush1.msra.mxu0 0.0
        %1131 = vmatprep.subr.mxu0 0.0
        %1132 = vmatpush1.msra.mxu0 0.0
        %1133 = vmatprep.subr.mxu0 0.0
        %1134 = vmatpush1.msra.mxu0 0.0
        %1135 = vmatprep.subr.mxu0 0.0
        %1136 = vmatpush1.msra.mxu0 0.0
        %1137 = vmatprep.subr.mxu0 0.0
        %1138 = vmatpush1.msra.mxu0 0.0
        %1139 = vmatprep.subr.mxu0 0.0
        %1140 = vmatpush1.msra.mxu0 0.0
        %1141 = vmatprep.subr.mxu0 0.0
        %1142 = vmatpush1.msra.mxu0 0.0
        %1143 = vmatprep.subr.mxu0 0.0
        %1144 = vmatpush1.msra.mxu0 0.0
        %1145 = vmatprep.subr.mxu0 0.0
        %1146 = vmatpush1.msra.mxu0 0.0
        %1147 = vmatprep.subr.mxu0 0.0
        %1148 = vmatpush1.msra.mxu0 0.0
        %1149 = vmatprep.subr.mxu0 0.0
        %1150 = vmatpush1.msra.mxu0 0.0
        %1151 = vmatprep.subr.mxu0 0.0
        %1152 = vmatpush1.msra.mxu0 0.0
        %1153 = vmatprep.subr.mxu0 0.0
        %1154 = vmatpush1.msra.mxu0 0.0
        %1155 = vmatprep.subr.mxu0 0.0
        %1156 = vmatpush1.msra.mxu0 0.0
        %1157 = vmatprep.mubr.f32.mxu0 0.0
        %1158 = vmatmul.mubr.f32.gmra.mrb[0].mxu0 %v1046
        %v1159 = vpop.f32.mrb[0].mxu0
        %v1160 = vadd.f32 0.0, %v1159
        %v1161 = vpop.f32.mrb[0].mxu0
        %v1162 = vadd.f32 0.0, %v1161
        %1163 = vmatprep.mubr.f32.mxu0 0.0
        %1164 = vmatmul.mubr.f32.gmra.mrb[0].mxu0 %v1049
        %v1165 = vpop.f32.mrb[0].mxu0
        %v1166 = vadd.f32 0.0, %v1165
        %v1167 = vpop.f32.mrb[0].mxu0
        %v1168 = vadd.f32 0.0, %v1167
        %1169 = vmatprep.mubr.f32.mxu0 0.0
        %1170 = vmatmul.mubr.f32.gmra.mrb[0].mxu0 %v1052
        %v1171 = vpop.f32.mrb[0].mxu0
        %v1172 = vadd.f32 0.0, %v1171
        %v1173 = vpop.f32.mrb[0].mxu0
        %v1174 = vadd.f32 0.0, %v1173
        %1175 = vmatprep.mubr.f32.mxu0 0.0
        %1176 = vmatmul.mubr.f32.gmra.mrb[0].mxu0 %v1055
        %v1177 = vpop.f32.mrb[0].mxu0
        %v1178 = vadd.f32 0.0, %v1177
        %v1179 = vpop.f32.mrb[0].mxu0
        %v1180 = vadd.f32 0.0, %v1179
        %1181 = vmatprep.mubr.f32.mxu0 0.0
        %1182 = vmatmul.mubr.f32.gmra.mrb[0].mxu0 %v1058
        %v1183 = vpop.f32.mrb[0].mxu0
        %v1184 = vadd.f32 0.0, %v1183
        %v1185 = vpop.f32.mrb[0].mxu0
        %v1186 = vadd.f32 0.0, %v1185
        %1187 = vmatprep.mubr.f32.mxu0 0.0
        %1188 = vmatmul.mubr.f32.gmra.mrb[0].mxu0 %v1061
        %v1189 = vpop.f32.mrb[0].mxu0
        %v1190 = vadd.f32 0.0, %v1189
        %v1191 = vpop.f32.mrb[0].mxu0
        %v1192 = vadd.f32 0.0, %v1191
        %1193 = vmatprep.mubr.f32.mxu0 0.0
        %1194 = vmatmul.mubr.f32.gmra.mrb[0].mxu0 %v1064
        %v1195 = vpop.f32.mrb[0].mxu0
        %v1196 = vadd.f32 0.0, %v1195
        %v1197 = vpop.f32.mrb[0].mxu0
        %v1198 = vadd.f32 0.0, %v1197
        %1199 = vmatprep.mubr.f32.mxu0 0.0
        %1200 = vmatmul.mubr.f32.gmra.mrb[0].mxu0 %v1067
        %v1201 = vpop.f32.mrb[0].mxu0
        %v1202 = vadd.f32 0.0, %v1201
        %v1203 = vpop.f32.mrb[0].mxu0
        %v1204 = vadd.f32 0.0, %v1203
        %1205 = vmatprep.mubr.f32.mxu0 0.0
        %1206 = vmatmul.mubr.f32.gmra.mrb[0].mxu0 %v1070
        %v1207 = vpop.f32.mrb[0].mxu0
        %v1208 = vadd.f32 0.0, %v1207
        %v1209 = vpop.f32.mrb[0].mxu0
        %v1210 = vadd.f32 0.0, %v1209
        %1211 = vmatprep.mubr.f32.mxu0 0.0
        %1212 = vmatmul.mubr.f32.gmra.mrb[0].mxu0 %v1073
        %v1213 = vpop.f32.mrb[0].mxu0
        %v1214 = vadd.f32 0.0, %v1213
        %v1215 = vpop.f32.mrb[0].mxu0
        %v1216 = vadd.f32 0.0, %v1215
        %1217 = vmatprep.mubr.f32.mxu0 0.0
        %1218 = vmatmul.mubr.f32.gmra.mrb[0].mxu0 %v1076
        %v1219 = vpop.f32.mrb[0].mxu0
        %v1220 = vadd.f32 0.0, %v1219
        %v1221 = vpop.f32.mrb[0].mxu0
        %v1222 = vadd.f32 0.0, %v1221
        %1223 = vmatprep.mubr.f32.mxu0 0.0
        %1224 = vmatmul.mubr.f32.gmra.mrb[0].mxu0 %v1079
        %v1225 = vpop.f32.mrb[0].mxu0
        %v1226 = vadd.f32 0.0, %v1225
        %v1227 = vpop.f32.mrb[0].mxu0
        %v1228 = vadd.f32 0.0, %v1227
        %1229 = vmatprep.mubr.f32.mxu0 0.0
        %1230 = vmatmul.mubr.f32.gmra.mrb[0].mxu0 %v1082
        %v1231 = vpop.f32.mrb[0].mxu0
        %v1232 = vadd.f32 0.0, %v1231
        %v1233 = vpop.f32.mrb[0].mxu0
        %v1234 = vadd.f32 0.0, %v1233
        %1235 = vmatprep.mubr.f32.mxu0 0.0
        %1236 = vmatmul.mubr.f32.gmra.mrb[0].mxu0 %v1085
        %v1237 = vpop.f32.mrb[0].mxu0
        %v1238 = vadd.f32 0.0, %v1237
        %v1239 = vpop.f32.mrb[0].mxu0
        %v1240 = vadd.f32 0.0, %v1239
        %1241 = vdwg.mxu0
        %v1242 = vadd.f32 %v940, %v1160
        %v1243 = vadd.f32 %v942, %v1162
        %v1244 = vadd.f32 %v946, %v1166
        %v1245 = vadd.f32 %v948, %v1168
        %v1246 = vadd.f32 %v952, %v1172
        %v1247 = vadd.f32 %v954, %v1174
        %v1248 = vadd.f32 %v958, %v1178
        %v1249 = vadd.f32 %v960, %v1180
        %v1250 = vadd.f32 %v964, %v1184
        %v1251 = vadd.f32 %v966, %v1186
        %v1252 = vadd.f32 %v970, %v1190
        %v1253 = vadd.f32 %v972, %v1192
        %v1254 = vadd.f32 %v976, %v1196
        %v1255 = vadd.f32 %v978, %v1198
        %v1256 = vadd.f32 %v982, %v1202
        %v1257 = vadd.f32 %v984, %v1204
        %v1258 = vadd.f32 %v988, %v1208
        %v1259 = vadd.f32 %v990, %v1210
        %v1260 = vadd.f32 %v994, %v1214
        %v1261 = vadd.f32 %v996, %v1216
        %v1262 = vadd.f32 %v1000, %v1220
        %v1263 = vadd.f32 %v1002, %v1222
        %v1264 = vadd.f32 %v1006, %v1226
        %v1265 = vadd.f32 %v1008, %v1228
        %v1266 = vadd.f32 %v1012, %v1232
        %v1267 = vadd.f32 %v1014, %v1234
        %v1268 = vadd.f32 %v1018, %v1238
        %v1269 = vadd.f32 %v1020, %v1240
        %v1270 = vld [vmem:[%s567] sm:$0xff]
        %v1271 = vld [vmem:[%s567 + $0x8] sm:$0xff]
        %v1272 = vld [vmem:[%s567 + $0x10] sm:$0xff]
        %v1273 = vld [vmem:[%s567 + $0x18] sm:$0xff]
        %v1274 = vld [vmem:[%s567 + $0x20] sm:$0xff]
        %v1275 = vld [vmem:[%s567 + $0x28] sm:$0xff]
        %v1276 = vld [vmem:[%s567 + $0x30] sm:$0xff]
        %v1277 = vld [vmem:[%s567 + $0x38] sm:$0xff]
        %v1278 = vld [vmem:[%s567 + $0x40] sm:$0xff]
        %v1279 = vld [vmem:[%s567 + $0x48] sm:$0xff]
        %v1280 = vld [vmem:[%s567 + $0x50] sm:$0xff]
        %v1281 = vld [vmem:[%s567 + $0x58] sm:$0xff]
        %v1282 = vld [vmem:[%s567 + $0x60] sm:$0xff]
        %v1283 = vld [vmem:[%s567 + $0x68] sm:$0xff]
        %s1284 = scalar_lea.vmem %s1, 384
        %v1285 = vld [vmem:[%s1284] sm:$0xff]
        %v1286 = vld [vmem:[%s1284 + $0x8] sm:$0xff]
        %v1287 = vld [vmem:[%s1284 + $0x10] sm:$0xff]
        %v1288 = vld [vmem:[%s1284 + $0x18] sm:$0xff]
        %v1289 = vld [vmem:[%s1284 + $0x20] sm:$0xff]
        %v1290 = vld [vmem:[%s1284 + $0x28] sm:$0xff]
        %v1291 = vld [vmem:[%s1284 + $0x30] sm:$0xf]
        %v1292 = vld [vmem:[%s1284 + $0x38] sm:$0xf]
        %v1294 = vsel %vm453, %v1270, 0
        %v1297 = vsel %vm453, %v1271, 0
        %v1300 = vsel %vm453, %v1272, 0
        %v1303 = vsel %vm453, %v1273, 0
        %v1306 = vsel %vm453, %v1274, 0
        %v1309 = vsel %vm453, %v1275, 0
        %v1312 = vsel %vm453, %v1276, 0
        %v1315 = vsel %vm453, %v1277, 0
        %v1318 = vsel %vm453, %v1278, 0
        %v1321 = vsel %vm453, %v1279, 0
        %v1324 = vsel %vm453, %v1280, 0
        %v1327 = vsel %vm453, %v1281, 0
        %v1330 = vsel %vm453, %v1282, 0
        %v1333 = vsel %vm453, %v1283, 0
        %v1336 = vsel %vm669, %v1291, 0
        %v1339 = vsel %vm669, %v1292, 0
        %1341 = vmatprep.subr.mxu0 %v1286
        %1342 = vmatpush1.msra.mxu0 %v1285
        %1343 = vmatprep.subr.mxu0 %v1288
        %1344 = vmatpush1.msra.mxu0 %v1287
        %1345 = vmatprep.subr.mxu0 %v1290
        %1346 = vmatpush1.msra.mxu0 %v1289
        %1347 = vmatprep.subr.mxu0 %v1339
        %1348 = vmatpush1.msra.mxu0 %v1336
        %1349 = vmatprep.subr.mxu0 0.0
        %1350 = vmatpush1.msra.mxu0 0.0
        %1351 = vmatprep.subr.mxu0 0.0
        %1352 = vmatpush1.msra.mxu0 0.0
        %1353 = vmatprep.subr.mxu0 0.0
        %1354 = vmatpush1.msra.mxu0 0.0
        %1355 = vmatprep.subr.mxu0 0.0
        %1356 = vmatpush1.msra.mxu0 0.0
        %1357 = vmatprep.subr.mxu0 0.0
        %1358 = vmatpush1.msra.mxu0 0.0
        %1359 = vmatprep.subr.mxu0 0.0
        %1360 = vmatpush1.msra.mxu0 0.0
        %1361 = vmatprep.subr.mxu0 0.0
        %1362 = vmatpush1.msra.mxu0 0.0
        %1363 = vmatprep.subr.mxu0 0.0
        %1364 = vmatpush1.msra.mxu0 0.0
        %1365 = vmatprep.subr.mxu0 0.0
        %1366 = vmatpush1.msra.mxu0 0.0
        %1367 = vmatprep.subr.mxu0 0.0
        %1368 = vmatpush1.msra.mxu0 0.0
        %1369 = vmatprep.subr.mxu0 0.0
        %1370 = vmatpush1.msra.mxu0 0.0
        %1371 = vmatprep.subr.mxu0 0.0
        %1372 = vmatpush1.msra.mxu0 0.0
        %1373 = vmatprep.subr.mxu0 0.0
        %1374 = vmatpush1.msra.mxu0 0.0
        %1375 = vmatprep.subr.mxu0 0.0
        %1376 = vmatpush1.msra.mxu0 0.0
        %1377 = vmatprep.subr.mxu0 0.0
        %1378 = vmatpush1.msra.mxu0 0.0
        %1379 = vmatprep.subr.mxu0 0.0
        %1380 = vmatpush1.msra.mxu0 0.0
        %1381 = vmatprep.subr.mxu0 0.0
        %1382 = vmatpush1.msra.mxu0 0.0
        %1383 = vmatprep.subr.mxu0 0.0
        %1384 = vmatpush1.msra.mxu0 0.0
        %1385 = vmatprep.subr.mxu0 0.0
        %1386 = vmatpush1.msra.mxu0 0.0
        %1387 = vmatprep.subr.mxu0 0.0
        %1388 = vmatpush1.msra.mxu0 0.0
        %1389 = vmatprep.subr.mxu0 0.0
        %1390 = vmatpush1.msra.mxu0 0.0
        %1391 = vmatprep.subr.mxu0 0.0
        %1392 = vmatpush1.msra.mxu0 0.0
        %1393 = vmatprep.subr.mxu0 0.0
        %1394 = vmatpush1.msra.mxu0 0.0
        %1395 = vmatprep.subr.mxu0 0.0
        %1396 = vmatpush1.msra.mxu0 0.0
        %1397 = vmatprep.subr.mxu0 0.0
        %1398 = vmatpush1.msra.mxu0 0.0
        %1399 = vmatprep.subr.mxu0 0.0
        %1400 = vmatpush1.msra.mxu0 0.0
        %1401 = vmatprep.subr.mxu0 0.0
        %1402 = vmatpush1.msra.mxu0 0.0
        %1403 = vmatprep.subr.mxu0 0.0
        %1404 = vmatpush1.msra.mxu0 0.0
        %1405 = vmatprep.mubr.f32.mxu0 0.0
        %1406 = vmatmul.mubr.f32.gmra.mrb[0].mxu0 %v1294
        %v1407 = vpop.f32.mrb[0].mxu0
        %v1408 = vadd.f32 0.0, %v1407
        %v1409 = vpop.f32.mrb[0].mxu0
        %v1410 = vadd.f32 0.0, %v1409
        %1411 = vmatprep.mubr.f32.mxu0 0.0
        %1412 = vmatmul.mubr.f32.gmra.mrb[0].mxu0 %v1297
        %v1413 = vpop.f32.mrb[0].mxu0
        %v1414 = vadd.f32 0.0, %v1413
        %v1415 = vpop.f32.mrb[0].mxu0
        %v1416 = vadd.f32 0.0, %v1415
        %1417 = vmatprep.mubr.f32.mxu0 0.0
        %1418 = vmatmul.mubr.f32.gmra.mrb[0].mxu0 %v1300
        %v1419 = vpop.f32.mrb[0].mxu0
        %v1420 = vadd.f32 0.0, %v1419
        %v1421 = vpop.f32.mrb[0].mxu0
        %v1422 = vadd.f32 0.0, %v1421
        %1423 = vmatprep.mubr.f32.mxu0 0.0
        %1424 = vmatmul.mubr.f32.gmra.mrb[0].mxu0 %v1303
        %v1425 = vpop.f32.mrb[0].mxu0
        %v1426 = vadd.f32 0.0, %v1425
        %v1427 = vpop.f32.mrb[0].mxu0
        %v1428 = vadd.f32 0.0, %v1427
        %1429 = vmatprep.mubr.f32.mxu0 0.0
        %1430 = vmatmul.mubr.f32.gmra.mrb[0].mxu0 %v1306
        %v1431 = vpop.f32.mrb[0].mxu0
        %v1432 = vadd.f32 0.0, %v1431
        %v1433 = vpop.f32.mrb[0].mxu0
        %v1434 = vadd.f32 0.0, %v1433
        %1435 = vmatprep.mubr.f32.mxu0 0.0
        %1436 = vmatmul.mubr.f32.gmra.mrb[0].mxu0 %v1309
        %v1437 = vpop.f32.mrb[0].mxu0
        %v1438 = vadd.f32 0.0, %v1437
        %v1439 = vpop.f32.mrb[0].mxu0
        %v1440 = vadd.f32 0.0, %v1439
        %1441 = vmatprep.mubr.f32.mxu0 0.0
        %1442 = vmatmul.mubr.f32.gmra.mrb[0].mxu0 %v1312
        %v1443 = vpop.f32.mrb[0].mxu0
        %v1444 = vadd.f32 0.0, %v1443
        %v1445 = vpop.f32.mrb[0].mxu0
        %v1446 = vadd.f32 0.0, %v1445
        %1447 = vmatprep.mubr.f32.mxu0 0.0
        %1448 = vmatmul.mubr.f32.gmra.mrb[0].mxu0 %v1315
        %v1449 = vpop.f32.mrb[0].mxu0
        %v1450 = vadd.f32 0.0, %v1449
        %v1451 = vpop.f32.mrb[0].mxu0
        %v1452 = vadd.f32 0.0, %v1451
        %1453 = vmatprep.mubr.f32.mxu0 0.0
        %1454 = vmatmul.mubr.f32.gmra.mrb[0].mxu0 %v1318
        %v1455 = vpop.f32.mrb[0].mxu0
        %v1456 = vadd.f32 0.0, %v1455
        %v1457 = vpop.f32.mrb[0].mxu0
        %v1458 = vadd.f32 0.0, %v1457
        %1459 = vmatprep.mubr.f32.mxu0 0.0
        %1460 = vmatmul.mubr.f32.gmra.mrb[0].mxu0 %v1321
        %v1461 = vpop.f32.mrb[0].mxu0
        %v1462 = vadd.f32 0.0, %v1461
        %v1463 = vpop.f32.mrb[0].mxu0
        %v1464 = vadd.f32 0.0, %v1463
        %1465 = vmatprep.mubr.f32.mxu0 0.0
        %1466 = vmatmul.mubr.f32.gmra.mrb[0].mxu0 %v1324
        %v1467 = vpop.f32.mrb[0].mxu0
        %v1468 = vadd.f32 0.0, %v1467
        %v1469 = vpop.f32.mrb[0].mxu0
        %v1470 = vadd.f32 0.0, %v1469
        %1471 = vmatprep.mubr.f32.mxu0 0.0
        %1472 = vmatmul.mubr.f32.gmra.mrb[0].mxu0 %v1327
        %v1473 = vpop.f32.mrb[0].mxu0
        %v1474 = vadd.f32 0.0, %v1473
        %v1475 = vpop.f32.mrb[0].mxu0
        %v1476 = vadd.f32 0.0, %v1475
        %1477 = vmatprep.mubr.f32.mxu0 0.0
        %1478 = vmatmul.mubr.f32.gmra.mrb[0].mxu0 %v1330
        %v1479 = vpop.f32.mrb[0].mxu0
        %v1480 = vadd.f32 0.0, %v1479
        %v1481 = vpop.f32.mrb[0].mxu0
        %v1482 = vadd.f32 0.0, %v1481
        %1483 = vmatprep.mubr.f32.mxu0 0.0
        %1484 = vmatmul.mubr.f32.gmra.mrb[0].mxu0 %v1333
        %v1485 = vpop.f32.mrb[0].mxu0
        %v1486 = vadd.f32 0.0, %v1485
        %v1487 = vpop.f32.mrb[0].mxu0
        %v1488 = vadd.f32 0.0, %v1487
        %1489 = vdwg.mxu0
        %v1490 = vadd.f32 %v1242, %v1408
        %v1491 = vadd.f32 %v1243, %v1410
        %v1492 = vadd.f32 %v1244, %v1414
        %v1493 = vadd.f32 %v1245, %v1416
        %v1494 = vadd.f32 %v1246, %v1420
        %v1495 = vadd.f32 %v1247, %v1422
        %v1496 = vadd.f32 %v1248, %v1426
        %v1497 = vadd.f32 %v1249, %v1428
        %v1498 = vadd.f32 %v1250, %v1432
        %v1499 = vadd.f32 %v1251, %v1434
        %v1500 = vadd.f32 %v1252, %v1438
        %v1501 = vadd.f32 %v1253, %v1440
        %v1502 = vadd.f32 %v1254, %v1444
        %v1503 = vadd.f32 %v1255, %v1446
        %v1504 = vadd.f32 %v1256, %v1450
        %v1505 = vadd.f32 %v1257, %v1452
        %v1506 = vadd.f32 %v1258, %v1456
        %v1507 = vadd.f32 %v1259, %v1458
        %v1508 = vadd.f32 %v1260, %v1462
        %v1509 = vadd.f32 %v1261, %v1464
        %v1510 = vadd.f32 %v1262, %v1468
        %v1511 = vadd.f32 %v1263, %v1470
        %v1512 = vadd.f32 %v1264, %v1474
        %v1513 = vadd.f32 %v1265, %v1476
        %v1514 = vadd.f32 %v1266, %v1480
        %v1515 = vadd.f32 %v1267, %v1482
        %v1516 = vadd.f32 %v1268, %v1486
        %v1517 = vadd.f32 %v1269, %v1488
        %s1518 = scalar_lea.vmem [#allocation2], 16
        %v1519 = vld [vmem:[%s1518] sm:$0xff]
        %v1520 = vld [vmem:[%s1518 + $0x8] sm:$0xff]
        %v1521 = vld [vmem:[%s1518 + $0x10] sm:$0xff]
        %v1522 = vld [vmem:[%s1518 + $0x18] sm:$0xff]
        %v1523 = vld [vmem:[%s1518 + $0x20] sm:$0xff]
        %v1524 = vld [vmem:[%s1518 + $0x28] sm:$0xff]
        %v1525 = vld [vmem:[%s1518 + $0x30] sm:$0xff]
        %v1526 = vld [vmem:[%s1518 + $0x38] sm:$0xff]
        %v1527 = vld [vmem:[%s1518 + $0x40] sm:$0xff]
        %v1528 = vld [vmem:[%s1518 + $0x48] sm:$0xff]
        %v1529 = vld [vmem:[%s1518 + $0x50] sm:$0xff]
        %v1530 = vld [vmem:[%s1518 + $0x58] sm:$0xff]
        %v1531 = vld [vmem:[%s1518 + $0x60] sm:$0xff]
        %v1532 = vld [vmem:[%s1518 + $0x68] sm:$0xff]
        %s1533 = scalar_lea.vmem %s1, 512
        %v1534 = vld [vmem:[%s1533] sm:$0xff]
        %v1535 = vld [vmem:[%s1533 + $0x8] sm:$0xff]
        %v1536 = vld [vmem:[%s1533 + $0x10] sm:$0xff]
        %v1537 = vld [vmem:[%s1533 + $0x18] sm:$0xff]
        %v1538 = vld [vmem:[%s1533 + $0x20] sm:$0xff]
        %v1539 = vld [vmem:[%s1533 + $0x28] sm:$0xff]
        %v1540 = vld [vmem:[%s1533 + $0x30] sm:$0xf]
        %v1541 = vld [vmem:[%s1533 + $0x38] sm:$0xf]
        %v1543 = vsel %vm453, %v1519, 0
        %v1546 = vsel %vm453, %v1520, 0
        %v1549 = vsel %vm453, %v1521, 0
        %v1552 = vsel %vm453, %v1522, 0
        %v1555 = vsel %vm453, %v1523, 0
        %v1558 = vsel %vm453, %v1524, 0
        %v1561 = vsel %vm453, %v1525, 0
        %v1564 = vsel %vm453, %v1526, 0
        %v1567 = vsel %vm453, %v1527, 0
        %v1570 = vsel %vm453, %v1528, 0
        %v1573 = vsel %vm453, %v1529, 0
        %v1576 = vsel %vm453, %v1530, 0
        %v1579 = vsel %vm453, %v1531, 0
        %v1582 = vsel %vm453, %v1532, 0
        %v1585 = vsel %vm669, %v1540, 0
        %v1588 = vsel %vm669, %v1541, 0
        %1590 = vmatprep.subr.mxu0 %v1535
        %1591 = vmatpush1.msra.mxu0 %v1534
        %1592 = vmatprep.subr.mxu0 %v1537
        %1593 = vmatpush1.msra.mxu0 %v1536
        %1594 = vmatprep.subr.mxu0 %v1539
        %1595 = vmatpush1.msra.mxu0 %v1538
        %1596 = vmatprep.subr.mxu0 %v1588
        %1597 = vmatpush1.msra.mxu0 %v1585
        %1598 = vmatprep.subr.mxu0 0.0
        %1599 = vmatpush1.msra.mxu0 0.0
        %1600 = vmatprep.subr.mxu0 0.0
        %1601 = vmatpush1.msra.mxu0 0.0
        %1602 = vmatprep.subr.mxu0 0.0
        %1603 = vmatpush1.msra.mxu0 0.0
        %1604 = vmatprep.subr.mxu0 0.0
        %1605 = vmatpush1.msra.mxu0 0.0
        %1606 = vmatprep.subr.mxu0 0.0
        %1607 = vmatpush1.msra.mxu0 0.0
        %1608 = vmatprep.subr.mxu0 0.0
        %1609 = vmatpush1.msra.mxu0 0.0
        %1610 = vmatprep.subr.mxu0 0.0
        %1611 = vmatpush1.msra.mxu0 0.0
        %1612 = vmatprep.subr.mxu0 0.0
        %1613 = vmatpush1.msra.mxu0 0.0
        %1614 = vmatprep.subr.mxu0 0.0
        %1615 = vmatpush1.msra.mxu0 0.0
        %1616 = vmatprep.subr.mxu0 0.0
        %1617 = vmatpush1.msra.mxu0 0.0
        %1618 = vmatprep.subr.mxu0 0.0
        %1619 = vmatpush1.msra.mxu0 0.0
        %1620 = vmatprep.subr.mxu0 0.0
        %1621 = vmatpush1.msra.mxu0 0.0
        %1622 = vmatprep.subr.mxu0 0.0
        %1623 = vmatpush1.msra.mxu0 0.0
        %1624 = vmatprep.subr.mxu0 0.0
        %1625 = vmatpush1.msra.mxu0 0.0
        %1626 = vmatprep.subr.mxu0 0.0
        %1627 = vmatpush1.msra.mxu0 0.0
        %1628 = vmatprep.subr.mxu0 0.0
        %1629 = vmatpush1.msra.mxu0 0.0
        %1630 = vmatprep.subr.mxu0 0.0
        %1631 = vmatpush1.msra.mxu0 0.0
        %1632 = vmatprep.subr.mxu0 0.0
        %1633 = vmatpush1.msra.mxu0 0.0
        %1634 = vmatprep.subr.mxu0 0.0
        %1635 = vmatpush1.msra.mxu0 0.0
        %1636 = vmatprep.subr.mxu0 0.0
        %1637 = vmatpush1.msra.mxu0 0.0
        %1638 = vmatprep.subr.mxu0 0.0
        %1639 = vmatpush1.msra.mxu0 0.0
        %1640 = vmatprep.subr.mxu0 0.0
        %1641 = vmatpush1.msra.mxu0 0.0
        %1642 = vmatprep.subr.mxu0 0.0
        %1643 = vmatpush1.msra.mxu0 0.0
        %1644 = vmatprep.subr.mxu0 0.0
        %1645 = vmatpush1.msra.mxu0 0.0
        %1646 = vmatprep.subr.mxu0 0.0
        %1647 = vmatpush1.msra.mxu0 0.0
        %1648 = vmatprep.subr.mxu0 0.0
        %1649 = vmatpush1.msra.mxu0 0.0
        %1650 = vmatprep.subr.mxu0 0.0
        %1651 = vmatpush1.msra.mxu0 0.0
        %1652 = vmatprep.subr.mxu0 0.0
        %1653 = vmatpush1.msra.mxu0 0.0
        %1654 = vmatprep.mubr.f32.mxu0 0.0
        %1655 = vmatmul.mubr.f32.gmra.mrb[0].mxu0 %v1543
        %v1656 = vpop.f32.mrb[0].mxu0
        %v1657 = vadd.f32 0.0, %v1656
        %v1658 = vpop.f32.mrb[0].mxu0
        %v1659 = vadd.f32 0.0, %v1658
        %1660 = vmatprep.mubr.f32.mxu0 0.0
        %1661 = vmatmul.mubr.f32.gmra.mrb[0].mxu0 %v1546
        %v1662 = vpop.f32.mrb[0].mxu0
        %v1663 = vadd.f32 0.0, %v1662
        %v1664 = vpop.f32.mrb[0].mxu0
        %v1665 = vadd.f32 0.0, %v1664
        %1666 = vmatprep.mubr.f32.mxu0 0.0
        %1667 = vmatmul.mubr.f32.gmra.mrb[0].mxu0 %v1549
        %v1668 = vpop.f32.mrb[0].mxu0
        %v1669 = vadd.f32 0.0, %v1668
        %v1670 = vpop.f32.mrb[0].mxu0
        %v1671 = vadd.f32 0.0, %v1670
        %1672 = vmatprep.mubr.f32.mxu0 0.0
        %1673 = vmatmul.mubr.f32.gmra.mrb[0].mxu0 %v1552
        %v1674 = vpop.f32.mrb[0].mxu0
        %v1675 = vadd.f32 0.0, %v1674
        %v1676 = vpop.f32.mrb[0].mxu0
        %v1677 = vadd.f32 0.0, %v1676
        %1678 = vmatprep.mubr.f32.mxu0 0.0
        %1679 = vmatmul.mubr.f32.gmra.mrb[0].mxu0 %v1555
        %v1680 = vpop.f32.mrb[0].mxu0
        %v1681 = vadd.f32 0.0, %v1680
        %v1682 = vpop.f32.mrb[0].mxu0
        %v1683 = vadd.f32 0.0, %v1682
        %1684 = vmatprep.mubr.f32.mxu0 0.0
        %1685 = vmatmul.mubr.f32.gmra.mrb[0].mxu0 %v1558
        %v1686 = vpop.f32.mrb[0].mxu0
        %v1687 = vadd.f32 0.0, %v1686
        %v1688 = vpop.f32.mrb[0].mxu0
        %v1689 = vadd.f32 0.0, %v1688
        %1690 = vmatprep.mubr.f32.mxu0 0.0
        %1691 = vmatmul.mubr.f32.gmra.mrb[0].mxu0 %v1561
        %v1692 = vpop.f32.mrb[0].mxu0
        %v1693 = vadd.f32 0.0, %v1692
        %v1694 = vpop.f32.mrb[0].mxu0
        %v1695 = vadd.f32 0.0, %v1694
        %1696 = vmatprep.mubr.f32.mxu0 0.0
        %1697 = vmatmul.mubr.f32.gmra.mrb[0].mxu0 %v1564
        %v1698 = vpop.f32.mrb[0].mxu0
        %v1699 = vadd.f32 0.0, %v1698
        %v1700 = vpop.f32.mrb[0].mxu0
        %v1701 = vadd.f32 0.0, %v1700
        %1702 = vmatprep.mubr.f32.mxu0 0.0
        %1703 = vmatmul.mubr.f32.gmra.mrb[0].mxu0 %v1567
        %v1704 = vpop.f32.mrb[0].mxu0
        %v1705 = vadd.f32 0.0, %v1704
        %v1706 = vpop.f32.mrb[0].mxu0
        %v1707 = vadd.f32 0.0, %v1706
        %1708 = vmatprep.mubr.f32.mxu0 0.0
        %1709 = vmatmul.mubr.f32.gmra.mrb[0].mxu0 %v1570
        %v1710 = vpop.f32.mrb[0].mxu0
        %v1711 = vadd.f32 0.0, %v1710
        %v1712 = vpop.f32.mrb[0].mxu0
        %v1713 = vadd.f32 0.0, %v1712
        %1714 = vmatprep.mubr.f32.mxu0 0.0
        %1715 = vmatmul.mubr.f32.gmra.mrb[0].mxu0 %v1573
        %v1716 = vpop.f32.mrb[0].mxu0
        %v1717 = vadd.f32 0.0, %v1716
        %v1718 = vpop.f32.mrb[0].mxu0
        %v1719 = vadd.f32 0.0, %v1718
        %1720 = vmatprep.mubr.f32.mxu0 0.0
        %1721 = vmatmul.mubr.f32.gmra.mrb[0].mxu0 %v1576
        %v1722 = vpop.f32.mrb[0].mxu0
        %v1723 = vadd.f32 0.0, %v1722
        %v1724 = vpop.f32.mrb[0].mxu0
        %v1725 = vadd.f32 0.0, %v1724
        %1726 = vmatprep.mubr.f32.mxu0 0.0
        %1727 = vmatmul.mubr.f32.gmra.mrb[0].mxu0 %v1579
        %v1728 = vpop.f32.mrb[0].mxu0
        %v1729 = vadd.f32 0.0, %v1728
        %v1730 = vpop.f32.mrb[0].mxu0
        %v1731 = vadd.f32 0.0, %v1730
        %1732 = vmatprep.mubr.f32.mxu0 0.0
        %1733 = vmatmul.mubr.f32.gmra.mrb[0].mxu0 %v1582
        %v1734 = vpop.f32.mrb[0].mxu0
        %v1735 = vadd.f32 0.0, %v1734
        %v1736 = vpop.f32.mrb[0].mxu0
        %v1737 = vadd.f32 0.0, %v1736
        %1738 = vdwg.mxu0
        %v1739 = vadd.f32 %v1490, %v1657
        %v1740 = vadd.f32 %v1491, %v1659
        %v1741 = vadd.f32 %v1492, %v1663
        %v1742 = vadd.f32 %v1493, %v1665
        %v1743 = vadd.f32 %v1494, %v1669
        %v1744 = vadd.f32 %v1495, %v1671
        %v1745 = vadd.f32 %v1496, %v1675
        %v1746 = vadd.f32 %v1497, %v1677
        %v1747 = vadd.f32 %v1498, %v1681
        %v1748 = vadd.f32 %v1499, %v1683
        %v1749 = vadd.f32 %v1500, %v1687
        %v1750 = vadd.f32 %v1501, %v1689
        %v1751 = vadd.f32 %v1502, %v1693
        %v1752 = vadd.f32 %v1503, %v1695
        %v1753 = vadd.f32 %v1504, %v1699
        %v1754 = vadd.f32 %v1505, %v1701
        %v1755 = vadd.f32 %v1506, %v1705
        %v1756 = vadd.f32 %v1507, %v1707
        %v1757 = vadd.f32 %v1508, %v1711
        %v1758 = vadd.f32 %v1509, %v1713
        %v1759 = vadd.f32 %v1510, %v1717
        %v1760 = vadd.f32 %v1511, %v1719
        %v1761 = vadd.f32 %v1512, %v1723
        %v1762 = vadd.f32 %v1513, %v1725
        %v1763 = vadd.f32 %v1514, %v1729
        %v1764 = vadd.f32 %v1515, %v1731
        %v1765 = vadd.f32 %v1516, %v1735
        %v1766 = vadd.f32 %v1517, %v1737
        %s1767 = scalar_lea.vmem %s1, 64
        %v1768 = vld [vmem:[%s1767] sm:$0xff]
        %v1769 = vld [vmem:[%s1767 + $0x8] sm:$0xff]
        %v1770 = vld [vmem:[%s1767 + $0x10] sm:$0xff]
        %v1771 = vld [vmem:[%s1767 + $0x18] sm:$0xff]
        %v1772 = vld [vmem:[%s1767 + $0x20] sm:$0xff]
        %v1773 = vld [vmem:[%s1767 + $0x28] sm:$0xff]
        %v1774 = vld [vmem:[%s1767 + $0x30] sm:$0xf]
        %v1775 = vld [vmem:[%s1767 + $0x38] sm:$0xf]
        %s1776 = scalar_lea.vmem %s1, 192
        %v1777 = vld [vmem:[%s1776] sm:$0xff]
        %v1778 = vld [vmem:[%s1776 + $0x8] sm:$0xff]
        %v1779 = vld [vmem:[%s1776 + $0x10] sm:$0xff]
        %v1780 = vld [vmem:[%s1776 + $0x18] sm:$0xff]
        %v1781 = vld [vmem:[%s1776 + $0x20] sm:$0xff]
        %v1782 = vld [vmem:[%s1776 + $0x28] sm:$0xff]
        %v1783 = vld [vmem:[%s1776 + $0x30] sm:$0xf]
        %v1784 = vld [vmem:[%s1776 + $0x38] sm:$0xf]
        %v1786 = vsel %vm669, %v1783, 0
        %v1789 = vsel %vm669, %v1784, 0
        %1791 = vmatprep.subr.mxu0 %v1778
        %1792 = vmatpush1.msra.mxu0 %v1777
        %1793 = vmatprep.subr.mxu0 %v1780
        %1794 = vmatpush1.msra.mxu0 %v1779
        %1795 = vmatprep.subr.mxu0 %v1782
        %1796 = vmatpush1.msra.mxu0 %v1781
        %1797 = vmatprep.subr.mxu0 %v1789
        %1798 = vmatpush1.msra.mxu0 %v1786
        %1799 = vmatprep.subr.mxu0 0.0
        %1800 = vmatpush1.msra.mxu0 0.0
        %1801 = vmatprep.subr.mxu0 0.0
        %1802 = vmatpush1.msra.mxu0 0.0
        %1803 = vmatprep.subr.mxu0 0.0
        %1804 = vmatpush1.msra.mxu0 0.0
        %1805 = vmatprep.subr.mxu0 0.0
        %1806 = vmatpush1.msra.mxu0 0.0
        %1807 = vmatprep.subr.mxu0 0.0
        %1808 = vmatpush1.msra.mxu0 0.0
        %1809 = vmatprep.subr.mxu0 0.0
        %1810 = vmatpush1.msra.mxu0 0.0
        %1811 = vmatprep.subr.mxu0 0.0
        %1812 = vmatpush1.msra.mxu0 0.0
        %1813 = vmatprep.subr.mxu0 0.0
        %1814 = vmatpush1.msra.mxu0 0.0
        %1815 = vmatprep.subr.mxu0 0.0
        %1816 = vmatpush1.msra.mxu0 0.0
        %1817 = vmatprep.subr.mxu0 0.0
        %1818 = vmatpush1.msra.mxu0 0.0
        %1819 = vmatprep.subr.mxu0 0.0
        %1820 = vmatpush1.msra.mxu0 0.0
        %1821 = vmatprep.subr.mxu0 0.0
        %1822 = vmatpush1.msra.mxu0 0.0
        %1823 = vmatprep.subr.mxu0 0.0
        %1824 = vmatpush1.msra.mxu0 0.0
        %1825 = vmatprep.subr.mxu0 0.0
        %1826 = vmatpush1.msra.mxu0 0.0
        %1827 = vmatprep.subr.mxu0 0.0
        %1828 = vmatpush1.msra.mxu0 0.0
        %1829 = vmatprep.subr.mxu0 0.0
        %1830 = vmatpush1.msra.mxu0 0.0
        %1831 = vmatprep.subr.mxu0 0.0
        %1832 = vmatpush1.msra.mxu0 0.0
        %1833 = vmatprep.subr.mxu0 0.0
        %1834 = vmatpush1.msra.mxu0 0.0
        %1835 = vmatprep.subr.mxu0 0.0
        %1836 = vmatpush1.msra.mxu0 0.0
        %1837 = vmatprep.subr.mxu0 0.0
        %1838 = vmatpush1.msra.mxu0 0.0
        %1839 = vmatprep.subr.mxu0 0.0
        %1840 = vmatpush1.msra.mxu0 0.0
        %1841 = vmatprep.subr.mxu0 0.0
        %1842 = vmatpush1.msra.mxu0 0.0
        %1843 = vmatprep.subr.mxu0 0.0
        %1844 = vmatpush1.msra.mxu0 0.0
        %1845 = vmatprep.subr.mxu0 0.0
        %1846 = vmatpush1.msra.mxu0 0.0
        %1847 = vmatprep.subr.mxu0 0.0
        %1848 = vmatpush1.msra.mxu0 0.0
        %1849 = vmatprep.subr.mxu0 0.0
        %1850 = vmatpush1.msra.mxu0 0.0
        %1851 = vmatprep.subr.mxu0 0.0
        %1852 = vmatpush1.msra.mxu0 0.0
        %1853 = vmatprep.subr.mxu0 0.0
        %1854 = vmatpush1.msra.mxu0 0.0
        %1855 = vmatprep.mubr.f32.mxu0 0.0
        %1856 = vmatmul.mubr.f32.gmra.mrb[0].mxu0 %v628
        %v1857 = vpop.f32.mrb[0].mxu0
        %v1858 = vadd.f32 0.0, %v1857
        %v1859 = vpop.f32.mrb[0].mxu0
        %v1860 = vadd.f32 0.0, %v1859
        %1861 = vmatprep.mubr.f32.mxu0 0.0
        %1862 = vmatmul.mubr.f32.gmra.mrb[0].mxu0 %v631
        %v1863 = vpop.f32.mrb[0].mxu0
        %v1864 = vadd.f32 0.0, %v1863
        %v1865 = vpop.f32.mrb[0].mxu0
        %v1866 = vadd.f32 0.0, %v1865
        %1867 = vmatprep.mubr.f32.mxu0 0.0
        %1868 = vmatmul.mubr.f32.gmra.mrb[0].mxu0 %v634
        %v1869 = vpop.f32.mrb[0].mxu0
        %v1870 = vadd.f32 0.0, %v1869
        %v1871 = vpop.f32.mrb[0].mxu0
        %v1872 = vadd.f32 0.0, %v1871
        %1873 = vmatprep.mubr.f32.mxu0 0.0
        %1874 = vmatmul.mubr.f32.gmra.mrb[0].mxu0 %v637
        %v1875 = vpop.f32.mrb[0].mxu0
        %v1876 = vadd.f32 0.0, %v1875
        %v1877 = vpop.f32.mrb[0].mxu0
        %v1878 = vadd.f32 0.0, %v1877
        %1879 = vmatprep.mubr.f32.mxu0 0.0
        %1880 = vmatmul.mubr.f32.gmra.mrb[0].mxu0 %v640
        %v1881 = vpop.f32.mrb[0].mxu0
        %v1882 = vadd.f32 0.0, %v1881
        %v1883 = vpop.f32.mrb[0].mxu0
        %v1884 = vadd.f32 0.0, %v1883
        %1885 = vmatprep.mubr.f32.mxu0 0.0
        %1886 = vmatmul.mubr.f32.gmra.mrb[0].mxu0 %v643
        %v1887 = vpop.f32.mrb[0].mxu0
        %v1888 = vadd.f32 0.0, %v1887
        %v1889 = vpop.f32.mrb[0].mxu0
        %v1890 = vadd.f32 0.0, %v1889
        %1891 = vmatprep.mubr.f32.mxu0 0.0
        %1892 = vmatmul.mubr.f32.gmra.mrb[0].mxu0 %v646
        %v1893 = vpop.f32.mrb[0].mxu0
        %v1894 = vadd.f32 0.0, %v1893
        %v1895 = vpop.f32.mrb[0].mxu0
        %v1896 = vadd.f32 0.0, %v1895
        %1897 = vmatprep.mubr.f32.mxu0 0.0
        %1898 = vmatmul.mubr.f32.gmra.mrb[0].mxu0 %v649
        %v1899 = vpop.f32.mrb[0].mxu0
        %v1900 = vadd.f32 0.0, %v1899
        %v1901 = vpop.f32.mrb[0].mxu0
        %v1902 = vadd.f32 0.0, %v1901
        %1903 = vmatprep.mubr.f32.mxu0 0.0
        %1904 = vmatmul.mubr.f32.gmra.mrb[0].mxu0 %v652
        %v1905 = vpop.f32.mrb[0].mxu0
        %v1906 = vadd.f32 0.0, %v1905
        %v1907 = vpop.f32.mrb[0].mxu0
        %v1908 = vadd.f32 0.0, %v1907
        %1909 = vmatprep.mubr.f32.mxu0 0.0
        %1910 = vmatmul.mubr.f32.gmra.mrb[0].mxu0 %v655
        %v1911 = vpop.f32.mrb[0].mxu0
        %v1912 = vadd.f32 0.0, %v1911
        %v1913 = vpop.f32.mrb[0].mxu0
        %v1914 = vadd.f32 0.0, %v1913
        %1915 = vmatprep.mubr.f32.mxu0 0.0
        %1916 = vmatmul.mubr.f32.gmra.mrb[0].mxu0 %v658
        %v1917 = vpop.f32.mrb[0].mxu0
        %v1918 = vadd.f32 0.0, %v1917
        %v1919 = vpop.f32.mrb[0].mxu0
        %v1920 = vadd.f32 0.0, %v1919
        %1921 = vmatprep.mubr.f32.mxu0 0.0
        %1922 = vmatmul.mubr.f32.gmra.mrb[0].mxu0 %v661
        %v1923 = vpop.f32.mrb[0].mxu0
        %v1924 = vadd.f32 0.0, %v1923
        %v1925 = vpop.f32.mrb[0].mxu0
        %v1926 = vadd.f32 0.0, %v1925
        %1927 = vmatprep.mubr.f32.mxu0 0.0
        %1928 = vmatmul.mubr.f32.gmra.mrb[0].mxu0 %v664
        %v1929 = vpop.f32.mrb[0].mxu0
        %v1930 = vadd.f32 0.0, %v1929
        %v1931 = vpop.f32.mrb[0].mxu0
        %v1932 = vadd.f32 0.0, %v1931
        %1933 = vmatprep.mubr.f32.mxu0 0.0
        %1934 = vmatmul.mubr.f32.gmra.mrb[0].mxu0 %v667
        %v1935 = vpop.f32.mrb[0].mxu0
        %v1936 = vadd.f32 0.0, %v1935
        %v1937 = vpop.f32.mrb[0].mxu0
        %v1938 = vadd.f32 0.0, %v1937
        %1939 = vdwg.mxu0
        %v1941 = vsel %vm669, %v1774, 0
        %v1944 = vsel %vm669, %v1775, 0
        %1946 = vmatprep.subr.mxu0 %v1769
        %1947 = vmatpush1.msra.mxu0 %v1768
        %1948 = vmatprep.subr.mxu0 %v1771
        %1949 = vmatpush1.msra.mxu0 %v1770
        %1950 = vmatprep.subr.mxu0 %v1773
        %1951 = vmatpush1.msra.mxu0 %v1772
        %1952 = vmatprep.subr.mxu0 %v1944
        %1953 = vmatpush1.msra.mxu0 %v1941
        %1954 = vmatprep.subr.mxu0 0.0
        %1955 = vmatpush1.msra.mxu0 0.0
        %1956 = vmatprep.subr.mxu0 0.0
        %1957 = vmatpush1.msra.mxu0 0.0
        %1958 = vmatprep.subr.mxu0 0.0
        %1959 = vmatpush1.msra.mxu0 0.0
        %1960 = vmatprep.subr.mxu0 0.0
        %1961 = vmatpush1.msra.mxu0 0.0
        %1962 = vmatprep.subr.mxu0 0.0
        %1963 = vmatpush1.msra.mxu0 0.0
        %1964 = vmatprep.subr.mxu0 0.0
        %1965 = vmatpush1.msra.mxu0 0.0
        %1966 = vmatprep.subr.mxu0 0.0
        %1967 = vmatpush1.msra.mxu0 0.0
        %1968 = vmatprep.subr.mxu0 0.0
        %1969 = vmatpush1.msra.mxu0 0.0
        %1970 = vmatprep.subr.mxu0 0.0
        %1971 = vmatpush1.msra.mxu0 0.0
        %1972 = vmatprep.subr.mxu0 0.0
        %1973 = vmatpush1.msra.mxu0 0.0
        %1974 = vmatprep.subr.mxu0 0.0
        %1975 = vmatpush1.msra.mxu0 0.0
        %1976 = vmatprep.subr.mxu0 0.0
        %1977 = vmatpush1.msra.mxu0 0.0
        %1978 = vmatprep.subr.mxu0 0.0
        %1979 = vmatpush1.msra.mxu0 0.0
        %1980 = vmatprep.subr.mxu0 0.0
        %1981 = vmatpush1.msra.mxu0 0.0
        %1982 = vmatprep.subr.mxu0 0.0
        %1983 = vmatpush1.msra.mxu0 0.0
        %1984 = vmatprep.subr.mxu0 0.0
        %1985 = vmatpush1.msra.mxu0 0.0
        %1986 = vmatprep.subr.mxu0 0.0
        %1987 = vmatpush1.msra.mxu0 0.0
        %1988 = vmatprep.subr.mxu0 0.0
        %1989 = vmatpush1.msra.mxu0 0.0
        %1990 = vmatprep.subr.mxu0 0.0
        %1991 = vmatpush1.msra.mxu0 0.0
        %1992 = vmatprep.subr.mxu0 0.0
        %1993 = vmatpush1.msra.mxu0 0.0
        %1994 = vmatprep.subr.mxu0 0.0
        %1995 = vmatpush1.msra.mxu0 0.0
        %1996 = vmatprep.subr.mxu0 0.0
        %1997 = vmatpush1.msra.mxu0 0.0
        %1998 = vmatprep.subr.mxu0 0.0
        %1999 = vmatpush1.msra.mxu0 0.0
        %2000 = vmatprep.subr.mxu0 0.0
        %2001 = vmatpush1.msra.mxu0 0.0
        %2002 = vmatprep.subr.mxu0 0.0
        %2003 = vmatpush1.msra.mxu0 0.0
        %2004 = vmatprep.subr.mxu0 0.0
        %2005 = vmatpush1.msra.mxu0 0.0
        %2006 = vmatprep.subr.mxu0 0.0
        %2007 = vmatpush1.msra.mxu0 0.0
        %2008 = vmatprep.subr.mxu0 0.0
        %2009 = vmatpush1.msra.mxu0 0.0
        %2010 = vmatprep.mubr.f32.mxu0 0.0
        %2011 = vmatmul.mubr.f32.gmra.mrb[0].mxu0 %v826
        %v2012 = vpop.f32.mrb[0].mxu0
        %v2013 = vadd.f32 %v1858, %v2012
        %v2014 = vpop.f32.mrb[0].mxu0
        %v2015 = vadd.f32 %v1860, %v2014
        %2016 = vmatprep.mubr.f32.mxu0 0.0
        %2017 = vmatmul.mubr.f32.gmra.mrb[0].mxu0 %v829
        %v2018 = vpop.f32.mrb[0].mxu0
        %v2019 = vadd.f32 %v1864, %v2018
        %v2020 = vpop.f32.mrb[0].mxu0
        %v2021 = vadd.f32 %v1866, %v2020
        %2022 = vmatprep.mubr.f32.mxu0 0.0
        %2023 = vmatmul.mubr.f32.gmra.mrb[0].mxu0 %v832
        %v2024 = vpop.f32.mrb[0].mxu0
        %v2025 = vadd.f32 %v1870, %v2024
        %v2026 = vpop.f32.mrb[0].mxu0
        %v2027 = vadd.f32 %v1872, %v2026
        %2028 = vmatprep.mubr.f32.mxu0 0.0
        %2029 = vmatmul.mubr.f32.gmra.mrb[0].mxu0 %v835
        %v2030 = vpop.f32.mrb[0].mxu0
        %v2031 = vadd.f32 %v1876, %v2030
        %v2032 = vpop.f32.mrb[0].mxu0
        %v2033 = vadd.f32 %v1878, %v2032
        %2034 = vmatprep.mubr.f32.mxu0 0.0
        %2035 = vmatmul.mubr.f32.gmra.mrb[0].mxu0 %v838
        %v2036 = vpop.f32.mrb[0].mxu0
        %v2037 = vadd.f32 %v1882, %v2036
        %v2038 = vpop.f32.mrb[0].mxu0
        %v2039 = vadd.f32 %v1884, %v2038
        %2040 = vmatprep.mubr.f32.mxu0 0.0
        %2041 = vmatmul.mubr.f32.gmra.mrb[0].mxu0 %v841
        %v2042 = vpop.f32.mrb[0].mxu0
        %v2043 = vadd.f32 %v1888, %v2042
        %v2044 = vpop.f32.mrb[0].mxu0
        %v2045 = vadd.f32 %v1890, %v2044
        %2046 = vmatprep.mubr.f32.mxu0 0.0
        %2047 = vmatmul.mubr.f32.gmra.mrb[0].mxu0 %v844
        %v2048 = vpop.f32.mrb[0].mxu0
        %v2049 = vadd.f32 %v1894, %v2048
        %v2050 = vpop.f32.mrb[0].mxu0
        %v2051 = vadd.f32 %v1896, %v2050
        %2052 = vmatprep.mubr.f32.mxu0 0.0
        %2053 = vmatmul.mubr.f32.gmra.mrb[0].mxu0 %v847
        %v2054 = vpop.f32.mrb[0].mxu0
        %v2055 = vadd.f32 %v1900, %v2054
        %v2056 = vpop.f32.mrb[0].mxu0
        %v2057 = vadd.f32 %v1902, %v2056
        %2058 = vmatprep.mubr.f32.mxu0 0.0
        %2059 = vmatmul.mubr.f32.gmra.mrb[0].mxu0 %v850
        %v2060 = vpop.f32.mrb[0].mxu0
        %v2061 = vadd.f32 %v1906, %v2060
        %v2062 = vpop.f32.mrb[0].mxu0
        %v2063 = vadd.f32 %v1908, %v2062
        %2064 = vmatprep.mubr.f32.mxu0 0.0
        %2065 = vmatmul.mubr.f32.gmra.mrb[0].mxu0 %v853
        %v2066 = vpop.f32.mrb[0].mxu0
        %v2067 = vadd.f32 %v1912, %v2066
        %v2068 = vpop.f32.mrb[0].mxu0
        %v2069 = vadd.f32 %v1914, %v2068
        %2070 = vmatprep.mubr.f32.mxu0 0.0
        %2071 = vmatmul.mubr.f32.gmra.mrb[0].mxu0 %v856
        %v2072 = vpop.f32.mrb[0].mxu0
        %v2073 = vadd.f32 %v1918, %v2072
        %v2074 = vpop.f32.mrb[0].mxu0
        %v2075 = vadd.f32 %v1920, %v2074
        %2076 = vmatprep.mubr.f32.mxu0 0.0
        %2077 = vmatmul.mubr.f32.gmra.mrb[0].mxu0 %v859
        %v2078 = vpop.f32.mrb[0].mxu0
        %v2079 = vadd.f32 %v1924, %v2078
        %v2080 = vpop.f32.mrb[0].mxu0
        %v2081 = vadd.f32 %v1926, %v2080
        %2082 = vmatprep.mubr.f32.mxu0 0.0
        %2083 = vmatmul.mubr.f32.gmra.mrb[0].mxu0 %v862
        %v2084 = vpop.f32.mrb[0].mxu0
        %v2085 = vadd.f32 %v1930, %v2084
        %v2086 = vpop.f32.mrb[0].mxu0
        %v2087 = vadd.f32 %v1932, %v2086
        %2088 = vmatprep.mubr.f32.mxu0 0.0
        %2089 = vmatmul.mubr.f32.gmra.mrb[0].mxu0 %v865
        %v2090 = vpop.f32.mrb[0].mxu0
        %v2091 = vadd.f32 %v1936, %v2090
        %v2092 = vpop.f32.mrb[0].mxu0
        %v2093 = vadd.f32 %v1938, %v2092
        %2094 = vdwg.mxu0
        %s2095 = scalar_lea.vmem %s1, 320
        %v2096 = vld [vmem:[%s2095] sm:$0xff]
        %v2097 = vld [vmem:[%s2095 + $0x8] sm:$0xff]
        %v2098 = vld [vmem:[%s2095 + $0x10] sm:$0xff]
        %v2099 = vld [vmem:[%s2095 + $0x18] sm:$0xff]
        %v2100 = vld [vmem:[%s2095 + $0x20] sm:$0xff]
        %v2101 = vld [vmem:[%s2095 + $0x28] sm:$0xff]
        %v2102 = vld [vmem:[%s2095 + $0x30] sm:$0xf]
        %v2103 = vld [vmem:[%s2095 + $0x38] sm:$0xf]
        %v2105 = vsel %vm669, %v2102, 0
        %v2108 = vsel %vm669, %v2103, 0
        %2110 = vmatprep.subr.mxu0 %v2097
        %2111 = vmatpush1.msra.mxu0 %v2096
        %2112 = vmatprep.subr.mxu0 %v2099
        %2113 = vmatpush1.msra.mxu0 %v2098
        %2114 = vmatprep.subr.mxu0 %v2101
        %2115 = vmatpush1.msra.mxu0 %v2100
        %2116 = vmatprep.subr.mxu0 %v2108
        %2117 = vmatpush1.msra.mxu0 %v2105
        %2118 = vmatprep.subr.mxu0 0.0
        %2119 = vmatpush1.msra.mxu0 0.0
        %2120 = vmatprep.subr.mxu0 0.0
        %2121 = vmatpush1.msra.mxu0 0.0
        %2122 = vmatprep.subr.mxu0 0.0
        %2123 = vmatpush1.msra.mxu0 0.0
        %2124 = vmatprep.subr.mxu0 0.0
        %2125 = vmatpush1.msra.mxu0 0.0
        %2126 = vmatprep.subr.mxu0 0.0
        %2127 = vmatpush1.msra.mxu0 0.0
        %2128 = vmatprep.subr.mxu0 0.0
        %2129 = vmatpush1.msra.mxu0 0.0
        %2130 = vmatprep.subr.mxu0 0.0
        %2131 = vmatpush1.msra.mxu0 0.0
        %2132 = vmatprep.subr.mxu0 0.0
        %2133 = vmatpush1.msra.mxu0 0.0
        %2134 = vmatprep.subr.mxu0 0.0
        %2135 = vmatpush1.msra.mxu0 0.0
        %2136 = vmatprep.subr.mxu0 0.0
        %2137 = vmatpush1.msra.mxu0 0.0
        %2138 = vmatprep.subr.mxu0 0.0
        %2139 = vmatpush1.msra.mxu0 0.0
        %2140 = vmatprep.subr.mxu0 0.0
        %2141 = vmatpush1.msra.mxu0 0.0
        %2142 = vmatprep.subr.mxu0 0.0
        %2143 = vmatpush1.msra.mxu0 0.0
        %2144 = vmatprep.subr.mxu0 0.0
        %2145 = vmatpush1.msra.mxu0 0.0
        %2146 = vmatprep.subr.mxu0 0.0
        %2147 = vmatpush1.msra.mxu0 0.0
        %2148 = vmatprep.subr.mxu0 0.0
        %2149 = vmatpush1.msra.mxu0 0.0
        %2150 = vmatprep.subr.mxu0 0.0
        %2151 = vmatpush1.msra.mxu0 0.0
        %2152 = vmatprep.subr.mxu0 0.0
        %2153 = vmatpush1.msra.mxu0 0.0
        %2154 = vmatprep.subr.mxu0 0.0
        %2155 = vmatpush1.msra.mxu0 0.0
        %2156 = vmatprep.subr.mxu0 0.0
        %2157 = vmatpush1.msra.mxu0 0.0
        %2158 = vmatprep.subr.mxu0 0.0
        %2159 = vmatpush1.msra.mxu0 0.0
        %2160 = vmatprep.subr.mxu0 0.0
        %2161 = vmatpush1.msra.mxu0 0.0
        %2162 = vmatprep.subr.mxu0 0.0
        %2163 = vmatpush1.msra.mxu0 0.0
        %2164 = vmatprep.subr.mxu0 0.0
        %2165 = vmatpush1.msra.mxu0 0.0
        %2166 = vmatprep.subr.mxu0 0.0
        %2167 = vmatpush1.msra.mxu0 0.0
        %2168 = vmatprep.subr.mxu0 0.0
        %2169 = vmatpush1.msra.mxu0 0.0
        %2170 = vmatprep.subr.mxu0 0.0
        %2171 = vmatpush1.msra.mxu0 0.0
        %2172 = vmatprep.subr.mxu0 0.0
        %2173 = vmatpush1.msra.mxu0 0.0
        %2174 = vmatprep.mubr.f32.mxu0 0.0
        %2175 = vmatmul.mubr.f32.gmra.mrb[0].mxu0 %v1046
        %v2176 = vpop.f32.mrb[0].mxu0
        %v2177 = vadd.f32 0.0, %v2176
        %v2178 = vpop.f32.mrb[0].mxu0
        %v2179 = vadd.f32 0.0, %v2178
        %2180 = vmatprep.mubr.f32.mxu0 0.0
        %2181 = vmatmul.mubr.f32.gmra.mrb[0].mxu0 %v1049
        %v2182 = vpop.f32.mrb[0].mxu0
        %v2183 = vadd.f32 0.0, %v2182
        %v2184 = vpop.f32.mrb[0].mxu0
        %v2185 = vadd.f32 0.0, %v2184
        %2186 = vmatprep.mubr.f32.mxu0 0.0
        %2187 = vmatmul.mubr.f32.gmra.mrb[0].mxu0 %v1052
        %v2188 = vpop.f32.mrb[0].mxu0
        %v2189 = vadd.f32 0.0, %v2188
        %v2190 = vpop.f32.mrb[0].mxu0
        %v2191 = vadd.f32 0.0, %v2190
        %2192 = vmatprep.mubr.f32.mxu0 0.0
        %2193 = vmatmul.mubr.f32.gmra.mrb[0].mxu0 %v1055
        %v2194 = vpop.f32.mrb[0].mxu0
        %v2195 = vadd.f32 0.0, %v2194
        %v2196 = vpop.f32.mrb[0].mxu0
        %v2197 = vadd.f32 0.0, %v2196
        %2198 = vmatprep.mubr.f32.mxu0 0.0
        %2199 = vmatmul.mubr.f32.gmra.mrb[0].mxu0 %v1058
        %v2200 = vpop.f32.mrb[0].mxu0
        %v2201 = vadd.f32 0.0, %v2200
        %v2202 = vpop.f32.mrb[0].mxu0
        %v2203 = vadd.f32 0.0, %v2202
        %2204 = vmatprep.mubr.f32.mxu0 0.0
        %2205 = vmatmul.mubr.f32.gmra.mrb[0].mxu0 %v1061
        %v2206 = vpop.f32.mrb[0].mxu0
        %v2207 = vadd.f32 0.0, %v2206
        %v2208 = vpop.f32.mrb[0].mxu0
        %v2209 = vadd.f32 0.0, %v2208
        %2210 = vmatprep.mubr.f32.mxu0 0.0
        %2211 = vmatmul.mubr.f32.gmra.mrb[0].mxu0 %v1064
        %v2212 = vpop.f32.mrb[0].mxu0
        %v2213 = vadd.f32 0.0, %v2212
        %v2214 = vpop.f32.mrb[0].mxu0
        %v2215 = vadd.f32 0.0, %v2214
        %2216 = vmatprep.mubr.f32.mxu0 0.0
        %2217 = vmatmul.mubr.f32.gmra.mrb[0].mxu0 %v1067
        %v2218 = vpop.f32.mrb[0].mxu0
        %v2219 = vadd.f32 0.0, %v2218
        %v2220 = vpop.f32.mrb[0].mxu0
        %v2221 = vadd.f32 0.0, %v2220
        %2222 = vmatprep.mubr.f32.mxu0 0.0
        %2223 = vmatmul.mubr.f32.gmra.mrb[0].mxu0 %v1070
        %v2224 = vpop.f32.mrb[0].mxu0
        %v2225 = vadd.f32 0.0, %v2224
        %v2226 = vpop.f32.mrb[0].mxu0
        %v2227 = vadd.f32 0.0, %v2226
        %2228 = vmatprep.mubr.f32.mxu0 0.0
        %2229 = vmatmul.mubr.f32.gmra.mrb[0].mxu0 %v1073
        %v2230 = vpop.f32.mrb[0].mxu0
        %v2231 = vadd.f32 0.0, %v2230
        %v2232 = vpop.f32.mrb[0].mxu0
        %v2233 = vadd.f32 0.0, %v2232
        %2234 = vmatprep.mubr.f32.mxu0 0.0
        %2235 = vmatmul.mubr.f32.gmra.mrb[0].mxu0 %v1076
        %v2236 = vpop.f32.mrb[0].mxu0
        %v2237 = vadd.f32 0.0, %v2236
        %v2238 = vpop.f32.mrb[0].mxu0
        %v2239 = vadd.f32 0.0, %v2238
        %2240 = vmatprep.mubr.f32.mxu0 0.0
        %2241 = vmatmul.mubr.f32.gmra.mrb[0].mxu0 %v1079
        %v2242 = vpop.f32.mrb[0].mxu0
        %v2243 = vadd.f32 0.0, %v2242
        %v2244 = vpop.f32.mrb[0].mxu0
        %v2245 = vadd.f32 0.0, %v2244
        %2246 = vmatprep.mubr.f32.mxu0 0.0
        %2247 = vmatmul.mubr.f32.gmra.mrb[0].mxu0 %v1082
        %v2248 = vpop.f32.mrb[0].mxu0
        %v2249 = vadd.f32 0.0, %v2248
        %v2250 = vpop.f32.mrb[0].mxu0
        %v2251 = vadd.f32 0.0, %v2250
        %2252 = vmatprep.mubr.f32.mxu0 0.0
        %2253 = vmatmul.mubr.f32.gmra.mrb[0].mxu0 %v1085
        %v2254 = vpop.f32.mrb[0].mxu0
        %v2255 = vadd.f32 0.0, %v2254
        %v2256 = vpop.f32.mrb[0].mxu0
        %v2257 = vadd.f32 0.0, %v2256
        %2258 = vdwg.mxu0
        %v2259 = vadd.f32 %v2013, %v2177
        %v2260 = vadd.f32 %v2015, %v2179
        %v2261 = vadd.f32 %v2019, %v2183
        %v2262 = vadd.f32 %v2021, %v2185
        %v2263 = vadd.f32 %v2025, %v2189
        %v2264 = vadd.f32 %v2027, %v2191
        %v2265 = vadd.f32 %v2031, %v2195
        %v2266 = vadd.f32 %v2033, %v2197
        %v2267 = vadd.f32 %v2037, %v2201
        %v2268 = vadd.f32 %v2039, %v2203
        %v2269 = vadd.f32 %v2043, %v2207
        %v2270 = vadd.f32 %v2045, %v2209
        %v2271 = vadd.f32 %v2049, %v2213
        %v2272 = vadd.f32 %v2051, %v2215
        %v2273 = vadd.f32 %v2055, %v2219
        %v2274 = vadd.f32 %v2057, %v2221
        %v2275 = vadd.f32 %v2061, %v2225
        %v2276 = vadd.f32 %v2063, %v2227
        %v2277 = vadd.f32 %v2067, %v2231
        %v2278 = vadd.f32 %v2069, %v2233
        %v2279 = vadd.f32 %v2073, %v2237
        %v2280 = vadd.f32 %v2075, %v2239
        %v2281 = vadd.f32 %v2079, %v2243
        %v2282 = vadd.f32 %v2081, %v2245
        %v2283 = vadd.f32 %v2085, %v2249
        %v2284 = vadd.f32 %v2087, %v2251
        %v2285 = vadd.f32 %v2091, %v2255
        %v2286 = vadd.f32 %v2093, %v2257
        %s2287 = scalar_lea.vmem %s1, 448
        %v2288 = vld [vmem:[%s2287] sm:$0xff]
        %v2289 = vld [vmem:[%s2287 + $0x8] sm:$0xff]
        %v2290 = vld [vmem:[%s2287 + $0x10] sm:$0xff]
        %v2291 = vld [vmem:[%s2287 + $0x18] sm:$0xff]
        %v2292 = vld [vmem:[%s2287 + $0x20] sm:$0xff]
        %v2293 = vld [vmem:[%s2287 + $0x28] sm:$0xff]
        %v2294 = vld [vmem:[%s2287 + $0x30] sm:$0xf]
        %v2295 = vld [vmem:[%s2287 + $0x38] sm:$0xf]
        %v2297 = vsel %vm669, %v2294, 0
        %v2300 = vsel %vm669, %v2295, 0
        %2302 = vmatprep.subr.mxu0 %v2289
        %2303 = vmatpush1.msra.mxu0 %v2288
        %2304 = vmatprep.subr.mxu0 %v2291
        %2305 = vmatpush1.msra.mxu0 %v2290
        %2306 = vmatprep.subr.mxu0 %v2293
        %2307 = vmatpush1.msra.mxu0 %v2292
        %2308 = vmatprep.subr.mxu0 %v2300
        %2309 = vmatpush1.msra.mxu0 %v2297
        %2310 = vmatprep.subr.mxu0 0.0
        %2311 = vmatpush1.msra.mxu0 0.0
        %2312 = vmatprep.subr.mxu0 0.0
        %2313 = vmatpush1.msra.mxu0 0.0
        %2314 = vmatprep.subr.mxu0 0.0
        %2315 = vmatpush1.msra.mxu0 0.0
        %2316 = vmatprep.subr.mxu0 0.0
        %2317 = vmatpush1.msra.mxu0 0.0
        %2318 = vmatprep.subr.mxu0 0.0
        %2319 = vmatpush1.msra.mxu0 0.0
        %2320 = vmatprep.subr.mxu0 0.0
        %2321 = vmatpush1.msra.mxu0 0.0
        %2322 = vmatprep.subr.mxu0 0.0
        %2323 = vmatpush1.msra.mxu0 0.0
        %2324 = vmatprep.subr.mxu0 0.0
        %2325 = vmatpush1.msra.mxu0 0.0
        %2326 = vmatprep.subr.mxu0 0.0
        %2327 = vmatpush1.msra.mxu0 0.0
        %2328 = vmatprep.subr.mxu0 0.0
        %2329 = vmatpush1.msra.mxu0 0.0
        %2330 = vmatprep.subr.mxu0 0.0
        %2331 = vmatpush1.msra.mxu0 0.0
        %2332 = vmatprep.subr.mxu0 0.0
        %2333 = vmatpush1.msra.mxu0 0.0
        %2334 = vmatprep.subr.mxu0 0.0
        %2335 = vmatpush1.msra.mxu0 0.0
        %2336 = vmatprep.subr.mxu0 0.0
        %2337 = vmatpush1.msra.mxu0 0.0
        %2338 = vmatprep.subr.mxu0 0.0
        %2339 = vmatpush1.msra.mxu0 0.0
        %2340 = vmatprep.subr.mxu0 0.0
        %2341 = vmatpush1.msra.mxu0 0.0
        %2342 = vmatprep.subr.mxu0 0.0
        %2343 = vmatpush1.msra.mxu0 0.0
        %2344 = vmatprep.subr.mxu0 0.0
        %2345 = vmatpush1.msra.mxu0 0.0
        %2346 = vmatprep.subr.mxu0 0.0
        %2347 = vmatpush1.msra.mxu0 0.0
        %2348 = vmatprep.subr.mxu0 0.0
        %2349 = vmatpush1.msra.mxu0 0.0
        %2350 = vmatprep.subr.mxu0 0.0
        %2351 = vmatpush1.msra.mxu0 0.0
        %2352 = vmatprep.subr.mxu0 0.0
        %2353 = vmatpush1.msra.mxu0 0.0
        %2354 = vmatprep.subr.mxu0 0.0
        %2355 = vmatpush1.msra.mxu0 0.0
        %2356 = vmatprep.subr.mxu0 0.0
        %2357 = vmatpush1.msra.mxu0 0.0
        %2358 = vmatprep.subr.mxu0 0.0
        %2359 = vmatpush1.msra.mxu0 0.0
        %2360 = vmatprep.subr.mxu0 0.0
        %2361 = vmatpush1.msra.mxu0 0.0
        %2362 = vmatprep.subr.mxu0 0.0
        %2363 = vmatpush1.msra.mxu0 0.0
        %2364 = vmatprep.subr.mxu0 0.0
        %2365 = vmatpush1.msra.mxu0 0.0
        %2366 = vmatprep.mubr.f32.mxu0 0.0
        %2367 = vmatmul.mubr.f32.gmra.mrb[0].mxu0 %v1294
        %v2368 = vpop.f32.mrb[0].mxu0
        %v2369 = vadd.f32 0.0, %v2368
        %v2370 = vpop.f32.mrb[0].mxu0
        %v2371 = vadd.f32 0.0, %v2370
        %2372 = vmatprep.mubr.f32.mxu0 0.0
        %2373 = vmatmul.mubr.f32.gmra.mrb[0].mxu0 %v1297
        %v2374 = vpop.f32.mrb[0].mxu0
        %v2375 = vadd.f32 0.0, %v2374
        %v2376 = vpop.f32.mrb[0].mxu0
        %v2377 = vadd.f32 0.0, %v2376
        %2378 = vmatprep.mubr.f32.mxu0 0.0
        %2379 = vmatmul.mubr.f32.gmra.mrb[0].mxu0 %v1300
        %v2380 = vpop.f32.mrb[0].mxu0
        %v2381 = vadd.f32 0.0, %v2380
        %v2382 = vpop.f32.mrb[0].mxu0
        %v2383 = vadd.f32 0.0, %v2382
        %2384 = vmatprep.mubr.f32.mxu0 0.0
        %2385 = vmatmul.mubr.f32.gmra.mrb[0].mxu0 %v1303
        %v2386 = vpop.f32.mrb[0].mxu0
        %v2387 = vadd.f32 0.0, %v2386
        %v2388 = vpop.f32.mrb[0].mxu0
        %v2389 = vadd.f32 0.0, %v2388
        %2390 = vmatprep.mubr.f32.mxu0 0.0
        %2391 = vmatmul.mubr.f32.gmra.mrb[0].mxu0 %v1306
        %v2392 = vpop.f32.mrb[0].mxu0
        %v2393 = vadd.f32 0.0, %v2392
        %v2394 = vpop.f32.mrb[0].mxu0
        %v2395 = vadd.f32 0.0, %v2394
        %2396 = vmatprep.mubr.f32.mxu0 0.0
        %2397 = vmatmul.mubr.f32.gmra.mrb[0].mxu0 %v1309
        %v2398 = vpop.f32.mrb[0].mxu0
        %v2399 = vadd.f32 0.0, %v2398
        %v2400 = vpop.f32.mrb[0].mxu0
        %v2401 = vadd.f32 0.0, %v2400
        %2402 = vmatprep.mubr.f32.mxu0 0.0
        %2403 = vmatmul.mubr.f32.gmra.mrb[0].mxu0 %v1312
        %v2404 = vpop.f32.mrb[0].mxu0
        %v2405 = vadd.f32 0.0, %v2404
        %v2406 = vpop.f32.mrb[0].mxu0
        %v2407 = vadd.f32 0.0, %v2406
        %2408 = vmatprep.mubr.f32.mxu0 0.0
        %2409 = vmatmul.mubr.f32.gmra.mrb[0].mxu0 %v1315
        %v2410 = vpop.f32.mrb[0].mxu0
        %v2411 = vadd.f32 0.0, %v2410
        %v2412 = vpop.f32.mrb[0].mxu0
        %v2413 = vadd.f32 0.0, %v2412
        %2414 = vmatprep.mubr.f32.mxu0 0.0
        %2415 = vmatmul.mubr.f32.gmra.mrb[0].mxu0 %v1318
        %v2416 = vpop.f32.mrb[0].mxu0
        %v2417 = vadd.f32 0.0, %v2416
        %v2418 = vpop.f32.mrb[0].mxu0
        %v2419 = vadd.f32 0.0, %v2418
        %2420 = vmatprep.mubr.f32.mxu0 0.0
        %2421 = vmatmul.mubr.f32.gmra.mrb[0].mxu0 %v1321
        %v2422 = vpop.f32.mrb[0].mxu0
        %v2423 = vadd.f32 0.0, %v2422
        %v2424 = vpop.f32.mrb[0].mxu0
        %v2425 = vadd.f32 0.0, %v2424
        %2426 = vmatprep.mubr.f32.mxu0 0.0
        %2427 = vmatmul.mubr.f32.gmra.mrb[0].mxu0 %v1324
        %v2428 = vpop.f32.mrb[0].mxu0
        %v2429 = vadd.f32 0.0, %v2428
        %v2430 = vpop.f32.mrb[0].mxu0
        %v2431 = vadd.f32 0.0, %v2430
        %2432 = vmatprep.mubr.f32.mxu0 0.0
        %2433 = vmatmul.mubr.f32.gmra.mrb[0].mxu0 %v1327
        %v2434 = vpop.f32.mrb[0].mxu0
        %v2435 = vadd.f32 0.0, %v2434
        %v2436 = vpop.f32.mrb[0].mxu0
        %v2437 = vadd.f32 0.0, %v2436
        %2438 = vmatprep.mubr.f32.mxu0 0.0
        %2439 = vmatmul.mubr.f32.gmra.mrb[0].mxu0 %v1330
        %v2440 = vpop.f32.mrb[0].mxu0
        %v2441 = vadd.f32 0.0, %v2440
        %v2442 = vpop.f32.mrb[0].mxu0
        %v2443 = vadd.f32 0.0, %v2442
        %2444 = vmatprep.mubr.f32.mxu0 0.0
        %2445 = vmatmul.mubr.f32.gmra.mrb[0].mxu0 %v1333
        %v2446 = vpop.f32.mrb[0].mxu0
        %v2447 = vadd.f32 0.0, %v2446
        %v2448 = vpop.f32.mrb[0].mxu0
        %v2449 = vadd.f32 0.0, %v2448
        %2450 = vdwg.mxu0
        %v2451 = vadd.f32 %v2259, %v2369
        %v2452 = vadd.f32 %v2260, %v2371
        %v2453 = vadd.f32 %v2261, %v2375
        %v2454 = vadd.f32 %v2262, %v2377
        %v2455 = vadd.f32 %v2263, %v2381
        %v2456 = vadd.f32 %v2264, %v2383
        %v2457 = vadd.f32 %v2265, %v2387
        %v2458 = vadd.f32 %v2266, %v2389
        %v2459 = vadd.f32 %v2267, %v2393
        %v2460 = vadd.f32 %v2268, %v2395
        %v2461 = vadd.f32 %v2269, %v2399
        %v2462 = vadd.f32 %v2270, %v2401
        %v2463 = vadd.f32 %v2271, %v2405
        %v2464 = vadd.f32 %v2272, %v2407
        %v2465 = vadd.f32 %v2273, %v2411
        %v2466 = vadd.f32 %v2274, %v2413
        %v2467 = vadd.f32 %v2275, %v2417
        %v2468 = vadd.f32 %v2276, %v2419
        %v2469 = vadd.f32 %v2277, %v2423
        %v2470 = vadd.f32 %v2278, %v2425
        %v2471 = vadd.f32 %v2279, %v2429
        %v2472 = vadd.f32 %v2280, %v2431
        %v2473 = vadd.f32 %v2281, %v2435
        %v2474 = vadd.f32 %v2282, %v2437
        %v2475 = vadd.f32 %v2283, %v2441
        %v2476 = vadd.f32 %v2284, %v2443
        %v2477 = vadd.f32 %v2285, %v2447
        %v2478 = vadd.f32 %v2286, %v2449
        %s2479 = scalar_lea.vmem %s1, 576
        %v2480 = vld [vmem:[%s2479] sm:$0xff]
        %v2481 = vld [vmem:[%s2479 + $0x8] sm:$0xff]
        %v2482 = vld [vmem:[%s2479 + $0x10] sm:$0xff]
        %v2483 = vld [vmem:[%s2479 + $0x18] sm:$0xff]
        %v2484 = vld [vmem:[%s2479 + $0x20] sm:$0xff]
        %v2485 = vld [vmem:[%s2479 + $0x28] sm:$0xff]
        %v2486 = vld [vmem:[%s2479 + $0x30] sm:$0xf]
        %v2487 = vld [vmem:[%s2479 + $0x38] sm:$0xf]
        %v2489 = vsel %vm669, %v2486, 0
        %v2492 = vsel %vm669, %v2487, 0
        %2494 = vmatprep.subr.mxu0 %v2481
        %2495 = vmatpush1.msra.mxu0 %v2480
        %2496 = vmatprep.subr.mxu0 %v2483
        %2497 = vmatpush1.msra.mxu0 %v2482
        %2498 = vmatprep.subr.mxu0 %v2485
        %2499 = vmatpush1.msra.mxu0 %v2484
        %2500 = vmatprep.subr.mxu0 %v2492
        %2501 = vmatpush1.msra.mxu0 %v2489
        %2502 = vmatprep.subr.mxu0 0.0
        %2503 = vmatpush1.msra.mxu0 0.0
        %2504 = vmatprep.subr.mxu0 0.0
        %2505 = vmatpush1.msra.mxu0 0.0
        %2506 = vmatprep.subr.mxu0 0.0
        %2507 = vmatpush1.msra.mxu0 0.0
        %2508 = vmatprep.subr.mxu0 0.0
        %2509 = vmatpush1.msra.mxu0 0.0
        %2510 = vmatprep.subr.mxu0 0.0
        %2511 = vmatpush1.msra.mxu0 0.0
        %2512 = vmatprep.subr.mxu0 0.0
        %2513 = vmatpush1.msra.mxu0 0.0
        %2514 = vmatprep.subr.mxu0 0.0
        %2515 = vmatpush1.msra.mxu0 0.0
        %2516 = vmatprep.subr.mxu0 0.0
        %2517 = vmatpush1.msra.mxu0 0.0
        %2518 = vmatprep.subr.mxu0 0.0
        %2519 = vmatpush1.msra.mxu0 0.0
        %2520 = vmatprep.subr.mxu0 0.0
        %2521 = vmatpush1.msra.mxu0 0.0
        %2522 = vmatprep.subr.mxu0 0.0
        %2523 = vmatpush1.msra.mxu0 0.0
        %2524 = vmatprep.subr.mxu0 0.0
        %2525 = vmatpush1.msra.mxu0 0.0
        %2526 = vmatprep.subr.mxu0 0.0
        %2527 = vmatpush1.msra.mxu0 0.0
        %2528 = vmatprep.subr.mxu0 0.0
        %2529 = vmatpush1.msra.mxu0 0.0
        %2530 = vmatprep.subr.mxu0 0.0
        %2531 = vmatpush1.msra.mxu0 0.0
        %2532 = vmatprep.subr.mxu0 0.0
        %2533 = vmatpush1.msra.mxu0 0.0
        %2534 = vmatprep.subr.mxu0 0.0
        %2535 = vmatpush1.msra.mxu0 0.0
        %2536 = vmatprep.subr.mxu0 0.0
        %2537 = vmatpush1.msra.mxu0 0.0
        %2538 = vmatprep.subr.mxu0 0.0
        %2539 = vmatpush1.msra.mxu0 0.0
        %2540 = vmatprep.subr.mxu0 0.0
        %2541 = vmatpush1.msra.mxu0 0.0
        %2542 = vmatprep.subr.mxu0 0.0
        %2543 = vmatpush1.msra.mxu0 0.0
        %2544 = vmatprep.subr.mxu0 0.0
        %2545 = vmatpush1.msra.mxu0 0.0
        %2546 = vmatprep.subr.mxu0 0.0
        %2547 = vmatpush1.msra.mxu0 0.0
        %2548 = vmatprep.subr.mxu0 0.0
        %2549 = vmatpush1.msra.mxu0 0.0
        %2550 = vmatprep.subr.mxu0 0.0
        %2551 = vmatpush1.msra.mxu0 0.0
        %2552 = vmatprep.subr.mxu0 0.0
        %2553 = vmatpush1.msra.mxu0 0.0
        %2554 = vmatprep.subr.mxu0 0.0
        %2555 = vmatpush1.msra.mxu0 0.0
        %2556 = vmatprep.subr.mxu0 0.0
        %2557 = vmatpush1.msra.mxu0 0.0
        %2558 = vmatprep.mubr.f32.mxu0 0.0
        %2559 = vmatmul.mubr.f32.gmra.mrb[0].mxu0 %v1543
        %v2560 = vpop.f32.mrb[0].mxu0
        %v2561 = vadd.f32 0.0, %v2560
        %v2562 = vpop.f32.mrb[0].mxu0
        %v2563 = vadd.f32 0.0, %v2562
        %2564 = vmatprep.mubr.f32.mxu0 0.0
        %2565 = vmatmul.mubr.f32.gmra.mrb[0].mxu0 %v1546
        %v2566 = vpop.f32.mrb[0].mxu0
        %v2567 = vadd.f32 0.0, %v2566
        %v2568 = vpop.f32.mrb[0].mxu0
        %v2569 = vadd.f32 0.0, %v2568
        %2570 = vmatprep.mubr.f32.mxu0 0.0
        %2571 = vmatmul.mubr.f32.gmra.mrb[0].mxu0 %v1549
        %v2572 = vpop.f32.mrb[0].mxu0
        %v2573 = vadd.f32 0.0, %v2572
        %v2574 = vpop.f32.mrb[0].mxu0
        %v2575 = vadd.f32 0.0, %v2574
        %2576 = vmatprep.mubr.f32.mxu0 0.0
        %2577 = vmatmul.mubr.f32.gmra.mrb[0].mxu0 %v1552
        %v2578 = vpop.f32.mrb[0].mxu0
        %v2579 = vadd.f32 0.0, %v2578
        %v2580 = vpop.f32.mrb[0].mxu0
        %v2581 = vadd.f32 0.0, %v2580
        %2582 = vmatprep.mubr.f32.mxu0 0.0
        %2583 = vmatmul.mubr.f32.gmra.mrb[0].mxu0 %v1555
        %v2584 = vpop.f32.mrb[0].mxu0
        %v2585 = vadd.f32 0.0, %v2584
        %v2586 = vpop.f32.mrb[0].mxu0
        %v2587 = vadd.f32 0.0, %v2586
        %2588 = vmatprep.mubr.f32.mxu0 0.0
        %2589 = vmatmul.mubr.f32.gmra.mrb[0].mxu0 %v1558
        %v2590 = vpop.f32.mrb[0].mxu0
        %v2591 = vadd.f32 0.0, %v2590
        %v2592 = vpop.f32.mrb[0].mxu0
        %v2593 = vadd.f32 0.0, %v2592
        %2594 = vmatprep.mubr.f32.mxu0 0.0
        %2595 = vmatmul.mubr.f32.gmra.mrb[0].mxu0 %v1561
        %v2596 = vpop.f32.mrb[0].mxu0
        %v2597 = vadd.f32 0.0, %v2596
        %v2598 = vpop.f32.mrb[0].mxu0
        %v2599 = vadd.f32 0.0, %v2598
        %2600 = vmatprep.mubr.f32.mxu0 0.0
        %2601 = vmatmul.mubr.f32.gmra.mrb[0].mxu0 %v1564
        %v2602 = vpop.f32.mrb[0].mxu0
        %v2603 = vadd.f32 0.0, %v2602
        %v2604 = vpop.f32.mrb[0].mxu0
        %v2605 = vadd.f32 0.0, %v2604
        %2606 = vmatprep.mubr.f32.mxu0 0.0
        %2607 = vmatmul.mubr.f32.gmra.mrb[0].mxu0 %v1567
        %v2608 = vpop.f32.mrb[0].mxu0
        %v2609 = vadd.f32 0.0, %v2608
        %v2610 = vpop.f32.mrb[0].mxu0
        %v2611 = vadd.f32 0.0, %v2610
        %2612 = vmatprep.mubr.f32.mxu0 0.0
        %2613 = vmatmul.mubr.f32.gmra.mrb[0].mxu0 %v1570
        %v2614 = vpop.f32.mrb[0].mxu0
        %v2615 = vadd.f32 0.0, %v2614
        %v2616 = vpop.f32.mrb[0].mxu0
        %v2617 = vadd.f32 0.0, %v2616
        %2618 = vmatprep.mubr.f32.mxu0 0.0
        %2619 = vmatmul.mubr.f32.gmra.mrb[0].mxu0 %v1573
        %v2620 = vpop.f32.mrb[0].mxu0
        %v2621 = vadd.f32 0.0, %v2620
        %v2622 = vpop.f32.mrb[0].mxu0
        %v2623 = vadd.f32 0.0, %v2622
        %2624 = vmatprep.mubr.f32.mxu0 0.0
        %2625 = vmatmul.mubr.f32.gmra.mrb[0].mxu0 %v1576
        %v2626 = vpop.f32.mrb[0].mxu0
        %v2627 = vadd.f32 0.0, %v2626
        %v2628 = vpop.f32.mrb[0].mxu0
        %v2629 = vadd.f32 0.0, %v2628
        %2630 = vmatprep.mubr.f32.mxu0 0.0
        %2631 = vmatmul.mubr.f32.gmra.mrb[0].mxu0 %v1579
        %v2632 = vpop.f32.mrb[0].mxu0
        %v2633 = vadd.f32 0.0, %v2632
        %v2634 = vpop.f32.mrb[0].mxu0
        %v2635 = vadd.f32 0.0, %v2634
        %2636 = vmatprep.mubr.f32.mxu0 0.0
        %2637 = vmatmul.mubr.f32.gmra.mrb[0].mxu0 %v1582
        %v2638 = vpop.f32.mrb[0].mxu0
        %v2639 = vadd.f32 0.0, %v2638
        %v2640 = vpop.f32.mrb[0].mxu0
        %v2641 = vadd.f32 0.0, %v2640
        %2642 = vdwg.mxu0
        %v2643 = vadd.f32 %v2451, %v2561
        %v2644 = vadd.f32 %v2452, %v2563
        %v2645 = vadd.f32 %v2453, %v2567
        %v2646 = vadd.f32 %v2454, %v2569
        %v2647 = vadd.f32 %v2455, %v2573
        %v2648 = vadd.f32 %v2456, %v2575
        %v2649 = vadd.f32 %v2457, %v2579
        %v2650 = vadd.f32 %v2458, %v2581
        %v2651 = vadd.f32 %v2459, %v2585
        %v2652 = vadd.f32 %v2460, %v2587
        %v2653 = vadd.f32 %v2461, %v2591
        %v2654 = vadd.f32 %v2462, %v2593
        %v2655 = vadd.f32 %v2463, %v2597
        %v2656 = vadd.f32 %v2464, %v2599
        %v2657 = vadd.f32 %v2465, %v2603
        %v2658 = vadd.f32 %v2466, %v2605
        %v2659 = vadd.f32 %v2467, %v2609
        %v2660 = vadd.f32 %v2468, %v2611
        %v2661 = vadd.f32 %v2469, %v2615
        %v2662 = vadd.f32 %v2470, %v2617
        %v2663 = vadd.f32 %v2471, %v2621
        %v2664 = vadd.f32 %v2472, %v2623
        %v2665 = vadd.f32 %v2473, %v2627
        %v2666 = vadd.f32 %v2474, %v2629
        %v2667 = vadd.f32 %v2475, %v2633
        %v2668 = vadd.f32 %v2476, %v2635
        %v2669 = vadd.f32 %v2477, %v2639
        %v2670 = vadd.f32 %v2478, %v2641
        %v2671 = vmax.f32 %v1739, %v2643
        %v2672 = vmax.f32 %v1740, %v2644
        %v2673 = vmax.f32 %v1741, %v2645
        %v2674 = vmax.f32 %v1742, %v2646
        %v2675 = vmax.f32 %v1743, %v2647
        %v2676 = vmax.f32 %v1744, %v2648
        %v2677 = vmax.f32 %v1745, %v2649
        %v2678 = vmax.f32 %v1746, %v2650
        %v2679 = vmax.f32 %v1747, %v2651
        %v2680 = vmax.f32 %v1748, %v2652
        %v2681 = vmax.f32 %v1749, %v2653
        %v2682 = vmax.f32 %v1750, %v2654
        %v2683 = vmax.f32 %v1751, %v2655
        %v2684 = vmax.f32 %v1752, %v2656
        %v2685 = vmax.f32 %v1753, %v2657
        %v2686 = vmax.f32 %v1754, %v2658
        %v2687 = vmax.f32 %v1755, %v2659
        %v2688 = vmax.f32 %v1756, %v2660
        %v2689 = vmax.f32 %v1757, %v2661
        %v2690 = vmax.f32 %v1758, %v2662
        %v2691 = vmax.f32 %v1759, %v2663
        %v2692 = vmax.f32 %v1760, %v2664
        %v2693 = vmax.f32 %v1761, %v2665
        %v2694 = vmax.f32 %v1762, %v2666
        %v2695 = vmax.f32 %v1763, %v2667
        %v2696 = vmax.f32 %v1764, %v2668
        %v2697 = vmax.f32 %v1765, %v2669
        %v2698 = vmax.f32 %v1766, %v2670
        %2699 = vmatprep.subr.mxu0 %v620
        %2700 = vmatpush1.msra.mxu0 %v619
        %2701 = vmatprep.subr.mxu0 %v622
        %2702 = vmatpush1.msra.mxu0 %v621
        %2703 = vmatprep.subr.mxu0 %v624
        %2704 = vmatpush1.msra.mxu0 %v623
        %2705 = vmatprep.subr.mxu0 %v674
        %2706 = vmatpush1.msra.mxu0 %v671
        %2707 = vmatprep.subr.mxu0 0.0
        %2708 = vmatpush1.msra.mxu0 0.0
        %2709 = vmatprep.subr.mxu0 0.0
        %2710 = vmatpush1.msra.mxu0 0.0
        %2711 = vmatprep.subr.mxu0 0.0
        %2712 = vmatpush1.msra.mxu0 0.0
        %2713 = vmatprep.subr.mxu0 0.0
        %2714 = vmatpush1.msra.mxu0 0.0
        %2715 = vmatprep.subr.mxu0 0.0
        %2716 = vmatpush1.msra.mxu0 0.0
        %2717 = vmatprep.subr.mxu0 0.0
        %2718 = vmatpush1.msra.mxu0 0.0
        %2719 = vmatprep.subr.mxu0 0.0
        %2720 = vmatpush1.msra.mxu0 0.0
        %2721 = vmatprep.subr.mxu0 0.0
        %2722 = vmatpush1.msra.mxu0 0.0
        %2723 = vmatprep.subr.mxu0 0.0
        %2724 = vmatpush1.msra.mxu0 0.0
        %2725 = vmatprep.subr.mxu0 0.0
        %2726 = vmatpush1.msra.mxu0 0.0
        %2727 = vmatprep.subr.mxu0 0.0
        %2728 = vmatpush1.msra.mxu0 0.0
        %2729 = vmatprep.subr.mxu0 0.0
        %2730 = vmatpush1.msra.mxu0 0.0
        %2731 = vmatprep.subr.mxu0 0.0
        %2732 = vmatpush1.msra.mxu0 0.0
        %2733 = vmatprep.subr.mxu0 0.0
        %2734 = vmatpush1.msra.mxu0 0.0
        %2735 = vmatprep.subr.mxu0 0.0
        %2736 = vmatpush1.msra.mxu0 0.0
        %2737 = vmatprep.subr.mxu0 0.0
        %2738 = vmatpush1.msra.mxu0 0.0
        %2739 = vmatprep.subr.mxu0 0.0
        %2740 = vmatpush1.msra.mxu0 0.0
        %2741 = vmatprep.subr.mxu0 0.0
        %2742 = vmatpush1.msra.mxu0 0.0
        %2743 = vmatprep.subr.mxu0 0.0
        %2744 = vmatpush1.msra.mxu0 0.0
        %2745 = vmatprep.subr.mxu0 0.0
        %2746 = vmatpush1.msra.mxu0 0.0
        %2747 = vmatprep.subr.mxu0 0.0
        %2748 = vmatpush1.msra.mxu0 0.0
        %2749 = vmatprep.subr.mxu0 0.0
        %2750 = vmatpush1.msra.mxu0 0.0
        %2751 = vmatprep.subr.mxu0 0.0
        %2752 = vmatpush1.msra.mxu0 0.0
        %2753 = vmatprep.subr.mxu0 0.0
        %2754 = vmatpush1.msra.mxu0 0.0
        %2755 = vmatprep.subr.mxu0 0.0
        %2756 = vmatpush1.msra.mxu0 0.0
        %2757 = vmatprep.subr.mxu0 0.0
        %2758 = vmatpush1.msra.mxu0 0.0
        %2759 = vmatprep.subr.mxu0 0.0
        %2760 = vmatpush1.msra.mxu0 0.0
        %2761 = vmatprep.subr.mxu0 0.0
        %2762 = vmatpush1.msra.mxu0 0.0
        %2763 = vmatprep.mubr.f32.mxu0 0.0
        %2764 = vmatmul.mubr.f32.gmra.mrb[0].mxu0 %v1046
        %v2765 = vpop.f32.mrb[0].mxu0
        %v2766 = vadd.f32 0.0, %v2765
        %v2767 = vpop.f32.mrb[0].mxu0
        %v2768 = vadd.f32 0.0, %v2767
        %2769 = vmatprep.mubr.f32.mxu0 0.0
        %2770 = vmatmul.mubr.f32.gmra.mrb[0].mxu0 %v1049
        %v2771 = vpop.f32.mrb[0].mxu0
        %v2772 = vadd.f32 0.0, %v2771
        %v2773 = vpop.f32.mrb[0].mxu0
        %v2774 = vadd.f32 0.0, %v2773
        %2775 = vmatprep.mubr.f32.mxu0 0.0
        %2776 = vmatmul.mubr.f32.gmra.mrb[0].mxu0 %v1052
        %v2777 = vpop.f32.mrb[0].mxu0
        %v2778 = vadd.f32 0.0, %v2777
        %v2779 = vpop.f32.mrb[0].mxu0
        %v2780 = vadd.f32 0.0, %v2779
        %2781 = vmatprep.mubr.f32.mxu0 0.0
        %2782 = vmatmul.mubr.f32.gmra.mrb[0].mxu0 %v1055
        %v2783 = vpop.f32.mrb[0].mxu0
        %v2784 = vadd.f32 0.0, %v2783
        %v2785 = vpop.f32.mrb[0].mxu0
        %v2786 = vadd.f32 0.0, %v2785
        %2787 = vmatprep.mubr.f32.mxu0 0.0
        %2788 = vmatmul.mubr.f32.gmra.mrb[0].mxu0 %v1058
        %v2789 = vpop.f32.mrb[0].mxu0
        %v2790 = vadd.f32 0.0, %v2789
        %v2791 = vpop.f32.mrb[0].mxu0
        %v2792 = vadd.f32 0.0, %v2791
        %2793 = vmatprep.mubr.f32.mxu0 0.0
        %2794 = vmatmul.mubr.f32.gmra.mrb[0].mxu0 %v1061
        %v2795 = vpop.f32.mrb[0].mxu0
        %v2796 = vadd.f32 0.0, %v2795
        %v2797 = vpop.f32.mrb[0].mxu0
        %v2798 = vadd.f32 0.0, %v2797
        %2799 = vmatprep.mubr.f32.mxu0 0.0
        %2800 = vmatmul.mubr.f32.gmra.mrb[0].mxu0 %v1064
        %v2801 = vpop.f32.mrb[0].mxu0
        %v2802 = vadd.f32 0.0, %v2801
        %v2803 = vpop.f32.mrb[0].mxu0
        %v2804 = vadd.f32 0.0, %v2803
        %2805 = vmatprep.mubr.f32.mxu0 0.0
        %2806 = vmatmul.mubr.f32.gmra.mrb[0].mxu0 %v1067
        %v2807 = vpop.f32.mrb[0].mxu0
        %v2808 = vadd.f32 0.0, %v2807
        %v2809 = vpop.f32.mrb[0].mxu0
        %v2810 = vadd.f32 0.0, %v2809
        %2811 = vmatprep.mubr.f32.mxu0 0.0
        %2812 = vmatmul.mubr.f32.gmra.mrb[0].mxu0 %v1070
        %v2813 = vpop.f32.mrb[0].mxu0
        %v2814 = vadd.f32 0.0, %v2813
        %v2815 = vpop.f32.mrb[0].mxu0
        %v2816 = vadd.f32 0.0, %v2815
        %2817 = vmatprep.mubr.f32.mxu0 0.0
        %2818 = vmatmul.mubr.f32.gmra.mrb[0].mxu0 %v1073
        %v2819 = vpop.f32.mrb[0].mxu0
        %v2820 = vadd.f32 0.0, %v2819
        %v2821 = vpop.f32.mrb[0].mxu0
        %v2822 = vadd.f32 0.0, %v2821
        %2823 = vmatprep.mubr.f32.mxu0 0.0
        %2824 = vmatmul.mubr.f32.gmra.mrb[0].mxu0 %v1076
        %v2825 = vpop.f32.mrb[0].mxu0
        %v2826 = vadd.f32 0.0, %v2825
        %v2827 = vpop.f32.mrb[0].mxu0
        %v2828 = vadd.f32 0.0, %v2827
        %2829 = vmatprep.mubr.f32.mxu0 0.0
        %2830 = vmatmul.mubr.f32.gmra.mrb[0].mxu0 %v1079
        %v2831 = vpop.f32.mrb[0].mxu0
        %v2832 = vadd.f32 0.0, %v2831
        %v2833 = vpop.f32.mrb[0].mxu0
        %v2834 = vadd.f32 0.0, %v2833
        %2835 = vmatprep.mubr.f32.mxu0 0.0
        %2836 = vmatmul.mubr.f32.gmra.mrb[0].mxu0 %v1082
        %v2837 = vpop.f32.mrb[0].mxu0
        %v2838 = vadd.f32 0.0, %v2837
        %v2839 = vpop.f32.mrb[0].mxu0
        %v2840 = vadd.f32 0.0, %v2839
        %2841 = vmatprep.mubr.f32.mxu0 0.0
        %2842 = vmatmul.mubr.f32.gmra.mrb[0].mxu0 %v1085
        %v2843 = vpop.f32.mrb[0].mxu0
        %v2844 = vadd.f32 0.0, %v2843
        %v2845 = vpop.f32.mrb[0].mxu0
        %v2846 = vadd.f32 0.0, %v2845
        %2847 = vdwg.mxu0
        %2848 = vmatprep.subr.mxu0 %v597
        %2849 = vmatpush1.msra.mxu0 %v596
        %2850 = vmatprep.subr.mxu0 %v599
        %2851 = vmatpush1.msra.mxu0 %v598
        %2852 = vmatprep.subr.mxu0 %v601
        %2853 = vmatpush1.msra.mxu0 %v600
        %2854 = vmatprep.subr.mxu0 %v871
        %2855 = vmatpush1.msra.mxu0 %v868
        %2856 = vmatprep.subr.mxu0 0.0
        %2857 = vmatpush1.msra.mxu0 0.0
        %2858 = vmatprep.subr.mxu0 0.0
        %2859 = vmatpush1.msra.mxu0 0.0
        %2860 = vmatprep.subr.mxu0 0.0
        %2861 = vmatpush1.msra.mxu0 0.0
        %2862 = vmatprep.subr.mxu0 0.0
        %2863 = vmatpush1.msra.mxu0 0.0
        %2864 = vmatprep.subr.mxu0 0.0
        %2865 = vmatpush1.msra.mxu0 0.0
        %2866 = vmatprep.subr.mxu0 0.0
        %2867 = vmatpush1.msra.mxu0 0.0
        %2868 = vmatprep.subr.mxu0 0.0
        %2869 = vmatpush1.msra.mxu0 0.0
        %2870 = vmatprep.subr.mxu0 0.0
        %2871 = vmatpush1.msra.mxu0 0.0
        %2872 = vmatprep.subr.mxu0 0.0
        %2873 = vmatpush1.msra.mxu0 0.0
        %2874 = vmatprep.subr.mxu0 0.0
        %2875 = vmatpush1.msra.mxu0 0.0
        %2876 = vmatprep.subr.mxu0 0.0
        %2877 = vmatpush1.msra.mxu0 0.0
        %2878 = vmatprep.subr.mxu0 0.0
        %2879 = vmatpush1.msra.mxu0 0.0
        %2880 = vmatprep.subr.mxu0 0.0
        %2881 = vmatpush1.msra.mxu0 0.0
        %2882 = vmatprep.subr.mxu0 0.0
        %2883 = vmatpush1.msra.mxu0 0.0
        %2884 = vmatprep.subr.mxu0 0.0
        %2885 = vmatpush1.msra.mxu0 0.0
        %2886 = vmatprep.subr.mxu0 0.0
        %2887 = vmatpush1.msra.mxu0 0.0
        %2888 = vmatprep.subr.mxu0 0.0
        %2889 = vmatpush1.msra.mxu0 0.0
        %2890 = vmatprep.subr.mxu0 0.0
        %2891 = vmatpush1.msra.mxu0 0.0
        %2892 = vmatprep.subr.mxu0 0.0
        %2893 = vmatpush1.msra.mxu0 0.0
        %2894 = vmatprep.subr.mxu0 0.0
        %2895 = vmatpush1.msra.mxu0 0.0
        %2896 = vmatprep.subr.mxu0 0.0
        %2897 = vmatpush1.msra.mxu0 0.0
        %2898 = vmatprep.subr.mxu0 0.0
        %2899 = vmatpush1.msra.mxu0 0.0
        %2900 = vmatprep.subr.mxu0 0.0
        %2901 = vmatpush1.msra.mxu0 0.0
        %2902 = vmatprep.subr.mxu0 0.0
        %2903 = vmatpush1.msra.mxu0 0.0
        %2904 = vmatprep.subr.mxu0 0.0
        %2905 = vmatpush1.msra.mxu0 0.0
        %2906 = vmatprep.subr.mxu0 0.0
        %2907 = vmatpush1.msra.mxu0 0.0
        %2908 = vmatprep.subr.mxu0 0.0
        %2909 = vmatpush1.msra.mxu0 0.0
        %2910 = vmatprep.subr.mxu0 0.0
        %2911 = vmatpush1.msra.mxu0 0.0
        %2912 = vmatprep.mubr.f32.mxu0 0.0
        %2913 = vmatmul.mubr.f32.gmra.mrb[0].mxu0 %v628
        %v2914 = vpop.f32.mrb[0].mxu0
        %v2915 = vadd.f32 %v2766, %v2914
        %v2916 = vpop.f32.mrb[0].mxu0
        %v2917 = vadd.f32 %v2768, %v2916
        %2918 = vmatprep.mubr.f32.mxu0 0.0
        %2919 = vmatmul.mubr.f32.gmra.mrb[0].mxu0 %v631
        %v2920 = vpop.f32.mrb[0].mxu0
        %v2921 = vadd.f32 %v2772, %v2920
        %v2922 = vpop.f32.mrb[0].mxu0
        %v2923 = vadd.f32 %v2774, %v2922
        %2924 = vmatprep.mubr.f32.mxu0 0.0
        %2925 = vmatmul.mubr.f32.gmra.mrb[0].mxu0 %v634
        %v2926 = vpop.f32.mrb[0].mxu0
        %v2927 = vadd.f32 %v2778, %v2926
        %v2928 = vpop.f32.mrb[0].mxu0
        %v2929 = vadd.f32 %v2780, %v2928
        %2930 = vmatprep.mubr.f32.mxu0 0.0
        %2931 = vmatmul.mubr.f32.gmra.mrb[0].mxu0 %v637
        %v2932 = vpop.f32.mrb[0].mxu0
        %v2933 = vadd.f32 %v2784, %v2932
        %v2934 = vpop.f32.mrb[0].mxu0
        %v2935 = vadd.f32 %v2786, %v2934
        %2936 = vmatprep.mubr.f32.mxu0 0.0
        %2937 = vmatmul.mubr.f32.gmra.mrb[0].mxu0 %v640
        %v2938 = vpop.f32.mrb[0].mxu0
        %v2939 = vadd.f32 %v2790, %v2938
        %v2940 = vpop.f32.mrb[0].mxu0
        %v2941 = vadd.f32 %v2792, %v2940
        %2942 = vmatprep.mubr.f32.mxu0 0.0
        %2943 = vmatmul.mubr.f32.gmra.mrb[0].mxu0 %v643
        %v2944 = vpop.f32.mrb[0].mxu0
        %v2945 = vadd.f32 %v2796, %v2944
        %v2946 = vpop.f32.mrb[0].mxu0
        %v2947 = vadd.f32 %v2798, %v2946
        %2948 = vmatprep.mubr.f32.mxu0 0.0
        %2949 = vmatmul.mubr.f32.gmra.mrb[0].mxu0 %v646
        %v2950 = vpop.f32.mrb[0].mxu0
        %v2951 = vadd.f32 %v2802, %v2950
        %v2952 = vpop.f32.mrb[0].mxu0
        %v2953 = vadd.f32 %v2804, %v2952
        %2954 = vmatprep.mubr.f32.mxu0 0.0
        %2955 = vmatmul.mubr.f32.gmra.mrb[0].mxu0 %v649
        %v2956 = vpop.f32.mrb[0].mxu0
        %v2957 = vadd.f32 %v2808, %v2956
        %v2958 = vpop.f32.mrb[0].mxu0
        %v2959 = vadd.f32 %v2810, %v2958
        %2960 = vmatprep.mubr.f32.mxu0 0.0
        %2961 = vmatmul.mubr.f32.gmra.mrb[0].mxu0 %v652
        %v2962 = vpop.f32.mrb[0].mxu0
        %v2963 = vadd.f32 %v2814, %v2962
        %v2964 = vpop.f32.mrb[0].mxu0
        %v2965 = vadd.f32 %v2816, %v2964
        %2966 = vmatprep.mubr.f32.mxu0 0.0
        %2967 = vmatmul.mubr.f32.gmra.mrb[0].mxu0 %v655
        %v2968 = vpop.f32.mrb[0].mxu0
        %v2969 = vadd.f32 %v2820, %v2968
        %v2970 = vpop.f32.mrb[0].mxu0
        %v2971 = vadd.f32 %v2822, %v2970
        %2972 = vmatprep.mubr.f32.mxu0 0.0
        %2973 = vmatmul.mubr.f32.gmra.mrb[0].mxu0 %v658
        %v2974 = vpop.f32.mrb[0].mxu0
        %v2975 = vadd.f32 %v2826, %v2974
        %v2976 = vpop.f32.mrb[0].mxu0
        %v2977 = vadd.f32 %v2828, %v2976
        %2978 = vmatprep.mubr.f32.mxu0 0.0
        %2979 = vmatmul.mubr.f32.gmra.mrb[0].mxu0 %v661
        %v2980 = vpop.f32.mrb[0].mxu0
        %v2981 = vadd.f32 %v2832, %v2980
        %v2982 = vpop.f32.mrb[0].mxu0
        %v2983 = vadd.f32 %v2834, %v2982
        %2984 = vmatprep.mubr.f32.mxu0 0.0
        %2985 = vmatmul.mubr.f32.gmra.mrb[0].mxu0 %v664
        %v2986 = vpop.f32.mrb[0].mxu0
        %v2987 = vadd.f32 %v2838, %v2986
        %v2988 = vpop.f32.mrb[0].mxu0
        %v2989 = vadd.f32 %v2840, %v2988
        %2990 = vmatprep.mubr.f32.mxu0 0.0
        %2991 = vmatmul.mubr.f32.gmra.mrb[0].mxu0 %v667
        %v2992 = vpop.f32.mrb[0].mxu0
        %v2993 = vadd.f32 %v2844, %v2992
        %v2994 = vpop.f32.mrb[0].mxu0
        %v2995 = vadd.f32 %v2846, %v2994
        %2996 = vdwg.mxu0
        %2997 = vmatprep.subr.mxu0 %v1038
        %2998 = vmatpush1.msra.mxu0 %v1037
        %2999 = vmatprep.subr.mxu0 %v1040
        %3000 = vmatpush1.msra.mxu0 %v1039
        %3001 = vmatprep.subr.mxu0 %v1042
        %3002 = vmatpush1.msra.mxu0 %v1041
        %3003 = vmatprep.subr.mxu0 %v1091
        %3004 = vmatpush1.msra.mxu0 %v1088
        %3005 = vmatprep.subr.mxu0 0.0
        %3006 = vmatpush1.msra.mxu0 0.0
        %3007 = vmatprep.subr.mxu0 0.0
        %3008 = vmatpush1.msra.mxu0 0.0
        %3009 = vmatprep.subr.mxu0 0.0
        %3010 = vmatpush1.msra.mxu0 0.0
        %3011 = vmatprep.subr.mxu0 0.0
        %3012 = vmatpush1.msra.mxu0 0.0
        %3013 = vmatprep.subr.mxu0 0.0
        %3014 = vmatpush1.msra.mxu0 0.0
        %3015 = vmatprep.subr.mxu0 0.0
        %3016 = vmatpush1.msra.mxu0 0.0
        %3017 = vmatprep.subr.mxu0 0.0
        %3018 = vmatpush1.msra.mxu0 0.0
        %3019 = vmatprep.subr.mxu0 0.0
        %3020 = vmatpush1.msra.mxu0 0.0
        %3021 = vmatprep.subr.mxu0 0.0
        %3022 = vmatpush1.msra.mxu0 0.0
        %3023 = vmatprep.subr.mxu0 0.0
        %3024 = vmatpush1.msra.mxu0 0.0
        %3025 = vmatprep.subr.mxu0 0.0
        %3026 = vmatpush1.msra.mxu0 0.0
        %3027 = vmatprep.subr.mxu0 0.0
        %3028 = vmatpush1.msra.mxu0 0.0
        %3029 = vmatprep.subr.mxu0 0.0
        %3030 = vmatpush1.msra.mxu0 0.0
        %3031 = vmatprep.subr.mxu0 0.0
        %3032 = vmatpush1.msra.mxu0 0.0
        %3033 = vmatprep.subr.mxu0 0.0
        %3034 = vmatpush1.msra.mxu0 0.0
        %3035 = vmatprep.subr.mxu0 0.0
        %3036 = vmatpush1.msra.mxu0 0.0
        %3037 = vmatprep.subr.mxu0 0.0
        %3038 = vmatpush1.msra.mxu0 0.0
        %3039 = vmatprep.subr.mxu0 0.0
        %3040 = vmatpush1.msra.mxu0 0.0
        %3041 = vmatprep.subr.mxu0 0.0
        %3042 = vmatpush1.msra.mxu0 0.0
        %3043 = vmatprep.subr.mxu0 0.0
        %3044 = vmatpush1.msra.mxu0 0.0
        %3045 = vmatprep.subr.mxu0 0.0
        %3046 = vmatpush1.msra.mxu0 0.0
        %3047 = vmatprep.subr.mxu0 0.0
        %3048 = vmatpush1.msra.mxu0 0.0
        %3049 = vmatprep.subr.mxu0 0.0
        %3050 = vmatpush1.msra.mxu0 0.0
        %3051 = vmatprep.subr.mxu0 0.0
        %3052 = vmatpush1.msra.mxu0 0.0
        %3053 = vmatprep.subr.mxu0 0.0
        %3054 = vmatpush1.msra.mxu0 0.0
        %3055 = vmatprep.subr.mxu0 0.0
        %3056 = vmatpush1.msra.mxu0 0.0
        %3057 = vmatprep.subr.mxu0 0.0
        %3058 = vmatpush1.msra.mxu0 0.0
        %3059 = vmatprep.subr.mxu0 0.0
        %3060 = vmatpush1.msra.mxu0 0.0
        %3061 = vmatprep.mubr.f32.mxu0 0.0
        %3062 = vmatmul.mubr.f32.gmra.mrb[0].mxu0 %v1294
        %v3063 = vpop.f32.mrb[0].mxu0
        %v3064 = vadd.f32 0.0, %v3063
        %v3065 = vpop.f32.mrb[0].mxu0
        %v3066 = vadd.f32 0.0, %v3065
        %3067 = vmatprep.mubr.f32.mxu0 0.0
        %3068 = vmatmul.mubr.f32.gmra.mrb[0].mxu0 %v1297
        %v3069 = vpop.f32.mrb[0].mxu0
        %v3070 = vadd.f32 0.0, %v3069
        %v3071 = vpop.f32.mrb[0].mxu0
        %v3072 = vadd.f32 0.0, %v3071
        %3073 = vmatprep.mubr.f32.mxu0 0.0
        %3074 = vmatmul.mubr.f32.gmra.mrb[0].mxu0 %v1300
        %v3075 = vpop.f32.mrb[0].mxu0
        %v3076 = vadd.f32 0.0, %v3075
        %v3077 = vpop.f32.mrb[0].mxu0
        %v3078 = vadd.f32 0.0, %v3077
        %3079 = vmatprep.mubr.f32.mxu0 0.0
        %3080 = vmatmul.mubr.f32.gmra.mrb[0].mxu0 %v1303
        %v3081 = vpop.f32.mrb[0].mxu0
        %v3082 = vadd.f32 0.0, %v3081
        %v3083 = vpop.f32.mrb[0].mxu0
        %v3084 = vadd.f32 0.0, %v3083
        %3085 = vmatprep.mubr.f32.mxu0 0.0
        %3086 = vmatmul.mubr.f32.gmra.mrb[0].mxu0 %v1306
        %v3087 = vpop.f32.mrb[0].mxu0
        %v3088 = vadd.f32 0.0, %v3087
        %v3089 = vpop.f32.mrb[0].mxu0
        %v3090 = vadd.f32 0.0, %v3089
        %3091 = vmatprep.mubr.f32.mxu0 0.0
        %3092 = vmatmul.mubr.f32.gmra.mrb[0].mxu0 %v1309
        %v3093 = vpop.f32.mrb[0].mxu0
        %v3094 = vadd.f32 0.0, %v3093
        %v3095 = vpop.f32.mrb[0].mxu0
        %v3096 = vadd.f32 0.0, %v3095
        %3097 = vmatprep.mubr.f32.mxu0 0.0
        %3098 = vmatmul.mubr.f32.gmra.mrb[0].mxu0 %v1312
        %v3099 = vpop.f32.mrb[0].mxu0
        %v3100 = vadd.f32 0.0, %v3099
        %v3101 = vpop.f32.mrb[0].mxu0
        %v3102 = vadd.f32 0.0, %v3101
        %3103 = vmatprep.mubr.f32.mxu0 0.0
        %3104 = vmatmul.mubr.f32.gmra.mrb[0].mxu0 %v1315
        %v3105 = vpop.f32.mrb[0].mxu0
        %v3106 = vadd.f32 0.0, %v3105
        %v3107 = vpop.f32.mrb[0].mxu0
        %v3108 = vadd.f32 0.0, %v3107
        %3109 = vmatprep.mubr.f32.mxu0 0.0
        %3110 = vmatmul.mubr.f32.gmra.mrb[0].mxu0 %v1318
        %v3111 = vpop.f32.mrb[0].mxu0
        %v3112 = vadd.f32 0.0, %v3111
        %v3113 = vpop.f32.mrb[0].mxu0
        %v3114 = vadd.f32 0.0, %v3113
        %3115 = vmatprep.mubr.f32.mxu0 0.0
        %3116 = vmatmul.mubr.f32.gmra.mrb[0].mxu0 %v1321
        %v3117 = vpop.f32.mrb[0].mxu0
        %v3118 = vadd.f32 0.0, %v3117
        %v3119 = vpop.f32.mrb[0].mxu0
        %v3120 = vadd.f32 0.0, %v3119
        %3121 = vmatprep.mubr.f32.mxu0 0.0
        %3122 = vmatmul.mubr.f32.gmra.mrb[0].mxu0 %v1324
        %v3123 = vpop.f32.mrb[0].mxu0
        %v3124 = vadd.f32 0.0, %v3123
        %v3125 = vpop.f32.mrb[0].mxu0
        %v3126 = vadd.f32 0.0, %v3125
        %3127 = vmatprep.mubr.f32.mxu0 0.0
        %3128 = vmatmul.mubr.f32.gmra.mrb[0].mxu0 %v1327
        %v3129 = vpop.f32.mrb[0].mxu0
        %v3130 = vadd.f32 0.0, %v3129
        %v3131 = vpop.f32.mrb[0].mxu0
        %v3132 = vadd.f32 0.0, %v3131
        %3133 = vmatprep.mubr.f32.mxu0 0.0
        %3134 = vmatmul.mubr.f32.gmra.mrb[0].mxu0 %v1330
        %v3135 = vpop.f32.mrb[0].mxu0
        %v3136 = vadd.f32 0.0, %v3135
        %v3137 = vpop.f32.mrb[0].mxu0
        %v3138 = vadd.f32 0.0, %v3137
        %3139 = vmatprep.mubr.f32.mxu0 0.0
        %3140 = vmatmul.mubr.f32.gmra.mrb[0].mxu0 %v1333
        %v3141 = vpop.f32.mrb[0].mxu0
        %v3142 = vadd.f32 0.0, %v3141
        %v3143 = vpop.f32.mrb[0].mxu0
        %v3144 = vadd.f32 0.0, %v3143
        %3145 = vdwg.mxu0
        %v3146 = vadd.f32 %v2915, %v3064
        %v3147 = vadd.f32 %v2917, %v3066
        %v3148 = vadd.f32 %v2921, %v3070
        %v3149 = vadd.f32 %v2923, %v3072
        %v3150 = vadd.f32 %v2927, %v3076
        %v3151 = vadd.f32 %v2929, %v3078
        %v3152 = vadd.f32 %v2933, %v3082
        %v3153 = vadd.f32 %v2935, %v3084
        %v3154 = vadd.f32 %v2939, %v3088
        %v3155 = vadd.f32 %v2941, %v3090
        %v3156 = vadd.f32 %v2945, %v3094
        %v3157 = vadd.f32 %v2947, %v3096
        %v3158 = vadd.f32 %v2951, %v3100
        %v3159 = vadd.f32 %v2953, %v3102
        %v3160 = vadd.f32 %v2957, %v3106
        %v3161 = vadd.f32 %v2959, %v3108
        %v3162 = vadd.f32 %v2963, %v3112
        %v3163 = vadd.f32 %v2965, %v3114
        %v3164 = vadd.f32 %v2969, %v3118
        %v3165 = vadd.f32 %v2971, %v3120
        %v3166 = vadd.f32 %v2975, %v3124
        %v3167 = vadd.f32 %v2977, %v3126
        %v3168 = vadd.f32 %v2981, %v3130
        %v3169 = vadd.f32 %v2983, %v3132
        %v3170 = vadd.f32 %v2987, %v3136
        %v3171 = vadd.f32 %v2989, %v3138
        %v3172 = vadd.f32 %v2993, %v3142
        %v3173 = vadd.f32 %v2995, %v3144
        %3174 = vmatprep.subr.mxu0 %v1286
        %3175 = vmatpush1.msra.mxu0 %v1285
        %3176 = vmatprep.subr.mxu0 %v1288
        %3177 = vmatpush1.msra.mxu0 %v1287
        %3178 = vmatprep.subr.mxu0 %v1290
        %3179 = vmatpush1.msra.mxu0 %v1289
        %3180 = vmatprep.subr.mxu0 %v1339
        %3181 = vmatpush1.msra.mxu0 %v1336
        %3182 = vmatprep.subr.mxu0 0.0
        %3183 = vmatpush1.msra.mxu0 0.0
        %3184 = vmatprep.subr.mxu0 0.0
        %3185 = vmatpush1.msra.mxu0 0.0
        %3186 = vmatprep.subr.mxu0 0.0
        %3187 = vmatpush1.msra.mxu0 0.0
        %3188 = vmatprep.subr.mxu0 0.0
        %3189 = vmatpush1.msra.mxu0 0.0
        %3190 = vmatprep.subr.mxu0 0.0
        %3191 = vmatpush1.msra.mxu0 0.0
        %3192 = vmatprep.subr.mxu0 0.0
        %3193 = vmatpush1.msra.mxu0 0.0
        %3194 = vmatprep.subr.mxu0 0.0
        %3195 = vmatpush1.msra.mxu0 0.0
        %3196 = vmatprep.subr.mxu0 0.0
        %3197 = vmatpush1.msra.mxu0 0.0
        %3198 = vmatprep.subr.mxu0 0.0
        %3199 = vmatpush1.msra.mxu0 0.0
        %3200 = vmatprep.subr.mxu0 0.0
        %3201 = vmatpush1.msra.mxu0 0.0
        %3202 = vmatprep.subr.mxu0 0.0
        %3203 = vmatpush1.msra.mxu0 0.0
        %3204 = vmatprep.subr.mxu0 0.0
        %3205 = vmatpush1.msra.mxu0 0.0
        %3206 = vmatprep.subr.mxu0 0.0
        %3207 = vmatpush1.msra.mxu0 0.0
        %3208 = vmatprep.subr.mxu0 0.0
        %3209 = vmatpush1.msra.mxu0 0.0
        %3210 = vmatprep.subr.mxu0 0.0
        %3211 = vmatpush1.msra.mxu0 0.0
        %3212 = vmatprep.subr.mxu0 0.0
        %3213 = vmatpush1.msra.mxu0 0.0
        %3214 = vmatprep.subr.mxu0 0.0
        %3215 = vmatpush1.msra.mxu0 0.0
        %3216 = vmatprep.subr.mxu0 0.0
        %3217 = vmatpush1.msra.mxu0 0.0
        %3218 = vmatprep.subr.mxu0 0.0
        %3219 = vmatpush1.msra.mxu0 0.0
        %3220 = vmatprep.subr.mxu0 0.0
        %3221 = vmatpush1.msra.mxu0 0.0
        %3222 = vmatprep.subr.mxu0 0.0
        %3223 = vmatpush1.msra.mxu0 0.0
        %3224 = vmatprep.subr.mxu0 0.0
        %3225 = vmatpush1.msra.mxu0 0.0
        %3226 = vmatprep.subr.mxu0 0.0
        %3227 = vmatpush1.msra.mxu0 0.0
        %3228 = vmatprep.subr.mxu0 0.0
        %3229 = vmatpush1.msra.mxu0 0.0
        %3230 = vmatprep.subr.mxu0 0.0
        %3231 = vmatpush1.msra.mxu0 0.0
        %3232 = vmatprep.subr.mxu0 0.0
        %3233 = vmatpush1.msra.mxu0 0.0
        %3234 = vmatprep.subr.mxu0 0.0
        %3235 = vmatpush1.msra.mxu0 0.0
        %3236 = vmatprep.subr.mxu0 0.0
        %3237 = vmatpush1.msra.mxu0 0.0
        %3238 = vmatprep.mubr.f32.mxu0 0.0
        %3239 = vmatmul.mubr.f32.gmra.mrb[0].mxu0 %v1543
        %v3240 = vpop.f32.mrb[0].mxu0
        %v3241 = vadd.f32 0.0, %v3240
        %v3242 = vpop.f32.mrb[0].mxu0
        %v3243 = vadd.f32 0.0, %v3242
        %3244 = vmatprep.mubr.f32.mxu0 0.0
        %3245 = vmatmul.mubr.f32.gmra.mrb[0].mxu0 %v1546
        %v3246 = vpop.f32.mrb[0].mxu0
        %v3247 = vadd.f32 0.0, %v3246
        %v3248 = vpop.f32.mrb[0].mxu0
        %v3249 = vadd.f32 0.0, %v3248
        %3250 = vmatprep.mubr.f32.mxu0 0.0
        %3251 = vmatmul.mubr.f32.gmra.mrb[0].mxu0 %v1549
        %v3252 = vpop.f32.mrb[0].mxu0
        %v3253 = vadd.f32 0.0, %v3252
        %v3254 = vpop.f32.mrb[0].mxu0
        %v3255 = vadd.f32 0.0, %v3254
        %3256 = vmatprep.mubr.f32.mxu0 0.0
        %3257 = vmatmul.mubr.f32.gmra.mrb[0].mxu0 %v1552
        %v3258 = vpop.f32.mrb[0].mxu0
        %v3259 = vadd.f32 0.0, %v3258
        %v3260 = vpop.f32.mrb[0].mxu0
        %v3261 = vadd.f32 0.0, %v3260
        %3262 = vmatprep.mubr.f32.mxu0 0.0
        %3263 = vmatmul.mubr.f32.gmra.mrb[0].mxu0 %v1555
        %v3264 = vpop.f32.mrb[0].mxu0
        %v3265 = vadd.f32 0.0, %v3264
        %v3266 = vpop.f32.mrb[0].mxu0
        %v3267 = vadd.f32 0.0, %v3266
        %3268 = vmatprep.mubr.f32.mxu0 0.0
        %3269 = vmatmul.mubr.f32.gmra.mrb[0].mxu0 %v1558
        %v3270 = vpop.f32.mrb[0].mxu0
        %v3271 = vadd.f32 0.0, %v3270
        %v3272 = vpop.f32.mrb[0].mxu0
        %v3273 = vadd.f32 0.0, %v3272
        %3274 = vmatprep.mubr.f32.mxu0 0.0
        %3275 = vmatmul.mubr.f32.gmra.mrb[0].mxu0 %v1561
        %v3276 = vpop.f32.mrb[0].mxu0
        %v3277 = vadd.f32 0.0, %v3276
        %v3278 = vpop.f32.mrb[0].mxu0
        %v3279 = vadd.f32 0.0, %v3278
        %3280 = vmatprep.mubr.f32.mxu0 0.0
        %3281 = vmatmul.mubr.f32.gmra.mrb[0].mxu0 %v1564
        %v3282 = vpop.f32.mrb[0].mxu0
        %v3283 = vadd.f32 0.0, %v3282
        %v3284 = vpop.f32.mrb[0].mxu0
        %v3285 = vadd.f32 0.0, %v3284
        %3286 = vmatprep.mubr.f32.mxu0 0.0
        %3287 = vmatmul.mubr.f32.gmra.mrb[0].mxu0 %v1567
        %v3288 = vpop.f32.mrb[0].mxu0
        %v3289 = vadd.f32 0.0, %v3288
        %v3290 = vpop.f32.mrb[0].mxu0
        %v3291 = vadd.f32 0.0, %v3290
        %3292 = vmatprep.mubr.f32.mxu0 0.0
        %3293 = vmatmul.mubr.f32.gmra.mrb[0].mxu0 %v1570
        %v3294 = vpop.f32.mrb[0].mxu0
        %v3295 = vadd.f32 0.0, %v3294
        %v3296 = vpop.f32.mrb[0].mxu0
        %v3297 = vadd.f32 0.0, %v3296
        %3298 = vmatprep.mubr.f32.mxu0 0.0
        %3299 = vmatmul.mubr.f32.gmra.mrb[0].mxu0 %v1573
        %v3300 = vpop.f32.mrb[0].mxu0
        %v3301 = vadd.f32 0.0, %v3300
        %v3302 = vpop.f32.mrb[0].mxu0
        %v3303 = vadd.f32 0.0, %v3302
        %3304 = vmatprep.mubr.f32.mxu0 0.0
        %3305 = vmatmul.mubr.f32.gmra.mrb[0].mxu0 %v1576
        %v3306 = vpop.f32.mrb[0].mxu0
        %v3307 = vadd.f32 0.0, %v3306
        %v3308 = vpop.f32.mrb[0].mxu0
        %v3309 = vadd.f32 0.0, %v3308
        %3310 = vmatprep.mubr.f32.mxu0 0.0
        %3311 = vmatmul.mubr.f32.gmra.mrb[0].mxu0 %v1579
        %v3312 = vpop.f32.mrb[0].mxu0
        %v3313 = vadd.f32 0.0, %v3312
        %v3314 = vpop.f32.mrb[0].mxu0
        %v3315 = vadd.f32 0.0, %v3314
        %3316 = vmatprep.mubr.f32.mxu0 0.0
        %3317 = vmatmul.mubr.f32.gmra.mrb[0].mxu0 %v1582
        %v3318 = vpop.f32.mrb[0].mxu0
        %v3319 = vadd.f32 0.0, %v3318
        %v3320 = vpop.f32.mrb[0].mxu0
        %v3321 = vadd.f32 0.0, %v3320
        %3322 = vdwg.mxu0
        %v3323 = vadd.f32 %v3146, %v3241
        %v3324 = vadd.f32 %v3147, %v3243
        %v3325 = vadd.f32 %v3148, %v3247
        %v3326 = vadd.f32 %v3149, %v3249
        %v3327 = vadd.f32 %v3150, %v3253
        %v3328 = vadd.f32 %v3151, %v3255
        %v3329 = vadd.f32 %v3152, %v3259
        %v3330 = vadd.f32 %v3153, %v3261
        %v3331 = vadd.f32 %v3154, %v3265
        %v3332 = vadd.f32 %v3155, %v3267
        %v3333 = vadd.f32 %v3156, %v3271
        %v3334 = vadd.f32 %v3157, %v3273
        %v3335 = vadd.f32 %v3158, %v3277
        %v3336 = vadd.f32 %v3159, %v3279
        %v3337 = vadd.f32 %v3160, %v3283
        %v3338 = vadd.f32 %v3161, %v3285
        %v3339 = vadd.f32 %v3162, %v3289
        %v3340 = vadd.f32 %v3163, %v3291
        %v3341 = vadd.f32 %v3164, %v3295
        %v3342 = vadd.f32 %v3165, %v3297
        %v3343 = vadd.f32 %v3166, %v3301
        %v3344 = vadd.f32 %v3167, %v3303
        %v3345 = vadd.f32 %v3168, %v3307
        %v3346 = vadd.f32 %v3169, %v3309
        %v3347 = vadd.f32 %v3170, %v3313
        %v3348 = vadd.f32 %v3171, %v3315
        %v3349 = vadd.f32 %v3172, %v3319
        %v3350 = vadd.f32 %v3173, %v3321
        %s3351 = scalar_lea.vmem [#allocation3], 16
        %v3352 = vld [vmem:[%s3351] sm:$0xff]
        %v3353 = vld [vmem:[%s3351 + $0x8] sm:$0xff]
        %v3354 = vld [vmem:[%s3351 + $0x10] sm:$0xff]
        %v3355 = vld [vmem:[%s3351 + $0x18] sm:$0xff]
        %v3356 = vld [vmem:[%s3351 + $0x20] sm:$0xff]
        %v3357 = vld [vmem:[%s3351 + $0x28] sm:$0xff]
        %v3358 = vld [vmem:[%s3351 + $0x30] sm:$0xff]
        %v3359 = vld [vmem:[%s3351 + $0x38] sm:$0xff]
        %v3360 = vld [vmem:[%s3351 + $0x40] sm:$0xff]
        %v3361 = vld [vmem:[%s3351 + $0x48] sm:$0xff]
        %v3362 = vld [vmem:[%s3351 + $0x50] sm:$0xff]
        %v3363 = vld [vmem:[%s3351 + $0x58] sm:$0xff]
        %v3364 = vld [vmem:[%s3351 + $0x60] sm:$0xff]
        %v3365 = vld [vmem:[%s3351 + $0x68] sm:$0xff]
        %v3367 = vsel %vm453, %v3352, 0
        %v3370 = vsel %vm453, %v3353, 0
        %v3373 = vsel %vm453, %v3354, 0
        %v3376 = vsel %vm453, %v3355, 0
        %v3379 = vsel %vm453, %v3356, 0
        %v3382 = vsel %vm453, %v3357, 0
        %v3385 = vsel %vm453, %v3358, 0
        %v3388 = vsel %vm453, %v3359, 0
        %v3391 = vsel %vm453, %v3360, 0
        %v3394 = vsel %vm453, %v3361, 0
        %v3397 = vsel %vm453, %v3362, 0
        %v3400 = vsel %vm453, %v3363, 0
        %v3403 = vsel %vm453, %v3364, 0
        %v3406 = vsel %vm453, %v3365, 0
        %3408 = vmatprep.subr.mxu0 %v1535
        %3409 = vmatpush1.msra.mxu0 %v1534
        %3410 = vmatprep.subr.mxu0 %v1537
        %3411 = vmatpush1.msra.mxu0 %v1536
        %3412 = vmatprep.subr.mxu0 %v1539
        %3413 = vmatpush1.msra.mxu0 %v1538
        %3414 = vmatprep.subr.mxu0 %v1588
        %3415 = vmatpush1.msra.mxu0 %v1585
        %3416 = vmatprep.subr.mxu0 0.0
        %3417 = vmatpush1.msra.mxu0 0.0
        %3418 = vmatprep.subr.mxu0 0.0
        %3419 = vmatpush1.msra.mxu0 0.0
        %3420 = vmatprep.subr.mxu0 0.0
        %3421 = vmatpush1.msra.mxu0 0.0
        %3422 = vmatprep.subr.mxu0 0.0
        %3423 = vmatpush1.msra.mxu0 0.0
        %3424 = vmatprep.subr.mxu0 0.0
        %3425 = vmatpush1.msra.mxu0 0.0
        %3426 = vmatprep.subr.mxu0 0.0
        %3427 = vmatpush1.msra.mxu0 0.0
        %3428 = vmatprep.subr.mxu0 0.0
        %3429 = vmatpush1.msra.mxu0 0.0
        %3430 = vmatprep.subr.mxu0 0.0
        %3431 = vmatpush1.msra.mxu0 0.0
        %3432 = vmatprep.subr.mxu0 0.0
        %3433 = vmatpush1.msra.mxu0 0.0
        %3434 = vmatprep.subr.mxu0 0.0
        %3435 = vmatpush1.msra.mxu0 0.0
        %3436 = vmatprep.subr.mxu0 0.0
        %3437 = vmatpush1.msra.mxu0 0.0
        %3438 = vmatprep.subr.mxu0 0.0
        %3439 = vmatpush1.msra.mxu0 0.0
        %3440 = vmatprep.subr.mxu0 0.0
        %3441 = vmatpush1.msra.mxu0 0.0
        %3442 = vmatprep.subr.mxu0 0.0
        %3443 = vmatpush1.msra.mxu0 0.0
        %3444 = vmatprep.subr.mxu0 0.0
        %3445 = vmatpush1.msra.mxu0 0.0
        %3446 = vmatprep.subr.mxu0 0.0
        %3447 = vmatpush1.msra.mxu0 0.0
        %3448 = vmatprep.subr.mxu0 0.0
        %3449 = vmatpush1.msra.mxu0 0.0
        %3450 = vmatprep.subr.mxu0 0.0
        %3451 = vmatpush1.msra.mxu0 0.0
        %3452 = vmatprep.subr.mxu0 0.0
        %3453 = vmatpush1.msra.mxu0 0.0
        %3454 = vmatprep.subr.mxu0 0.0
        %3455 = vmatpush1.msra.mxu0 0.0
        %3456 = vmatprep.subr.mxu0 0.0
        %3457 = vmatpush1.msra.mxu0 0.0
        %3458 = vmatprep.subr.mxu0 0.0
        %3459 = vmatpush1.msra.mxu0 0.0
        %3460 = vmatprep.subr.mxu0 0.0
        %3461 = vmatpush1.msra.mxu0 0.0
        %3462 = vmatprep.subr.mxu0 0.0
        %3463 = vmatpush1.msra.mxu0 0.0
        %3464 = vmatprep.subr.mxu0 0.0
        %3465 = vmatpush1.msra.mxu0 0.0
        %3466 = vmatprep.subr.mxu0 0.0
        %3467 = vmatpush1.msra.mxu0 0.0
        %3468 = vmatprep.subr.mxu0 0.0
        %3469 = vmatpush1.msra.mxu0 0.0
        %3470 = vmatprep.subr.mxu0 0.0
        %3471 = vmatpush1.msra.mxu0 0.0
        %3472 = vmatprep.mubr.f32.mxu0 0.0
        %3473 = vmatmul.mubr.f32.gmra.mrb[0].mxu0 %v3367
        %v3474 = vpop.f32.mrb[0].mxu0
        %v3475 = vadd.f32 0.0, %v3474
        %v3476 = vpop.f32.mrb[0].mxu0
        %v3477 = vadd.f32 0.0, %v3476
        %3478 = vmatprep.mubr.f32.mxu0 0.0
        %3479 = vmatmul.mubr.f32.gmra.mrb[0].mxu0 %v3370
        %v3480 = vpop.f32.mrb[0].mxu0
        %v3481 = vadd.f32 0.0, %v3480
        %v3482 = vpop.f32.mrb[0].mxu0
        %v3483 = vadd.f32 0.0, %v3482
        %3484 = vmatprep.mubr.f32.mxu0 0.0
        %3485 = vmatmul.mubr.f32.gmra.mrb[0].mxu0 %v3373
        %v3486 = vpop.f32.mrb[0].mxu0
        %v3487 = vadd.f32 0.0, %v3486
        %v3488 = vpop.f32.mrb[0].mxu0
        %v3489 = vadd.f32 0.0, %v3488
        %3490 = vmatprep.mubr.f32.mxu0 0.0
        %3491 = vmatmul.mubr.f32.gmra.mrb[0].mxu0 %v3376
        %v3492 = vpop.f32.mrb[0].mxu0
        %v3493 = vadd.f32 0.0, %v3492
        %v3494 = vpop.f32.mrb[0].mxu0
        %v3495 = vadd.f32 0.0, %v3494
        %3496 = vmatprep.mubr.f32.mxu0 0.0
        %3497 = vmatmul.mubr.f32.gmra.mrb[0].mxu0 %v3379
        %v3498 = vpop.f32.mrb[0].mxu0
        %v3499 = vadd.f32 0.0, %v3498
        %v3500 = vpop.f32.mrb[0].mxu0
        %v3501 = vadd.f32 0.0, %v3500
        %3502 = vmatprep.mubr.f32.mxu0 0.0
        %3503 = vmatmul.mubr.f32.gmra.mrb[0].mxu0 %v3382
        %v3504 = vpop.f32.mrb[0].mxu0
        %v3505 = vadd.f32 0.0, %v3504
        %v3506 = vpop.f32.mrb[0].mxu0
        %v3507 = vadd.f32 0.0, %v3506
        %3508 = vmatprep.mubr.f32.mxu0 0.0
        %3509 = vmatmul.mubr.f32.gmra.mrb[0].mxu0 %v3385
        %v3510 = vpop.f32.mrb[0].mxu0
        %v3511 = vadd.f32 0.0, %v3510
        %v3512 = vpop.f32.mrb[0].mxu0
        %v3513 = vadd.f32 0.0, %v3512
        %3514 = vmatprep.mubr.f32.mxu0 0.0
        %3515 = vmatmul.mubr.f32.gmra.mrb[0].mxu0 %v3388
        %v3516 = vpop.f32.mrb[0].mxu0
        %v3517 = vadd.f32 0.0, %v3516
        %v3518 = vpop.f32.mrb[0].mxu0
        %v3519 = vadd.f32 0.0, %v3518
        %3520 = vmatprep.mubr.f32.mxu0 0.0
        %3521 = vmatmul.mubr.f32.gmra.mrb[0].mxu0 %v3391
        %v3522 = vpop.f32.mrb[0].mxu0
        %v3523 = vadd.f32 0.0, %v3522
        %v3524 = vpop.f32.mrb[0].mxu0
        %v3525 = vadd.f32 0.0, %v3524
        %3526 = vmatprep.mubr.f32.mxu0 0.0
        %3527 = vmatmul.mubr.f32.gmra.mrb[0].mxu0 %v3394
        %v3528 = vpop.f32.mrb[0].mxu0
        %v3529 = vadd.f32 0.0, %v3528
        %v3530 = vpop.f32.mrb[0].mxu0
        %v3531 = vadd.f32 0.0, %v3530
        %3532 = vmatprep.mubr.f32.mxu0 0.0
        %3533 = vmatmul.mubr.f32.gmra.mrb[0].mxu0 %v3397
        %v3534 = vpop.f32.mrb[0].mxu0
        %v3535 = vadd.f32 0.0, %v3534
        %v3536 = vpop.f32.mrb[0].mxu0
        %v3537 = vadd.f32 0.0, %v3536
        %3538 = vmatprep.mubr.f32.mxu0 0.0
        %3539 = vmatmul.mubr.f32.gmra.mrb[0].mxu0 %v3400
        %v3540 = vpop.f32.mrb[0].mxu0
        %v3541 = vadd.f32 0.0, %v3540
        %v3542 = vpop.f32.mrb[0].mxu0
        %v3543 = vadd.f32 0.0, %v3542
        %3544 = vmatprep.mubr.f32.mxu0 0.0
        %3545 = vmatmul.mubr.f32.gmra.mrb[0].mxu0 %v3403
        %v3546 = vpop.f32.mrb[0].mxu0
        %v3547 = vadd.f32 0.0, %v3546
        %v3548 = vpop.f32.mrb[0].mxu0
        %v3549 = vadd.f32 0.0, %v3548
        %3550 = vmatprep.mubr.f32.mxu0 0.0
        %3551 = vmatmul.mubr.f32.gmra.mrb[0].mxu0 %v3406
        %v3552 = vpop.f32.mrb[0].mxu0
        %v3553 = vadd.f32 0.0, %v3552
        %v3554 = vpop.f32.mrb[0].mxu0
        %v3555 = vadd.f32 0.0, %v3554
        %3556 = vdwg.mxu0
        %v3557 = vadd.f32 %v3323, %v3475
        %v3558 = vadd.f32 %v3324, %v3477
        %v3559 = vadd.f32 %v3325, %v3481
        %v3560 = vadd.f32 %v3326, %v3483
        %v3561 = vadd.f32 %v3327, %v3487
        %v3562 = vadd.f32 %v3328, %v3489
        %v3563 = vadd.f32 %v3329, %v3493
        %v3564 = vadd.f32 %v3330, %v3495
        %v3565 = vadd.f32 %v3331, %v3499
        %v3566 = vadd.f32 %v3332, %v3501
        %v3567 = vadd.f32 %v3333, %v3505
        %v3568 = vadd.f32 %v3334, %v3507
        %v3569 = vadd.f32 %v3335, %v3511
        %v3570 = vadd.f32 %v3336, %v3513
        %v3571 = vadd.f32 %v3337, %v3517
        %v3572 = vadd.f32 %v3338, %v3519
        %v3573 = vadd.f32 %v3339, %v3523
        %v3574 = vadd.f32 %v3340, %v3525
        %v3575 = vadd.f32 %v3341, %v3529
        %v3576 = vadd.f32 %v3342, %v3531
        %v3577 = vadd.f32 %v3343, %v3535
        %v3578 = vadd.f32 %v3344, %v3537
        %v3579 = vadd.f32 %v3345, %v3541
        %v3580 = vadd.f32 %v3346, %v3543
        %v3581 = vadd.f32 %v3347, %v3547
        %v3582 = vadd.f32 %v3348, %v3549
        %v3583 = vadd.f32 %v3349, %v3553
        %v3584 = vadd.f32 %v3350, %v3555
        %v3585 = vmax.f32 %v2671, %v3557
        %v3586 = vmax.f32 %v2672, %v3558
        %v3587 = vmax.f32 %v2673, %v3559
        %v3588 = vmax.f32 %v2674, %v3560
        %v3589 = vmax.f32 %v2675, %v3561
        %v3590 = vmax.f32 %v2676, %v3562
        %v3591 = vmax.f32 %v2677, %v3563
        %v3592 = vmax.f32 %v2678, %v3564
        %v3593 = vmax.f32 %v2679, %v3565
        %v3594 = vmax.f32 %v2680, %v3566
        %v3595 = vmax.f32 %v2681, %v3567
        %v3596 = vmax.f32 %v2682, %v3568
        %v3597 = vmax.f32 %v2683, %v3569
        %v3598 = vmax.f32 %v2684, %v3570
        %v3599 = vmax.f32 %v2685, %v3571
        %v3600 = vmax.f32 %v2686, %v3572
        %v3601 = vmax.f32 %v2687, %v3573
        %v3602 = vmax.f32 %v2688, %v3574
        %v3603 = vmax.f32 %v2689, %v3575
        %v3604 = vmax.f32 %v2690, %v3576
        %v3605 = vmax.f32 %v2691, %v3577
        %v3606 = vmax.f32 %v2692, %v3578
        %v3607 = vmax.f32 %v2693, %v3579
        %v3608 = vmax.f32 %v2694, %v3580
        %v3609 = vmax.f32 %v2695, %v3581
        %v3610 = vmax.f32 %v2696, %v3582
        %v3611 = vmax.f32 %v2697, %v3583
        %v3612 = vmax.f32 %v2698, %v3584
        %3613 = vmatprep.subr.mxu0 %v1778
        %3614 = vmatpush1.msra.mxu0 %v1777
        %3615 = vmatprep.subr.mxu0 %v1780
        %3616 = vmatpush1.msra.mxu0 %v1779
        %3617 = vmatprep.subr.mxu0 %v1782
        %3618 = vmatpush1.msra.mxu0 %v1781
        %3619 = vmatprep.subr.mxu0 %v1789
        %3620 = vmatpush1.msra.mxu0 %v1786
        %3621 = vmatprep.subr.mxu0 0.0
        %3622 = vmatpush1.msra.mxu0 0.0
        %3623 = vmatprep.subr.mxu0 0.0
        %3624 = vmatpush1.msra.mxu0 0.0
        %3625 = vmatprep.subr.mxu0 0.0
        %3626 = vmatpush1.msra.mxu0 0.0
        %3627 = vmatprep.subr.mxu0 0.0
        %3628 = vmatpush1.msra.mxu0 0.0
        %3629 = vmatprep.subr.mxu0 0.0
        %3630 = vmatpush1.msra.mxu0 0.0
        %3631 = vmatprep.subr.mxu0 0.0
        %3632 = vmatpush1.msra.mxu0 0.0
        %3633 = vmatprep.subr.mxu0 0.0
        %3634 = vmatpush1.msra.mxu0 0.0
        %3635 = vmatprep.subr.mxu0 0.0
        %3636 = vmatpush1.msra.mxu0 0.0
        %3637 = vmatprep.subr.mxu0 0.0
        %3638 = vmatpush1.msra.mxu0 0.0
        %3639 = vmatprep.subr.mxu0 0.0
        %3640 = vmatpush1.msra.mxu0 0.0
        %3641 = vmatprep.subr.mxu0 0.0
        %3642 = vmatpush1.msra.mxu0 0.0
        %3643 = vmatprep.subr.mxu0 0.0
        %3644 = vmatpush1.msra.mxu0 0.0
        %3645 = vmatprep.subr.mxu0 0.0
        %3646 = vmatpush1.msra.mxu0 0.0
        %3647 = vmatprep.subr.mxu0 0.0
        %3648 = vmatpush1.msra.mxu0 0.0
        %3649 = vmatprep.subr.mxu0 0.0
        %3650 = vmatpush1.msra.mxu0 0.0
        %3651 = vmatprep.subr.mxu0 0.0
        %3652 = vmatpush1.msra.mxu0 0.0
        %3653 = vmatprep.subr.mxu0 0.0
        %3654 = vmatpush1.msra.mxu0 0.0
        %3655 = vmatprep.subr.mxu0 0.0
        %3656 = vmatpush1.msra.mxu0 0.0
        %3657 = vmatprep.subr.mxu0 0.0
        %3658 = vmatpush1.msra.mxu0 0.0
        %3659 = vmatprep.subr.mxu0 0.0
        %3660 = vmatpush1.msra.mxu0 0.0
        %3661 = vmatprep.subr.mxu0 0.0
        %3662 = vmatpush1.msra.mxu0 0.0
        %3663 = vmatprep.subr.mxu0 0.0
        %3664 = vmatpush1.msra.mxu0 0.0
        %3665 = vmatprep.subr.mxu0 0.0
        %3666 = vmatpush1.msra.mxu0 0.0
        %3667 = vmatprep.subr.mxu0 0.0
        %3668 = vmatpush1.msra.mxu0 0.0
        %3669 = vmatprep.subr.mxu0 0.0
        %3670 = vmatpush1.msra.mxu0 0.0
        %3671 = vmatprep.subr.mxu0 0.0
        %3672 = vmatpush1.msra.mxu0 0.0
        %3673 = vmatprep.subr.mxu0 0.0
        %3674 = vmatpush1.msra.mxu0 0.0
        %3675 = vmatprep.subr.mxu0 0.0
        %3676 = vmatpush1.msra.mxu0 0.0
        %3677 = vmatprep.mubr.f32.mxu0 0.0
        %3678 = vmatmul.mubr.f32.gmra.mrb[0].mxu0 %v1046
        %v3679 = vpop.f32.mrb[0].mxu0
        %v3680 = vadd.f32 0.0, %v3679
        %v3681 = vpop.f32.mrb[0].mxu0
        %v3682 = vadd.f32 0.0, %v3681
        %3683 = vmatprep.mubr.f32.mxu0 0.0
        %3684 = vmatmul.mubr.f32.gmra.mrb[0].mxu0 %v1049
        %v3685 = vpop.f32.mrb[0].mxu0
        %v3686 = vadd.f32 0.0, %v3685
        %v3687 = vpop.f32.mrb[0].mxu0
        %v3688 = vadd.f32 0.0, %v3687
        %3689 = vmatprep.mubr.f32.mxu0 0.0
        %3690 = vmatmul.mubr.f32.gmra.mrb[0].mxu0 %v1052
        %v3691 = vpop.f32.mrb[0].mxu0
        %v3692 = vadd.f32 0.0, %v3691
        %v3693 = vpop.f32.mrb[0].mxu0
        %v3694 = vadd.f32 0.0, %v3693
        %3695 = vmatprep.mubr.f32.mxu0 0.0
        %3696 = vmatmul.mubr.f32.gmra.mrb[0].mxu0 %v1055
        %v3697 = vpop.f32.mrb[0].mxu0
        %v3698 = vadd.f32 0.0, %v3697
        %v3699 = vpop.f32.mrb[0].mxu0
        %v3700 = vadd.f32 0.0, %v3699
        %3701 = vmatprep.mubr.f32.mxu0 0.0
        %3702 = vmatmul.mubr.f32.gmra.mrb[0].mxu0 %v1058
        %v3703 = vpop.f32.mrb[0].mxu0
        %v3704 = vadd.f32 0.0, %v3703
        %v3705 = vpop.f32.mrb[0].mxu0
        %v3706 = vadd.f32 0.0, %v3705
        %3707 = vmatprep.mubr.f32.mxu0 0.0
        %3708 = vmatmul.mubr.f32.gmra.mrb[0].mxu0 %v1061
        %v3709 = vpop.f32.mrb[0].mxu0
        %v3710 = vadd.f32 0.0, %v3709
        %v3711 = vpop.f32.mrb[0].mxu0
        %v3712 = vadd.f32 0.0, %v3711
        %3713 = vmatprep.mubr.f32.mxu0 0.0
        %3714 = vmatmul.mubr.f32.gmra.mrb[0].mxu0 %v1064
        %v3715 = vpop.f32.mrb[0].mxu0
        %v3716 = vadd.f32 0.0, %v3715
        %v3717 = vpop.f32.mrb[0].mxu0
        %v3718 = vadd.f32 0.0, %v3717
        %3719 = vmatprep.mubr.f32.mxu0 0.0
        %3720 = vmatmul.mubr.f32.gmra.mrb[0].mxu0 %v1067
        %v3721 = vpop.f32.mrb[0].mxu0
        %v3722 = vadd.f32 0.0, %v3721
        %v3723 = vpop.f32.mrb[0].mxu0
        %v3724 = vadd.f32 0.0, %v3723
        %3725 = vmatprep.mubr.f32.mxu0 0.0
        %3726 = vmatmul.mubr.f32.gmra.mrb[0].mxu0 %v1070
        %v3727 = vpop.f32.mrb[0].mxu0
        %v3728 = vadd.f32 0.0, %v3727
        %v3729 = vpop.f32.mrb[0].mxu0
        %v3730 = vadd.f32 0.0, %v3729
        %3731 = vmatprep.mubr.f32.mxu0 0.0
        %3732 = vmatmul.mubr.f32.gmra.mrb[0].mxu0 %v1073
        %v3733 = vpop.f32.mrb[0].mxu0
        %v3734 = vadd.f32 0.0, %v3733
        %v3735 = vpop.f32.mrb[0].mxu0
        %v3736 = vadd.f32 0.0, %v3735
        %3737 = vmatprep.mubr.f32.mxu0 0.0
        %3738 = vmatmul.mubr.f32.gmra.mrb[0].mxu0 %v1076
        %v3739 = vpop.f32.mrb[0].mxu0
        %v3740 = vadd.f32 0.0, %v3739
        %v3741 = vpop.f32.mrb[0].mxu0
        %v3742 = vadd.f32 0.0, %v3741
        %3743 = vmatprep.mubr.f32.mxu0 0.0
        %3744 = vmatmul.mubr.f32.gmra.mrb[0].mxu0 %v1079
        %v3745 = vpop.f32.mrb[0].mxu0
        %v3746 = vadd.f32 0.0, %v3745
        %v3747 = vpop.f32.mrb[0].mxu0
        %v3748 = vadd.f32 0.0, %v3747
        %3749 = vmatprep.mubr.f32.mxu0 0.0
        %3750 = vmatmul.mubr.f32.gmra.mrb[0].mxu0 %v1082
        %v3751 = vpop.f32.mrb[0].mxu0
        %v3752 = vadd.f32 0.0, %v3751
        %v3753 = vpop.f32.mrb[0].mxu0
        %v3754 = vadd.f32 0.0, %v3753
        %3755 = vmatprep.mubr.f32.mxu0 0.0
        %3756 = vmatmul.mubr.f32.gmra.mrb[0].mxu0 %v1085
        %v3757 = vpop.f32.mrb[0].mxu0
        %v3758 = vadd.f32 0.0, %v3757
        %v3759 = vpop.f32.mrb[0].mxu0
        %v3760 = vadd.f32 0.0, %v3759
        %3761 = vdwg.mxu0
        %3762 = vmatprep.subr.mxu0 %v1769
        %3763 = vmatpush1.msra.mxu0 %v1768
        %3764 = vmatprep.subr.mxu0 %v1771
        %3765 = vmatpush1.msra.mxu0 %v1770
        %3766 = vmatprep.subr.mxu0 %v1773
        %3767 = vmatpush1.msra.mxu0 %v1772
        %3768 = vmatprep.subr.mxu0 %v1944
        %3769 = vmatpush1.msra.mxu0 %v1941
        %3770 = vmatprep.subr.mxu0 0.0
        %3771 = vmatpush1.msra.mxu0 0.0
        %3772 = vmatprep.subr.mxu0 0.0
        %3773 = vmatpush1.msra.mxu0 0.0
        %3774 = vmatprep.subr.mxu0 0.0
        %3775 = vmatpush1.msra.mxu0 0.0
        %3776 = vmatprep.subr.mxu0 0.0
        %3777 = vmatpush1.msra.mxu0 0.0
        %3778 = vmatprep.subr.mxu0 0.0
        %3779 = vmatpush1.msra.mxu0 0.0
        %3780 = vmatprep.subr.mxu0 0.0
        %3781 = vmatpush1.msra.mxu0 0.0
        %3782 = vmatprep.subr.mxu0 0.0
        %3783 = vmatpush1.msra.mxu0 0.0
        %3784 = vmatprep.subr.mxu0 0.0
        %3785 = vmatpush1.msra.mxu0 0.0
        %3786 = vmatprep.subr.mxu0 0.0
        %3787 = vmatpush1.msra.mxu0 0.0
        %3788 = vmatprep.subr.mxu0 0.0
        %3789 = vmatpush1.msra.mxu0 0.0
        %3790 = vmatprep.subr.mxu0 0.0
        %3791 = vmatpush1.msra.mxu0 0.0
        %3792 = vmatprep.subr.mxu0 0.0
        %3793 = vmatpush1.msra.mxu0 0.0
        %3794 = vmatprep.subr.mxu0 0.0
        %3795 = vmatpush1.msra.mxu0 0.0
        %3796 = vmatprep.subr.mxu0 0.0
        %3797 = vmatpush1.msra.mxu0 0.0
        %3798 = vmatprep.subr.mxu0 0.0
        %3799 = vmatpush1.msra.mxu0 0.0
        %3800 = vmatprep.subr.mxu0 0.0
        %3801 = vmatpush1.msra.mxu0 0.0
        %3802 = vmatprep.subr.mxu0 0.0
        %3803 = vmatpush1.msra.mxu0 0.0
        %3804 = vmatprep.subr.mxu0 0.0
        %3805 = vmatpush1.msra.mxu0 0.0
        %3806 = vmatprep.subr.mxu0 0.0
        %3807 = vmatpush1.msra.mxu0 0.0
        %3808 = vmatprep.subr.mxu0 0.0
        %3809 = vmatpush1.msra.mxu0 0.0
        %3810 = vmatprep.subr.mxu0 0.0
        %3811 = vmatpush1.msra.mxu0 0.0
        %3812 = vmatprep.subr.mxu0 0.0
        %3813 = vmatpush1.msra.mxu0 0.0
        %3814 = vmatprep.subr.mxu0 0.0
        %3815 = vmatpush1.msra.mxu0 0.0
        %3816 = vmatprep.subr.mxu0 0.0
        %3817 = vmatpush1.msra.mxu0 0.0
        %3818 = vmatprep.subr.mxu0 0.0
        %3819 = vmatpush1.msra.mxu0 0.0
        %3820 = vmatprep.subr.mxu0 0.0
        %3821 = vmatpush1.msra.mxu0 0.0
        %3822 = vmatprep.subr.mxu0 0.0
        %3823 = vmatpush1.msra.mxu0 0.0
        %3824 = vmatprep.subr.mxu0 0.0
        %3825 = vmatpush1.msra.mxu0 0.0
        %3826 = vmatprep.mubr.f32.mxu0 0.0
        %3827 = vmatmul.mubr.f32.gmra.mrb[0].mxu0 %v628
        %v3828 = vpop.f32.mrb[0].mxu0
        %v3829 = vadd.f32 %v3680, %v3828
        %v3830 = vpop.f32.mrb[0].mxu0
        %v3831 = vadd.f32 %v3682, %v3830
        %3832 = vmatprep.mubr.f32.mxu0 0.0
        %3833 = vmatmul.mubr.f32.gmra.mrb[0].mxu0 %v631
        %v3834 = vpop.f32.mrb[0].mxu0
        %v3835 = vadd.f32 %v3686, %v3834
        %v3836 = vpop.f32.mrb[0].mxu0
        %v3837 = vadd.f32 %v3688, %v3836
        %3838 = vmatprep.mubr.f32.mxu0 0.0
        %3839 = vmatmul.mubr.f32.gmra.mrb[0].mxu0 %v634
        %v3840 = vpop.f32.mrb[0].mxu0
        %v3841 = vadd.f32 %v3692, %v3840
        %v3842 = vpop.f32.mrb[0].mxu0
        %v3843 = vadd.f32 %v3694, %v3842
        %3844 = vmatprep.mubr.f32.mxu0 0.0
        %3845 = vmatmul.mubr.f32.gmra.mrb[0].mxu0 %v637
        %v3846 = vpop.f32.mrb[0].mxu0
        %v3847 = vadd.f32 %v3698, %v3846
        %v3848 = vpop.f32.mrb[0].mxu0
        %v3849 = vadd.f32 %v3700, %v3848
        %3850 = vmatprep.mubr.f32.mxu0 0.0
        %3851 = vmatmul.mubr.f32.gmra.mrb[0].mxu0 %v640
        %v3852 = vpop.f32.mrb[0].mxu0
        %v3853 = vadd.f32 %v3704, %v3852
        %v3854 = vpop.f32.mrb[0].mxu0
        %v3855 = vadd.f32 %v3706, %v3854
        %3856 = vmatprep.mubr.f32.mxu0 0.0
        %3857 = vmatmul.mubr.f32.gmra.mrb[0].mxu0 %v643
        %v3858 = vpop.f32.mrb[0].mxu0
        %v3859 = vadd.f32 %v3710, %v3858
        %v3860 = vpop.f32.mrb[0].mxu0
        %v3861 = vadd.f32 %v3712, %v3860
        %3862 = vmatprep.mubr.f32.mxu0 0.0
        %3863 = vmatmul.mubr.f32.gmra.mrb[0].mxu0 %v646
        %v3864 = vpop.f32.mrb[0].mxu0
        %v3865 = vadd.f32 %v3716, %v3864
        %v3866 = vpop.f32.mrb[0].mxu0
        %v3867 = vadd.f32 %v3718, %v3866
        %3868 = vmatprep.mubr.f32.mxu0 0.0
        %3869 = vmatmul.mubr.f32.gmra.mrb[0].mxu0 %v649
        %v3870 = vpop.f32.mrb[0].mxu0
        %v3871 = vadd.f32 %v3722, %v3870
        %v3872 = vpop.f32.mrb[0].mxu0
        %v3873 = vadd.f32 %v3724, %v3872
        %3874 = vmatprep.mubr.f32.mxu0 0.0
        %3875 = vmatmul.mubr.f32.gmra.mrb[0].mxu0 %v652
        %v3876 = vpop.f32.mrb[0].mxu0
        %v3877 = vadd.f32 %v3728, %v3876
        %v3878 = vpop.f32.mrb[0].mxu0
        %v3879 = vadd.f32 %v3730, %v3878
        %3880 = vmatprep.mubr.f32.mxu0 0.0
        %3881 = vmatmul.mubr.f32.gmra.mrb[0].mxu0 %v655
        %v3882 = vpop.f32.mrb[0].mxu0
        %v3883 = vadd.f32 %v3734, %v3882
        %v3884 = vpop.f32.mrb[0].mxu0
        %v3885 = vadd.f32 %v3736, %v3884
        %3886 = vmatprep.mubr.f32.mxu0 0.0
        %3887 = vmatmul.mubr.f32.gmra.mrb[0].mxu0 %v658
        %v3888 = vpop.f32.mrb[0].mxu0
        %v3889 = vadd.f32 %v3740, %v3888
        %v3890 = vpop.f32.mrb[0].mxu0
        %v3891 = vadd.f32 %v3742, %v3890
        %3892 = vmatprep.mubr.f32.mxu0 0.0
        %3893 = vmatmul.mubr.f32.gmra.mrb[0].mxu0 %v661
        %v3894 = vpop.f32.mrb[0].mxu0
        %v3895 = vadd.f32 %v3746, %v3894
        %v3896 = vpop.f32.mrb[0].mxu0
        %v3897 = vadd.f32 %v3748, %v3896
        %3898 = vmatprep.mubr.f32.mxu0 0.0
        %3899 = vmatmul.mubr.f32.gmra.mrb[0].mxu0 %v664
        %v3900 = vpop.f32.mrb[0].mxu0
        %v3901 = vadd.f32 %v3752, %v3900
        %v3902 = vpop.f32.mrb[0].mxu0
        %v3903 = vadd.f32 %v3754, %v3902
        %3904 = vmatprep.mubr.f32.mxu0 0.0
        %3905 = vmatmul.mubr.f32.gmra.mrb[0].mxu0 %v667
        %v3906 = vpop.f32.mrb[0].mxu0
        %v3907 = vadd.f32 %v3758, %v3906
        %v3908 = vpop.f32.mrb[0].mxu0
        %v3909 = vadd.f32 %v3760, %v3908
        %3910 = vdwg.mxu0
        %3911 = vmatprep.subr.mxu0 %v2097
        %3912 = vmatpush1.msra.mxu0 %v2096
        %3913 = vmatprep.subr.mxu0 %v2099
        %3914 = vmatpush1.msra.mxu0 %v2098
        %3915 = vmatprep.subr.mxu0 %v2101
        %3916 = vmatpush1.msra.mxu0 %v2100
        %3917 = vmatprep.subr.mxu0 %v2108
        %3918 = vmatpush1.msra.mxu0 %v2105
        %3919 = vmatprep.subr.mxu0 0.0
        %3920 = vmatpush1.msra.mxu0 0.0
        %3921 = vmatprep.subr.mxu0 0.0
        %3922 = vmatpush1.msra.mxu0 0.0
        %3923 = vmatprep.subr.mxu0 0.0
        %3924 = vmatpush1.msra.mxu0 0.0
        %3925 = vmatprep.subr.mxu0 0.0
        %3926 = vmatpush1.msra.mxu0 0.0
        %3927 = vmatprep.subr.mxu0 0.0
        %3928 = vmatpush1.msra.mxu0 0.0
        %3929 = vmatprep.subr.mxu0 0.0
        %3930 = vmatpush1.msra.mxu0 0.0
        %3931 = vmatprep.subr.mxu0 0.0
        %3932 = vmatpush1.msra.mxu0 0.0
        %3933 = vmatprep.subr.mxu0 0.0
        %3934 = vmatpush1.msra.mxu0 0.0
        %3935 = vmatprep.subr.mxu0 0.0
        %3936 = vmatpush1.msra.mxu0 0.0
        %3937 = vmatprep.subr.mxu0 0.0
        %3938 = vmatpush1.msra.mxu0 0.0
        %3939 = vmatprep.subr.mxu0 0.0
        %3940 = vmatpush1.msra.mxu0 0.0
        %3941 = vmatprep.subr.mxu0 0.0
        %3942 = vmatpush1.msra.mxu0 0.0
        %3943 = vmatprep.subr.mxu0 0.0
        %3944 = vmatpush1.msra.mxu0 0.0
        %3945 = vmatprep.subr.mxu0 0.0
        %3946 = vmatpush1.msra.mxu0 0.0
        %3947 = vmatprep.subr.mxu0 0.0
        %3948 = vmatpush1.msra.mxu0 0.0
        %3949 = vmatprep.subr.mxu0 0.0
        %3950 = vmatpush1.msra.mxu0 0.0
        %3951 = vmatprep.subr.mxu0 0.0
        %3952 = vmatpush1.msra.mxu0 0.0
        %3953 = vmatprep.subr.mxu0 0.0
        %3954 = vmatpush1.msra.mxu0 0.0
        %3955 = vmatprep.subr.mxu0 0.0
        %3956 = vmatpush1.msra.mxu0 0.0
        %3957 = vmatprep.subr.mxu0 0.0
        %3958 = vmatpush1.msra.mxu0 0.0
        %3959 = vmatprep.subr.mxu0 0.0
        %3960 = vmatpush1.msra.mxu0 0.0
        %3961 = vmatprep.subr.mxu0 0.0
        %3962 = vmatpush1.msra.mxu0 0.0
        %3963 = vmatprep.subr.mxu0 0.0
        %3964 = vmatpush1.msra.mxu0 0.0
        %3965 = vmatprep.subr.mxu0 0.0
        %3966 = vmatpush1.msra.mxu0 0.0
        %3967 = vmatprep.subr.mxu0 0.0
        %3968 = vmatpush1.msra.mxu0 0.0
        %3969 = vmatprep.subr.mxu0 0.0
        %3970 = vmatpush1.msra.mxu0 0.0
        %3971 = vmatprep.subr.mxu0 0.0
        %3972 = vmatpush1.msra.mxu0 0.0
        %3973 = vmatprep.subr.mxu0 0.0
        %3974 = vmatpush1.msra.mxu0 0.0
        %3975 = vmatprep.mubr.f32.mxu0 0.0
        %3976 = vmatmul.mubr.f32.gmra.mrb[0].mxu0 %v1294
        %v3977 = vpop.f32.mrb[0].mxu0
        %v3978 = vadd.f32 0.0, %v3977
        %v3979 = vpop.f32.mrb[0].mxu0
        %v3980 = vadd.f32 0.0, %v3979
        %3981 = vmatprep.mubr.f32.mxu0 0.0
        %3982 = vmatmul.mubr.f32.gmra.mrb[0].mxu0 %v1297
        %v3983 = vpop.f32.mrb[0].mxu0
        %v3984 = vadd.f32 0.0, %v3983
        %v3985 = vpop.f32.mrb[0].mxu0
        %v3986 = vadd.f32 0.0, %v3985
        %3987 = vmatprep.mubr.f32.mxu0 0.0
        %3988 = vmatmul.mubr.f32.gmra.mrb[0].mxu0 %v1300
        %v3989 = vpop.f32.mrb[0].mxu0
        %v3990 = vadd.f32 0.0, %v3989
        %v3991 = vpop.f32.mrb[0].mxu0
        %v3992 = vadd.f32 0.0, %v3991
        %3993 = vmatprep.mubr.f32.mxu0 0.0
        %3994 = vmatmul.mubr.f32.gmra.mrb[0].mxu0 %v1303
        %v3995 = vpop.f32.mrb[0].mxu0
        %v3996 = vadd.f32 0.0, %v3995
        %v3997 = vpop.f32.mrb[0].mxu0
        %v3998 = vadd.f32 0.0, %v3997
        %3999 = vmatprep.mubr.f32.mxu0 0.0
        %4000 = vmatmul.mubr.f32.gmra.mrb[0].mxu0 %v1306
        %v4001 = vpop.f32.mrb[0].mxu0
        %v4002 = vadd.f32 0.0, %v4001
        %v4003 = vpop.f32.mrb[0].mxu0
        %v4004 = vadd.f32 0.0, %v4003
        %4005 = vmatprep.mubr.f32.mxu0 0.0
        %4006 = vmatmul.mubr.f32.gmra.mrb[0].mxu0 %v1309
        %v4007 = vpop.f32.mrb[0].mxu0
        %v4008 = vadd.f32 0.0, %v4007
        %v4009 = vpop.f32.mrb[0].mxu0
        %v4010 = vadd.f32 0.0, %v4009
        %4011 = vmatprep.mubr.f32.mxu0 0.0
        %4012 = vmatmul.mubr.f32.gmra.mrb[0].mxu0 %v1312
        %v4013 = vpop.f32.mrb[0].mxu0
        %v4014 = vadd.f32 0.0, %v4013
        %v4015 = vpop.f32.mrb[0].mxu0
        %v4016 = vadd.f32 0.0, %v4015
        %4017 = vmatprep.mubr.f32.mxu0 0.0
        %4018 = vmatmul.mubr.f32.gmra.mrb[0].mxu0 %v1315
        %v4019 = vpop.f32.mrb[0].mxu0
        %v4020 = vadd.f32 0.0, %v4019
        %v4021 = vpop.f32.mrb[0].mxu0
        %v4022 = vadd.f32 0.0, %v4021
        %4023 = vmatprep.mubr.f32.mxu0 0.0
        %4024 = vmatmul.mubr.f32.gmra.mrb[0].mxu0 %v1318
        %v4025 = vpop.f32.mrb[0].mxu0
        %v4026 = vadd.f32 0.0, %v4025
        %v4027 = vpop.f32.mrb[0].mxu0
        %v4028 = vadd.f32 0.0, %v4027
        %4029 = vmatprep.mubr.f32.mxu0 0.0
        %4030 = vmatmul.mubr.f32.gmra.mrb[0].mxu0 %v1321
        %v4031 = vpop.f32.mrb[0].mxu0
        %v4032 = vadd.f32 0.0, %v4031
        %v4033 = vpop.f32.mrb[0].mxu0
        %v4034 = vadd.f32 0.0, %v4033
        %4035 = vmatprep.mubr.f32.mxu0 0.0
        %4036 = vmatmul.mubr.f32.gmra.mrb[0].mxu0 %v1324
        %v4037 = vpop.f32.mrb[0].mxu0
        %v4038 = vadd.f32 0.0, %v4037
        %v4039 = vpop.f32.mrb[0].mxu0
        %v4040 = vadd.f32 0.0, %v4039
        %4041 = vmatprep.mubr.f32.mxu0 0.0
        %4042 = vmatmul.mubr.f32.gmra.mrb[0].mxu0 %v1327
        %v4043 = vpop.f32.mrb[0].mxu0
        %v4044 = vadd.f32 0.0, %v4043
        %v4045 = vpop.f32.mrb[0].mxu0
        %v4046 = vadd.f32 0.0, %v4045
        %4047 = vmatprep.mubr.f32.mxu0 0.0
        %4048 = vmatmul.mubr.f32.gmra.mrb[0].mxu0 %v1330
        %v4049 = vpop.f32.mrb[0].mxu0
        %v4050 = vadd.f32 0.0, %v4049
        %v4051 = vpop.f32.mrb[0].mxu0
        %v4052 = vadd.f32 0.0, %v4051
        %4053 = vmatprep.mubr.f32.mxu0 0.0
        %4054 = vmatmul.mubr.f32.gmra.mrb[0].mxu0 %v1333
        %v4055 = vpop.f32.mrb[0].mxu0
        %v4056 = vadd.f32 0.0, %v4055
        %v4057 = vpop.f32.mrb[0].mxu0
        %v4058 = vadd.f32 0.0, %v4057
        %4059 = vdwg.mxu0
        %v4060 = vadd.f32 %v3829, %v3978
        %v4061 = vadd.f32 %v3831, %v3980
        %v4062 = vadd.f32 %v3835, %v3984
        %v4063 = vadd.f32 %v3837, %v3986
        %v4064 = vadd.f32 %v3841, %v3990
        %v4065 = vadd.f32 %v3843, %v3992
        %v4066 = vadd.f32 %v3847, %v3996
        %v4067 = vadd.f32 %v3849, %v3998
        %v4068 = vadd.f32 %v3853, %v4002
        %v4069 = vadd.f32 %v3855, %v4004
        %v4070 = vadd.f32 %v3859, %v4008
        %v4071 = vadd.f32 %v3861, %v4010
        %v4072 = vadd.f32 %v3865, %v4014
        %v4073 = vadd.f32 %v3867, %v4016
        %v4074 = vadd.f32 %v3871, %v4020
        %v4075 = vadd.f32 %v3873, %v4022
        %v4076 = vadd.f32 %v3877, %v4026
        %v4077 = vadd.f32 %v3879, %v4028
        %v4078 = vadd.f32 %v3883, %v4032
        %v4079 = vadd.f32 %v3885, %v4034
        %v4080 = vadd.f32 %v3889, %v4038
        %v4081 = vadd.f32 %v3891, %v4040
        %v4082 = vadd.f32 %v3895, %v4044
        %v4083 = vadd.f32 %v3897, %v4046
        %v4084 = vadd.f32 %v3901, %v4050
        %v4085 = vadd.f32 %v3903, %v4052
        %v4086 = vadd.f32 %v3907, %v4056
        %v4087 = vadd.f32 %v3909, %v4058
        %4088 = vmatprep.subr.mxu0 %v2289
        %4089 = vmatpush1.msra.mxu0 %v2288
        %4090 = vmatprep.subr.mxu0 %v2291
        %4091 = vmatpush1.msra.mxu0 %v2290
        %4092 = vmatprep.subr.mxu0 %v2293
        %4093 = vmatpush1.msra.mxu0 %v2292
        %4094 = vmatprep.subr.mxu0 %v2300
        %4095 = vmatpush1.msra.mxu0 %v2297
        %4096 = vmatprep.subr.mxu0 0.0
        %4097 = vmatpush1.msra.mxu0 0.0
        %4098 = vmatprep.subr.mxu0 0.0
        %4099 = vmatpush1.msra.mxu0 0.0
        %4100 = vmatprep.subr.mxu0 0.0
        %4101 = vmatpush1.msra.mxu0 0.0
        %4102 = vmatprep.subr.mxu0 0.0
        %4103 = vmatpush1.msra.mxu0 0.0
        %4104 = vmatprep.subr.mxu0 0.0
        %4105 = vmatpush1.msra.mxu0 0.0
        %4106 = vmatprep.subr.mxu0 0.0
        %4107 = vmatpush1.msra.mxu0 0.0
        %4108 = vmatprep.subr.mxu0 0.0
        %4109 = vmatpush1.msra.mxu0 0.0
        %4110 = vmatprep.subr.mxu0 0.0
        %4111 = vmatpush1.msra.mxu0 0.0
        %4112 = vmatprep.subr.mxu0 0.0
        %4113 = vmatpush1.msra.mxu0 0.0
        %4114 = vmatprep.subr.mxu0 0.0
        %4115 = vmatpush1.msra.mxu0 0.0
        %4116 = vmatprep.subr.mxu0 0.0
        %4117 = vmatpush1.msra.mxu0 0.0
        %4118 = vmatprep.subr.mxu0 0.0
        %4119 = vmatpush1.msra.mxu0 0.0
        %4120 = vmatprep.subr.mxu0 0.0
        %4121 = vmatpush1.msra.mxu0 0.0
        %4122 = vmatprep.subr.mxu0 0.0
        %4123 = vmatpush1.msra.mxu0 0.0
        %4124 = vmatprep.subr.mxu0 0.0
        %4125 = vmatpush1.msra.mxu0 0.0
        %4126 = vmatprep.subr.mxu0 0.0
        %4127 = vmatpush1.msra.mxu0 0.0
        %4128 = vmatprep.subr.mxu0 0.0
        %4129 = vmatpush1.msra.mxu0 0.0
        %4130 = vmatprep.subr.mxu0 0.0
        %4131 = vmatpush1.msra.mxu0 0.0
        %4132 = vmatprep.subr.mxu0 0.0
        %4133 = vmatpush1.msra.mxu0 0.0
        %4134 = vmatprep.subr.mxu0 0.0
        %4135 = vmatpush1.msra.mxu0 0.0
        %4136 = vmatprep.subr.mxu0 0.0
        %4137 = vmatpush1.msra.mxu0 0.0
        %4138 = vmatprep.subr.mxu0 0.0
        %4139 = vmatpush1.msra.mxu0 0.0
        %4140 = vmatprep.subr.mxu0 0.0
        %4141 = vmatpush1.msra.mxu0 0.0
        %4142 = vmatprep.subr.mxu0 0.0
        %4143 = vmatpush1.msra.mxu0 0.0
        %4144 = vmatprep.subr.mxu0 0.0
        %4145 = vmatpush1.msra.mxu0 0.0
        %4146 = vmatprep.subr.mxu0 0.0
        %4147 = vmatpush1.msra.mxu0 0.0
        %4148 = vmatprep.subr.mxu0 0.0
        %4149 = vmatpush1.msra.mxu0 0.0
        %4150 = vmatprep.subr.mxu0 0.0
        %4151 = vmatpush1.msra.mxu0 0.0
        %4152 = vmatprep.mubr.f32.mxu0 0.0
        %4153 = vmatmul.mubr.f32.gmra.mrb[0].mxu0 %v1543
        %v4154 = vpop.f32.mrb[0].mxu0
        %v4155 = vadd.f32 0.0, %v4154
        %v4156 = vpop.f32.mrb[0].mxu0
        %v4157 = vadd.f32 0.0, %v4156
        %4158 = vmatprep.mubr.f32.mxu0 0.0
        %4159 = vmatmul.mubr.f32.gmra.mrb[0].mxu0 %v1546
        %v4160 = vpop.f32.mrb[0].mxu0
        %v4161 = vadd.f32 0.0, %v4160
        %v4162 = vpop.f32.mrb[0].mxu0
        %v4163 = vadd.f32 0.0, %v4162
        %4164 = vmatprep.mubr.f32.mxu0 0.0
        %4165 = vmatmul.mubr.f32.gmra.mrb[0].mxu0 %v1549
        %v4166 = vpop.f32.mrb[0].mxu0
        %v4167 = vadd.f32 0.0, %v4166
        %v4168 = vpop.f32.mrb[0].mxu0
        %v4169 = vadd.f32 0.0, %v4168
        %4170 = vmatprep.mubr.f32.mxu0 0.0
        %4171 = vmatmul.mubr.f32.gmra.mrb[0].mxu0 %v1552
        %v4172 = vpop.f32.mrb[0].mxu0
        %v4173 = vadd.f32 0.0, %v4172
        %v4174 = vpop.f32.mrb[0].mxu0
        %v4175 = vadd.f32 0.0, %v4174
        %4176 = vmatprep.mubr.f32.mxu0 0.0
        %4177 = vmatmul.mubr.f32.gmra.mrb[0].mxu0 %v1555
        %v4178 = vpop.f32.mrb[0].mxu0
        %v4179 = vadd.f32 0.0, %v4178
        %v4180 = vpop.f32.mrb[0].mxu0
        %v4181 = vadd.f32 0.0, %v4180
        %4182 = vmatprep.mubr.f32.mxu0 0.0
        %4183 = vmatmul.mubr.f32.gmra.mrb[0].mxu0 %v1558
        %v4184 = vpop.f32.mrb[0].mxu0
        %v4185 = vadd.f32 0.0, %v4184
        %v4186 = vpop.f32.mrb[0].mxu0
        %v4187 = vadd.f32 0.0, %v4186
        %4188 = vmatprep.mubr.f32.mxu0 0.0
        %4189 = vmatmul.mubr.f32.gmra.mrb[0].mxu0 %v1561
        %v4190 = vpop.f32.mrb[0].mxu0
        %v4191 = vadd.f32 0.0, %v4190
        %v4192 = vpop.f32.mrb[0].mxu0
        %v4193 = vadd.f32 0.0, %v4192
        %4194 = vmatprep.mubr.f32.mxu0 0.0
        %4195 = vmatmul.mubr.f32.gmra.mrb[0].mxu0 %v1564
        %v4196 = vpop.f32.mrb[0].mxu0
        %v4197 = vadd.f32 0.0, %v4196
        %v4198 = vpop.f32.mrb[0].mxu0
        %v4199 = vadd.f32 0.0, %v4198
        %4200 = vmatprep.mubr.f32.mxu0 0.0
        %4201 = vmatmul.mubr.f32.gmra.mrb[0].mxu0 %v1567
        %v4202 = vpop.f32.mrb[0].mxu0
        %v4203 = vadd.f32 0.0, %v4202
        %v4204 = vpop.f32.mrb[0].mxu0
        %v4205 = vadd.f32 0.0, %v4204
        %4206 = vmatprep.mubr.f32.mxu0 0.0
        %4207 = vmatmul.mubr.f32.gmra.mrb[0].mxu0 %v1570
        %v4208 = vpop.f32.mrb[0].mxu0
        %v4209 = vadd.f32 0.0, %v4208
        %v4210 = vpop.f32.mrb[0].mxu0
        %v4211 = vadd.f32 0.0, %v4210
        %4212 = vmatprep.mubr.f32.mxu0 0.0
        %4213 = vmatmul.mubr.f32.gmra.mrb[0].mxu0 %v1573
        %v4214 = vpop.f32.mrb[0].mxu0
        %v4215 = vadd.f32 0.0, %v4214
        %v4216 = vpop.f32.mrb[0].mxu0
        %v4217 = vadd.f32 0.0, %v4216
        %4218 = vmatprep.mubr.f32.mxu0 0.0
        %4219 = vmatmul.mubr.f32.gmra.mrb[0].mxu0 %v1576
        %v4220 = vpop.f32.mrb[0].mxu0
        %v4221 = vadd.f32 0.0, %v4220
        %v4222 = vpop.f32.mrb[0].mxu0
        %v4223 = vadd.f32 0.0, %v4222
        %4224 = vmatprep.mubr.f32.mxu0 0.0
        %4225 = vmatmul.mubr.f32.gmra.mrb[0].mxu0 %v1579
        %v4226 = vpop.f32.mrb[0].mxu0
        %v4227 = vadd.f32 0.0, %v4226
        %v4228 = vpop.f32.mrb[0].mxu0
        %v4229 = vadd.f32 0.0, %v4228
        %4230 = vmatprep.mubr.f32.mxu0 0.0
        %4231 = vmatmul.mubr.f32.gmra.mrb[0].mxu0 %v1582
        %v4232 = vpop.f32.mrb[0].mxu0
        %v4233 = vadd.f32 0.0, %v4232
        %v4234 = vpop.f32.mrb[0].mxu0
        %v4235 = vadd.f32 0.0, %v4234
        %4236 = vdwg.mxu0
        %v4237 = vadd.f32 %v4060, %v4155
        %v4238 = vadd.f32 %v4061, %v4157
        %v4239 = vadd.f32 %v4062, %v4161
        %v4240 = vadd.f32 %v4063, %v4163
        %v4241 = vadd.f32 %v4064, %v4167
        %v4242 = vadd.f32 %v4065, %v4169
        %v4243 = vadd.f32 %v4066, %v4173
        %v4244 = vadd.f32 %v4067, %v4175
        %v4245 = vadd.f32 %v4068, %v4179
        %v4246 = vadd.f32 %v4069, %v4181
        %v4247 = vadd.f32 %v4070, %v4185
        %v4248 = vadd.f32 %v4071, %v4187
        %v4249 = vadd.f32 %v4072, %v4191
        %v4250 = vadd.f32 %v4073, %v4193
        %v4251 = vadd.f32 %v4074, %v4197
        %v4252 = vadd.f32 %v4075, %v4199
        %v4253 = vadd.f32 %v4076, %v4203
        %v4254 = vadd.f32 %v4077, %v4205
        %v4255 = vadd.f32 %v4078, %v4209
        %v4256 = vadd.f32 %v4079, %v4211
        %v4257 = vadd.f32 %v4080, %v4215
        %v4258 = vadd.f32 %v4081, %v4217
        %v4259 = vadd.f32 %v4082, %v4221
        %v4260 = vadd.f32 %v4083, %v4223
        %v4261 = vadd.f32 %v4084, %v4227
        %v4262 = vadd.f32 %v4085, %v4229
        %v4263 = vadd.f32 %v4086, %v4233
        %v4264 = vadd.f32 %v4087, %v4235
        %4265 = vmatprep.subr.mxu0 %v2481
        %4266 = vmatpush1.msra.mxu0 %v2480
        %4267 = vmatprep.subr.mxu0 %v2483
        %4268 = vmatpush1.msra.mxu0 %v2482
        %4269 = vmatprep.subr.mxu0 %v2485
        %4270 = vmatpush1.msra.mxu0 %v2484
        %4271 = vmatprep.subr.mxu0 %v2492
        %4272 = vmatpush1.msra.mxu0 %v2489
        %4273 = vmatprep.subr.mxu0 0.0
        %4274 = vmatpush1.msra.mxu0 0.0
        %4275 = vmatprep.subr.mxu0 0.0
        %4276 = vmatpush1.msra.mxu0 0.0
        %4277 = vmatprep.subr.mxu0 0.0
        %4278 = vmatpush1.msra.mxu0 0.0
        %4279 = vmatprep.subr.mxu0 0.0
        %4280 = vmatpush1.msra.mxu0 0.0
        %4281 = vmatprep.subr.mxu0 0.0
        %4282 = vmatpush1.msra.mxu0 0.0
        %4283 = vmatprep.subr.mxu0 0.0
        %4284 = vmatpush1.msra.mxu0 0.0
        %4285 = vmatprep.subr.mxu0 0.0
        %4286 = vmatpush1.msra.mxu0 0.0
        %4287 = vmatprep.subr.mxu0 0.0
        %4288 = vmatpush1.msra.mxu0 0.0
        %4289 = vmatprep.subr.mxu0 0.0
        %4290 = vmatpush1.msra.mxu0 0.0
        %4291 = vmatprep.subr.mxu0 0.0
        %4292 = vmatpush1.msra.mxu0 0.0
        %4293 = vmatprep.subr.mxu0 0.0
        %4294 = vmatpush1.msra.mxu0 0.0
        %4295 = vmatprep.subr.mxu0 0.0
        %4296 = vmatpush1.msra.mxu0 0.0
        %4297 = vmatprep.subr.mxu0 0.0
        %4298 = vmatpush1.msra.mxu0 0.0
        %4299 = vmatprep.subr.mxu0 0.0
        %4300 = vmatpush1.msra.mxu0 0.0
        %4301 = vmatprep.subr.mxu0 0.0
        %4302 = vmatpush1.msra.mxu0 0.0
        %4303 = vmatprep.subr.mxu0 0.0
        %4304 = vmatpush1.msra.mxu0 0.0
        %4305 = vmatprep.subr.mxu0 0.0
        %4306 = vmatpush1.msra.mxu0 0.0
        %4307 = vmatprep.subr.mxu0 0.0
        %4308 = vmatpush1.msra.mxu0 0.0
        %4309 = vmatprep.subr.mxu0 0.0
        %4310 = vmatpush1.msra.mxu0 0.0
        %4311 = vmatprep.subr.mxu0 0.0
        %4312 = vmatpush1.msra.mxu0 0.0
        %4313 = vmatprep.subr.mxu0 0.0
        %4314 = vmatpush1.msra.mxu0 0.0
        %4315 = vmatprep.subr.mxu0 0.0
        %4316 = vmatpush1.msra.mxu0 0.0
        %4317 = vmatprep.subr.mxu0 0.0
        %4318 = vmatpush1.msra.mxu0 0.0
        %4319 = vmatprep.subr.mxu0 0.0
        %4320 = vmatpush1.msra.mxu0 0.0
        %4321 = vmatprep.subr.mxu0 0.0
        %4322 = vmatpush1.msra.mxu0 0.0
        %4323 = vmatprep.subr.mxu0 0.0
        %4324 = vmatpush1.msra.mxu0 0.0
        %4325 = vmatprep.subr.mxu0 0.0
        %4326 = vmatpush1.msra.mxu0 0.0
        %4327 = vmatprep.subr.mxu0 0.0
        %4328 = vmatpush1.msra.mxu0 0.0
        %4329 = vmatprep.mubr.f32.mxu0 0.0
        %4330 = vmatmul.mubr.f32.gmra.mrb[0].mxu0 %v3367
        %v4331 = vpop.f32.mrb[0].mxu0
        %v4332 = vadd.f32 0.0, %v4331
        %v4333 = vpop.f32.mrb[0].mxu0
        %v4334 = vadd.f32 0.0, %v4333
        %4335 = vmatprep.mubr.f32.mxu0 0.0
        %4336 = vmatmul.mubr.f32.gmra.mrb[0].mxu0 %v3370
        %v4337 = vpop.f32.mrb[0].mxu0
        %v4338 = vadd.f32 0.0, %v4337
        %v4339 = vpop.f32.mrb[0].mxu0
        %v4340 = vadd.f32 0.0, %v4339
        %4341 = vmatprep.mubr.f32.mxu0 0.0
        %4342 = vmatmul.mubr.f32.gmra.mrb[0].mxu0 %v3373
        %v4343 = vpop.f32.mrb[0].mxu0
        %v4344 = vadd.f32 0.0, %v4343
        %v4345 = vpop.f32.mrb[0].mxu0
        %v4346 = vadd.f32 0.0, %v4345
        %4347 = vmatprep.mubr.f32.mxu0 0.0
        %4348 = vmatmul.mubr.f32.gmra.mrb[0].mxu0 %v3376
        %v4349 = vpop.f32.mrb[0].mxu0
        %v4350 = vadd.f32 0.0, %v4349
        %v4351 = vpop.f32.mrb[0].mxu0
        %v4352 = vadd.f32 0.0, %v4351
        %4353 = vmatprep.mubr.f32.mxu0 0.0
        %4354 = vmatmul.mubr.f32.gmra.mrb[0].mxu0 %v3379
        %v4355 = vpop.f32.mrb[0].mxu0
        %v4356 = vadd.f32 0.0, %v4355
        %v4357 = vpop.f32.mrb[0].mxu0
        %v4358 = vadd.f32 0.0, %v4357
        %4359 = vmatprep.mubr.f32.mxu0 0.0
        %4360 = vmatmul.mubr.f32.gmra.mrb[0].mxu0 %v3382
        %v4361 = vpop.f32.mrb[0].mxu0
        %v4362 = vadd.f32 0.0, %v4361
        %v4363 = vpop.f32.mrb[0].mxu0
        %v4364 = vadd.f32 0.0, %v4363
        %4365 = vmatprep.mubr.f32.mxu0 0.0
        %4366 = vmatmul.mubr.f32.gmra.mrb[0].mxu0 %v3385
        %v4367 = vpop.f32.mrb[0].mxu0
        %v4368 = vadd.f32 0.0, %v4367
        %v4369 = vpop.f32.mrb[0].mxu0
        %v4370 = vadd.f32 0.0, %v4369
        %4371 = vmatprep.mubr.f32.mxu0 0.0
        %4372 = vmatmul.mubr.f32.gmra.mrb[0].mxu0 %v3388
        %v4373 = vpop.f32.mrb[0].mxu0
        %v4374 = vadd.f32 0.0, %v4373
        %v4375 = vpop.f32.mrb[0].mxu0
        %v4376 = vadd.f32 0.0, %v4375
        %4377 = vmatprep.mubr.f32.mxu0 0.0
        %4378 = vmatmul.mubr.f32.gmra.mrb[0].mxu0 %v3391
        %v4379 = vpop.f32.mrb[0].mxu0
        %v4380 = vadd.f32 0.0, %v4379
        %v4381 = vpop.f32.mrb[0].mxu0
        %v4382 = vadd.f32 0.0, %v4381
        %4383 = vmatprep.mubr.f32.mxu0 0.0
        %4384 = vmatmul.mubr.f32.gmra.mrb[0].mxu0 %v3394
        %v4385 = vpop.f32.mrb[0].mxu0
        %v4386 = vadd.f32 0.0, %v4385
        %v4387 = vpop.f32.mrb[0].mxu0
        %v4388 = vadd.f32 0.0, %v4387
        %4389 = vmatprep.mubr.f32.mxu0 0.0
        %4390 = vmatmul.mubr.f32.gmra.mrb[0].mxu0 %v3397
        %v4391 = vpop.f32.mrb[0].mxu0
        %v4392 = vadd.f32 0.0, %v4391
        %v4393 = vpop.f32.mrb[0].mxu0
        %v4394 = vadd.f32 0.0, %v4393
        %4395 = vmatprep.mubr.f32.mxu0 0.0
        %4396 = vmatmul.mubr.f32.gmra.mrb[0].mxu0 %v3400
        %v4397 = vpop.f32.mrb[0].mxu0
        %v4398 = vadd.f32 0.0, %v4397
        %v4399 = vpop.f32.mrb[0].mxu0
        %v4400 = vadd.f32 0.0, %v4399
        %4401 = vmatprep.mubr.f32.mxu0 0.0
        %4402 = vmatmul.mubr.f32.gmra.mrb[0].mxu0 %v3403
        %v4403 = vpop.f32.mrb[0].mxu0
        %v4404 = vadd.f32 0.0, %v4403
        %v4405 = vpop.f32.mrb[0].mxu0
        %v4406 = vadd.f32 0.0, %v4405
        %4407 = vmatprep.mubr.f32.mxu0 0.0
        %4408 = vmatmul.mubr.f32.gmra.mrb[0].mxu0 %v3406
        %v4409 = vpop.f32.mrb[0].mxu0
        %v4410 = vadd.f32 0.0, %v4409
        %v4411 = vpop.f32.mrb[0].mxu0
        %v4412 = vadd.f32 0.0, %v4411
        %4413 = vdwg.mxu0
        %v4414 = vadd.f32 %v4237, %v4332
        %v4415 = vadd.f32 %v4238, %v4334
        %v4416 = vadd.f32 %v4239, %v4338
        %v4417 = vadd.f32 %v4240, %v4340
        %v4418 = vadd.f32 %v4241, %v4344
        %v4419 = vadd.f32 %v4242, %v4346
        %v4420 = vadd.f32 %v4243, %v4350
        %v4421 = vadd.f32 %v4244, %v4352
        %v4422 = vadd.f32 %v4245, %v4356
        %v4423 = vadd.f32 %v4246, %v4358
        %v4424 = vadd.f32 %v4247, %v4362
        %v4425 = vadd.f32 %v4248, %v4364
        %v4426 = vadd.f32 %v4249, %v4368
        %v4427 = vadd.f32 %v4250, %v4370
        %v4428 = vadd.f32 %v4251, %v4374
        %v4429 = vadd.f32 %v4252, %v4376
        %v4430 = vadd.f32 %v4253, %v4380
        %v4431 = vadd.f32 %v4254, %v4382
        %v4432 = vadd.f32 %v4255, %v4386
        %v4433 = vadd.f32 %v4256, %v4388
        %v4434 = vadd.f32 %v4257, %v4392
        %v4435 = vadd.f32 %v4258, %v4394
        %v4436 = vadd.f32 %v4259, %v4398
        %v4437 = vadd.f32 %v4260, %v4400
        %v4438 = vadd.f32 %v4261, %v4404
        %v4439 = vadd.f32 %v4262, %v4406
        %v4440 = vadd.f32 %v4263, %v4410
        %v4441 = vadd.f32 %v4264, %v4412
        %v4442 = vmax.f32 %v3585, %v4414
        %v4443 = vmax.f32 %v3586, %v4415
        %v4444 = vmax.f32 %v3587, %v4416
        %v4445 = vmax.f32 %v3588, %v4417
        %v4446 = vmax.f32 %v3589, %v4418
        %v4447 = vmax.f32 %v3590, %v4419
        %v4448 = vmax.f32 %v3591, %v4420
        %v4449 = vmax.f32 %v3592, %v4421
        %v4450 = vmax.f32 %v3593, %v4422
        %v4451 = vmax.f32 %v3594, %v4423
        %v4452 = vmax.f32 %v3595, %v4424
        %v4453 = vmax.f32 %v3596, %v4425
        %v4454 = vmax.f32 %v3597, %v4426
        %v4455 = vmax.f32 %v3598, %v4427
        %v4456 = vmax.f32 %v3599, %v4428
        %v4457 = vmax.f32 %v3600, %v4429
        %v4458 = vmax.f32 %v3601, %v4430
        %v4459 = vmax.f32 %v3602, %v4431
        %v4460 = vmax.f32 %v3603, %v4432
        %v4461 = vmax.f32 %v3604, %v4433
        %v4462 = vmax.f32 %v3605, %v4434
        %v4463 = vmax.f32 %v3606, %v4435
        %v4464 = vmax.f32 %v3607, %v4436
        %v4465 = vmax.f32 %v3608, %v4437
        %v4466 = vmax.f32 %v3609, %v4438
        %v4467 = vmax.f32 %v3610, %v4439
        %v4468 = vmax.f32 %v3611, %v4440
        %v4469 = vmax.f32 %v3612, %v4441
        %v4470 = vld [vmem:[%s2] sm:$0x3]
        %v4472 = vlaneseq
        %v4473 = vshrl.u32 %v4472, 7
        %v4474 = vsub.s32 0, %v4473
        %v4475 = vrot.slane %v4470, %v4474
        %v4476 = vlaneseq
        %v4477 = vshrl.u32 %v4476, 7
        %v4478 = vsub.s32 1, %v4477
        %v4479 = vrot.slane %v4470, %v4478
        %v4482 = vadd.f32 %v4442, %v4475
        %v4483 = vadd.f32 %v4443, %v4479
        %v4484 = vadd.f32 %v4444, %v4475
        %v4485 = vadd.f32 %v4445, %v4479
        %v4486 = vadd.f32 %v4446, %v4475
        %v4487 = vadd.f32 %v4447, %v4479
        %v4488 = vadd.f32 %v4448, %v4475
        %v4489 = vadd.f32 %v4449, %v4479
        %v4490 = vadd.f32 %v4450, %v4475
        %v4491 = vadd.f32 %v4451, %v4479
        %v4492 = vadd.f32 %v4452, %v4475
        %v4493 = vadd.f32 %v4453, %v4479
        %v4494 = vadd.f32 %v4454, %v4475
        %v4495 = vadd.f32 %v4455, %v4479
        %v4496 = vadd.f32 %v4456, %v4475
        %v4497 = vadd.f32 %v4457, %v4479
        %v4498 = vadd.f32 %v4458, %v4475
        %v4499 = vadd.f32 %v4459, %v4479
        %v4500 = vadd.f32 %v4460, %v4475
        %v4501 = vadd.f32 %v4461, %v4479
        %v4502 = vadd.f32 %v4462, %v4475
        %v4503 = vadd.f32 %v4463, %v4479
        %v4504 = vadd.f32 %v4464, %v4475
        %v4505 = vadd.f32 %v4465, %v4479
        %v4506 = vadd.f32 %v4466, %v4475
        %v4507 = vadd.f32 %v4467, %v4479
        %v4508 = vadd.f32 %v4468, %v4475
        %v4509 = vadd.f32 %v4469, %v4479
        %v4510 = vmax.f32 %v4482, 0.0
        %v4511 = vmax.f32 %v4483, 0.0
        %v4512 = vmax.f32 %v4484, 0.0
        %v4513 = vmax.f32 %v4485, 0.0
        %v4514 = vmax.f32 %v4486, 0.0
        %v4515 = vmax.f32 %v4487, 0.0
        %v4516 = vmax.f32 %v4488, 0.0
        %v4517 = vmax.f32 %v4489, 0.0
        %v4518 = vmax.f32 %v4490, 0.0
        %v4519 = vmax.f32 %v4491, 0.0
        %v4520 = vmax.f32 %v4492, 0.0
        %v4521 = vmax.f32 %v4493, 0.0
        %v4522 = vmax.f32 %v4494, 0.0
        %v4523 = vmax.f32 %v4495, 0.0
        %v4524 = vmax.f32 %v4496, 0.0
        %v4525 = vmax.f32 %v4497, 0.0
        %v4526 = vmax.f32 %v4498, 0.0
        %v4527 = vmax.f32 %v4499, 0.0
        %v4528 = vmax.f32 %v4500, 0.0
        %v4529 = vmax.f32 %v4501, 0.0
        %v4530 = vmax.f32 %v4502, 0.0
        %v4531 = vmax.f32 %v4503, 0.0
        %v4532 = vmax.f32 %v4504, 0.0
        %v4533 = vmax.f32 %v4505, 0.0
        %v4534 = vmax.f32 %v4506, 0.0
        %v4535 = vmax.f32 %v4507, 0.0
        %v4536 = vmax.f32 %v4508, 0.0
        %v4537 = vmax.f32 %v4509, 0.0
        %s4538 = scalar_lea.vmem [#allocation4], 16
        %4539 = vst [vmem:[%s4538] sm:$0xff] %v4510
        %4540 = vst.msk [vmem:[%s4538 + $0x8] sm:$0xff] %vm487, %v4511
        %s4541 = scalar_lea.vmem [#allocation5], 16
        %4542 = vst [vmem:[%s4541] sm:$0xff] %v4512
        %4543 = vst.msk [vmem:[%s4541 + $0x8] sm:$0xff] %vm487, %v4513
        %s4544 = scalar_lea.vmem [#allocation4], 32
        %4545 = vst [vmem:[%s4544] sm:$0xff] %v4514
        %4546 = vst.msk [vmem:[%s4544 + $0x8] sm:$0xff] %vm487, %v4515
        %s4547 = scalar_lea.vmem [#allocation5], 32
        %4548 = vst [vmem:[%s4547] sm:$0xff] %v4516
        %4549 = vst.msk [vmem:[%s4547 + $0x8] sm:$0xff] %vm487, %v4517
        %s4550 = scalar_lea.vmem [#allocation4], 48
        %4551 = vst [vmem:[%s4550] sm:$0xff] %v4518
        %4552 = vst.msk [vmem:[%s4550 + $0x8] sm:$0xff] %vm487, %v4519
        %s4553 = scalar_lea.vmem [#allocation5], 48
        %4554 = vst [vmem:[%s4553] sm:$0xff] %v4520
        %4555 = vst.msk [vmem:[%s4553 + $0x8] sm:$0xff] %vm487, %v4521
        %s4556 = scalar_lea.vmem [#allocation4], 64
        %4557 = vst [vmem:[%s4556] sm:$0xff] %v4522
        %4558 = vst.msk [vmem:[%s4556 + $0x8] sm:$0xff] %vm487, %v4523
        %s4559 = scalar_lea.vmem [#allocation5], 64
        %4560 = vst [vmem:[%s4559] sm:$0xff] %v4524
        %4561 = vst.msk [vmem:[%s4559 + $0x8] sm:$0xff] %vm487, %v4525
        %s4562 = scalar_lea.vmem [#allocation4], 80
        %4563 = vst [vmem:[%s4562] sm:$0xff] %v4526
        %4564 = vst.msk [vmem:[%s4562 + $0x8] sm:$0xff] %vm487, %v4527
        %s4565 = scalar_lea.vmem [#allocation5], 80
        %4566 = vst [vmem:[%s4565] sm:$0xff] %v4528
        %4567 = vst.msk [vmem:[%s4565 + $0x8] sm:$0xff] %vm487, %v4529
        %s4568 = scalar_lea.vmem [#allocation4], 96
        %4569 = vst [vmem:[%s4568] sm:$0xff] %v4530
        %4570 = vst.msk [vmem:[%s4568 + $0x8] sm:$0xff] %vm487, %v4531
        %s4571 = scalar_lea.vmem [#allocation5], 96
        %4572 = vst [vmem:[%s4571] sm:$0xff] %v4532
        %4573 = vst.msk [vmem:[%s4571 + $0x8] sm:$0xff] %vm487, %v4533
        %s4574 = scalar_lea.vmem [#allocation4], 112
        %4575 = vst [vmem:[%s4574] sm:$0xff] %v4534
        %4576 = vst.msk [vmem:[%s4574 + $0x8] sm:$0xff] %vm487, %v4535
        %s4577 = scalar_lea.vmem [#allocation5], 112
        %4578 = vst [vmem:[%s4577] sm:$0xff] %v4536
        %4579 = vst.msk [vmem:[%s4577 + $0x8] sm:$0xff] %vm487, %v4537
        %v4580 = vld [vmem:[#allocation4] sm:$0xff]
        %v4581 = vld [vmem:[#allocation4 + $0x8] sm:$0xff]
        %v4582 = vld [vmem:[#allocation4 + $0x10] sm:$0xff]
        %v4583 = vld [vmem:[#allocation4 + $0x18] sm:$0xff]
        %v4584 = vld [vmem:[#allocation4 + $0x20] sm:$0xff]
        %v4585 = vld [vmem:[#allocation4 + $0x28] sm:$0xff]
        %v4586 = vld [vmem:[#allocation4 + $0x30] sm:$0xff]
        %v4587 = vld [vmem:[#allocation4 + $0x38] sm:$0xff]
        %v4588 = vld [vmem:[#allocation4 + $0x40] sm:$0xff]
        %v4589 = vld [vmem:[#allocation4 + $0x48] sm:$0xff]
        %v4590 = vld [vmem:[#allocation4 + $0x50] sm:$0xff]
        %v4591 = vld [vmem:[#allocation4 + $0x58] sm:$0xff]
        %v4592 = vld [vmem:[#allocation4 + $0x60] sm:$0xff]
        %v4593 = vld [vmem:[#allocation4 + $0x68] sm:$0xff]
        %v4594 = vld [vmem:[%s3] sm:$0xff]
        %v4595 = vld [vmem:[%s3 + $0x8] sm:$0xff]
        %v4596 = vld [vmem:[%s3 + $0x10] sm:$0xff]
        %v4597 = vld [vmem:[%s3 + $0x18] sm:$0xff]
        %v4598 = vld [vmem:[%s3 + $0x20] sm:$0xff]
        %v4599 = vld [vmem:[%s3 + $0x28] sm:$0xff]
        %v4600 = vld [vmem:[%s3 + $0x30] sm:$0xff]
        %v4601 = vld [vmem:[%s3 + $0x38] sm:$0xff]
        %v4602 = vld [vmem:[%s3 + $0x40] sm:$0xff]
        %v4603 = vld [vmem:[%s3 + $0x48] sm:$0xff]
        %v4604 = vld [vmem:[%s3 + $0x50] sm:$0xff]
        %v4605 = vld [vmem:[%s3 + $0x58] sm:$0xff]
        %v4606 = vld [vmem:[%s3 + $0x60] sm:$0xff]
        %v4607 = vld [vmem:[%s3 + $0x68] sm:$0xff]
        %v4608 = vld [vmem:[%s3 + $0x70] sm:$0xff]
        %v4609 = vld [vmem:[%s3 + $0x78] sm:$0xff]
        %v4610 = vld [vmem:[%s3 + $0x80] sm:$0xff]
        %v4611 = vld [vmem:[%s3 + $0x88] sm:$0xff]
        %v4612 = vld [vmem:[%s3 + $0x90] sm:$0xff]
        %v4613 = vld [vmem:[%s3 + $0x98] sm:$0xff]
        %v4614 = vld [vmem:[%s3 + $0xa0] sm:$0xff]
        %v4615 = vld [vmem:[%s3 + $0xa8] sm:$0xff]
        %v4616 = vld [vmem:[%s3 + $0xb0] sm:$0xff]
        %v4617 = vld [vmem:[%s3 + $0xb8] sm:$0xff]
        %v4618 = vld [vmem:[%s3 + $0xc0] sm:$0xff]
        %v4619 = vld [vmem:[%s3 + $0xc8] sm:$0xff]
        %v4620 = vld [vmem:[%s3 + $0xd0] sm:$0xff]
        %v4621 = vld [vmem:[%s3 + $0xd8] sm:$0xff]
        %v4622 = vld [vmem:[%s3 + $0xe0] sm:$0xff]
        %v4623 = vld [vmem:[%s3 + $0xe8] sm:$0xff]
        %v4624 = vld [vmem:[%s3 + $0xf0] sm:$0xff]
        %v4625 = vld [vmem:[%s3 + $0xf8] sm:$0xff]
        %v4626 = vld [vmem:[%s3 + $0x100] sm:$0xff]
        %v4627 = vld [vmem:[%s3 + $0x108] sm:$0xff]
        %v4628 = vld [vmem:[%s3 + $0x110] sm:$0xff]
        %v4629 = vld [vmem:[%s3 + $0x118] sm:$0xff]
        %v4630 = vld [vmem:[%s3 + $0x120] sm:$0xff]
        %v4631 = vld [vmem:[%s3 + $0x128] sm:$0xff]
        %v4632 = vld [vmem:[%s3 + $0x130] sm:$0xff]
        %v4633 = vld [vmem:[%s3 + $0x138] sm:$0xff]
        %v4634 = vld [vmem:[%s3 + $0x140] sm:$0xff]
        %v4635 = vld [vmem:[%s3 + $0x148] sm:$0xff]
        %v4636 = vld [vmem:[%s3 + $0x150] sm:$0xff]
        %v4637 = vld [vmem:[%s3 + $0x158] sm:$0xff]
        %v4638 = vld [vmem:[%s3 + $0x160] sm:$0xff]
        %v4639 = vld [vmem:[%s3 + $0x168] sm:$0xff]
        %v4640 = vld [vmem:[%s3 + $0x170] sm:$0xff]
        %v4641 = vld [vmem:[%s3 + $0x178] sm:$0xff]
        %v4642 = vld [vmem:[%s3 + $0x180] sm:$0xff]
        %v4643 = vld [vmem:[%s3 + $0x188] sm:$0xff]
        %v4644 = vld [vmem:[%s3 + $0x190] sm:$0xff]
        %v4645 = vld [vmem:[%s3 + $0x198] sm:$0xff]
        %v4646 = vld [vmem:[%s3 + $0x1a0] sm:$0xff]
        %v4647 = vld [vmem:[%s3 + $0x1a8] sm:$0xff]
        %v4648 = vld [vmem:[%s3 + $0x1b0] sm:$0xff]
        %v4649 = vld [vmem:[%s3 + $0x1b8] sm:$0xff]
        %v4650 = vld [vmem:[#allocation5] sm:$0xff]
        %v4651 = vld [vmem:[#allocation5 + $0x8] sm:$0xff]
        %v4652 = vld [vmem:[#allocation5 + $0x10] sm:$0xff]
        %v4653 = vld [vmem:[#allocation5 + $0x18] sm:$0xff]
        %v4654 = vld [vmem:[#allocation5 + $0x20] sm:$0xff]
        %v4655 = vld [vmem:[#allocation5 + $0x28] sm:$0xff]
        %v4656 = vld [vmem:[#allocation5 + $0x30] sm:$0xff]
        %v4657 = vld [vmem:[#allocation5 + $0x38] sm:$0xff]
        %v4658 = vld [vmem:[#allocation5 + $0x40] sm:$0xff]
        %v4659 = vld [vmem:[#allocation5 + $0x48] sm:$0xff]
        %v4660 = vld [vmem:[#allocation5 + $0x50] sm:$0xff]
        %v4661 = vld [vmem:[#allocation5 + $0x58] sm:$0xff]
        %v4662 = vld [vmem:[#allocation5 + $0x60] sm:$0xff]
        %v4663 = vld [vmem:[#allocation5 + $0x68] sm:$0xff]
        %s4664 = scalar_lea.vmem %s3, 896
        %v4665 = vld [vmem:[%s4664] sm:$0xff]
        %v4666 = vld [vmem:[%s4664 + $0x8] sm:$0xff]
        %v4667 = vld [vmem:[%s4664 + $0x10] sm:$0xff]
        %v4668 = vld [vmem:[%s4664 + $0x18] sm:$0xff]
        %v4669 = vld [vmem:[%s4664 + $0x20] sm:$0xff]
        %v4670 = vld [vmem:[%s4664 + $0x28] sm:$0xff]
        %v4671 = vld [vmem:[%s4664 + $0x30] sm:$0xff]
        %v4672 = vld [vmem:[%s4664 + $0x38] sm:$0xff]
        %v4673 = vld [vmem:[%s4664 + $0x40] sm:$0xff]
        %v4674 = vld [vmem:[%s4664 + $0x48] sm:$0xff]
        %v4675 = vld [vmem:[%s4664 + $0x50] sm:$0xff]
        %v4676 = vld [vmem:[%s4664 + $0x58] sm:$0xff]
        %v4677 = vld [vmem:[%s4664 + $0x60] sm:$0xff]
        %v4678 = vld [vmem:[%s4664 + $0x68] sm:$0xff]
        %v4679 = vld [vmem:[%s4664 + $0x70] sm:$0xff]
        %v4680 = vld [vmem:[%s4664 + $0x78] sm:$0xff]
        %v4681 = vld [vmem:[%s4664 + $0x80] sm:$0xff]
        %v4682 = vld [vmem:[%s4664 + $0x88] sm:$0xff]
        %v4683 = vld [vmem:[%s4664 + $0x90] sm:$0xff]
        %v4684 = vld [vmem:[%s4664 + $0x98] sm:$0xff]
        %v4685 = vld [vmem:[%s4664 + $0xa0] sm:$0xff]
        %v4686 = vld [vmem:[%s4664 + $0xa8] sm:$0xff]
        %v4687 = vld [vmem:[%s4664 + $0xb0] sm:$0xff]
        %v4688 = vld [vmem:[%s4664 + $0xb8] sm:$0xff]
        %v4689 = vld [vmem:[%s4664 + $0xc0] sm:$0xff]
        %v4690 = vld [vmem:[%s4664 + $0xc8] sm:$0xff]
        %v4691 = vld [vmem:[%s4664 + $0xd0] sm:$0xff]
        %v4692 = vld [vmem:[%s4664 + $0xd8] sm:$0xff]
        %v4693 = vld [vmem:[%s4664 + $0xe0] sm:$0xff]
        %v4694 = vld [vmem:[%s4664 + $0xe8] sm:$0xff]
        %v4695 = vld [vmem:[%s4664 + $0xf0] sm:$0xff]
        %v4696 = vld [vmem:[%s4664 + $0xf8] sm:$0xff]
        %v4697 = vld [vmem:[%s4664 + $0x100] sm:$0xff]
        %v4698 = vld [vmem:[%s4664 + $0x108] sm:$0xff]
        %v4699 = vld [vmem:[%s4664 + $0x110] sm:$0xff]
        %v4700 = vld [vmem:[%s4664 + $0x118] sm:$0xff]
        %v4701 = vld [vmem:[%s4664 + $0x120] sm:$0xff]
        %v4702 = vld [vmem:[%s4664 + $0x128] sm:$0xff]
        %v4703 = vld [vmem:[%s4664 + $0x130] sm:$0xff]
        %v4704 = vld [vmem:[%s4664 + $0x138] sm:$0xff]
        %v4705 = vld [vmem:[%s4664 + $0x140] sm:$0xff]
        %v4706 = vld [vmem:[%s4664 + $0x148] sm:$0xff]
        %v4707 = vld [vmem:[%s4664 + $0x150] sm:$0xff]
        %v4708 = vld [vmem:[%s4664 + $0x158] sm:$0xff]
        %v4709 = vld [vmem:[%s4664 + $0x160] sm:$0xff]
        %v4710 = vld [vmem:[%s4664 + $0x168] sm:$0xff]
        %v4711 = vld [vmem:[%s4664 + $0x170] sm:$0xff]
        %v4712 = vld [vmem:[%s4664 + $0x178] sm:$0xff]
        %v4713 = vld [vmem:[%s4664 + $0x180] sm:$0xff]
        %v4714 = vld [vmem:[%s4664 + $0x188] sm:$0xff]
        %v4715 = vld [vmem:[%s4664 + $0x190] sm:$0xff]
        %v4716 = vld [vmem:[%s4664 + $0x198] sm:$0xff]
        %v4717 = vld [vmem:[%s4664 + $0x1a0] sm:$0xff]
        %v4718 = vld [vmem:[%s4664 + $0x1a8] sm:$0xff]
        %v4719 = vld [vmem:[%s4664 + $0x1b0] sm:$0xff]
        %v4720 = vld [vmem:[%s4664 + $0x1b8] sm:$0xff]
        %v4722 = vsel %vm487, %v4651, 0
        %v4725 = vsel %vm487, %v4653, 0
        %v4728 = vsel %vm487, %v4655, 0
        %v4731 = vsel %vm487, %v4657, 0
        %v4734 = vsel %vm487, %v4659, 0
        %v4737 = vsel %vm487, %v4661, 0
        %v4740 = vsel %vm487, %v4663, 0
        %4742 = vmatprep.subr.mxu0 %v4666
        %4743 = vmatpush1.msra.mxu0 %v4665
        %4744 = vmatprep.subr.mxu0 %v4668
        %4745 = vmatpush1.msra.mxu0 %v4667
        %4746 = vmatprep.subr.mxu0 %v4670
        %4747 = vmatpush1.msra.mxu0 %v4669
        %4748 = vmatprep.subr.mxu0 %v4672
        %4749 = vmatpush1.msra.mxu0 %v4671
        %4750 = vmatprep.subr.mxu0 %v4674
        %4751 = vmatpush1.msra.mxu0 %v4673
        %4752 = vmatprep.subr.mxu0 %v4676
        %4753 = vmatpush1.msra.mxu0 %v4675
        %4754 = vmatprep.subr.mxu0 %v4678
        %4755 = vmatpush1.msra.mxu0 %v4677
        %4756 = vmatprep.subr.mxu0 %v4680
        %4757 = vmatpush1.msra.mxu0 %v4679
        %4758 = vmatprep.subr.mxu0 %v4682
        %4759 = vmatpush1.msra.mxu0 %v4681
        %4760 = vmatprep.subr.mxu0 %v4684
        %4761 = vmatpush1.msra.mxu0 %v4683
        %4762 = vmatprep.subr.mxu0 %v4686
        %4763 = vmatpush1.msra.mxu0 %v4685
        %4764 = vmatprep.subr.mxu0 %v4688
        %4765 = vmatpush1.msra.mxu0 %v4687
        %4766 = vmatprep.subr.mxu0 %v4690
        %4767 = vmatpush1.msra.mxu0 %v4689
        %4768 = vmatprep.subr.mxu0 %v4692
        %4769 = vmatpush1.msra.mxu0 %v4691
        %4770 = vmatprep.subr.mxu0 %v4694
        %4771 = vmatpush1.msra.mxu0 %v4693
        %4772 = vmatprep.subr.mxu0 %v4696
        %4773 = vmatpush1.msra.mxu0 %v4695
        %4774 = vmatprep.subr.mxu0 %v4698
        %4775 = vmatpush1.msra.mxu0 %v4697
        %4776 = vmatprep.subr.mxu0 %v4700
        %4777 = vmatpush1.msra.mxu0 %v4699
        %4778 = vmatprep.subr.mxu0 %v4702
        %4779 = vmatpush1.msra.mxu0 %v4701
        %4780 = vmatprep.subr.mxu0 %v4704
        %4781 = vmatpush1.msra.mxu0 %v4703
        %4782 = vmatprep.subr.mxu0 %v4706
        %4783 = vmatpush1.msra.mxu0 %v4705
        %4784 = vmatprep.subr.mxu0 %v4708
        %4785 = vmatpush1.msra.mxu0 %v4707
        %4786 = vmatprep.subr.mxu0 %v4710
        %4787 = vmatpush1.msra.mxu0 %v4709
        %4788 = vmatprep.subr.mxu0 %v4712
        %4789 = vmatpush1.msra.mxu0 %v4711
        %4790 = vmatprep.subr.mxu0 %v4714
        %4791 = vmatpush1.msra.mxu0 %v4713
        %4792 = vmatprep.subr.mxu0 %v4716
        %4793 = vmatpush1.msra.mxu0 %v4715
        %4794 = vmatprep.subr.mxu0 %v4718
        %4795 = vmatpush1.msra.mxu0 %v4717
        %4796 = vmatprep.subr.mxu0 %v4720
        %4797 = vmatpush1.msra.mxu0 %v4719
        %4798 = vmatprep.subr.mxu0 0.0
        %4799 = vmatpush1.msra.mxu0 0.0
        %4800 = vmatprep.subr.mxu0 0.0
        %4801 = vmatpush1.msra.mxu0 0.0
        %4802 = vmatprep.subr.mxu0 0.0
        %4803 = vmatpush1.msra.mxu0 0.0
        %4804 = vmatprep.subr.mxu0 0.0
        %4805 = vmatpush1.msra.mxu0 0.0
        %4806 = vmatprep.mubr.f32.mxu0 %v4722
        %4807 = vmatmul.mubr.f32.gmra.mrb[0].mxu0 %v4650
        %v4808 = vpop.f32.mrb[0].mxu0
        %v4809 = vadd.f32 0.0, %v4808
        %v4810 = vpop.f32.mrb[0].mxu0
        %v4811 = vadd.f32 0.0, %v4810
        %4812 = vmatprep.mubr.f32.mxu0 %v4725
        %4813 = vmatmul.mubr.f32.gmra.mrb[0].mxu0 %v4652
        %v4814 = vpop.f32.mrb[0].mxu0
        %v4815 = vadd.f32 0.0, %v4814
        %v4816 = vpop.f32.mrb[0].mxu0
        %v4817 = vadd.f32 0.0, %v4816
        %4818 = vmatprep.mubr.f32.mxu0 %v4728
        %4819 = vmatmul.mubr.f32.gmra.mrb[0].mxu0 %v4654
        %v4820 = vpop.f32.mrb[0].mxu0
        %v4821 = vadd.f32 0.0, %v4820
        %v4822 = vpop.f32.mrb[0].mxu0
        %v4823 = vadd.f32 0.0, %v4822
        %4824 = vmatprep.mubr.f32.mxu0 %v4731
        %4825 = vmatmul.mubr.f32.gmra.mrb[0].mxu0 %v4656
        %v4826 = vpop.f32.mrb[0].mxu0
        %v4827 = vadd.f32 0.0, %v4826
        %v4828 = vpop.f32.mrb[0].mxu0
        %v4829 = vadd.f32 0.0, %v4828
        %4830 = vmatprep.mubr.f32.mxu0 %v4734
        %4831 = vmatmul.mubr.f32.gmra.mrb[0].mxu0 %v4658
        %v4832 = vpop.f32.mrb[0].mxu0
        %v4833 = vadd.f32 0.0, %v4832
        %v4834 = vpop.f32.mrb[0].mxu0
        %v4835 = vadd.f32 0.0, %v4834
        %4836 = vmatprep.mubr.f32.mxu0 %v4737
        %4837 = vmatmul.mubr.f32.gmra.mrb[0].mxu0 %v4660
        %v4838 = vpop.f32.mrb[0].mxu0
        %v4839 = vadd.f32 0.0, %v4838
        %v4840 = vpop.f32.mrb[0].mxu0
        %v4841 = vadd.f32 0.0, %v4840
        %4842 = vmatprep.mubr.f32.mxu0 %v4740
        %4843 = vmatmul.mubr.f32.gmra.mrb[0].mxu0 %v4662
        %v4844 = vpop.f32.mrb[0].mxu0
        %v4845 = vadd.f32 0.0, %v4844
        %v4846 = vpop.f32.mrb[0].mxu0
        %v4847 = vadd.f32 0.0, %v4846
        %4848 = vdwg.mxu0
        %v4850 = vsel %vm487, %v4581, 0
        %v4853 = vsel %vm487, %v4583, 0
        %v4856 = vsel %vm487, %v4585, 0
        %v4859 = vsel %vm487, %v4587, 0
        %v4862 = vsel %vm487, %v4589, 0
        %v4865 = vsel %vm487, %v4591, 0
        %v4868 = vsel %vm487, %v4593, 0
        %4870 = vmatprep.subr.mxu0 %v4595
        %4871 = vmatpush1.msra.mxu0 %v4594
        %4872 = vmatprep.subr.mxu0 %v4597
        %4873 = vmatpush1.msra.mxu0 %v4596
        %4874 = vmatprep.subr.mxu0 %v4599
        %4875 = vmatpush1.msra.mxu0 %v4598
        %4876 = vmatprep.subr.mxu0 %v4601
        %4877 = vmatpush1.msra.mxu0 %v4600
        %4878 = vmatprep.subr.mxu0 %v4603
        %4879 = vmatpush1.msra.mxu0 %v4602
        %4880 = vmatprep.subr.mxu0 %v4605
        %4881 = vmatpush1.msra.mxu0 %v4604
        %4882 = vmatprep.subr.mxu0 %v4607
        %4883 = vmatpush1.msra.mxu0 %v4606
        %4884 = vmatprep.subr.mxu0 %v4609
        %4885 = vmatpush1.msra.mxu0 %v4608
        %4886 = vmatprep.subr.mxu0 %v4611
        %4887 = vmatpush1.msra.mxu0 %v4610
        %4888 = vmatprep.subr.mxu0 %v4613
        %4889 = vmatpush1.msra.mxu0 %v4612
        %4890 = vmatprep.subr.mxu0 %v4615
        %4891 = vmatpush1.msra.mxu0 %v4614
        %4892 = vmatprep.subr.mxu0 %v4617
        %4893 = vmatpush1.msra.mxu0 %v4616
        %4894 = vmatprep.subr.mxu0 %v4619
        %4895 = vmatpush1.msra.mxu0 %v4618
        %4896 = vmatprep.subr.mxu0 %v4621
        %4897 = vmatpush1.msra.mxu0 %v4620
        %4898 = vmatprep.subr.mxu0 %v4623
        %4899 = vmatpush1.msra.mxu0 %v4622
        %4900 = vmatprep.subr.mxu0 %v4625
        %4901 = vmatpush1.msra.mxu0 %v4624
        %4902 = vmatprep.subr.mxu0 %v4627
        %4903 = vmatpush1.msra.mxu0 %v4626
        %4904 = vmatprep.subr.mxu0 %v4629
        %4905 = vmatpush1.msra.mxu0 %v4628
        %4906 = vmatprep.subr.mxu0 %v4631
        %4907 = vmatpush1.msra.mxu0 %v4630
        %4908 = vmatprep.subr.mxu0 %v4633
        %4909 = vmatpush1.msra.mxu0 %v4632
        %4910 = vmatprep.subr.mxu0 %v4635
        %4911 = vmatpush1.msra.mxu0 %v4634
        %4912 = vmatprep.subr.mxu0 %v4637
        %4913 = vmatpush1.msra.mxu0 %v4636
        %4914 = vmatprep.subr.mxu0 %v4639
        %4915 = vmatpush1.msra.mxu0 %v4638
        %4916 = vmatprep.subr.mxu0 %v4641
        %4917 = vmatpush1.msra.mxu0 %v4640
        %4918 = vmatprep.subr.mxu0 %v4643
        %4919 = vmatpush1.msra.mxu0 %v4642
        %4920 = vmatprep.subr.mxu0 %v4645
        %4921 = vmatpush1.msra.mxu0 %v4644
        %4922 = vmatprep.subr.mxu0 %v4647
        %4923 = vmatpush1.msra.mxu0 %v4646
        %4924 = vmatprep.subr.mxu0 %v4649
        %4925 = vmatpush1.msra.mxu0 %v4648
        %4926 = vmatprep.subr.mxu0 0.0
        %4927 = vmatpush1.msra.mxu0 0.0
        %4928 = vmatprep.subr.mxu0 0.0
        %4929 = vmatpush1.msra.mxu0 0.0
        %4930 = vmatprep.subr.mxu0 0.0
        %4931 = vmatpush1.msra.mxu0 0.0
        %4932 = vmatprep.subr.mxu0 0.0
        %4933 = vmatpush1.msra.mxu0 0.0
        %4934 = vmatprep.mubr.f32.mxu0 %v4850
        %4935 = vmatmul.mubr.f32.gmra.mrb[0].mxu0 %v4580
        %v4936 = vpop.f32.mrb[0].mxu0
        %v4937 = vadd.f32 %v4809, %v4936
        %v4938 = vpop.f32.mrb[0].mxu0
        %v4939 = vadd.f32 %v4811, %v4938
        %4940 = vmatprep.mubr.f32.mxu0 %v4853
        %4941 = vmatmul.mubr.f32.gmra.mrb[0].mxu0 %v4582
        %v4942 = vpop.f32.mrb[0].mxu0
        %v4943 = vadd.f32 %v4815, %v4942
        %v4944 = vpop.f32.mrb[0].mxu0
        %v4945 = vadd.f32 %v4817, %v4944
        %4946 = vmatprep.mubr.f32.mxu0 %v4856
        %4947 = vmatmul.mubr.f32.gmra.mrb[0].mxu0 %v4584
        %v4948 = vpop.f32.mrb[0].mxu0
        %v4949 = vadd.f32 %v4821, %v4948
        %v4950 = vpop.f32.mrb[0].mxu0
        %v4951 = vadd.f32 %v4823, %v4950
        %4952 = vmatprep.mubr.f32.mxu0 %v4859
        %4953 = vmatmul.mubr.f32.gmra.mrb[0].mxu0 %v4586
        %v4954 = vpop.f32.mrb[0].mxu0
        %v4955 = vadd.f32 %v4827, %v4954
        %v4956 = vpop.f32.mrb[0].mxu0
        %v4957 = vadd.f32 %v4829, %v4956
        %4958 = vmatprep.mubr.f32.mxu0 %v4862
        %4959 = vmatmul.mubr.f32.gmra.mrb[0].mxu0 %v4588
        %v4960 = vpop.f32.mrb[0].mxu0
        %v4961 = vadd.f32 %v4833, %v4960
        %v4962 = vpop.f32.mrb[0].mxu0
        %v4963 = vadd.f32 %v4835, %v4962
        %4964 = vmatprep.mubr.f32.mxu0 %v4865
        %4965 = vmatmul.mubr.f32.gmra.mrb[0].mxu0 %v4590
        %v4966 = vpop.f32.mrb[0].mxu0
        %v4967 = vadd.f32 %v4839, %v4966
        %v4968 = vpop.f32.mrb[0].mxu0
        %v4969 = vadd.f32 %v4841, %v4968
        %4970 = vmatprep.mubr.f32.mxu0 %v4868
        %4971 = vmatmul.mubr.f32.gmra.mrb[0].mxu0 %v4592
        %v4972 = vpop.f32.mrb[0].mxu0
        %v4973 = vadd.f32 %v4845, %v4972
        %v4974 = vpop.f32.mrb[0].mxu0
        %v4975 = vadd.f32 %v4847, %v4974
        %4976 = vdwg.mxu0
        %v4977 = vld [vmem:[%s4538] sm:$0xff]
        %v4978 = vld [vmem:[%s4538 + $0x8] sm:$0xff]
        %v4979 = vld [vmem:[%s4538 + $0x10] sm:$0xff]
        %v4980 = vld [vmem:[%s4538 + $0x18] sm:$0xff]
        %v4981 = vld [vmem:[%s4538 + $0x20] sm:$0xff]
        %v4982 = vld [vmem:[%s4538 + $0x28] sm:$0xff]
        %v4983 = vld [vmem:[%s4538 + $0x30] sm:$0xff]
        %v4984 = vld [vmem:[%s4538 + $0x38] sm:$0xff]
        %v4985 = vld [vmem:[%s4538 + $0x40] sm:$0xff]
        %v4986 = vld [vmem:[%s4538 + $0x48] sm:$0xff]
        %v4987 = vld [vmem:[%s4538 + $0x50] sm:$0xff]
        %v4988 = vld [vmem:[%s4538 + $0x58] sm:$0xff]
        %v4989 = vld [vmem:[%s4538 + $0x60] sm:$0xff]
        %v4990 = vld [vmem:[%s4538 + $0x68] sm:$0xff]
        %s4991 = scalar_lea.vmem %s3, 1792
        %v4992 = vld [vmem:[%s4991] sm:$0xff]
        %v4993 = vld [vmem:[%s4991 + $0x8] sm:$0xff]
        %v4994 = vld [vmem:[%s4991 + $0x10] sm:$0xff]
        %v4995 = vld [vmem:[%s4991 + $0x18] sm:$0xff]
        %v4996 = vld [vmem:[%s4991 + $0x20] sm:$0xff]
        %v4997 = vld [vmem:[%s4991 + $0x28] sm:$0xff]
        %v4998 = vld [vmem:[%s4991 + $0x30] sm:$0xff]
        %v4999 = vld [vmem:[%s4991 + $0x38] sm:$0xff]
        %v5000 = vld [vmem:[%s4991 + $0x40] sm:$0xff]
        %v5001 = vld [vmem:[%s4991 + $0x48] sm:$0xff]
        %v5002 = vld [vmem:[%s4991 + $0x50] sm:$0xff]
        %v5003 = vld [vmem:[%s4991 + $0x58] sm:$0xff]
        %v5004 = vld [vmem:[%s4991 + $0x60] sm:$0xff]
        %v5005 = vld [vmem:[%s4991 + $0x68] sm:$0xff]
        %v5006 = vld [vmem:[%s4991 + $0x70] sm:$0xff]
        %v5007 = vld [vmem:[%s4991 + $0x78] sm:$0xff]
        %v5008 = vld [vmem:[%s4991 + $0x80] sm:$0xff]
        %v5009 = vld [vmem:[%s4991 + $0x88] sm:$0xff]
        %v5010 = vld [vmem:[%s4991 + $0x90] sm:$0xff]
        %v5011 = vld [vmem:[%s4991 + $0x98] sm:$0xff]
        %v5012 = vld [vmem:[%s4991 + $0xa0] sm:$0xff]
        %v5013 = vld [vmem:[%s4991 + $0xa8] sm:$0xff]
        %v5014 = vld [vmem:[%s4991 + $0xb0] sm:$0xff]
        %v5015 = vld [vmem:[%s4991 + $0xb8] sm:$0xff]
        %v5016 = vld [vmem:[%s4991 + $0xc0] sm:$0xff]
        %v5017 = vld [vmem:[%s4991 + $0xc8] sm:$0xff]
        %v5018 = vld [vmem:[%s4991 + $0xd0] sm:$0xff]
        %v5019 = vld [vmem:[%s4991 + $0xd8] sm:$0xff]
        %v5020 = vld [vmem:[%s4991 + $0xe0] sm:$0xff]
        %v5021 = vld [vmem:[%s4991 + $0xe8] sm:$0xff]
        %v5022 = vld [vmem:[%s4991 + $0xf0] sm:$0xff]
        %v5023 = vld [vmem:[%s4991 + $0xf8] sm:$0xff]
        %v5024 = vld [vmem:[%s4991 + $0x100] sm:$0xff]
        %v5025 = vld [vmem:[%s4991 + $0x108] sm:$0xff]
        %v5026 = vld [vmem:[%s4991 + $0x110] sm:$0xff]
        %v5027 = vld [vmem:[%s4991 + $0x118] sm:$0xff]
        %v5028 = vld [vmem:[%s4991 + $0x120] sm:$0xff]
        %v5029 = vld [vmem:[%s4991 + $0x128] sm:$0xff]
        %v5030 = vld [vmem:[%s4991 + $0x130] sm:$0xff]
        %v5031 = vld [vmem:[%s4991 + $0x138] sm:$0xff]
        %v5032 = vld [vmem:[%s4991 + $0x140] sm:$0xff]
        %v5033 = vld [vmem:[%s4991 + $0x148] sm:$0xff]
        %v5034 = vld [vmem:[%s4991 + $0x150] sm:$0xff]
        %v5035 = vld [vmem:[%s4991 + $0x158] sm:$0xff]
        %v5036 = vld [vmem:[%s4991 + $0x160] sm:$0xff]
        %v5037 = vld [vmem:[%s4991 + $0x168] sm:$0xff]
        %v5038 = vld [vmem:[%s4991 + $0x170] sm:$0xff]
        %v5039 = vld [vmem:[%s4991 + $0x178] sm:$0xff]
        %v5040 = vld [vmem:[%s4991 + $0x180] sm:$0xff]
        %v5041 = vld [vmem:[%s4991 + $0x188] sm:$0xff]
        %v5042 = vld [vmem:[%s4991 + $0x190] sm:$0xff]
        %v5043 = vld [vmem:[%s4991 + $0x198] sm:$0xff]
        %v5044 = vld [vmem:[%s4991 + $0x1a0] sm:$0xff]
        %v5045 = vld [vmem:[%s4991 + $0x1a8] sm:$0xff]
        %v5046 = vld [vmem:[%s4991 + $0x1b0] sm:$0xff]
        %v5047 = vld [vmem:[%s4991 + $0x1b8] sm:$0xff]
        %v5049 = vsel %vm487, %v4978, 0
        %v5052 = vsel %vm487, %v4980, 0
        %v5055 = vsel %vm487, %v4982, 0
        %v5058 = vsel %vm487, %v4984, 0
        %v5061 = vsel %vm487, %v4986, 0
        %v5064 = vsel %vm487, %v4988, 0
        %v5067 = vsel %vm487, %v4990, 0
        %5069 = vmatprep.subr.mxu0 %v4993
        %5070 = vmatpush1.msra.mxu0 %v4992
        %5071 = vmatprep.subr.mxu0 %v4995
        %5072 = vmatpush1.msra.mxu0 %v4994
        %5073 = vmatprep.subr.mxu0 %v4997
        %5074 = vmatpush1.msra.mxu0 %v4996
        %5075 = vmatprep.subr.mxu0 %v4999
        %5076 = vmatpush1.msra.mxu0 %v4998
        %5077 = vmatprep.subr.mxu0 %v5001
        %5078 = vmatpush1.msra.mxu0 %v5000
        %5079 = vmatprep.subr.mxu0 %v5003
        %5080 = vmatpush1.msra.mxu0 %v5002
        %5081 = vmatprep.subr.mxu0 %v5005
        %5082 = vmatpush1.msra.mxu0 %v5004
        %5083 = vmatprep.subr.mxu0 %v5007
        %5084 = vmatpush1.msra.mxu0 %v5006
        %5085 = vmatprep.subr.mxu0 %v5009
        %5086 = vmatpush1.msra.mxu0 %v5008
        %5087 = vmatprep.subr.mxu0 %v5011
        %5088 = vmatpush1.msra.mxu0 %v5010
        %5089 = vmatprep.subr.mxu0 %v5013
        %5090 = vmatpush1.msra.mxu0 %v5012
        %5091 = vmatprep.subr.mxu0 %v5015
        %5092 = vmatpush1.msra.mxu0 %v5014
        %5093 = vmatprep.subr.mxu0 %v5017
        %5094 = vmatpush1.msra.mxu0 %v5016
        %5095 = vmatprep.subr.mxu0 %v5019
        %5096 = vmatpush1.msra.mxu0 %v5018
        %5097 = vmatprep.subr.mxu0 %v5021
        %5098 = vmatpush1.msra.mxu0 %v5020
        %5099 = vmatprep.subr.mxu0 %v5023
        %5100 = vmatpush1.msra.mxu0 %v5022
        %5101 = vmatprep.subr.mxu0 %v5025
        %5102 = vmatpush1.msra.mxu0 %v5024
        %5103 = vmatprep.subr.mxu0 %v5027
        %5104 = vmatpush1.msra.mxu0 %v5026
        %5105 = vmatprep.subr.mxu0 %v5029
        %5106 = vmatpush1.msra.mxu0 %v5028
        %5107 = vmatprep.subr.mxu0 %v5031
        %5108 = vmatpush1.msra.mxu0 %v5030
        %5109 = vmatprep.subr.mxu0 %v5033
        %5110 = vmatpush1.msra.mxu0 %v5032
        %5111 = vmatprep.subr.mxu0 %v5035
        %5112 = vmatpush1.msra.mxu0 %v5034
        %5113 = vmatprep.subr.mxu0 %v5037
        %5114 = vmatpush1.msra.mxu0 %v5036
        %5115 = vmatprep.subr.mxu0 %v5039
        %5116 = vmatpush1.msra.mxu0 %v5038
        %5117 = vmatprep.subr.mxu0 %v5041
        %5118 = vmatpush1.msra.mxu0 %v5040
        %5119 = vmatprep.subr.mxu0 %v5043
        %5120 = vmatpush1.msra.mxu0 %v5042
        %5121 = vmatprep.subr.mxu0 %v5045
        %5122 = vmatpush1.msra.mxu0 %v5044
        %5123 = vmatprep.subr.mxu0 %v5047
        %5124 = vmatpush1.msra.mxu0 %v5046
        %5125 = vmatprep.subr.mxu0 0.0
        %5126 = vmatpush1.msra.mxu0 0.0
        %5127 = vmatprep.subr.mxu0 0.0
        %5128 = vmatpush1.msra.mxu0 0.0
        %5129 = vmatprep.subr.mxu0 0.0
        %5130 = vmatpush1.msra.mxu0 0.0
        %5131 = vmatprep.subr.mxu0 0.0
        %5132 = vmatpush1.msra.mxu0 0.0
        %5133 = vmatprep.mubr.f32.mxu0 %v5049
        %5134 = vmatmul.mubr.f32.gmra.mrb[0].mxu0 %v4977
        %v5135 = vpop.f32.mrb[0].mxu0
        %v5136 = vadd.f32 0.0, %v5135
        %v5137 = vpop.f32.mrb[0].mxu0
        %v5138 = vadd.f32 0.0, %v5137
        %5139 = vmatprep.mubr.f32.mxu0 %v5052
        %5140 = vmatmul.mubr.f32.gmra.mrb[0].mxu0 %v4979
        %v5141 = vpop.f32.mrb[0].mxu0
        %v5142 = vadd.f32 0.0, %v5141
        %v5143 = vpop.f32.mrb[0].mxu0
        %v5144 = vadd.f32 0.0, %v5143
        %5145 = vmatprep.mubr.f32.mxu0 %v5055
        %5146 = vmatmul.mubr.f32.gmra.mrb[0].mxu0 %v4981
        %v5147 = vpop.f32.mrb[0].mxu0
        %v5148 = vadd.f32 0.0, %v5147
        %v5149 = vpop.f32.mrb[0].mxu0
        %v5150 = vadd.f32 0.0, %v5149
        %5151 = vmatprep.mubr.f32.mxu0 %v5058
        %5152 = vmatmul.mubr.f32.gmra.mrb[0].mxu0 %v4983
        %v5153 = vpop.f32.mrb[0].mxu0
        %v5154 = vadd.f32 0.0, %v5153
        %v5155 = vpop.f32.mrb[0].mxu0
        %v5156 = vadd.f32 0.0, %v5155
        %5157 = vmatprep.mubr.f32.mxu0 %v5061
        %5158 = vmatmul.mubr.f32.gmra.mrb[0].mxu0 %v4985
        %v5159 = vpop.f32.mrb[0].mxu0
        %v5160 = vadd.f32 0.0, %v5159
        %v5161 = vpop.f32.mrb[0].mxu0
        %v5162 = vadd.f32 0.0, %v5161
        %5163 = vmatprep.mubr.f32.mxu0 %v5064
        %5164 = vmatmul.mubr.f32.gmra.mrb[0].mxu0 %v4987
        %v5165 = vpop.f32.mrb[0].mxu0
        %v5166 = vadd.f32 0.0, %v5165
        %v5167 = vpop.f32.mrb[0].mxu0
        %v5168 = vadd.f32 0.0, %v5167
        %5169 = vmatprep.mubr.f32.mxu0 %v5067
        %5170 = vmatmul.mubr.f32.gmra.mrb[0].mxu0 %v4989
        %v5171 = vpop.f32.mrb[0].mxu0
        %v5172 = vadd.f32 0.0, %v5171
        %v5173 = vpop.f32.mrb[0].mxu0
        %v5174 = vadd.f32 0.0, %v5173
        %5175 = vdwg.mxu0
        %v5176 = vadd.f32 %v4937, %v5136
        %v5177 = vadd.f32 %v4939, %v5138
        %v5178 = vadd.f32 %v4943, %v5142
        %v5179 = vadd.f32 %v4945, %v5144
        %v5180 = vadd.f32 %v4949, %v5148
        %v5181 = vadd.f32 %v4951, %v5150
        %v5182 = vadd.f32 %v4955, %v5154
        %v5183 = vadd.f32 %v4957, %v5156
        %v5184 = vadd.f32 %v4961, %v5160
        %v5185 = vadd.f32 %v4963, %v5162
        %v5186 = vadd.f32 %v4967, %v5166
        %v5187 = vadd.f32 %v4969, %v5168
        %v5188 = vadd.f32 %v4973, %v5172
        %v5189 = vadd.f32 %v4975, %v5174
        %v5190 = vld [vmem:[%s4541] sm:$0xff]
        %v5191 = vld [vmem:[%s4541 + $0x8] sm:$0xff]
        %v5192 = vld [vmem:[%s4541 + $0x10] sm:$0xff]
        %v5193 = vld [vmem:[%s4541 + $0x18] sm:$0xff]
        %v5194 = vld [vmem:[%s4541 + $0x20] sm:$0xff]
        %v5195 = vld [vmem:[%s4541 + $0x28] sm:$0xff]
        %v5196 = vld [vmem:[%s4541 + $0x30] sm:$0xff]
        %v5197 = vld [vmem:[%s4541 + $0x38] sm:$0xff]
        %v5198 = vld [vmem:[%s4541 + $0x40] sm:$0xff]
        %v5199 = vld [vmem:[%s4541 + $0x48] sm:$0xff]
        %v5200 = vld [vmem:[%s4541 + $0x50] sm:$0xff]
        %v5201 = vld [vmem:[%s4541 + $0x58] sm:$0xff]
        %v5202 = vld [vmem:[%s4541 + $0x60] sm:$0xff]
        %v5203 = vld [vmem:[%s4541 + $0x68] sm:$0xff]
        %s5204 = scalar_lea.vmem %s3, 2688
        %v5205 = vld [vmem:[%s5204] sm:$0xff]
        %v5206 = vld [vmem:[%s5204 + $0x8] sm:$0xff]
        %v5207 = vld [vmem:[%s5204 + $0x10] sm:$0xff]
        %v5208 = vld [vmem:[%s5204 + $0x18] sm:$0xff]
        %v5209 = vld [vmem:[%s5204 + $0x20] sm:$0xff]
        %v5210 = vld [vmem:[%s5204 + $0x28] sm:$0xff]
        %v5211 = vld [vmem:[%s5204 + $0x30] sm:$0xff]
        %v5212 = vld [vmem:[%s5204 + $0x38] sm:$0xff]
        %v5213 = vld [vmem:[%s5204 + $0x40] sm:$0xff]
        %v5214 = vld [vmem:[%s5204 + $0x48] sm:$0xff]
        %v5215 = vld [vmem:[%s5204 + $0x50] sm:$0xff]
        %v5216 = vld [vmem:[%s5204 + $0x58] sm:$0xff]
        %v5217 = vld [vmem:[%s5204 + $0x60] sm:$0xff]
        %v5218 = vld [vmem:[%s5204 + $0x68] sm:$0xff]
        %v5219 = vld [vmem:[%s5204 + $0x70] sm:$0xff]
        %v5220 = vld [vmem:[%s5204 + $0x78] sm:$0xff]
        %v5221 = vld [vmem:[%s5204 + $0x80] sm:$0xff]
        %v5222 = vld [vmem:[%s5204 + $0x88] sm:$0xff]
        %v5223 = vld [vmem:[%s5204 + $0x90] sm:$0xff]
        %v5224 = vld [vmem:[%s5204 + $0x98] sm:$0xff]
        %v5225 = vld [vmem:[%s5204 + $0xa0] sm:$0xff]
        %v5226 = vld [vmem:[%s5204 + $0xa8] sm:$0xff]
        %v5227 = vld [vmem:[%s5204 + $0xb0] sm:$0xff]
        %v5228 = vld [vmem:[%s5204 + $0xb8] sm:$0xff]
        %v5229 = vld [vmem:[%s5204 + $0xc0] sm:$0xff]
        %v5230 = vld [vmem:[%s5204 + $0xc8] sm:$0xff]
        %v5231 = vld [vmem:[%s5204 + $0xd0] sm:$0xff]
        %v5232 = vld [vmem:[%s5204 + $0xd8] sm:$0xff]
        %v5233 = vld [vmem:[%s5204 + $0xe0] sm:$0xff]
        %v5234 = vld [vmem:[%s5204 + $0xe8] sm:$0xff]
        %v5235 = vld [vmem:[%s5204 + $0xf0] sm:$0xff]
        %v5236 = vld [vmem:[%s5204 + $0xf8] sm:$0xff]
        %v5237 = vld [vmem:[%s5204 + $0x100] sm:$0xff]
        %v5238 = vld [vmem:[%s5204 + $0x108] sm:$0xff]
        %v5239 = vld [vmem:[%s5204 + $0x110] sm:$0xff]
        %v5240 = vld [vmem:[%s5204 + $0x118] sm:$0xff]
        %v5241 = vld [vmem:[%s5204 + $0x120] sm:$0xff]
        %v5242 = vld [vmem:[%s5204 + $0x128] sm:$0xff]
        %v5243 = vld [vmem:[%s5204 + $0x130] sm:$0xff]
        %v5244 = vld [vmem:[%s5204 + $0x138] sm:$0xff]
        %v5245 = vld [vmem:[%s5204 + $0x140] sm:$0xff]
        %v5246 = vld [vmem:[%s5204 + $0x148] sm:$0xff]
        %v5247 = vld [vmem:[%s5204 + $0x150] sm:$0xff]
        %v5248 = vld [vmem:[%s5204 + $0x158] sm:$0xff]
        %v5249 = vld [vmem:[%s5204 + $0x160] sm:$0xff]
        %v5250 = vld [vmem:[%s5204 + $0x168] sm:$0xff]
        %v5251 = vld [vmem:[%s5204 + $0x170] sm:$0xff]
        %v5252 = vld [vmem:[%s5204 + $0x178] sm:$0xff]
        %v5253 = vld [vmem:[%s5204 + $0x180] sm:$0xff]
        %v5254 = vld [vmem:[%s5204 + $0x188] sm:$0xff]
        %v5255 = vld [vmem:[%s5204 + $0x190] sm:$0xff]
        %v5256 = vld [vmem:[%s5204 + $0x198] sm:$0xff]
        %v5257 = vld [vmem:[%s5204 + $0x1a0] sm:$0xff]
        %v5258 = vld [vmem:[%s5204 + $0x1a8] sm:$0xff]
        %v5259 = vld [vmem:[%s5204 + $0x1b0] sm:$0xff]
        %v5260 = vld [vmem:[%s5204 + $0x1b8] sm:$0xff]
        %v5262 = vsel %vm487, %v5191, 0
        %v5265 = vsel %vm487, %v5193, 0
        %v5268 = vsel %vm487, %v5195, 0
        %v5271 = vsel %vm487, %v5197, 0
        %v5274 = vsel %vm487, %v5199, 0
        %v5277 = vsel %vm487, %v5201, 0
        %v5280 = vsel %vm487, %v5203, 0
        %5282 = vmatprep.subr.mxu0 %v5206
        %5283 = vmatpush1.msra.mxu0 %v5205
        %5284 = vmatprep.subr.mxu0 %v5208
        %5285 = vmatpush1.msra.mxu0 %v5207
        %5286 = vmatprep.subr.mxu0 %v5210
        %5287 = vmatpush1.msra.mxu0 %v5209
        %5288 = vmatprep.subr.mxu0 %v5212
        %5289 = vmatpush1.msra.mxu0 %v5211
        %5290 = vmatprep.subr.mxu0 %v5214
        %5291 = vmatpush1.msra.mxu0 %v5213
        %5292 = vmatprep.subr.mxu0 %v5216
        %5293 = vmatpush1.msra.mxu0 %v5215
        %5294 = vmatprep.subr.mxu0 %v5218
        %5295 = vmatpush1.msra.mxu0 %v5217
        %5296 = vmatprep.subr.mxu0 %v5220
        %5297 = vmatpush1.msra.mxu0 %v5219
        %5298 = vmatprep.subr.mxu0 %v5222
        %5299 = vmatpush1.msra.mxu0 %v5221
        %5300 = vmatprep.subr.mxu0 %v5224
        %5301 = vmatpush1.msra.mxu0 %v5223
        %5302 = vmatprep.subr.mxu0 %v5226
        %5303 = vmatpush1.msra.mxu0 %v5225
        %5304 = vmatprep.subr.mxu0 %v5228
        %5305 = vmatpush1.msra.mxu0 %v5227
        %5306 = vmatprep.subr.mxu0 %v5230
        %5307 = vmatpush1.msra.mxu0 %v5229
        %5308 = vmatprep.subr.mxu0 %v5232
        %5309 = vmatpush1.msra.mxu0 %v5231
        %5310 = vmatprep.subr.mxu0 %v5234
        %5311 = vmatpush1.msra.mxu0 %v5233
        %5312 = vmatprep.subr.mxu0 %v5236
        %5313 = vmatpush1.msra.mxu0 %v5235
        %5314 = vmatprep.subr.mxu0 %v5238
        %5315 = vmatpush1.msra.mxu0 %v5237
        %5316 = vmatprep.subr.mxu0 %v5240
        %5317 = vmatpush1.msra.mxu0 %v5239
        %5318 = vmatprep.subr.mxu0 %v5242
        %5319 = vmatpush1.msra.mxu0 %v5241
        %5320 = vmatprep.subr.mxu0 %v5244
        %5321 = vmatpush1.msra.mxu0 %v5243
        %5322 = vmatprep.subr.mxu0 %v5246
        %5323 = vmatpush1.msra.mxu0 %v5245
        %5324 = vmatprep.subr.mxu0 %v5248
        %5325 = vmatpush1.msra.mxu0 %v5247
        %5326 = vmatprep.subr.mxu0 %v5250
        %5327 = vmatpush1.msra.mxu0 %v5249
        %5328 = vmatprep.subr.mxu0 %v5252
        %5329 = vmatpush1.msra.mxu0 %v5251
        %5330 = vmatprep.subr.mxu0 %v5254
        %5331 = vmatpush1.msra.mxu0 %v5253
        %5332 = vmatprep.subr.mxu0 %v5256
        %5333 = vmatpush1.msra.mxu0 %v5255
        %5334 = vmatprep.subr.mxu0 %v5258
        %5335 = vmatpush1.msra.mxu0 %v5257
        %5336 = vmatprep.subr.mxu0 %v5260
        %5337 = vmatpush1.msra.mxu0 %v5259
        %5338 = vmatprep.subr.mxu0 0.0
        %5339 = vmatpush1.msra.mxu0 0.0
        %5340 = vmatprep.subr.mxu0 0.0
        %5341 = vmatpush1.msra.mxu0 0.0
        %5342 = vmatprep.subr.mxu0 0.0
        %5343 = vmatpush1.msra.mxu0 0.0
        %5344 = vmatprep.subr.mxu0 0.0
        %5345 = vmatpush1.msra.mxu0 0.0
        %5346 = vmatprep.mubr.f32.mxu0 %v5262
        %5347 = vmatmul.mubr.f32.gmra.mrb[0].mxu0 %v5190
        %v5348 = vpop.f32.mrb[0].mxu0
        %v5349 = vadd.f32 0.0, %v5348
        %v5350 = vpop.f32.mrb[0].mxu0
        %v5351 = vadd.f32 0.0, %v5350
        %5352 = vmatprep.mubr.f32.mxu0 %v5265
        %5353 = vmatmul.mubr.f32.gmra.mrb[0].mxu0 %v5192
        %v5354 = vpop.f32.mrb[0].mxu0
        %v5355 = vadd.f32 0.0, %v5354
        %v5356 = vpop.f32.mrb[0].mxu0
        %v5357 = vadd.f32 0.0, %v5356
        %5358 = vmatprep.mubr.f32.mxu0 %v5268
        %5359 = vmatmul.mubr.f32.gmra.mrb[0].mxu0 %v5194
        %v5360 = vpop.f32.mrb[0].mxu0
        %v5361 = vadd.f32 0.0, %v5360
        %v5362 = vpop.f32.mrb[0].mxu0
        %v5363 = vadd.f32 0.0, %v5362
        %5364 = vmatprep.mubr.f32.mxu0 %v5271
        %5365 = vmatmul.mubr.f32.gmra.mrb[0].mxu0 %v5196
        %v5366 = vpop.f32.mrb[0].mxu0
        %v5367 = vadd.f32 0.0, %v5366
        %v5368 = vpop.f32.mrb[0].mxu0
        %v5369 = vadd.f32 0.0, %v5368
        %5370 = vmatprep.mubr.f32.mxu0 %v5274
        %5371 = vmatmul.mubr.f32.gmra.mrb[0].mxu0 %v5198
        %v5372 = vpop.f32.mrb[0].mxu0
        %v5373 = vadd.f32 0.0, %v5372
        %v5374 = vpop.f32.mrb[0].mxu0
        %v5375 = vadd.f32 0.0, %v5374
        %5376 = vmatprep.mubr.f32.mxu0 %v5277
        %5377 = vmatmul.mubr.f32.gmra.mrb[0].mxu0 %v5200
        %v5378 = vpop.f32.mrb[0].mxu0
        %v5379 = vadd.f32 0.0, %v5378
        %v5380 = vpop.f32.mrb[0].mxu0
        %v5381 = vadd.f32 0.0, %v5380
        %5382 = vmatprep.mubr.f32.mxu0 %v5280
        %5383 = vmatmul.mubr.f32.gmra.mrb[0].mxu0 %v5202
        %v5384 = vpop.f32.mrb[0].mxu0
        %v5385 = vadd.f32 0.0, %v5384
        %v5386 = vpop.f32.mrb[0].mxu0
        %v5387 = vadd.f32 0.0, %v5386
        %5388 = vdwg.mxu0
        %v5389 = vadd.f32 %v5176, %v5349
        %v5390 = vadd.f32 %v5177, %v5351
        %v5391 = vadd.f32 %v5178, %v5355
        %v5392 = vadd.f32 %v5179, %v5357
        %v5393 = vadd.f32 %v5180, %v5361
        %v5394 = vadd.f32 %v5181, %v5363
        %v5395 = vadd.f32 %v5182, %v5367
        %v5396 = vadd.f32 %v5183, %v5369
        %v5397 = vadd.f32 %v5184, %v5373
        %v5398 = vadd.f32 %v5185, %v5375
        %v5399 = vadd.f32 %v5186, %v5379
        %v5400 = vadd.f32 %v5187, %v5381
        %v5401 = vadd.f32 %v5188, %v5385
        %v5402 = vadd.f32 %v5189, %v5387
        %v5403 = vld [vmem:[%s4544] sm:$0xff]
        %v5404 = vld [vmem:[%s4544 + $0x8] sm:$0xff]
        %v5405 = vld [vmem:[%s4544 + $0x10] sm:$0xff]
        %v5406 = vld [vmem:[%s4544 + $0x18] sm:$0xff]
        %v5407 = vld [vmem:[%s4544 + $0x20] sm:$0xff]
        %v5408 = vld [vmem:[%s4544 + $0x28] sm:$0xff]
        %v5409 = vld [vmem:[%s4544 + $0x30] sm:$0xff]
        %v5410 = vld [vmem:[%s4544 + $0x38] sm:$0xff]
        %v5411 = vld [vmem:[%s4544 + $0x40] sm:$0xff]
        %v5412 = vld [vmem:[%s4544 + $0x48] sm:$0xff]
        %v5413 = vld [vmem:[%s4544 + $0x50] sm:$0xff]
        %v5414 = vld [vmem:[%s4544 + $0x58] sm:$0xff]
        %v5415 = vld [vmem:[%s4544 + $0x60] sm:$0xff]
        %v5416 = vld [vmem:[%s4544 + $0x68] sm:$0xff]
        %s5417 = scalar_lea.vmem %s3, 3584
        %v5418 = vld [vmem:[%s5417] sm:$0xff]
        %v5419 = vld [vmem:[%s5417 + $0x8] sm:$0xff]
        %v5420 = vld [vmem:[%s5417 + $0x10] sm:$0xff]
        %v5421 = vld [vmem:[%s5417 + $0x18] sm:$0xff]
        %v5422 = vld [vmem:[%s5417 + $0x20] sm:$0xff]
        %v5423 = vld [vmem:[%s5417 + $0x28] sm:$0xff]
        %v5424 = vld [vmem:[%s5417 + $0x30] sm:$0xff]
        %v5425 = vld [vmem:[%s5417 + $0x38] sm:$0xff]
        %v5426 = vld [vmem:[%s5417 + $0x40] sm:$0xff]
        %v5427 = vld [vmem:[%s5417 + $0x48] sm:$0xff]
        %v5428 = vld [vmem:[%s5417 + $0x50] sm:$0xff]
        %v5429 = vld [vmem:[%s5417 + $0x58] sm:$0xff]
        %v5430 = vld [vmem:[%s5417 + $0x60] sm:$0xff]
        %v5431 = vld [vmem:[%s5417 + $0x68] sm:$0xff]
        %v5432 = vld [vmem:[%s5417 + $0x70] sm:$0xff]
        %v5433 = vld [vmem:[%s5417 + $0x78] sm:$0xff]
        %v5434 = vld [vmem:[%s5417 + $0x80] sm:$0xff]
        %v5435 = vld [vmem:[%s5417 + $0x88] sm:$0xff]
        %v5436 = vld [vmem:[%s5417 + $0x90] sm:$0xff]
        %v5437 = vld [vmem:[%s5417 + $0x98] sm:$0xff]
        %v5438 = vld [vmem:[%s5417 + $0xa0] sm:$0xff]
        %v5439 = vld [vmem:[%s5417 + $0xa8] sm:$0xff]
        %v5440 = vld [vmem:[%s5417 + $0xb0] sm:$0xff]
        %v5441 = vld [vmem:[%s5417 + $0xb8] sm:$0xff]
        %v5442 = vld [vmem:[%s5417 + $0xc0] sm:$0xff]
        %v5443 = vld [vmem:[%s5417 + $0xc8] sm:$0xff]
        %v5444 = vld [vmem:[%s5417 + $0xd0] sm:$0xff]
        %v5445 = vld [vmem:[%s5417 + $0xd8] sm:$0xff]
        %v5446 = vld [vmem:[%s5417 + $0xe0] sm:$0xff]
        %v5447 = vld [vmem:[%s5417 + $0xe8] sm:$0xff]
        %v5448 = vld [vmem:[%s5417 + $0xf0] sm:$0xff]
        %v5449 = vld [vmem:[%s5417 + $0xf8] sm:$0xff]
        %v5450 = vld [vmem:[%s5417 + $0x100] sm:$0xff]
        %v5451 = vld [vmem:[%s5417 + $0x108] sm:$0xff]
        %v5452 = vld [vmem:[%s5417 + $0x110] sm:$0xff]
        %v5453 = vld [vmem:[%s5417 + $0x118] sm:$0xff]
        %v5454 = vld [vmem:[%s5417 + $0x120] sm:$0xff]
        %v5455 = vld [vmem:[%s5417 + $0x128] sm:$0xff]
        %v5456 = vld [vmem:[%s5417 + $0x130] sm:$0xff]
        %v5457 = vld [vmem:[%s5417 + $0x138] sm:$0xff]
        %v5458 = vld [vmem:[%s5417 + $0x140] sm:$0xff]
        %v5459 = vld [vmem:[%s5417 + $0x148] sm:$0xff]
        %v5460 = vld [vmem:[%s5417 + $0x150] sm:$0xff]
        %v5461 = vld [vmem:[%s5417 + $0x158] sm:$0xff]
        %v5462 = vld [vmem:[%s5417 + $0x160] sm:$0xff]
        %v5463 = vld [vmem:[%s5417 + $0x168] sm:$0xff]
        %v5464 = vld [vmem:[%s5417 + $0x170] sm:$0xff]
        %v5465 = vld [vmem:[%s5417 + $0x178] sm:$0xff]
        %v5466 = vld [vmem:[%s5417 + $0x180] sm:$0xff]
        %v5467 = vld [vmem:[%s5417 + $0x188] sm:$0xff]
        %v5468 = vld [vmem:[%s5417 + $0x190] sm:$0xff]
        %v5469 = vld [vmem:[%s5417 + $0x198] sm:$0xff]
        %v5470 = vld [vmem:[%s5417 + $0x1a0] sm:$0xff]
        %v5471 = vld [vmem:[%s5417 + $0x1a8] sm:$0xff]
        %v5472 = vld [vmem:[%s5417 + $0x1b0] sm:$0xff]
        %v5473 = vld [vmem:[%s5417 + $0x1b8] sm:$0xff]
        %v5475 = vsel %vm487, %v5404, 0
        %v5478 = vsel %vm487, %v5406, 0
        %v5481 = vsel %vm487, %v5408, 0
        %v5484 = vsel %vm487, %v5410, 0
        %v5487 = vsel %vm487, %v5412, 0
        %v5490 = vsel %vm487, %v5414, 0
        %v5493 = vsel %vm487, %v5416, 0
        %5495 = vmatprep.subr.mxu0 %v5419
        %5496 = vmatpush1.msra.mxu0 %v5418
        %5497 = vmatprep.subr.mxu0 %v5421
        %5498 = vmatpush1.msra.mxu0 %v5420
        %5499 = vmatprep.subr.mxu0 %v5423
        %5500 = vmatpush1.msra.mxu0 %v5422
        %5501 = vmatprep.subr.mxu0 %v5425
        %5502 = vmatpush1.msra.mxu0 %v5424
        %5503 = vmatprep.subr.mxu0 %v5427
        %5504 = vmatpush1.msra.mxu0 %v5426
        %5505 = vmatprep.subr.mxu0 %v5429
        %5506 = vmatpush1.msra.mxu0 %v5428
        %5507 = vmatprep.subr.mxu0 %v5431
        %5508 = vmatpush1.msra.mxu0 %v5430
        %5509 = vmatprep.subr.mxu0 %v5433
        %5510 = vmatpush1.msra.mxu0 %v5432
        %5511 = vmatprep.subr.mxu0 %v5435
        %5512 = vmatpush1.msra.mxu0 %v5434
        %5513 = vmatprep.subr.mxu0 %v5437
        %5514 = vmatpush1.msra.mxu0 %v5436
        %5515 = vmatprep.subr.mxu0 %v5439
        %5516 = vmatpush1.msra.mxu0 %v5438
        %5517 = vmatprep.subr.mxu0 %v5441
        %5518 = vmatpush1.msra.mxu0 %v5440
        %5519 = vmatprep.subr.mxu0 %v5443
        %5520 = vmatpush1.msra.mxu0 %v5442
        %5521 = vmatprep.subr.mxu0 %v5445
        %5522 = vmatpush1.msra.mxu0 %v5444
        %5523 = vmatprep.subr.mxu0 %v5447
        %5524 = vmatpush1.msra.mxu0 %v5446
        %5525 = vmatprep.subr.mxu0 %v5449
        %5526 = vmatpush1.msra.mxu0 %v5448
        %5527 = vmatprep.subr.mxu0 %v5451
        %5528 = vmatpush1.msra.mxu0 %v5450
        %5529 = vmatprep.subr.mxu0 %v5453
        %5530 = vmatpush1.msra.mxu0 %v5452
        %5531 = vmatprep.subr.mxu0 %v5455
        %5532 = vmatpush1.msra.mxu0 %v5454
        %5533 = vmatprep.subr.mxu0 %v5457
        %5534 = vmatpush1.msra.mxu0 %v5456
        %5535 = vmatprep.subr.mxu0 %v5459
        %5536 = vmatpush1.msra.mxu0 %v5458
        %5537 = vmatprep.subr.mxu0 %v5461
        %5538 = vmatpush1.msra.mxu0 %v5460
        %5539 = vmatprep.subr.mxu0 %v5463
        %5540 = vmatpush1.msra.mxu0 %v5462
        %5541 = vmatprep.subr.mxu0 %v5465
        %5542 = vmatpush1.msra.mxu0 %v5464
        %5543 = vmatprep.subr.mxu0 %v5467
        %5544 = vmatpush1.msra.mxu0 %v5466
        %5545 = vmatprep.subr.mxu0 %v5469
        %5546 = vmatpush1.msra.mxu0 %v5468
        %5547 = vmatprep.subr.mxu0 %v5471
        %5548 = vmatpush1.msra.mxu0 %v5470
        %5549 = vmatprep.subr.mxu0 %v5473
        %5550 = vmatpush1.msra.mxu0 %v5472
        %5551 = vmatprep.subr.mxu0 0.0
        %5552 = vmatpush1.msra.mxu0 0.0
        %5553 = vmatprep.subr.mxu0 0.0
        %5554 = vmatpush1.msra.mxu0 0.0
        %5555 = vmatprep.subr.mxu0 0.0
        %5556 = vmatpush1.msra.mxu0 0.0
        %5557 = vmatprep.subr.mxu0 0.0
        %5558 = vmatpush1.msra.mxu0 0.0
        %5559 = vmatprep.mubr.f32.mxu0 %v5475
        %5560 = vmatmul.mubr.f32.gmra.mrb[0].mxu0 %v5403
        %v5561 = vpop.f32.mrb[0].mxu0
        %v5562 = vadd.f32 0.0, %v5561
        %v5563 = vpop.f32.mrb[0].mxu0
        %v5564 = vadd.f32 0.0, %v5563
        %5565 = vmatprep.mubr.f32.mxu0 %v5478
        %5566 = vmatmul.mubr.f32.gmra.mrb[0].mxu0 %v5405
        %v5567 = vpop.f32.mrb[0].mxu0
        %v5568 = vadd.f32 0.0, %v5567
        %v5569 = vpop.f32.mrb[0].mxu0
        %v5570 = vadd.f32 0.0, %v5569
        %5571 = vmatprep.mubr.f32.mxu0 %v5481
        %5572 = vmatmul.mubr.f32.gmra.mrb[0].mxu0 %v5407
        %v5573 = vpop.f32.mrb[0].mxu0
        %v5574 = vadd.f32 0.0, %v5573
        %v5575 = vpop.f32.mrb[0].mxu0
        %v5576 = vadd.f32 0.0, %v5575
        %5577 = vmatprep.mubr.f32.mxu0 %v5484
        %5578 = vmatmul.mubr.f32.gmra.mrb[0].mxu0 %v5409
        %v5579 = vpop.f32.mrb[0].mxu0
        %v5580 = vadd.f32 0.0, %v5579
        %v5581 = vpop.f32.mrb[0].mxu0
        %v5582 = vadd.f32 0.0, %v5581
        %5583 = vmatprep.mubr.f32.mxu0 %v5487
        %5584 = vmatmul.mubr.f32.gmra.mrb[0].mxu0 %v5411
        %v5585 = vpop.f32.mrb[0].mxu0
        %v5586 = vadd.f32 0.0, %v5585
        %v5587 = vpop.f32.mrb[0].mxu0
        %v5588 = vadd.f32 0.0, %v5587
        %5589 = vmatprep.mubr.f32.mxu0 %v5490
        %5590 = vmatmul.mubr.f32.gmra.mrb[0].mxu0 %v5413
        %v5591 = vpop.f32.mrb[0].mxu0
        %v5592 = vadd.f32 0.0, %v5591
        %v5593 = vpop.f32.mrb[0].mxu0
        %v5594 = vadd.f32 0.0, %v5593
        %5595 = vmatprep.mubr.f32.mxu0 %v5493
        %5596 = vmatmul.mubr.f32.gmra.mrb[0].mxu0 %v5415
        %v5597 = vpop.f32.mrb[0].mxu0
        %v5598 = vadd.f32 0.0, %v5597
        %v5599 = vpop.f32.mrb[0].mxu0
        %v5600 = vadd.f32 0.0, %v5599
        %5601 = vdwg.mxu0
        %v5602 = vadd.f32 %v5389, %v5562
        %v5603 = vadd.f32 %v5390, %v5564
        %v5604 = vadd.f32 %v5391, %v5568
        %v5605 = vadd.f32 %v5392, %v5570
        %v5606 = vadd.f32 %v5393, %v5574
        %v5607 = vadd.f32 %v5394, %v5576
        %v5608 = vadd.f32 %v5395, %v5580
        %v5609 = vadd.f32 %v5396, %v5582
        %v5610 = vadd.f32 %v5397, %v5586
        %v5611 = vadd.f32 %v5398, %v5588
        %v5612 = vadd.f32 %v5399, %v5592
        %v5613 = vadd.f32 %v5400, %v5594
        %v5614 = vadd.f32 %v5401, %v5598
        %v5615 = vadd.f32 %v5402, %v5600
        %s5616 = scalar_lea.vmem %s3, 448
        %v5617 = vld [vmem:[%s5616] sm:$0xff]
        %v5618 = vld [vmem:[%s5616 + $0x8] sm:$0xff]
        %v5619 = vld [vmem:[%s5616 + $0x10] sm:$0xff]
        %v5620 = vld [vmem:[%s5616 + $0x18] sm:$0xff]
        %v5621 = vld [vmem:[%s5616 + $0x20] sm:$0xff]
        %v5622 = vld [vmem:[%s5616 + $0x28] sm:$0xff]
        %v5623 = vld [vmem:[%s5616 + $0x30] sm:$0xff]
        %v5624 = vld [vmem:[%s5616 + $0x38] sm:$0xff]
        %v5625 = vld [vmem:[%s5616 + $0x40] sm:$0xff]
        %v5626 = vld [vmem:[%s5616 + $0x48] sm:$0xff]
        %v5627 = vld [vmem:[%s5616 + $0x50] sm:$0xff]
        %v5628 = vld [vmem:[%s5616 + $0x58] sm:$0xff]
        %v5629 = vld [vmem:[%s5616 + $0x60] sm:$0xff]
        %v5630 = vld [vmem:[%s5616 + $0x68] sm:$0xff]
        %v5631 = vld [vmem:[%s5616 + $0x70] sm:$0xff]
        %v5632 = vld [vmem:[%s5616 + $0x78] sm:$0xff]
        %v5633 = vld [vmem:[%s5616 + $0x80] sm:$0xff]
        %v5634 = vld [vmem:[%s5616 + $0x88] sm:$0xff]
        %v5635 = vld [vmem:[%s5616 + $0x90] sm:$0xff]
        %v5636 = vld [vmem:[%s5616 + $0x98] sm:$0xff]
        %v5637 = vld [vmem:[%s5616 + $0xa0] sm:$0xff]
        %v5638 = vld [vmem:[%s5616 + $0xa8] sm:$0xff]
        %v5639 = vld [vmem:[%s5616 + $0xb0] sm:$0xff]
        %v5640 = vld [vmem:[%s5616 + $0xb8] sm:$0xff]
        %v5641 = vld [vmem:[%s5616 + $0xc0] sm:$0xff]
        %v5642 = vld [vmem:[%s5616 + $0xc8] sm:$0xff]
        %v5643 = vld [vmem:[%s5616 + $0xd0] sm:$0xff]
        %v5644 = vld [vmem:[%s5616 + $0xd8] sm:$0xff]
        %v5645 = vld [vmem:[%s5616 + $0xe0] sm:$0xff]
        %v5646 = vld [vmem:[%s5616 + $0xe8] sm:$0xff]
        %v5647 = vld [vmem:[%s5616 + $0xf0] sm:$0xff]
        %v5648 = vld [vmem:[%s5616 + $0xf8] sm:$0xff]
        %v5649 = vld [vmem:[%s5616 + $0x100] sm:$0xff]
        %v5650 = vld [vmem:[%s5616 + $0x108] sm:$0xff]
        %v5651 = vld [vmem:[%s5616 + $0x110] sm:$0xff]
        %v5652 = vld [vmem:[%s5616 + $0x118] sm:$0xff]
        %v5653 = vld [vmem:[%s5616 + $0x120] sm:$0xff]
        %v5654 = vld [vmem:[%s5616 + $0x128] sm:$0xff]
        %v5655 = vld [vmem:[%s5616 + $0x130] sm:$0xff]
        %v5656 = vld [vmem:[%s5616 + $0x138] sm:$0xff]
        %v5657 = vld [vmem:[%s5616 + $0x140] sm:$0xff]
        %v5658 = vld [vmem:[%s5616 + $0x148] sm:$0xff]
        %v5659 = vld [vmem:[%s5616 + $0x150] sm:$0xff]
        %v5660 = vld [vmem:[%s5616 + $0x158] sm:$0xff]
        %v5661 = vld [vmem:[%s5616 + $0x160] sm:$0xff]
        %v5662 = vld [vmem:[%s5616 + $0x168] sm:$0xff]
        %v5663 = vld [vmem:[%s5616 + $0x170] sm:$0xff]
        %v5664 = vld [vmem:[%s5616 + $0x178] sm:$0xff]
        %v5665 = vld [vmem:[%s5616 + $0x180] sm:$0xff]
        %v5666 = vld [vmem:[%s5616 + $0x188] sm:$0xff]
        %v5667 = vld [vmem:[%s5616 + $0x190] sm:$0xff]
        %v5668 = vld [vmem:[%s5616 + $0x198] sm:$0xff]
        %v5669 = vld [vmem:[%s5616 + $0x1a0] sm:$0xff]
        %v5670 = vld [vmem:[%s5616 + $0x1a8] sm:$0xff]
        %v5671 = vld [vmem:[%s5616 + $0x1b0] sm:$0xff]
        %v5672 = vld [vmem:[%s5616 + $0x1b8] sm:$0xff]
        %s5673 = scalar_lea.vmem %s3, 1344
        %v5674 = vld [vmem:[%s5673] sm:$0xff]
        %v5675 = vld [vmem:[%s5673 + $0x8] sm:$0xff]
        %v5676 = vld [vmem:[%s5673 + $0x10] sm:$0xff]
        %v5677 = vld [vmem:[%s5673 + $0x18] sm:$0xff]
        %v5678 = vld [vmem:[%s5673 + $0x20] sm:$0xff]
        %v5679 = vld [vmem:[%s5673 + $0x28] sm:$0xff]
        %v5680 = vld [vmem:[%s5673 + $0x30] sm:$0xff]
        %v5681 = vld [vmem:[%s5673 + $0x38] sm:$0xff]
        %v5682 = vld [vmem:[%s5673 + $0x40] sm:$0xff]
        %v5683 = vld [vmem:[%s5673 + $0x48] sm:$0xff]
        %v5684 = vld [vmem:[%s5673 + $0x50] sm:$0xff]
        %v5685 = vld [vmem:[%s5673 + $0x58] sm:$0xff]
        %v5686 = vld [vmem:[%s5673 + $0x60] sm:$0xff]
        %v5687 = vld [vmem:[%s5673 + $0x68] sm:$0xff]
        %v5688 = vld [vmem:[%s5673 + $0x70] sm:$0xff]
        %v5689 = vld [vmem:[%s5673 + $0x78] sm:$0xff]
        %v5690 = vld [vmem:[%s5673 + $0x80] sm:$0xff]
        %v5691 = vld [vmem:[%s5673 + $0x88] sm:$0xff]
        %v5692 = vld [vmem:[%s5673 + $0x90] sm:$0xff]
        %v5693 = vld [vmem:[%s5673 + $0x98] sm:$0xff]
        %v5694 = vld [vmem:[%s5673 + $0xa0] sm:$0xff]
        %v5695 = vld [vmem:[%s5673 + $0xa8] sm:$0xff]
        %v5696 = vld [vmem:[%s5673 + $0xb0] sm:$0xff]
        %v5697 = vld [vmem:[%s5673 + $0xb8] sm:$0xff]
        %v5698 = vld [vmem:[%s5673 + $0xc0] sm:$0xff]
        %v5699 = vld [vmem:[%s5673 + $0xc8] sm:$0xff]
        %v5700 = vld [vmem:[%s5673 + $0xd0] sm:$0xff]
        %v5701 = vld [vmem:[%s5673 + $0xd8] sm:$0xff]
        %v5702 = vld [vmem:[%s5673 + $0xe0] sm:$0xff]
        %v5703 = vld [vmem:[%s5673 + $0xe8] sm:$0xff]
        %v5704 = vld [vmem:[%s5673 + $0xf0] sm:$0xff]
        %v5705 = vld [vmem:[%s5673 + $0xf8] sm:$0xff]
        %v5706 = vld [vmem:[%s5673 + $0x100] sm:$0xff]
        %v5707 = vld [vmem:[%s5673 + $0x108] sm:$0xff]
        %v5708 = vld [vmem:[%s5673 + $0x110] sm:$0xff]
        %v5709 = vld [vmem:[%s5673 + $0x118] sm:$0xff]
        %v5710 = vld [vmem:[%s5673 + $0x120] sm:$0xff]
        %v5711 = vld [vmem:[%s5673 + $0x128] sm:$0xff]
        %v5712 = vld [vmem:[%s5673 + $0x130] sm:$0xff]
        %v5713 = vld [vmem:[%s5673 + $0x138] sm:$0xff]
        %v5714 = vld [vmem:[%s5673 + $0x140] sm:$0xff]
        %v5715 = vld [vmem:[%s5673 + $0x148] sm:$0xff]
        %v5716 = vld [vmem:[%s5673 + $0x150] sm:$0xff]
        %v5717 = vld [vmem:[%s5673 + $0x158] sm:$0xff]
        %v5718 = vld [vmem:[%s5673 + $0x160] sm:$0xff]
        %v5719 = vld [vmem:[%s5673 + $0x168] sm:$0xff]
        %v5720 = vld [vmem:[%s5673 + $0x170] sm:$0xff]
        %v5721 = vld [vmem:[%s5673 + $0x178] sm:$0xff]
        %v5722 = vld [vmem:[%s5673 + $0x180] sm:$0xff]
        %v5723 = vld [vmem:[%s5673 + $0x188] sm:$0xff]
        %v5724 = vld [vmem:[%s5673 + $0x190] sm:$0xff]
        %v5725 = vld [vmem:[%s5673 + $0x198] sm:$0xff]
        %v5726 = vld [vmem:[%s5673 + $0x1a0] sm:$0xff]
        %v5727 = vld [vmem:[%s5673 + $0x1a8] sm:$0xff]
        %v5728 = vld [vmem:[%s5673 + $0x1b0] sm:$0xff]
        %v5729 = vld [vmem:[%s5673 + $0x1b8] sm:$0xff]
        %5730 = vmatprep.subr.mxu0 %v5675
        %5731 = vmatpush1.msra.mxu0 %v5674
        %5732 = vmatprep.subr.mxu0 %v5677
        %5733 = vmatpush1.msra.mxu0 %v5676
        %5734 = vmatprep.subr.mxu0 %v5679
        %5735 = vmatpush1.msra.mxu0 %v5678
        %5736 = vmatprep.subr.mxu0 %v5681
        %5737 = vmatpush1.msra.mxu0 %v5680
        %5738 = vmatprep.subr.mxu0 %v5683
        %5739 = vmatpush1.msra.mxu0 %v5682
        %5740 = vmatprep.subr.mxu0 %v5685
        %5741 = vmatpush1.msra.mxu0 %v5684
        %5742 = vmatprep.subr.mxu0 %v5687
        %5743 = vmatpush1.msra.mxu0 %v5686
        %5744 = vmatprep.subr.mxu0 %v5689
        %5745 = vmatpush1.msra.mxu0 %v5688
        %5746 = vmatprep.subr.mxu0 %v5691
        %5747 = vmatpush1.msra.mxu0 %v5690
        %5748 = vmatprep.subr.mxu0 %v5693
        %5749 = vmatpush1.msra.mxu0 %v5692
        %5750 = vmatprep.subr.mxu0 %v5695
        %5751 = vmatpush1.msra.mxu0 %v5694
        %5752 = vmatprep.subr.mxu0 %v5697
        %5753 = vmatpush1.msra.mxu0 %v5696
        %5754 = vmatprep.subr.mxu0 %v5699
        %5755 = vmatpush1.msra.mxu0 %v5698
        %5756 = vmatprep.subr.mxu0 %v5701
        %5757 = vmatpush1.msra.mxu0 %v5700
        %5758 = vmatprep.subr.mxu0 %v5703
        %5759 = vmatpush1.msra.mxu0 %v5702
        %5760 = vmatprep.subr.mxu0 %v5705
        %5761 = vmatpush1.msra.mxu0 %v5704
        %5762 = vmatprep.subr.mxu0 %v5707
        %5763 = vmatpush1.msra.mxu0 %v5706
        %5764 = vmatprep.subr.mxu0 %v5709
        %5765 = vmatpush1.msra.mxu0 %v5708
        %5766 = vmatprep.subr.mxu0 %v5711
        %5767 = vmatpush1.msra.mxu0 %v5710
        %5768 = vmatprep.subr.mxu0 %v5713
        %5769 = vmatpush1.msra.mxu0 %v5712
        %5770 = vmatprep.subr.mxu0 %v5715
        %5771 = vmatpush1.msra.mxu0 %v5714
        %5772 = vmatprep.subr.mxu0 %v5717
        %5773 = vmatpush1.msra.mxu0 %v5716
        %5774 = vmatprep.subr.mxu0 %v5719
        %5775 = vmatpush1.msra.mxu0 %v5718
        %5776 = vmatprep.subr.mxu0 %v5721
        %5777 = vmatpush1.msra.mxu0 %v5720
        %5778 = vmatprep.subr.mxu0 %v5723
        %5779 = vmatpush1.msra.mxu0 %v5722
        %5780 = vmatprep.subr.mxu0 %v5725
        %5781 = vmatpush1.msra.mxu0 %v5724
        %5782 = vmatprep.subr.mxu0 %v5727
        %5783 = vmatpush1.msra.mxu0 %v5726
        %5784 = vmatprep.subr.mxu0 %v5729
        %5785 = vmatpush1.msra.mxu0 %v5728
        %5786 = vmatprep.subr.mxu0 0.0
        %5787 = vmatpush1.msra.mxu0 0.0
        %5788 = vmatprep.subr.mxu0 0.0
        %5789 = vmatpush1.msra.mxu0 0.0
        %5790 = vmatprep.subr.mxu0 0.0
        %5791 = vmatpush1.msra.mxu0 0.0
        %5792 = vmatprep.subr.mxu0 0.0
        %5793 = vmatpush1.msra.mxu0 0.0
        %5794 = vmatprep.mubr.f32.mxu0 %v4722
        %5795 = vmatmul.mubr.f32.gmra.mrb[0].mxu0 %v4650
        %v5796 = vpop.f32.mrb[0].mxu0
        %v5797 = vadd.f32 0.0, %v5796
        %v5798 = vpop.f32.mrb[0].mxu0
        %v5799 = vadd.f32 0.0, %v5798
        %5800 = vmatprep.mubr.f32.mxu0 %v4725
        %5801 = vmatmul.mubr.f32.gmra.mrb[0].mxu0 %v4652
        %v5802 = vpop.f32.mrb[0].mxu0
        %v5803 = vadd.f32 0.0, %v5802
        %v5804 = vpop.f32.mrb[0].mxu0
        %v5805 = vadd.f32 0.0, %v5804
        %5806 = vmatprep.mubr.f32.mxu0 %v4728
        %5807 = vmatmul.mubr.f32.gmra.mrb[0].mxu0 %v4654
        %v5808 = vpop.f32.mrb[0].mxu0
        %v5809 = vadd.f32 0.0, %v5808
        %v5810 = vpop.f32.mrb[0].mxu0
        %v5811 = vadd.f32 0.0, %v5810
        %5812 = vmatprep.mubr.f32.mxu0 %v4731
        %5813 = vmatmul.mubr.f32.gmra.mrb[0].mxu0 %v4656
        %v5814 = vpop.f32.mrb[0].mxu0
        %v5815 = vadd.f32 0.0, %v5814
        %v5816 = vpop.f32.mrb[0].mxu0
        %v5817 = vadd.f32 0.0, %v5816
        %5818 = vmatprep.mubr.f32.mxu0 %v4734
        %5819 = vmatmul.mubr.f32.gmra.mrb[0].mxu0 %v4658
        %v5820 = vpop.f32.mrb[0].mxu0
        %v5821 = vadd.f32 0.0, %v5820
        %v5822 = vpop.f32.mrb[0].mxu0
        %v5823 = vadd.f32 0.0, %v5822
        %5824 = vmatprep.mubr.f32.mxu0 %v4737
        %5825 = vmatmul.mubr.f32.gmra.mrb[0].mxu0 %v4660
        %v5826 = vpop.f32.mrb[0].mxu0
        %v5827 = vadd.f32 0.0, %v5826
        %v5828 = vpop.f32.mrb[0].mxu0
        %v5829 = vadd.f32 0.0, %v5828
        %5830 = vmatprep.mubr.f32.mxu0 %v4740
        %5831 = vmatmul.mubr.f32.gmra.mrb[0].mxu0 %v4662
        %v5832 = vpop.f32.mrb[0].mxu0
        %v5833 = vadd.f32 0.0, %v5832
        %v5834 = vpop.f32.mrb[0].mxu0
        %v5835 = vadd.f32 0.0, %v5834
        %5836 = vdwg.mxu0
        %5837 = vmatprep.subr.mxu0 %v5618
        %5838 = vmatpush1.msra.mxu0 %v5617
        %5839 = vmatprep.subr.mxu0 %v5620
        %5840 = vmatpush1.msra.mxu0 %v5619
        %5841 = vmatprep.subr.mxu0 %v5622
        %5842 = vmatpush1.msra.mxu0 %v5621
        %5843 = vmatprep.subr.mxu0 %v5624
        %5844 = vmatpush1.msra.mxu0 %v5623
        %5845 = vmatprep.subr.mxu0 %v5626
        %5846 = vmatpush1.msra.mxu0 %v5625
        %5847 = vmatprep.subr.mxu0 %v5628
        %5848 = vmatpush1.msra.mxu0 %v5627
        %5849 = vmatprep.subr.mxu0 %v5630
        %5850 = vmatpush1.msra.mxu0 %v5629
        %5851 = vmatprep.subr.mxu0 %v5632
        %5852 = vmatpush1.msra.mxu0 %v5631
        %5853 = vmatprep.subr.mxu0 %v5634
        %5854 = vmatpush1.msra.mxu0 %v5633
        %5855 = vmatprep.subr.mxu0 %v5636
        %5856 = vmatpush1.msra.mxu0 %v5635
        %5857 = vmatprep.subr.mxu0 %v5638
        %5858 = vmatpush1.msra.mxu0 %v5637
        %5859 = vmatprep.subr.mxu0 %v5640
        %5860 = vmatpush1.msra.mxu0 %v5639
        %5861 = vmatprep.subr.mxu0 %v5642
        %5862 = vmatpush1.msra.mxu0 %v5641
        %5863 = vmatprep.subr.mxu0 %v5644
        %5864 = vmatpush1.msra.mxu0 %v5643
        %5865 = vmatprep.subr.mxu0 %v5646
        %5866 = vmatpush1.msra.mxu0 %v5645
        %5867 = vmatprep.subr.mxu0 %v5648
        %5868 = vmatpush1.msra.mxu0 %v5647
        %5869 = vmatprep.subr.mxu0 %v5650
        %5870 = vmatpush1.msra.mxu0 %v5649
        %5871 = vmatprep.subr.mxu0 %v5652
        %5872 = vmatpush1.msra.mxu0 %v5651
        %5873 = vmatprep.subr.mxu0 %v5654
        %5874 = vmatpush1.msra.mxu0 %v5653
        %5875 = vmatprep.subr.mxu0 %v5656
        %5876 = vmatpush1.msra.mxu0 %v5655
        %5877 = vmatprep.subr.mxu0 %v5658
        %5878 = vmatpush1.msra.mxu0 %v5657
        %5879 = vmatprep.subr.mxu0 %v5660
        %5880 = vmatpush1.msra.mxu0 %v5659
        %5881 = vmatprep.subr.mxu0 %v5662
        %5882 = vmatpush1.msra.mxu0 %v5661
        %5883 = vmatprep.subr.mxu0 %v5664
        %5884 = vmatpush1.msra.mxu0 %v5663
        %5885 = vmatprep.subr.mxu0 %v5666
        %5886 = vmatpush1.msra.mxu0 %v5665
        %5887 = vmatprep.subr.mxu0 %v5668
        %5888 = vmatpush1.msra.mxu0 %v5667
        %5889 = vmatprep.subr.mxu0 %v5670
        %5890 = vmatpush1.msra.mxu0 %v5669
        %5891 = vmatprep.subr.mxu0 %v5672
        %5892 = vmatpush1.msra.mxu0 %v5671
        %5893 = vmatprep.subr.mxu0 0.0
        %5894 = vmatpush1.msra.mxu0 0.0
        %5895 = vmatprep.subr.mxu0 0.0
        %5896 = vmatpush1.msra.mxu0 0.0
        %5897 = vmatprep.subr.mxu0 0.0
        %5898 = vmatpush1.msra.mxu0 0.0
        %5899 = vmatprep.subr.mxu0 0.0
        %5900 = vmatpush1.msra.mxu0 0.0
        %5901 = vmatprep.mubr.f32.mxu0 %v4850
        %5902 = vmatmul.mubr.f32.gmra.mrb[0].mxu0 %v4580
        %v5903 = vpop.f32.mrb[0].mxu0
        %v5904 = vadd.f32 %v5797, %v5903
        %v5905 = vpop.f32.mrb[0].mxu0
        %v5906 = vadd.f32 %v5799, %v5905
        %5907 = vmatprep.mubr.f32.mxu0 %v4853
        %5908 = vmatmul.mubr.f32.gmra.mrb[0].mxu0 %v4582
        %v5909 = vpop.f32.mrb[0].mxu0
        %v5910 = vadd.f32 %v5803, %v5909
        %v5911 = vpop.f32.mrb[0].mxu0
        %v5912 = vadd.f32 %v5805, %v5911
        %5913 = vmatprep.mubr.f32.mxu0 %v4856
        %5914 = vmatmul.mubr.f32.gmra.mrb[0].mxu0 %v4584
        %v5915 = vpop.f32.mrb[0].mxu0
        %v5916 = vadd.f32 %v5809, %v5915
        %v5917 = vpop.f32.mrb[0].mxu0
        %v5918 = vadd.f32 %v5811, %v5917
        %5919 = vmatprep.mubr.f32.mxu0 %v4859
        %5920 = vmatmul.mubr.f32.gmra.mrb[0].mxu0 %v4586
        %v5921 = vpop.f32.mrb[0].mxu0
        %v5922 = vadd.f32 %v5815, %v5921
        %v5923 = vpop.f32.mrb[0].mxu0
        %v5924 = vadd.f32 %v5817, %v5923
        %5925 = vmatprep.mubr.f32.mxu0 %v4862
        %5926 = vmatmul.mubr.f32.gmra.mrb[0].mxu0 %v4588
        %v5927 = vpop.f32.mrb[0].mxu0
        %v5928 = vadd.f32 %v5821, %v5927
        %v5929 = vpop.f32.mrb[0].mxu0
        %v5930 = vadd.f32 %v5823, %v5929
        %5931 = vmatprep.mubr.f32.mxu0 %v4865
        %5932 = vmatmul.mubr.f32.gmra.mrb[0].mxu0 %v4590
        %v5933 = vpop.f32.mrb[0].mxu0
        %v5934 = vadd.f32 %v5827, %v5933
        %v5935 = vpop.f32.mrb[0].mxu0
        %v5936 = vadd.f32 %v5829, %v5935
        %5937 = vmatprep.mubr.f32.mxu0 %v4868
        %5938 = vmatmul.mubr.f32.gmra.mrb[0].mxu0 %v4592
        %v5939 = vpop.f32.mrb[0].mxu0
        %v5940 = vadd.f32 %v5833, %v5939
        %v5941 = vpop.f32.mrb[0].mxu0
        %v5942 = vadd.f32 %v5835, %v5941
        %5943 = vdwg.mxu0
        %s5944 = scalar_lea.vmem %s3, 2240
        %v5945 = vld [vmem:[%s5944] sm:$0xff]
        %v5946 = vld [vmem:[%s5944 + $0x8] sm:$0xff]
        %v5947 = vld [vmem:[%s5944 + $0x10] sm:$0xff]
        %v5948 = vld [vmem:[%s5944 + $0x18] sm:$0xff]
        %v5949 = vld [vmem:[%s5944 + $0x20] sm:$0xff]
        %v5950 = vld [vmem:[%s5944 + $0x28] sm:$0xff]
        %v5951 = vld [vmem:[%s5944 + $0x30] sm:$0xff]
        %v5952 = vld [vmem:[%s5944 + $0x38] sm:$0xff]
        %v5953 = vld [vmem:[%s5944 + $0x40] sm:$0xff]
        %v5954 = vld [vmem:[%s5944 + $0x48] sm:$0xff]
        %v5955 = vld [vmem:[%s5944 + $0x50] sm:$0xff]
        %v5956 = vld [vmem:[%s5944 + $0x58] sm:$0xff]
        %v5957 = vld [vmem:[%s5944 + $0x60] sm:$0xff]
        %v5958 = vld [vmem:[%s5944 + $0x68] sm:$0xff]
        %v5959 = vld [vmem:[%s5944 + $0x70] sm:$0xff]
        %v5960 = vld [vmem:[%s5944 + $0x78] sm:$0xff]
        %v5961 = vld [vmem:[%s5944 + $0x80] sm:$0xff]
        %v5962 = vld [vmem:[%s5944 + $0x88] sm:$0xff]
        %v5963 = vld [vmem:[%s5944 + $0x90] sm:$0xff]
        %v5964 = vld [vmem:[%s5944 + $0x98] sm:$0xff]
        %v5965 = vld [vmem:[%s5944 + $0xa0] sm:$0xff]
        %v5966 = vld [vmem:[%s5944 + $0xa8] sm:$0xff]
        %v5967 = vld [vmem:[%s5944 + $0xb0] sm:$0xff]
        %v5968 = vld [vmem:[%s5944 + $0xb8] sm:$0xff]
        %v5969 = vld [vmem:[%s5944 + $0xc0] sm:$0xff]
        %v5970 = vld [vmem:[%s5944 + $0xc8] sm:$0xff]
        %v5971 = vld [vmem:[%s5944 + $0xd0] sm:$0xff]
        %v5972 = vld [vmem:[%s5944 + $0xd8] sm:$0xff]
        %v5973 = vld [vmem:[%s5944 + $0xe0] sm:$0xff]
        %v5974 = vld [vmem:[%s5944 + $0xe8] sm:$0xff]
        %v5975 = vld [vmem:[%s5944 + $0xf0] sm:$0xff]
        %v5976 = vld [vmem:[%s5944 + $0xf8] sm:$0xff]
        %v5977 = vld [vmem:[%s5944 + $0x100] sm:$0xff]
        %v5978 = vld [vmem:[%s5944 + $0x108] sm:$0xff]
        %v5979 = vld [vmem:[%s5944 + $0x110] sm:$0xff]
        %v5980 = vld [vmem:[%s5944 + $0x118] sm:$0xff]
        %v5981 = vld [vmem:[%s5944 + $0x120] sm:$0xff]
        %v5982 = vld [vmem:[%s5944 + $0x128] sm:$0xff]
        %v5983 = vld [vmem:[%s5944 + $0x130] sm:$0xff]
        %v5984 = vld [vmem:[%s5944 + $0x138] sm:$0xff]
        %v5985 = vld [vmem:[%s5944 + $0x140] sm:$0xff]
        %v5986 = vld [vmem:[%s5944 + $0x148] sm:$0xff]
        %v5987 = vld [vmem:[%s5944 + $0x150] sm:$0xff]
        %v5988 = vld [vmem:[%s5944 + $0x158] sm:$0xff]
        %v5989 = vld [vmem:[%s5944 + $0x160] sm:$0xff]
        %v5990 = vld [vmem:[%s5944 + $0x168] sm:$0xff]
        %v5991 = vld [vmem:[%s5944 + $0x170] sm:$0xff]
        %v5992 = vld [vmem:[%s5944 + $0x178] sm:$0xff]
        %v5993 = vld [vmem:[%s5944 + $0x180] sm:$0xff]
        %v5994 = vld [vmem:[%s5944 + $0x188] sm:$0xff]
        %v5995 = vld [vmem:[%s5944 + $0x190] sm:$0xff]
        %v5996 = vld [vmem:[%s5944 + $0x198] sm:$0xff]
        %v5997 = vld [vmem:[%s5944 + $0x1a0] sm:$0xff]
        %v5998 = vld [vmem:[%s5944 + $0x1a8] sm:$0xff]
        %v5999 = vld [vmem:[%s5944 + $0x1b0] sm:$0xff]
        %v6000 = vld [vmem:[%s5944 + $0x1b8] sm:$0xff]
        %6001 = vmatprep.subr.mxu0 %v5946
        %6002 = vmatpush1.msra.mxu0 %v5945
        %6003 = vmatprep.subr.mxu0 %v5948
        %6004 = vmatpush1.msra.mxu0 %v5947
        %6005 = vmatprep.subr.mxu0 %v5950
        %6006 = vmatpush1.msra.mxu0 %v5949
        %6007 = vmatprep.subr.mxu0 %v5952
        %6008 = vmatpush1.msra.mxu0 %v5951
        %6009 = vmatprep.subr.mxu0 %v5954
        %6010 = vmatpush1.msra.mxu0 %v5953
        %6011 = vmatprep.subr.mxu0 %v5956
        %6012 = vmatpush1.msra.mxu0 %v5955
        %6013 = vmatprep.subr.mxu0 %v5958
        %6014 = vmatpush1.msra.mxu0 %v5957
        %6015 = vmatprep.subr.mxu0 %v5960
        %6016 = vmatpush1.msra.mxu0 %v5959
        %6017 = vmatprep.subr.mxu0 %v5962
        %6018 = vmatpush1.msra.mxu0 %v5961
        %6019 = vmatprep.subr.mxu0 %v5964
        %6020 = vmatpush1.msra.mxu0 %v5963
        %6021 = vmatprep.subr.mxu0 %v5966
        %6022 = vmatpush1.msra.mxu0 %v5965
        %6023 = vmatprep.subr.mxu0 %v5968
        %6024 = vmatpush1.msra.mxu0 %v5967
        %6025 = vmatprep.subr.mxu0 %v5970
        %6026 = vmatpush1.msra.mxu0 %v5969
        %6027 = vmatprep.subr.mxu0 %v5972
        %6028 = vmatpush1.msra.mxu0 %v5971
        %6029 = vmatprep.subr.mxu0 %v5974
        %6030 = vmatpush1.msra.mxu0 %v5973
        %6031 = vmatprep.subr.mxu0 %v5976
        %6032 = vmatpush1.msra.mxu0 %v5975
        %6033 = vmatprep.subr.mxu0 %v5978
        %6034 = vmatpush1.msra.mxu0 %v5977
        %6035 = vmatprep.subr.mxu0 %v5980
        %6036 = vmatpush1.msra.mxu0 %v5979
        %6037 = vmatprep.subr.mxu0 %v5982
        %6038 = vmatpush1.msra.mxu0 %v5981
        %6039 = vmatprep.subr.mxu0 %v5984
        %6040 = vmatpush1.msra.mxu0 %v5983
        %6041 = vmatprep.subr.mxu0 %v5986
        %6042 = vmatpush1.msra.mxu0 %v5985
        %6043 = vmatprep.subr.mxu0 %v5988
        %6044 = vmatpush1.msra.mxu0 %v5987
        %6045 = vmatprep.subr.mxu0 %v5990
        %6046 = vmatpush1.msra.mxu0 %v5989
        %6047 = vmatprep.subr.mxu0 %v5992
        %6048 = vmatpush1.msra.mxu0 %v5991
        %6049 = vmatprep.subr.mxu0 %v5994
        %6050 = vmatpush1.msra.mxu0 %v5993
        %6051 = vmatprep.subr.mxu0 %v5996
        %6052 = vmatpush1.msra.mxu0 %v5995
        %6053 = vmatprep.subr.mxu0 %v5998
        %6054 = vmatpush1.msra.mxu0 %v5997
        %6055 = vmatprep.subr.mxu0 %v6000
        %6056 = vmatpush1.msra.mxu0 %v5999
        %6057 = vmatprep.subr.mxu0 0.0
        %6058 = vmatpush1.msra.mxu0 0.0
        %6059 = vmatprep.subr.mxu0 0.0
        %6060 = vmatpush1.msra.mxu0 0.0
        %6061 = vmatprep.subr.mxu0 0.0
        %6062 = vmatpush1.msra.mxu0 0.0
        %6063 = vmatprep.subr.mxu0 0.0
        %6064 = vmatpush1.msra.mxu0 0.0
        %6065 = vmatprep.mubr.f32.mxu0 %v5049
        %6066 = vmatmul.mubr.f32.gmra.mrb[0].mxu0 %v4977
        %v6067 = vpop.f32.mrb[0].mxu0
        %v6068 = vadd.f32 0.0, %v6067
        %v6069 = vpop.f32.mrb[0].mxu0
        %v6070 = vadd.f32 0.0, %v6069
        %6071 = vmatprep.mubr.f32.mxu0 %v5052
        %6072 = vmatmul.mubr.f32.gmra.mrb[0].mxu0 %v4979
        %v6073 = vpop.f32.mrb[0].mxu0
        %v6074 = vadd.f32 0.0, %v6073
        %v6075 = vpop.f32.mrb[0].mxu0
        %v6076 = vadd.f32 0.0, %v6075
        %6077 = vmatprep.mubr.f32.mxu0 %v5055
        %6078 = vmatmul.mubr.f32.gmra.mrb[0].mxu0 %v4981
        %v6079 = vpop.f32.mrb[0].mxu0
        %v6080 = vadd.f32 0.0, %v6079
        %v6081 = vpop.f32.mrb[0].mxu0
        %v6082 = vadd.f32 0.0, %v6081
        %6083 = vmatprep.mubr.f32.mxu0 %v5058
        %6084 = vmatmul.mubr.f32.gmra.mrb[0].mxu0 %v4983
        %v6085 = vpop.f32.mrb[0].mxu0
        %v6086 = vadd.f32 0.0, %v6085
        %v6087 = vpop.f32.mrb[0].mxu0
        %v6088 = vadd.f32 0.0, %v6087
        %6089 = vmatprep.mubr.f32.mxu0 %v5061
        %6090 = vmatmul.mubr.f32.gmra.mrb[0].mxu0 %v4985
        %v6091 = vpop.f32.mrb[0].mxu0
        %v6092 = vadd.f32 0.0, %v6091
        %v6093 = vpop.f32.mrb[0].mxu0
        %v6094 = vadd.f32 0.0, %v6093
        %6095 = vmatprep.mubr.f32.mxu0 %v5064
        %6096 = vmatmul.mubr.f32.gmra.mrb[0].mxu0 %v4987
        %v6097 = vpop.f32.mrb[0].mxu0
        %v6098 = vadd.f32 0.0, %v6097
        %v6099 = vpop.f32.mrb[0].mxu0
        %v6100 = vadd.f32 0.0, %v6099
        %6101 = vmatprep.mubr.f32.mxu0 %v5067
        %6102 = vmatmul.mubr.f32.gmra.mrb[0].mxu0 %v4989
        %v6103 = vpop.f32.mrb[0].mxu0
        %v6104 = vadd.f32 0.0, %v6103
        %v6105 = vpop.f32.mrb[0].mxu0
        %v6106 = vadd.f32 0.0, %v6105
        %6107 = vdwg.mxu0
        %v6108 = vadd.f32 %v5904, %v6068
        %v6109 = vadd.f32 %v5906, %v6070
        %v6110 = vadd.f32 %v5910, %v6074
        %v6111 = vadd.f32 %v5912, %v6076
        %v6112 = vadd.f32 %v5916, %v6080
        %v6113 = vadd.f32 %v5918, %v6082
        %v6114 = vadd.f32 %v5922, %v6086
        %v6115 = vadd.f32 %v5924, %v6088
        %v6116 = vadd.f32 %v5928, %v6092
        %v6117 = vadd.f32 %v5930, %v6094
        %v6118 = vadd.f32 %v5934, %v6098
        %v6119 = vadd.f32 %v5936, %v6100
        %v6120 = vadd.f32 %v5940, %v6104
        %v6121 = vadd.f32 %v5942, %v6106
        %s6122 = scalar_lea.vmem %s3, 3136
        %v6123 = vld [vmem:[%s6122] sm:$0xff]
        %v6124 = vld [vmem:[%s6122 + $0x8] sm:$0xff]
        %v6125 = vld [vmem:[%s6122 + $0x10] sm:$0xff]
        %v6126 = vld [vmem:[%s6122 + $0x18] sm:$0xff]
        %v6127 = vld [vmem:[%s6122 + $0x20] sm:$0xff]
        %v6128 = vld [vmem:[%s6122 + $0x28] sm:$0xff]
        %v6129 = vld [vmem:[%s6122 + $0x30] sm:$0xff]
        %v6130 = vld [vmem:[%s6122 + $0x38] sm:$0xff]
        %v6131 = vld [vmem:[%s6122 + $0x40] sm:$0xff]
        %v6132 = vld [vmem:[%s6122 + $0x48] sm:$0xff]
        %v6133 = vld [vmem:[%s6122 + $0x50] sm:$0xff]
        %v6134 = vld [vmem:[%s6122 + $0x58] sm:$0xff]
        %v6135 = vld [vmem:[%s6122 + $0x60] sm:$0xff]
        %v6136 = vld [vmem:[%s6122 + $0x68] sm:$0xff]
        %v6137 = vld [vmem:[%s6122 + $0x70] sm:$0xff]
        %v6138 = vld [vmem:[%s6122 + $0x78] sm:$0xff]
        %v6139 = vld [vmem:[%s6122 + $0x80] sm:$0xff]
        %v6140 = vld [vmem:[%s6122 + $0x88] sm:$0xff]
        %v6141 = vld [vmem:[%s6122 + $0x90] sm:$0xff]
        %v6142 = vld [vmem:[%s6122 + $0x98] sm:$0xff]
        %v6143 = vld [vmem:[%s6122 + $0xa0] sm:$0xff]
        %v6144 = vld [vmem:[%s6122 + $0xa8] sm:$0xff]
        %v6145 = vld [vmem:[%s6122 + $0xb0] sm:$0xff]
        %v6146 = vld [vmem:[%s6122 + $0xb8] sm:$0xff]
        %v6147 = vld [vmem:[%s6122 + $0xc0] sm:$0xff]
        %v6148 = vld [vmem:[%s6122 + $0xc8] sm:$0xff]
        %v6149 = vld [vmem:[%s6122 + $0xd0] sm:$0xff]
        %v6150 = vld [vmem:[%s6122 + $0xd8] sm:$0xff]
        %v6151 = vld [vmem:[%s6122 + $0xe0] sm:$0xff]
        %v6152 = vld [vmem:[%s6122 + $0xe8] sm:$0xff]
        %v6153 = vld [vmem:[%s6122 + $0xf0] sm:$0xff]
        %v6154 = vld [vmem:[%s6122 + $0xf8] sm:$0xff]
        %v6155 = vld [vmem:[%s6122 + $0x100] sm:$0xff]
        %v6156 = vld [vmem:[%s6122 + $0x108] sm:$0xff]
        %v6157 = vld [vmem:[%s6122 + $0x110] sm:$0xff]
        %v6158 = vld [vmem:[%s6122 + $0x118] sm:$0xff]
        %v6159 = vld [vmem:[%s6122 + $0x120] sm:$0xff]
        %v6160 = vld [vmem:[%s6122 + $0x128] sm:$0xff]
        %v6161 = vld [vmem:[%s6122 + $0x130] sm:$0xff]
        %v6162 = vld [vmem:[%s6122 + $0x138] sm:$0xff]
        %v6163 = vld [vmem:[%s6122 + $0x140] sm:$0xff]
        %v6164 = vld [vmem:[%s6122 + $0x148] sm:$0xff]
        %v6165 = vld [vmem:[%s6122 + $0x150] sm:$0xff]
        %v6166 = vld [vmem:[%s6122 + $0x158] sm:$0xff]
        %v6167 = vld [vmem:[%s6122 + $0x160] sm:$0xff]
        %v6168 = vld [vmem:[%s6122 + $0x168] sm:$0xff]
        %v6169 = vld [vmem:[%s6122 + $0x170] sm:$0xff]
        %v6170 = vld [vmem:[%s6122 + $0x178] sm:$0xff]
        %v6171 = vld [vmem:[%s6122 + $0x180] sm:$0xff]
        %v6172 = vld [vmem:[%s6122 + $0x188] sm:$0xff]
        %v6173 = vld [vmem:[%s6122 + $0x190] sm:$0xff]
        %v6174 = vld [vmem:[%s6122 + $0x198] sm:$0xff]
        %v6175 = vld [vmem:[%s6122 + $0x1a0] sm:$0xff]
        %v6176 = vld [vmem:[%s6122 + $0x1a8] sm:$0xff]
        %v6177 = vld [vmem:[%s6122 + $0x1b0] sm:$0xff]
        %v6178 = vld [vmem:[%s6122 + $0x1b8] sm:$0xff]
        %6179 = vmatprep.subr.mxu0 %v6124
        %6180 = vmatpush1.msra.mxu0 %v6123
        %6181 = vmatprep.subr.mxu0 %v6126
        %6182 = vmatpush1.msra.mxu0 %v6125
        %6183 = vmatprep.subr.mxu0 %v6128
        %6184 = vmatpush1.msra.mxu0 %v6127
        %6185 = vmatprep.subr.mxu0 %v6130
        %6186 = vmatpush1.msra.mxu0 %v6129
        %6187 = vmatprep.subr.mxu0 %v6132
        %6188 = vmatpush1.msra.mxu0 %v6131
        %6189 = vmatprep.subr.mxu0 %v6134
        %6190 = vmatpush1.msra.mxu0 %v6133
        %6191 = vmatprep.subr.mxu0 %v6136
        %6192 = vmatpush1.msra.mxu0 %v6135
        %6193 = vmatprep.subr.mxu0 %v6138
        %6194 = vmatpush1.msra.mxu0 %v6137
        %6195 = vmatprep.subr.mxu0 %v6140
        %6196 = vmatpush1.msra.mxu0 %v6139
        %6197 = vmatprep.subr.mxu0 %v6142
        %6198 = vmatpush1.msra.mxu0 %v6141
        %6199 = vmatprep.subr.mxu0 %v6144
        %6200 = vmatpush1.msra.mxu0 %v6143
        %6201 = vmatprep.subr.mxu0 %v6146
        %6202 = vmatpush1.msra.mxu0 %v6145
        %6203 = vmatprep.subr.mxu0 %v6148
        %6204 = vmatpush1.msra.mxu0 %v6147
        %6205 = vmatprep.subr.mxu0 %v6150
        %6206 = vmatpush1.msra.mxu0 %v6149
        %6207 = vmatprep.subr.mxu0 %v6152
        %6208 = vmatpush1.msra.mxu0 %v6151
        %6209 = vmatprep.subr.mxu0 %v6154
        %6210 = vmatpush1.msra.mxu0 %v6153
        %6211 = vmatprep.subr.mxu0 %v6156
        %6212 = vmatpush1.msra.mxu0 %v6155
        %6213 = vmatprep.subr.mxu0 %v6158
        %6214 = vmatpush1.msra.mxu0 %v6157
        %6215 = vmatprep.subr.mxu0 %v6160
        %6216 = vmatpush1.msra.mxu0 %v6159
        %6217 = vmatprep.subr.mxu0 %v6162
        %6218 = vmatpush1.msra.mxu0 %v6161
        %6219 = vmatprep.subr.mxu0 %v6164
        %6220 = vmatpush1.msra.mxu0 %v6163
        %6221 = vmatprep.subr.mxu0 %v6166
        %6222 = vmatpush1.msra.mxu0 %v6165
        %6223 = vmatprep.subr.mxu0 %v6168
        %6224 = vmatpush1.msra.mxu0 %v6167
        %6225 = vmatprep.subr.mxu0 %v6170
        %6226 = vmatpush1.msra.mxu0 %v6169
        %6227 = vmatprep.subr.mxu0 %v6172
        %6228 = vmatpush1.msra.mxu0 %v6171
        %6229 = vmatprep.subr.mxu0 %v6174
        %6230 = vmatpush1.msra.mxu0 %v6173
        %6231 = vmatprep.subr.mxu0 %v6176
        %6232 = vmatpush1.msra.mxu0 %v6175
        %6233 = vmatprep.subr.mxu0 %v6178
        %6234 = vmatpush1.msra.mxu0 %v6177
        %6235 = vmatprep.subr.mxu0 0.0
        %6236 = vmatpush1.msra.mxu0 0.0
        %6237 = vmatprep.subr.mxu0 0.0
        %6238 = vmatpush1.msra.mxu0 0.0
        %6239 = vmatprep.subr.mxu0 0.0
        %6240 = vmatpush1.msra.mxu0 0.0
        %6241 = vmatprep.subr.mxu0 0.0
        %6242 = vmatpush1.msra.mxu0 0.0
        %6243 = vmatprep.mubr.f32.mxu0 %v5262
        %6244 = vmatmul.mubr.f32.gmra.mrb[0].mxu0 %v5190
        %v6245 = vpop.f32.mrb[0].mxu0
        %v6246 = vadd.f32 0.0, %v6245
        %v6247 = vpop.f32.mrb[0].mxu0
        %v6248 = vadd.f32 0.0, %v6247
        %6249 = vmatprep.mubr.f32.mxu0 %v5265
        %6250 = vmatmul.mubr.f32.gmra.mrb[0].mxu0 %v5192
        %v6251 = vpop.f32.mrb[0].mxu0
        %v6252 = vadd.f32 0.0, %v6251
        %v6253 = vpop.f32.mrb[0].mxu0
        %v6254 = vadd.f32 0.0, %v6253
        %6255 = vmatprep.mubr.f32.mxu0 %v5268
        %6256 = vmatmul.mubr.f32.gmra.mrb[0].mxu0 %v5194
        %v6257 = vpop.f32.mrb[0].mxu0
        %v6258 = vadd.f32 0.0, %v6257
        %v6259 = vpop.f32.mrb[0].mxu0
        %v6260 = vadd.f32 0.0, %v6259
        %6261 = vmatprep.mubr.f32.mxu0 %v5271
        %6262 = vmatmul.mubr.f32.gmra.mrb[0].mxu0 %v5196
        %v6263 = vpop.f32.mrb[0].mxu0
        %v6264 = vadd.f32 0.0, %v6263
        %v6265 = vpop.f32.mrb[0].mxu0
        %v6266 = vadd.f32 0.0, %v6265
        %6267 = vmatprep.mubr.f32.mxu0 %v5274
        %6268 = vmatmul.mubr.f32.gmra.mrb[0].mxu0 %v5198
        %v6269 = vpop.f32.mrb[0].mxu0
        %v6270 = vadd.f32 0.0, %v6269
        %v6271 = vpop.f32.mrb[0].mxu0
        %v6272 = vadd.f32 0.0, %v6271
        %6273 = vmatprep.mubr.f32.mxu0 %v5277
        %6274 = vmatmul.mubr.f32.gmra.mrb[0].mxu0 %v5200
        %v6275 = vpop.f32.mrb[0].mxu0
        %v6276 = vadd.f32 0.0, %v6275
        %v6277 = vpop.f32.mrb[0].mxu0
        %v6278 = vadd.f32 0.0, %v6277
        %6279 = vmatprep.mubr.f32.mxu0 %v5280
        %6280 = vmatmul.mubr.f32.gmra.mrb[0].mxu0 %v5202
        %v6281 = vpop.f32.mrb[0].mxu0
        %v6282 = vadd.f32 0.0, %v6281
        %v6283 = vpop.f32.mrb[0].mxu0
        %v6284 = vadd.f32 0.0, %v6283
        %6285 = vdwg.mxu0
        %v6286 = vadd.f32 %v6108, %v6246
        %v6287 = vadd.f32 %v6109, %v6248
        %v6288 = vadd.f32 %v6110, %v6252
        %v6289 = vadd.f32 %v6111, %v6254
        %v6290 = vadd.f32 %v6112, %v6258
        %v6291 = vadd.f32 %v6113, %v6260
        %v6292 = vadd.f32 %v6114, %v6264
        %v6293 = vadd.f32 %v6115, %v6266
        %v6294 = vadd.f32 %v6116, %v6270
        %v6295 = vadd.f32 %v6117, %v6272
        %v6296 = vadd.f32 %v6118, %v6276
        %v6297 = vadd.f32 %v6119, %v6278
        %v6298 = vadd.f32 %v6120, %v6282
        %v6299 = vadd.f32 %v6121, %v6284
        %s6300 = scalar_lea.vmem %s3, 4032
        %v6301 = vld [vmem:[%s6300] sm:$0xff]
        %v6302 = vld [vmem:[%s6300 + $0x8] sm:$0xff]
        %v6303 = vld [vmem:[%s6300 + $0x10] sm:$0xff]
        %v6304 = vld [vmem:[%s6300 + $0x18] sm:$0xff]
        %v6305 = vld [vmem:[%s6300 + $0x20] sm:$0xff]
        %v6306 = vld [vmem:[%s6300 + $0x28] sm:$0xff]
        %v6307 = vld [vmem:[%s6300 + $0x30] sm:$0xff]
        %v6308 = vld [vmem:[%s6300 + $0x38] sm:$0xff]
        %v6309 = vld [vmem:[%s6300 + $0x40] sm:$0xff]
        %v6310 = vld [vmem:[%s6300 + $0x48] sm:$0xff]
        %v6311 = vld [vmem:[%s6300 + $0x50] sm:$0xff]
        %v6312 = vld [vmem:[%s6300 + $0x58] sm:$0xff]
        %v6313 = vld [vmem:[%s6300 + $0x60] sm:$0xff]
        %v6314 = vld [vmem:[%s6300 + $0x68] sm:$0xff]
        %v6315 = vld [vmem:[%s6300 + $0x70] sm:$0xff]
        %v6316 = vld [vmem:[%s6300 + $0x78] sm:$0xff]
        %v6317 = vld [vmem:[%s6300 + $0x80] sm:$0xff]
        %v6318 = vld [vmem:[%s6300 + $0x88] sm:$0xff]
        %v6319 = vld [vmem:[%s6300 + $0x90] sm:$0xff]
        %v6320 = vld [vmem:[%s6300 + $0x98] sm:$0xff]
        %v6321 = vld [vmem:[%s6300 + $0xa0] sm:$0xff]
        %v6322 = vld [vmem:[%s6300 + $0xa8] sm:$0xff]
        %v6323 = vld [vmem:[%s6300 + $0xb0] sm:$0xff]
        %v6324 = vld [vmem:[%s6300 + $0xb8] sm:$0xff]
        %v6325 = vld [vmem:[%s6300 + $0xc0] sm:$0xff]
        %v6326 = vld [vmem:[%s6300 + $0xc8] sm:$0xff]
        %v6327 = vld [vmem:[%s6300 + $0xd0] sm:$0xff]
        %v6328 = vld [vmem:[%s6300 + $0xd8] sm:$0xff]
        %v6329 = vld [vmem:[%s6300 + $0xe0] sm:$0xff]
        %v6330 = vld [vmem:[%s6300 + $0xe8] sm:$0xff]
        %v6331 = vld [vmem:[%s6300 + $0xf0] sm:$0xff]
        %v6332 = vld [vmem:[%s6300 + $0xf8] sm:$0xff]
        %v6333 = vld [vmem:[%s6300 + $0x100] sm:$0xff]
        %v6334 = vld [vmem:[%s6300 + $0x108] sm:$0xff]
        %v6335 = vld [vmem:[%s6300 + $0x110] sm:$0xff]
        %v6336 = vld [vmem:[%s6300 + $0x118] sm:$0xff]
        %v6337 = vld [vmem:[%s6300 + $0x120] sm:$0xff]
        %v6338 = vld [vmem:[%s6300 + $0x128] sm:$0xff]
        %v6339 = vld [vmem:[%s6300 + $0x130] sm:$0xff]
        %v6340 = vld [vmem:[%s6300 + $0x138] sm:$0xff]
        %v6341 = vld [vmem:[%s6300 + $0x140] sm:$0xff]
        %v6342 = vld [vmem:[%s6300 + $0x148] sm:$0xff]
        %v6343 = vld [vmem:[%s6300 + $0x150] sm:$0xff]
        %v6344 = vld [vmem:[%s6300 + $0x158] sm:$0xff]
        %v6345 = vld [vmem:[%s6300 + $0x160] sm:$0xff]
        %v6346 = vld [vmem:[%s6300 + $0x168] sm:$0xff]
        %v6347 = vld [vmem:[%s6300 + $0x170] sm:$0xff]
        %v6348 = vld [vmem:[%s6300 + $0x178] sm:$0xff]
        %v6349 = vld [vmem:[%s6300 + $0x180] sm:$0xff]
        %v6350 = vld [vmem:[%s6300 + $0x188] sm:$0xff]
        %v6351 = vld [vmem:[%s6300 + $0x190] sm:$0xff]
        %v6352 = vld [vmem:[%s6300 + $0x198] sm:$0xff]
        %v6353 = vld [vmem:[%s6300 + $0x1a0] sm:$0xff]
        %v6354 = vld [vmem:[%s6300 + $0x1a8] sm:$0xff]
        %v6355 = vld [vmem:[%s6300 + $0x1b0] sm:$0xff]
        %v6356 = vld [vmem:[%s6300 + $0x1b8] sm:$0xff]
        %6357 = vmatprep.subr.mxu0 %v6302
        %6358 = vmatpush1.msra.mxu0 %v6301
        %6359 = vmatprep.subr.mxu0 %v6304
        %6360 = vmatpush1.msra.mxu0 %v6303
        %6361 = vmatprep.subr.mxu0 %v6306
        %6362 = vmatpush1.msra.mxu0 %v6305
        %6363 = vmatprep.subr.mxu0 %v6308
        %6364 = vmatpush1.msra.mxu0 %v6307
        %6365 = vmatprep.subr.mxu0 %v6310
        %6366 = vmatpush1.msra.mxu0 %v6309
        %6367 = vmatprep.subr.mxu0 %v6312
        %6368 = vmatpush1.msra.mxu0 %v6311
        %6369 = vmatprep.subr.mxu0 %v6314
        %6370 = vmatpush1.msra.mxu0 %v6313
        %6371 = vmatprep.subr.mxu0 %v6316
        %6372 = vmatpush1.msra.mxu0 %v6315
        %6373 = vmatprep.subr.mxu0 %v6318
        %6374 = vmatpush1.msra.mxu0 %v6317
        %6375 = vmatprep.subr.mxu0 %v6320
        %6376 = vmatpush1.msra.mxu0 %v6319
        %6377 = vmatprep.subr.mxu0 %v6322
        %6378 = vmatpush1.msra.mxu0 %v6321
        %6379 = vmatprep.subr.mxu0 %v6324
        %6380 = vmatpush1.msra.mxu0 %v6323
        %6381 = vmatprep.subr.mxu0 %v6326
        %6382 = vmatpush1.msra.mxu0 %v6325
        %6383 = vmatprep.subr.mxu0 %v6328
        %6384 = vmatpush1.msra.mxu0 %v6327
        %6385 = vmatprep.subr.mxu0 %v6330
        %6386 = vmatpush1.msra.mxu0 %v6329
        %6387 = vmatprep.subr.mxu0 %v6332
        %6388 = vmatpush1.msra.mxu0 %v6331
        %6389 = vmatprep.subr.mxu0 %v6334
        %6390 = vmatpush1.msra.mxu0 %v6333
        %6391 = vmatprep.subr.mxu0 %v6336
        %6392 = vmatpush1.msra.mxu0 %v6335
        %6393 = vmatprep.subr.mxu0 %v6338
        %6394 = vmatpush1.msra.mxu0 %v6337
        %6395 = vmatprep.subr.mxu0 %v6340
        %6396 = vmatpush1.msra.mxu0 %v6339
        %6397 = vmatprep.subr.mxu0 %v6342
        %6398 = vmatpush1.msra.mxu0 %v6341
        %6399 = vmatprep.subr.mxu0 %v6344
        %6400 = vmatpush1.msra.mxu0 %v6343
        %6401 = vmatprep.subr.mxu0 %v6346
        %6402 = vmatpush1.msra.mxu0 %v6345
        %6403 = vmatprep.subr.mxu0 %v6348
        %6404 = vmatpush1.msra.mxu0 %v6347
        %6405 = vmatprep.subr.mxu0 %v6350
        %6406 = vmatpush1.msra.mxu0 %v6349
        %6407 = vmatprep.subr.mxu0 %v6352
        %6408 = vmatpush1.msra.mxu0 %v6351
        %6409 = vmatprep.subr.mxu0 %v6354
        %6410 = vmatpush1.msra.mxu0 %v6353
        %6411 = vmatprep.subr.mxu0 %v6356
        %6412 = vmatpush1.msra.mxu0 %v6355
        %6413 = vmatprep.subr.mxu0 0.0
        %6414 = vmatpush1.msra.mxu0 0.0
        %6415 = vmatprep.subr.mxu0 0.0
        %6416 = vmatpush1.msra.mxu0 0.0
        %6417 = vmatprep.subr.mxu0 0.0
        %6418 = vmatpush1.msra.mxu0 0.0
        %6419 = vmatprep.subr.mxu0 0.0
        %6420 = vmatpush1.msra.mxu0 0.0
        %6421 = vmatprep.mubr.f32.mxu0 %v5475
        %6422 = vmatmul.mubr.f32.gmra.mrb[0].mxu0 %v5403
        %v6423 = vpop.f32.mrb[0].mxu0
        %v6424 = vadd.f32 0.0, %v6423
        %v6425 = vpop.f32.mrb[0].mxu0
        %v6426 = vadd.f32 0.0, %v6425
        %6427 = vmatprep.mubr.f32.mxu0 %v5478
        %6428 = vmatmul.mubr.f32.gmra.mrb[0].mxu0 %v5405
        %v6429 = vpop.f32.mrb[0].mxu0
        %v6430 = vadd.f32 0.0, %v6429
        %v6431 = vpop.f32.mrb[0].mxu0
        %v6432 = vadd.f32 0.0, %v6431
        %6433 = vmatprep.mubr.f32.mxu0 %v5481
        %6434 = vmatmul.mubr.f32.gmra.mrb[0].mxu0 %v5407
        %v6435 = vpop.f32.mrb[0].mxu0
        %v6436 = vadd.f32 0.0, %v6435
        %v6437 = vpop.f32.mrb[0].mxu0
        %v6438 = vadd.f32 0.0, %v6437
        %6439 = vmatprep.mubr.f32.mxu0 %v5484
        %6440 = vmatmul.mubr.f32.gmra.mrb[0].mxu0 %v5409
        %v6441 = vpop.f32.mrb[0].mxu0
        %v6442 = vadd.f32 0.0, %v6441
        %v6443 = vpop.f32.mrb[0].mxu0
        %v6444 = vadd.f32 0.0, %v6443
        %6445 = vmatprep.mubr.f32.mxu0 %v5487
        %6446 = vmatmul.mubr.f32.gmra.mrb[0].mxu0 %v5411
        %v6447 = vpop.f32.mrb[0].mxu0
        %v6448 = vadd.f32 0.0, %v6447
        %v6449 = vpop.f32.mrb[0].mxu0
        %v6450 = vadd.f32 0.0, %v6449
        %6451 = vmatprep.mubr.f32.mxu0 %v5490
        %6452 = vmatmul.mubr.f32.gmra.mrb[0].mxu0 %v5413
        %v6453 = vpop.f32.mrb[0].mxu0
        %v6454 = vadd.f32 0.0, %v6453
        %v6455 = vpop.f32.mrb[0].mxu0
        %v6456 = vadd.f32 0.0, %v6455
        %6457 = vmatprep.mubr.f32.mxu0 %v5493
        %6458 = vmatmul.mubr.f32.gmra.mrb[0].mxu0 %v5415
        %v6459 = vpop.f32.mrb[0].mxu0
        %v6460 = vadd.f32 0.0, %v6459
        %v6461 = vpop.f32.mrb[0].mxu0
        %v6462 = vadd.f32 0.0, %v6461
        %6463 = vdwg.mxu0
        %v6464 = vadd.f32 %v6286, %v6424
        %v6465 = vadd.f32 %v6287, %v6426
        %v6466 = vadd.f32 %v6288, %v6430
        %v6467 = vadd.f32 %v6289, %v6432
        %v6468 = vadd.f32 %v6290, %v6436
        %v6469 = vadd.f32 %v6291, %v6438
        %v6470 = vadd.f32 %v6292, %v6442
        %v6471 = vadd.f32 %v6293, %v6444
        %v6472 = vadd.f32 %v6294, %v6448
        %v6473 = vadd.f32 %v6295, %v6450
        %v6474 = vadd.f32 %v6296, %v6454
        %v6475 = vadd.f32 %v6297, %v6456
        %v6476 = vadd.f32 %v6298, %v6460
        %v6477 = vadd.f32 %v6299, %v6462
        %v6478 = vmax.f32 %v5602, %v6464
        %v6479 = vmax.f32 %v5603, %v6465
        %v6480 = vmax.f32 %v5604, %v6466
        %v6481 = vmax.f32 %v5605, %v6467
        %v6482 = vmax.f32 %v5606, %v6468
        %v6483 = vmax.f32 %v5607, %v6469
        %v6484 = vmax.f32 %v5608, %v6470
        %v6485 = vmax.f32 %v5609, %v6471
        %v6486 = vmax.f32 %v5610, %v6472
        %v6487 = vmax.f32 %v5611, %v6473
        %v6488 = vmax.f32 %v5612, %v6474
        %v6489 = vmax.f32 %v5613, %v6475
        %v6490 = vmax.f32 %v5614, %v6476
        %v6491 = vmax.f32 %v5615, %v6477
        %6492 = vmatprep.subr.mxu0 %v4666
        %6493 = vmatpush1.msra.mxu0 %v4665
        %6494 = vmatprep.subr.mxu0 %v4668
        %6495 = vmatpush1.msra.mxu0 %v4667
        %6496 = vmatprep.subr.mxu0 %v4670
        %6497 = vmatpush1.msra.mxu0 %v4669
        %6498 = vmatprep.subr.mxu0 %v4672
        %6499 = vmatpush1.msra.mxu0 %v4671
        %6500 = vmatprep.subr.mxu0 %v4674
        %6501 = vmatpush1.msra.mxu0 %v4673
        %6502 = vmatprep.subr.mxu0 %v4676
        %6503 = vmatpush1.msra.mxu0 %v4675
        %6504 = vmatprep.subr.mxu0 %v4678
        %6505 = vmatpush1.msra.mxu0 %v4677
        %6506 = vmatprep.subr.mxu0 %v4680
        %6507 = vmatpush1.msra.mxu0 %v4679
        %6508 = vmatprep.subr.mxu0 %v4682
        %6509 = vmatpush1.msra.mxu0 %v4681
        %6510 = vmatprep.subr.mxu0 %v4684
        %6511 = vmatpush1.msra.mxu0 %v4683
        %6512 = vmatprep.subr.mxu0 %v4686
        %6513 = vmatpush1.msra.mxu0 %v4685
        %6514 = vmatprep.subr.mxu0 %v4688
        %6515 = vmatpush1.msra.mxu0 %v4687
        %6516 = vmatprep.subr.mxu0 %v4690
        %6517 = vmatpush1.msra.mxu0 %v4689
        %6518 = vmatprep.subr.mxu0 %v4692
        %6519 = vmatpush1.msra.mxu0 %v4691
        %6520 = vmatprep.subr.mxu0 %v4694
        %6521 = vmatpush1.msra.mxu0 %v4693
        %6522 = vmatprep.subr.mxu0 %v4696
        %6523 = vmatpush1.msra.mxu0 %v4695
        %6524 = vmatprep.subr.mxu0 %v4698
        %6525 = vmatpush1.msra.mxu0 %v4697
        %6526 = vmatprep.subr.mxu0 %v4700
        %6527 = vmatpush1.msra.mxu0 %v4699
        %6528 = vmatprep.subr.mxu0 %v4702
        %6529 = vmatpush1.msra.mxu0 %v4701
        %6530 = vmatprep.subr.mxu0 %v4704
        %6531 = vmatpush1.msra.mxu0 %v4703
        %6532 = vmatprep.subr.mxu0 %v4706
        %6533 = vmatpush1.msra.mxu0 %v4705
        %6534 = vmatprep.subr.mxu0 %v4708
        %6535 = vmatpush1.msra.mxu0 %v4707
        %6536 = vmatprep.subr.mxu0 %v4710
        %6537 = vmatpush1.msra.mxu0 %v4709
        %6538 = vmatprep.subr.mxu0 %v4712
        %6539 = vmatpush1.msra.mxu0 %v4711
        %6540 = vmatprep.subr.mxu0 %v4714
        %6541 = vmatpush1.msra.mxu0 %v4713
        %6542 = vmatprep.subr.mxu0 %v4716
        %6543 = vmatpush1.msra.mxu0 %v4715
        %6544 = vmatprep.subr.mxu0 %v4718
        %6545 = vmatpush1.msra.mxu0 %v4717
        %6546 = vmatprep.subr.mxu0 %v4720
        %6547 = vmatpush1.msra.mxu0 %v4719
        %6548 = vmatprep.subr.mxu0 0.0
        %6549 = vmatpush1.msra.mxu0 0.0
        %6550 = vmatprep.subr.mxu0 0.0
        %6551 = vmatpush1.msra.mxu0 0.0
        %6552 = vmatprep.subr.mxu0 0.0
        %6553 = vmatpush1.msra.mxu0 0.0
        %6554 = vmatprep.subr.mxu0 0.0
        %6555 = vmatpush1.msra.mxu0 0.0
        %6556 = vmatprep.mubr.f32.mxu0 %v5049
        %6557 = vmatmul.mubr.f32.gmra.mrb[0].mxu0 %v4977
        %v6558 = vpop.f32.mrb[0].mxu0
        %v6559 = vadd.f32 0.0, %v6558
        %v6560 = vpop.f32.mrb[0].mxu0
        %v6561 = vadd.f32 0.0, %v6560
        %6562 = vmatprep.mubr.f32.mxu0 %v5052
        %6563 = vmatmul.mubr.f32.gmra.mrb[0].mxu0 %v4979
        %v6564 = vpop.f32.mrb[0].mxu0
        %v6565 = vadd.f32 0.0, %v6564
        %v6566 = vpop.f32.mrb[0].mxu0
        %v6567 = vadd.f32 0.0, %v6566
        %6568 = vmatprep.mubr.f32.mxu0 %v5055
        %6569 = vmatmul.mubr.f32.gmra.mrb[0].mxu0 %v4981
        %v6570 = vpop.f32.mrb[0].mxu0
        %v6571 = vadd.f32 0.0, %v6570
        %v6572 = vpop.f32.mrb[0].mxu0
        %v6573 = vadd.f32 0.0, %v6572
        %6574 = vmatprep.mubr.f32.mxu0 %v5058
        %6575 = vmatmul.mubr.f32.gmra.mrb[0].mxu0 %v4983
        %v6576 = vpop.f32.mrb[0].mxu0
        %v6577 = vadd.f32 0.0, %v6576
        %v6578 = vpop.f32.mrb[0].mxu0
        %v6579 = vadd.f32 0.0, %v6578
        %6580 = vmatprep.mubr.f32.mxu0 %v5061
        %6581 = vmatmul.mubr.f32.gmra.mrb[0].mxu0 %v4985
        %v6582 = vpop.f32.mrb[0].mxu0
        %v6583 = vadd.f32 0.0, %v6582
        %v6584 = vpop.f32.mrb[0].mxu0
        %v6585 = vadd.f32 0.0, %v6584
        %6586 = vmatprep.mubr.f32.mxu0 %v5064
        %6587 = vmatmul.mubr.f32.gmra.mrb[0].mxu0 %v4987
        %v6588 = vpop.f32.mrb[0].mxu0
        %v6589 = vadd.f32 0.0, %v6588
        %v6590 = vpop.f32.mrb[0].mxu0
        %v6591 = vadd.f32 0.0, %v6590
        %6592 = vmatprep.mubr.f32.mxu0 %v5067
        %6593 = vmatmul.mubr.f32.gmra.mrb[0].mxu0 %v4989
        %v6594 = vpop.f32.mrb[0].mxu0
        %v6595 = vadd.f32 0.0, %v6594
        %v6596 = vpop.f32.mrb[0].mxu0
        %v6597 = vadd.f32 0.0, %v6596
        %6598 = vdwg.mxu0
        %6599 = vmatprep.subr.mxu0 %v4595
        %6600 = vmatpush1.msra.mxu0 %v4594
        %6601 = vmatprep.subr.mxu0 %v4597
        %6602 = vmatpush1.msra.mxu0 %v4596
        %6603 = vmatprep.subr.mxu0 %v4599
        %6604 = vmatpush1.msra.mxu0 %v4598
        %6605 = vmatprep.subr.mxu0 %v4601
        %6606 = vmatpush1.msra.mxu0 %v4600
        %6607 = vmatprep.subr.mxu0 %v4603
        %6608 = vmatpush1.msra.mxu0 %v4602
        %6609 = vmatprep.subr.mxu0 %v4605
        %6610 = vmatpush1.msra.mxu0 %v4604
        %6611 = vmatprep.subr.mxu0 %v4607
        %6612 = vmatpush1.msra.mxu0 %v4606
        %6613 = vmatprep.subr.mxu0 %v4609
        %6614 = vmatpush1.msra.mxu0 %v4608
        %6615 = vmatprep.subr.mxu0 %v4611
        %6616 = vmatpush1.msra.mxu0 %v4610
        %6617 = vmatprep.subr.mxu0 %v4613
        %6618 = vmatpush1.msra.mxu0 %v4612
        %6619 = vmatprep.subr.mxu0 %v4615
        %6620 = vmatpush1.msra.mxu0 %v4614
        %6621 = vmatprep.subr.mxu0 %v4617
        %6622 = vmatpush1.msra.mxu0 %v4616
        %6623 = vmatprep.subr.mxu0 %v4619
        %6624 = vmatpush1.msra.mxu0 %v4618
        %6625 = vmatprep.subr.mxu0 %v4621
        %6626 = vmatpush1.msra.mxu0 %v4620
        %6627 = vmatprep.subr.mxu0 %v4623
        %6628 = vmatpush1.msra.mxu0 %v4622
        %6629 = vmatprep.subr.mxu0 %v4625
        %6630 = vmatpush1.msra.mxu0 %v4624
        %6631 = vmatprep.subr.mxu0 %v4627
        %6632 = vmatpush1.msra.mxu0 %v4626
        %6633 = vmatprep.subr.mxu0 %v4629
        %6634 = vmatpush1.msra.mxu0 %v4628
        %6635 = vmatprep.subr.mxu0 %v4631
        %6636 = vmatpush1.msra.mxu0 %v4630
        %6637 = vmatprep.subr.mxu0 %v4633
        %6638 = vmatpush1.msra.mxu0 %v4632
        %6639 = vmatprep.subr.mxu0 %v4635
        %6640 = vmatpush1.msra.mxu0 %v4634
        %6641 = vmatprep.subr.mxu0 %v4637
        %6642 = vmatpush1.msra.mxu0 %v4636
        %6643 = vmatprep.subr.mxu0 %v4639
        %6644 = vmatpush1.msra.mxu0 %v4638
        %6645 = vmatprep.subr.mxu0 %v4641
        %6646 = vmatpush1.msra.mxu0 %v4640
        %6647 = vmatprep.subr.mxu0 %v4643
        %6648 = vmatpush1.msra.mxu0 %v4642
        %6649 = vmatprep.subr.mxu0 %v4645
        %6650 = vmatpush1.msra.mxu0 %v4644
        %6651 = vmatprep.subr.mxu0 %v4647
        %6652 = vmatpush1.msra.mxu0 %v4646
        %6653 = vmatprep.subr.mxu0 %v4649
        %6654 = vmatpush1.msra.mxu0 %v4648
        %6655 = vmatprep.subr.mxu0 0.0
        %6656 = vmatpush1.msra.mxu0 0.0
        %6657 = vmatprep.subr.mxu0 0.0
        %6658 = vmatpush1.msra.mxu0 0.0
        %6659 = vmatprep.subr.mxu0 0.0
        %6660 = vmatpush1.msra.mxu0 0.0
        %6661 = vmatprep.subr.mxu0 0.0
        %6662 = vmatpush1.msra.mxu0 0.0
        %6663 = vmatprep.mubr.f32.mxu0 %v4722
        %6664 = vmatmul.mubr.f32.gmra.mrb[0].mxu0 %v4650
        %v6665 = vpop.f32.mrb[0].mxu0
        %v6666 = vadd.f32 %v6559, %v6665
        %v6667 = vpop.f32.mrb[0].mxu0
        %v6668 = vadd.f32 %v6561, %v6667
        %6669 = vmatprep.mubr.f32.mxu0 %v4725
        %6670 = vmatmul.mubr.f32.gmra.mrb[0].mxu0 %v4652
        %v6671 = vpop.f32.mrb[0].mxu0
        %v6672 = vadd.f32 %v6565, %v6671
        %v6673 = vpop.f32.mrb[0].mxu0
        %v6674 = vadd.f32 %v6567, %v6673
        %6675 = vmatprep.mubr.f32.mxu0 %v4728
        %6676 = vmatmul.mubr.f32.gmra.mrb[0].mxu0 %v4654
        %v6677 = vpop.f32.mrb[0].mxu0
        %v6678 = vadd.f32 %v6571, %v6677
        %v6679 = vpop.f32.mrb[0].mxu0
        %v6680 = vadd.f32 %v6573, %v6679
        %6681 = vmatprep.mubr.f32.mxu0 %v4731
        %6682 = vmatmul.mubr.f32.gmra.mrb[0].mxu0 %v4656
        %v6683 = vpop.f32.mrb[0].mxu0
        %v6684 = vadd.f32 %v6577, %v6683
        %v6685 = vpop.f32.mrb[0].mxu0
        %v6686 = vadd.f32 %v6579, %v6685
        %6687 = vmatprep.mubr.f32.mxu0 %v4734
        %6688 = vmatmul.mubr.f32.gmra.mrb[0].mxu0 %v4658
        %v6689 = vpop.f32.mrb[0].mxu0
        %v6690 = vadd.f32 %v6583, %v6689
        %v6691 = vpop.f32.mrb[0].mxu0
        %v6692 = vadd.f32 %v6585, %v6691
        %6693 = vmatprep.mubr.f32.mxu0 %v4737
        %6694 = vmatmul.mubr.f32.gmra.mrb[0].mxu0 %v4660
        %v6695 = vpop.f32.mrb[0].mxu0
        %v6696 = vadd.f32 %v6589, %v6695
        %v6697 = vpop.f32.mrb[0].mxu0
        %v6698 = vadd.f32 %v6591, %v6697
        %6699 = vmatprep.mubr.f32.mxu0 %v4740
        %6700 = vmatmul.mubr.f32.gmra.mrb[0].mxu0 %v4662
        %v6701 = vpop.f32.mrb[0].mxu0
        %v6702 = vadd.f32 %v6595, %v6701
        %v6703 = vpop.f32.mrb[0].mxu0
        %v6704 = vadd.f32 %v6597, %v6703
        %6705 = vdwg.mxu0
        %6706 = vmatprep.subr.mxu0 %v4993
        %6707 = vmatpush1.msra.mxu0 %v4992
        %6708 = vmatprep.subr.mxu0 %v4995
        %6709 = vmatpush1.msra.mxu0 %v4994
        %6710 = vmatprep.subr.mxu0 %v4997
        %6711 = vmatpush1.msra.mxu0 %v4996
        %6712 = vmatprep.subr.mxu0 %v4999
        %6713 = vmatpush1.msra.mxu0 %v4998
        %6714 = vmatprep.subr.mxu0 %v5001
        %6715 = vmatpush1.msra.mxu0 %v5000
        %6716 = vmatprep.subr.mxu0 %v5003
        %6717 = vmatpush1.msra.mxu0 %v5002
        %6718 = vmatprep.subr.mxu0 %v5005
        %6719 = vmatpush1.msra.mxu0 %v5004
        %6720 = vmatprep.subr.mxu0 %v5007
        %6721 = vmatpush1.msra.mxu0 %v5006
        %6722 = vmatprep.subr.mxu0 %v5009
        %6723 = vmatpush1.msra.mxu0 %v5008
        %6724 = vmatprep.subr.mxu0 %v5011
        %6725 = vmatpush1.msra.mxu0 %v5010
        %6726 = vmatprep.subr.mxu0 %v5013
        %6727 = vmatpush1.msra.mxu0 %v5012
        %6728 = vmatprep.subr.mxu0 %v5015
        %6729 = vmatpush1.msra.mxu0 %v5014
        %6730 = vmatprep.subr.mxu0 %v5017
        %6731 = vmatpush1.msra.mxu0 %v5016
        %6732 = vmatprep.subr.mxu0 %v5019
        %6733 = vmatpush1.msra.mxu0 %v5018
        %6734 = vmatprep.subr.mxu0 %v5021
        %6735 = vmatpush1.msra.mxu0 %v5020
        %6736 = vmatprep.subr.mxu0 %v5023
        %6737 = vmatpush1.msra.mxu0 %v5022
        %6738 = vmatprep.subr.mxu0 %v5025
        %6739 = vmatpush1.msra.mxu0 %v5024
        %6740 = vmatprep.subr.mxu0 %v5027
        %6741 = vmatpush1.msra.mxu0 %v5026
        %6742 = vmatprep.subr.mxu0 %v5029
        %6743 = vmatpush1.msra.mxu0 %v5028
        %6744 = vmatprep.subr.mxu0 %v5031
        %6745 = vmatpush1.msra.mxu0 %v5030
        %6746 = vmatprep.subr.mxu0 %v5033
        %6747 = vmatpush1.msra.mxu0 %v5032
        %6748 = vmatprep.subr.mxu0 %v5035
        %6749 = vmatpush1.msra.mxu0 %v5034
        %6750 = vmatprep.subr.mxu0 %v5037
        %6751 = vmatpush1.msra.mxu0 %v5036
        %6752 = vmatprep.subr.mxu0 %v5039
        %6753 = vmatpush1.msra.mxu0 %v5038
        %6754 = vmatprep.subr.mxu0 %v5041
        %6755 = vmatpush1.msra.mxu0 %v5040
        %6756 = vmatprep.subr.mxu0 %v5043
        %6757 = vmatpush1.msra.mxu0 %v5042
        %6758 = vmatprep.subr.mxu0 %v5045
        %6759 = vmatpush1.msra.mxu0 %v5044
        %6760 = vmatprep.subr.mxu0 %v5047
        %6761 = vmatpush1.msra.mxu0 %v5046
        %6762 = vmatprep.subr.mxu0 0.0
        %6763 = vmatpush1.msra.mxu0 0.0
        %6764 = vmatprep.subr.mxu0 0.0
        %6765 = vmatpush1.msra.mxu0 0.0
        %6766 = vmatprep.subr.mxu0 0.0
        %6767 = vmatpush1.msra.mxu0 0.0
        %6768 = vmatprep.subr.mxu0 0.0
        %6769 = vmatpush1.msra.mxu0 0.0
        %6770 = vmatprep.mubr.f32.mxu0 %v5262
        %6771 = vmatmul.mubr.f32.gmra.mrb[0].mxu0 %v5190
        %v6772 = vpop.f32.mrb[0].mxu0
        %v6773 = vadd.f32 0.0, %v6772
        %v6774 = vpop.f32.mrb[0].mxu0
        %v6775 = vadd.f32 0.0, %v6774
        %6776 = vmatprep.mubr.f32.mxu0 %v5265
        %6777 = vmatmul.mubr.f32.gmra.mrb[0].mxu0 %v5192
        %v6778 = vpop.f32.mrb[0].mxu0
        %v6779 = vadd.f32 0.0, %v6778
        %v6780 = vpop.f32.mrb[0].mxu0
        %v6781 = vadd.f32 0.0, %v6780
        %6782 = vmatprep.mubr.f32.mxu0 %v5268
        %6783 = vmatmul.mubr.f32.gmra.mrb[0].mxu0 %v5194
        %v6784 = vpop.f32.mrb[0].mxu0
        %v6785 = vadd.f32 0.0, %v6784
        %v6786 = vpop.f32.mrb[0].mxu0
        %v6787 = vadd.f32 0.0, %v6786
        %6788 = vmatprep.mubr.f32.mxu0 %v5271
        %6789 = vmatmul.mubr.f32.gmra.mrb[0].mxu0 %v5196
        %v6790 = vpop.f32.mrb[0].mxu0
        %v6791 = vadd.f32 0.0, %v6790
        %v6792 = vpop.f32.mrb[0].mxu0
        %v6793 = vadd.f32 0.0, %v6792
        %6794 = vmatprep.mubr.f32.mxu0 %v5274
        %6795 = vmatmul.mubr.f32.gmra.mrb[0].mxu0 %v5198
        %v6796 = vpop.f32.mrb[0].mxu0
        %v6797 = vadd.f32 0.0, %v6796
        %v6798 = vpop.f32.mrb[0].mxu0
        %v6799 = vadd.f32 0.0, %v6798
        %6800 = vmatprep.mubr.f32.mxu0 %v5277
        %6801 = vmatmul.mubr.f32.gmra.mrb[0].mxu0 %v5200
        %v6802 = vpop.f32.mrb[0].mxu0
        %v6803 = vadd.f32 0.0, %v6802
        %v6804 = vpop.f32.mrb[0].mxu0
        %v6805 = vadd.f32 0.0, %v6804
        %6806 = vmatprep.mubr.f32.mxu0 %v5280
        %6807 = vmatmul.mubr.f32.gmra.mrb[0].mxu0 %v5202
        %v6808 = vpop.f32.mrb[0].mxu0
        %v6809 = vadd.f32 0.0, %v6808
        %v6810 = vpop.f32.mrb[0].mxu0
        %v6811 = vadd.f32 0.0, %v6810
        %6812 = vdwg.mxu0
        %v6813 = vadd.f32 %v6666, %v6773
        %v6814 = vadd.f32 %v6668, %v6775
        %v6815 = vadd.f32 %v6672, %v6779
        %v6816 = vadd.f32 %v6674, %v6781
        %v6817 = vadd.f32 %v6678, %v6785
        %v6818 = vadd.f32 %v6680, %v6787
        %v6819 = vadd.f32 %v6684, %v6791
        %v6820 = vadd.f32 %v6686, %v6793
        %v6821 = vadd.f32 %v6690, %v6797
        %v6822 = vadd.f32 %v6692, %v6799
        %v6823 = vadd.f32 %v6696, %v6803
        %v6824 = vadd.f32 %v6698, %v6805
        %v6825 = vadd.f32 %v6702, %v6809
        %v6826 = vadd.f32 %v6704, %v6811
        %6827 = vmatprep.subr.mxu0 %v5206
        %6828 = vmatpush1.msra.mxu0 %v5205
        %6829 = vmatprep.subr.mxu0 %v5208
        %6830 = vmatpush1.msra.mxu0 %v5207
        %6831 = vmatprep.subr.mxu0 %v5210
        %6832 = vmatpush1.msra.mxu0 %v5209
        %6833 = vmatprep.subr.mxu0 %v5212
        %6834 = vmatpush1.msra.mxu0 %v5211
        %6835 = vmatprep.subr.mxu0 %v5214
        %6836 = vmatpush1.msra.mxu0 %v5213
        %6837 = vmatprep.subr.mxu0 %v5216
        %6838 = vmatpush1.msra.mxu0 %v5215
        %6839 = vmatprep.subr.mxu0 %v5218
        %6840 = vmatpush1.msra.mxu0 %v5217
        %6841 = vmatprep.subr.mxu0 %v5220
        %6842 = vmatpush1.msra.mxu0 %v5219
        %6843 = vmatprep.subr.mxu0 %v5222
        %6844 = vmatpush1.msra.mxu0 %v5221
        %6845 = vmatprep.subr.mxu0 %v5224
        %6846 = vmatpush1.msra.mxu0 %v5223
        %6847 = vmatprep.subr.mxu0 %v5226
        %6848 = vmatpush1.msra.mxu0 %v5225
        %6849 = vmatprep.subr.mxu0 %v5228
        %6850 = vmatpush1.msra.mxu0 %v5227
        %6851 = vmatprep.subr.mxu0 %v5230
        %6852 = vmatpush1.msra.mxu0 %v5229
        %6853 = vmatprep.subr.mxu0 %v5232
        %6854 = vmatpush1.msra.mxu0 %v5231
        %6855 = vmatprep.subr.mxu0 %v5234
        %6856 = vmatpush1.msra.mxu0 %v5233
        %6857 = vmatprep.subr.mxu0 %v5236
        %6858 = vmatpush1.msra.mxu0 %v5235
        %6859 = vmatprep.subr.mxu0 %v5238
        %6860 = vmatpush1.msra.mxu0 %v5237
        %6861 = vmatprep.subr.mxu0 %v5240
        %6862 = vmatpush1.msra.mxu0 %v5239
        %6863 = vmatprep.subr.mxu0 %v5242
        %6864 = vmatpush1.msra.mxu0 %v5241
        %6865 = vmatprep.subr.mxu0 %v5244
        %6866 = vmatpush1.msra.mxu0 %v5243
        %6867 = vmatprep.subr.mxu0 %v5246
        %6868 = vmatpush1.msra.mxu0 %v5245
        %6869 = vmatprep.subr.mxu0 %v5248
        %6870 = vmatpush1.msra.mxu0 %v5247
        %6871 = vmatprep.subr.mxu0 %v5250
        %6872 = vmatpush1.msra.mxu0 %v5249
        %6873 = vmatprep.subr.mxu0 %v5252
        %6874 = vmatpush1.msra.mxu0 %v5251
        %6875 = vmatprep.subr.mxu0 %v5254
        %6876 = vmatpush1.msra.mxu0 %v5253
        %6877 = vmatprep.subr.mxu0 %v5256
        %6878 = vmatpush1.msra.mxu0 %v5255
        %6879 = vmatprep.subr.mxu0 %v5258
        %6880 = vmatpush1.msra.mxu0 %v5257
        %6881 = vmatprep.subr.mxu0 %v5260
        %6882 = vmatpush1.msra.mxu0 %v5259
        %6883 = vmatprep.subr.mxu0 0.0
        %6884 = vmatpush1.msra.mxu0 0.0
        %6885 = vmatprep.subr.mxu0 0.0
        %6886 = vmatpush1.msra.mxu0 0.0
        %6887 = vmatprep.subr.mxu0 0.0
        %6888 = vmatpush1.msra.mxu0 0.0
        %6889 = vmatprep.subr.mxu0 0.0
        %6890 = vmatpush1.msra.mxu0 0.0
        %6891 = vmatprep.mubr.f32.mxu0 %v5475
        %6892 = vmatmul.mubr.f32.gmra.mrb[0].mxu0 %v5403
        %v6893 = vpop.f32.mrb[0].mxu0
        %v6894 = vadd.f32 0.0, %v6893
        %v6895 = vpop.f32.mrb[0].mxu0
        %v6896 = vadd.f32 0.0, %v6895
        %6897 = vmatprep.mubr.f32.mxu0 %v5478
        %6898 = vmatmul.mubr.f32.gmra.mrb[0].mxu0 %v5405
        %v6899 = vpop.f32.mrb[0].mxu0
        %v6900 = vadd.f32 0.0, %v6899
        %v6901 = vpop.f32.mrb[0].mxu0
        %v6902 = vadd.f32 0.0, %v6901
        %6903 = vmatprep.mubr.f32.mxu0 %v5481
        %6904 = vmatmul.mubr.f32.gmra.mrb[0].mxu0 %v5407
        %v6905 = vpop.f32.mrb[0].mxu0
        %v6906 = vadd.f32 0.0, %v6905
        %v6907 = vpop.f32.mrb[0].mxu0
        %v6908 = vadd.f32 0.0, %v6907
        %6909 = vmatprep.mubr.f32.mxu0 %v5484
        %6910 = vmatmul.mubr.f32.gmra.mrb[0].mxu0 %v5409
        %v6911 = vpop.f32.mrb[0].mxu0
        %v6912 = vadd.f32 0.0, %v6911
        %v6913 = vpop.f32.mrb[0].mxu0
        %v6914 = vadd.f32 0.0, %v6913
        %6915 = vmatprep.mubr.f32.mxu0 %v5487
        %6916 = vmatmul.mubr.f32.gmra.mrb[0].mxu0 %v5411
        %v6917 = vpop.f32.mrb[0].mxu0
        %v6918 = vadd.f32 0.0, %v6917
        %v6919 = vpop.f32.mrb[0].mxu0
        %v6920 = vadd.f32 0.0, %v6919
        %6921 = vmatprep.mubr.f32.mxu0 %v5490
        %6922 = vmatmul.mubr.f32.gmra.mrb[0].mxu0 %v5413
        %v6923 = vpop.f32.mrb[0].mxu0
        %v6924 = vadd.f32 0.0, %v6923
        %v6925 = vpop.f32.mrb[0].mxu0
        %v6926 = vadd.f32 0.0, %v6925
        %6927 = vmatprep.mubr.f32.mxu0 %v5493
        %6928 = vmatmul.mubr.f32.gmra.mrb[0].mxu0 %v5415
        %v6929 = vpop.f32.mrb[0].mxu0
        %v6930 = vadd.f32 0.0, %v6929
        %v6931 = vpop.f32.mrb[0].mxu0
        %v6932 = vadd.f32 0.0, %v6931
        %6933 = vdwg.mxu0
        %v6934 = vadd.f32 %v6813, %v6894
        %v6935 = vadd.f32 %v6814, %v6896
        %v6936 = vadd.f32 %v6815, %v6900
        %v6937 = vadd.f32 %v6816, %v6902
        %v6938 = vadd.f32 %v6817, %v6906
        %v6939 = vadd.f32 %v6818, %v6908
        %v6940 = vadd.f32 %v6819, %v6912
        %v6941 = vadd.f32 %v6820, %v6914
        %v6942 = vadd.f32 %v6821, %v6918
        %v6943 = vadd.f32 %v6822, %v6920
        %v6944 = vadd.f32 %v6823, %v6924
        %v6945 = vadd.f32 %v6824, %v6926
        %v6946 = vadd.f32 %v6825, %v6930
        %v6947 = vadd.f32 %v6826, %v6932
        %v6948 = vld [vmem:[%s4547] sm:$0xff]
        %v6949 = vld [vmem:[%s4547 + $0x8] sm:$0xff]
        %v6950 = vld [vmem:[%s4547 + $0x10] sm:$0xff]
        %v6951 = vld [vmem:[%s4547 + $0x18] sm:$0xff]
        %v6952 = vld [vmem:[%s4547 + $0x20] sm:$0xff]
        %v6953 = vld [vmem:[%s4547 + $0x28] sm:$0xff]
        %v6954 = vld [vmem:[%s4547 + $0x30] sm:$0xff]
        %v6955 = vld [vmem:[%s4547 + $0x38] sm:$0xff]
        %v6956 = vld [vmem:[%s4547 + $0x40] sm:$0xff]
        %v6957 = vld [vmem:[%s4547 + $0x48] sm:$0xff]
        %v6958 = vld [vmem:[%s4547 + $0x50] sm:$0xff]
        %v6959 = vld [vmem:[%s4547 + $0x58] sm:$0xff]
        %v6960 = vld [vmem:[%s4547 + $0x60] sm:$0xff]
        %v6961 = vld [vmem:[%s4547 + $0x68] sm:$0xff]
        %v6963 = vsel %vm487, %v6949, 0
        %v6966 = vsel %vm487, %v6951, 0
        %v6969 = vsel %vm487, %v6953, 0
        %v6972 = vsel %vm487, %v6955, 0
        %v6975 = vsel %vm487, %v6957, 0
        %v6978 = vsel %vm487, %v6959, 0
        %v6981 = vsel %vm487, %v6961, 0
        %6983 = vmatprep.subr.mxu0 %v5419
        %6984 = vmatpush1.msra.mxu0 %v5418
        %6985 = vmatprep.subr.mxu0 %v5421
        %6986 = vmatpush1.msra.mxu0 %v5420
        %6987 = vmatprep.subr.mxu0 %v5423
        %6988 = vmatpush1.msra.mxu0 %v5422
        %6989 = vmatprep.subr.mxu0 %v5425
        %6990 = vmatpush1.msra.mxu0 %v5424
        %6991 = vmatprep.subr.mxu0 %v5427
        %6992 = vmatpush1.msra.mxu0 %v5426
        %6993 = vmatprep.subr.mxu0 %v5429
        %6994 = vmatpush1.msra.mxu0 %v5428
        %6995 = vmatprep.subr.mxu0 %v5431
        %6996 = vmatpush1.msra.mxu0 %v5430
        %6997 = vmatprep.subr.mxu0 %v5433
        %6998 = vmatpush1.msra.mxu0 %v5432
        %6999 = vmatprep.subr.mxu0 %v5435
        %7000 = vmatpush1.msra.mxu0 %v5434
        %7001 = vmatprep.subr.mxu0 %v5437
        %7002 = vmatpush1.msra.mxu0 %v5436
        %7003 = vmatprep.subr.mxu0 %v5439
        %7004 = vmatpush1.msra.mxu0 %v5438
        %7005 = vmatprep.subr.mxu0 %v5441
        %7006 = vmatpush1.msra.mxu0 %v5440
        %7007 = vmatprep.subr.mxu0 %v5443
        %7008 = vmatpush1.msra.mxu0 %v5442
        %7009 = vmatprep.subr.mxu0 %v5445
        %7010 = vmatpush1.msra.mxu0 %v5444
        %7011 = vmatprep.subr.mxu0 %v5447
        %7012 = vmatpush1.msra.mxu0 %v5446
        %7013 = vmatprep.subr.mxu0 %v5449
        %7014 = vmatpush1.msra.mxu0 %v5448
        %7015 = vmatprep.subr.mxu0 %v5451
        %7016 = vmatpush1.msra.mxu0 %v5450
        %7017 = vmatprep.subr.mxu0 %v5453
        %7018 = vmatpush1.msra.mxu0 %v5452
        %7019 = vmatprep.subr.mxu0 %v5455
        %7020 = vmatpush1.msra.mxu0 %v5454
        %7021 = vmatprep.subr.mxu0 %v5457
        %7022 = vmatpush1.msra.mxu0 %v5456
        %7023 = vmatprep.subr.mxu0 %v5459
        %7024 = vmatpush1.msra.mxu0 %v5458
        %7025 = vmatprep.subr.mxu0 %v5461
        %7026 = vmatpush1.msra.mxu0 %v5460
        %7027 = vmatprep.subr.mxu0 %v5463
        %7028 = vmatpush1.msra.mxu0 %v5462
        %7029 = vmatprep.subr.mxu0 %v5465
        %7030 = vmatpush1.msra.mxu0 %v5464
        %7031 = vmatprep.subr.mxu0 %v5467
        %7032 = vmatpush1.msra.mxu0 %v5466
        %7033 = vmatprep.subr.mxu0 %v5469
        %7034 = vmatpush1.msra.mxu0 %v5468
        %7035 = vmatprep.subr.mxu0 %v5471
        %7036 = vmatpush1.msra.mxu0 %v5470
        %7037 = vmatprep.subr.mxu0 %v5473
        %7038 = vmatpush1.msra.mxu0 %v5472
        %7039 = vmatprep.subr.mxu0 0.0
        %7040 = vmatpush1.msra.mxu0 0.0
        %7041 = vmatprep.subr.mxu0 0.0
        %7042 = vmatpush1.msra.mxu0 0.0
        %7043 = vmatprep.subr.mxu0 0.0
        %7044 = vmatpush1.msra.mxu0 0.0
        %7045 = vmatprep.subr.mxu0 0.0
        %7046 = vmatpush1.msra.mxu0 0.0
        %7047 = vmatprep.mubr.f32.mxu0 %v6963
        %7048 = vmatmul.mubr.f32.gmra.mrb[0].mxu0 %v6948
        %v7049 = vpop.f32.mrb[0].mxu0
        %v7050 = vadd.f32 0.0, %v7049
        %v7051 = vpop.f32.mrb[0].mxu0
        %v7052 = vadd.f32 0.0, %v7051
        %7053 = vmatprep.mubr.f32.mxu0 %v6966
        %7054 = vmatmul.mubr.f32.gmra.mrb[0].mxu0 %v6950
        %v7055 = vpop.f32.mrb[0].mxu0
        %v7056 = vadd.f32 0.0, %v7055
        %v7057 = vpop.f32.mrb[0].mxu0
        %v7058 = vadd.f32 0.0, %v7057
        %7059 = vmatprep.mubr.f32.mxu0 %v6969
        %7060 = vmatmul.mubr.f32.gmra.mrb[0].mxu0 %v6952
        %v7061 = vpop.f32.mrb[0].mxu0
        %v7062 = vadd.f32 0.0, %v7061
        %v7063 = vpop.f32.mrb[0].mxu0
        %v7064 = vadd.f32 0.0, %v7063
        %7065 = vmatprep.mubr.f32.mxu0 %v6972
        %7066 = vmatmul.mubr.f32.gmra.mrb[0].mxu0 %v6954
        %v7067 = vpop.f32.mrb[0].mxu0
        %v7068 = vadd.f32 0.0, %v7067
        %v7069 = vpop.f32.mrb[0].mxu0
        %v7070 = vadd.f32 0.0, %v7069
        %7071 = vmatprep.mubr.f32.mxu0 %v6975
        %7072 = vmatmul.mubr.f32.gmra.mrb[0].mxu0 %v6956
        %v7073 = vpop.f32.mrb[0].mxu0
        %v7074 = vadd.f32 0.0, %v7073
        %v7075 = vpop.f32.mrb[0].mxu0
        %v7076 = vadd.f32 0.0, %v7075
        %7077 = vmatprep.mubr.f32.mxu0 %v6978
        %7078 = vmatmul.mubr.f32.gmra.mrb[0].mxu0 %v6958
        %v7079 = vpop.f32.mrb[0].mxu0
        %v7080 = vadd.f32 0.0, %v7079
        %v7081 = vpop.f32.mrb[0].mxu0
        %v7082 = vadd.f32 0.0, %v7081
        %7083 = vmatprep.mubr.f32.mxu0 %v6981
        %7084 = vmatmul.mubr.f32.gmra.mrb[0].mxu0 %v6960
        %v7085 = vpop.f32.mrb[0].mxu0
        %v7086 = vadd.f32 0.0, %v7085
        %v7087 = vpop.f32.mrb[0].mxu0
        %v7088 = vadd.f32 0.0, %v7087
        %7089 = vdwg.mxu0
        %v7090 = vadd.f32 %v6934, %v7050
        %v7091 = vadd.f32 %v6935, %v7052
        %v7092 = vadd.f32 %v6936, %v7056
        %v7093 = vadd.f32 %v6937, %v7058
        %v7094 = vadd.f32 %v6938, %v7062
        %v7095 = vadd.f32 %v6939, %v7064
        %v7096 = vadd.f32 %v6940, %v7068
        %v7097 = vadd.f32 %v6941, %v7070
        %v7098 = vadd.f32 %v6942, %v7074
        %v7099 = vadd.f32 %v6943, %v7076
        %v7100 = vadd.f32 %v6944, %v7080
        %v7101 = vadd.f32 %v6945, %v7082
        %v7102 = vadd.f32 %v6946, %v7086
        %v7103 = vadd.f32 %v6947, %v7088
        %v7104 = vmax.f32 %v6478, %v7090
        %v7105 = vmax.f32 %v6479, %v7091
        %v7106 = vmax.f32 %v6480, %v7092
        %v7107 = vmax.f32 %v6481, %v7093
        %v7108 = vmax.f32 %v6482, %v7094
        %v7109 = vmax.f32 %v6483, %v7095
        %v7110 = vmax.f32 %v6484, %v7096
        %v7111 = vmax.f32 %v6485, %v7097
        %v7112 = vmax.f32 %v6486, %v7098
        %v7113 = vmax.f32 %v6487, %v7099
        %v7114 = vmax.f32 %v6488, %v7100
        %v7115 = vmax.f32 %v6489, %v7101
        %v7116 = vmax.f32 %v6490, %v7102
        %v7117 = vmax.f32 %v6491, %v7103
        %7118 = vmatprep.subr.mxu0 %v5675
        %7119 = vmatpush1.msra.mxu0 %v5674
        %7120 = vmatprep.subr.mxu0 %v5677
        %7121 = vmatpush1.msra.mxu0 %v5676
        %7122 = vmatprep.subr.mxu0 %v5679
        %7123 = vmatpush1.msra.mxu0 %v5678
        %7124 = vmatprep.subr.mxu0 %v5681
        %7125 = vmatpush1.msra.mxu0 %v5680
        %7126 = vmatprep.subr.mxu0 %v5683
        %7127 = vmatpush1.msra.mxu0 %v5682
        %7128 = vmatprep.subr.mxu0 %v5685
        %7129 = vmatpush1.msra.mxu0 %v5684
        %7130 = vmatprep.subr.mxu0 %v5687
        %7131 = vmatpush1.msra.mxu0 %v5686
        %7132 = vmatprep.subr.mxu0 %v5689
        %7133 = vmatpush1.msra.mxu0 %v5688
        %7134 = vmatprep.subr.mxu0 %v5691
        %7135 = vmatpush1.msra.mxu0 %v5690
        %7136 = vmatprep.subr.mxu0 %v5693
        %7137 = vmatpush1.msra.mxu0 %v5692
        %7138 = vmatprep.subr.mxu0 %v5695
        %7139 = vmatpush1.msra.mxu0 %v5694
        %7140 = vmatprep.subr.mxu0 %v5697
        %7141 = vmatpush1.msra.mxu0 %v5696
        %7142 = vmatprep.subr.mxu0 %v5699
        %7143 = vmatpush1.msra.mxu0 %v5698
        %7144 = vmatprep.subr.mxu0 %v5701
        %7145 = vmatpush1.msra.mxu0 %v5700
        %7146 = vmatprep.subr.mxu0 %v5703
        %7147 = vmatpush1.msra.mxu0 %v5702
        %7148 = vmatprep.subr.mxu0 %v5705
        %7149 = vmatpush1.msra.mxu0 %v5704
        %7150 = vmatprep.subr.mxu0 %v5707
        %7151 = vmatpush1.msra.mxu0 %v5706
        %7152 = vmatprep.subr.mxu0 %v5709
        %7153 = vmatpush1.msra.mxu0 %v5708
        %7154 = vmatprep.subr.mxu0 %v5711
        %7155 = vmatpush1.msra.mxu0 %v5710
        %7156 = vmatprep.subr.mxu0 %v5713
        %7157 = vmatpush1.msra.mxu0 %v5712
        %7158 = vmatprep.subr.mxu0 %v5715
        %7159 = vmatpush1.msra.mxu0 %v5714
        %7160 = vmatprep.subr.mxu0 %v5717
        %7161 = vmatpush1.msra.mxu0 %v5716
        %7162 = vmatprep.subr.mxu0 %v5719
        %7163 = vmatpush1.msra.mxu0 %v5718
        %7164 = vmatprep.subr.mxu0 %v5721
        %7165 = vmatpush1.msra.mxu0 %v5720
        %7166 = vmatprep.subr.mxu0 %v5723
        %7167 = vmatpush1.msra.mxu0 %v5722
        %7168 = vmatprep.subr.mxu0 %v5725
        %7169 = vmatpush1.msra.mxu0 %v5724
        %7170 = vmatprep.subr.mxu0 %v5727
        %7171 = vmatpush1.msra.mxu0 %v5726
        %7172 = vmatprep.subr.mxu0 %v5729
        %7173 = vmatpush1.msra.mxu0 %v5728
        %7174 = vmatprep.subr.mxu0 0.0
        %7175 = vmatpush1.msra.mxu0 0.0
        %7176 = vmatprep.subr.mxu0 0.0
        %7177 = vmatpush1.msra.mxu0 0.0
        %7178 = vmatprep.subr.mxu0 0.0
        %7179 = vmatpush1.msra.mxu0 0.0
        %7180 = vmatprep.subr.mxu0 0.0
        %7181 = vmatpush1.msra.mxu0 0.0
        %7182 = vmatprep.mubr.f32.mxu0 %v5049
        %7183 = vmatmul.mubr.f32.gmra.mrb[0].mxu0 %v4977
        %v7184 = vpop.f32.mrb[0].mxu0
        %v7185 = vadd.f32 0.0, %v7184
        %v7186 = vpop.f32.mrb[0].mxu0
        %v7187 = vadd.f32 0.0, %v7186
        %7188 = vmatprep.mubr.f32.mxu0 %v5052
        %7189 = vmatmul.mubr.f32.gmra.mrb[0].mxu0 %v4979
        %v7190 = vpop.f32.mrb[0].mxu0
        %v7191 = vadd.f32 0.0, %v7190
        %v7192 = vpop.f32.mrb[0].mxu0
        %v7193 = vadd.f32 0.0, %v7192
        %7194 = vmatprep.mubr.f32.mxu0 %v5055
        %7195 = vmatmul.mubr.f32.gmra.mrb[0].mxu0 %v4981
        %v7196 = vpop.f32.mrb[0].mxu0
        %v7197 = vadd.f32 0.0, %v7196
        %v7198 = vpop.f32.mrb[0].mxu0
        %v7199 = vadd.f32 0.0, %v7198
        %7200 = vmatprep.mubr.f32.mxu0 %v5058
        %7201 = vmatmul.mubr.f32.gmra.mrb[0].mxu0 %v4983
        %v7202 = vpop.f32.mrb[0].mxu0
        %v7203 = vadd.f32 0.0, %v7202
        %v7204 = vpop.f32.mrb[0].mxu0
        %v7205 = vadd.f32 0.0, %v7204
        %7206 = vmatprep.mubr.f32.mxu0 %v5061
        %7207 = vmatmul.mubr.f32.gmra.mrb[0].mxu0 %v4985
        %v7208 = vpop.f32.mrb[0].mxu0
        %v7209 = vadd.f32 0.0, %v7208
        %v7210 = vpop.f32.mrb[0].mxu0
        %v7211 = vadd.f32 0.0, %v7210
        %7212 = vmatprep.mubr.f32.mxu0 %v5064
        %7213 = vmatmul.mubr.f32.gmra.mrb[0].mxu0 %v4987
        %v7214 = vpop.f32.mrb[0].mxu0
        %v7215 = vadd.f32 0.0, %v7214
        %v7216 = vpop.f32.mrb[0].mxu0
        %v7217 = vadd.f32 0.0, %v7216
        %7218 = vmatprep.mubr.f32.mxu0 %v5067
        %7219 = vmatmul.mubr.f32.gmra.mrb[0].mxu0 %v4989
        %v7220 = vpop.f32.mrb[0].mxu0
        %v7221 = vadd.f32 0.0, %v7220
        %v7222 = vpop.f32.mrb[0].mxu0
        %v7223 = vadd.f32 0.0, %v7222
        %7224 = vdwg.mxu0
        %7225 = vmatprep.subr.mxu0 %v5618
        %7226 = vmatpush1.msra.mxu0 %v5617
        %7227 = vmatprep.subr.mxu0 %v5620
        %7228 = vmatpush1.msra.mxu0 %v5619
        %7229 = vmatprep.subr.mxu0 %v5622
        %7230 = vmatpush1.msra.mxu0 %v5621
        %7231 = vmatprep.subr.mxu0 %v5624
        %7232 = vmatpush1.msra.mxu0 %v5623
        %7233 = vmatprep.subr.mxu0 %v5626
        %7234 = vmatpush1.msra.mxu0 %v5625
        %7235 = vmatprep.subr.mxu0 %v5628
        %7236 = vmatpush1.msra.mxu0 %v5627
        %7237 = vmatprep.subr.mxu0 %v5630
        %7238 = vmatpush1.msra.mxu0 %v5629
        %7239 = vmatprep.subr.mxu0 %v5632
        %7240 = vmatpush1.msra.mxu0 %v5631
        %7241 = vmatprep.subr.mxu0 %v5634
        %7242 = vmatpush1.msra.mxu0 %v5633
        %7243 = vmatprep.subr.mxu0 %v5636
        %7244 = vmatpush1.msra.mxu0 %v5635
        %7245 = vmatprep.subr.mxu0 %v5638
        %7246 = vmatpush1.msra.mxu0 %v5637
        %7247 = vmatprep.subr.mxu0 %v5640
        %7248 = vmatpush1.msra.mxu0 %v5639
        %7249 = vmatprep.subr.mxu0 %v5642
        %7250 = vmatpush1.msra.mxu0 %v5641
        %7251 = vmatprep.subr.mxu0 %v5644
        %7252 = vmatpush1.msra.mxu0 %v5643
        %7253 = vmatprep.subr.mxu0 %v5646
        %7254 = vmatpush1.msra.mxu0 %v5645
        %7255 = vmatprep.subr.mxu0 %v5648
        %7256 = vmatpush1.msra.mxu0 %v5647
        %7257 = vmatprep.subr.mxu0 %v5650
        %7258 = vmatpush1.msra.mxu0 %v5649
        %7259 = vmatprep.subr.mxu0 %v5652
        %7260 = vmatpush1.msra.mxu0 %v5651
        %7261 = vmatprep.subr.mxu0 %v5654
        %7262 = vmatpush1.msra.mxu0 %v5653
        %7263 = vmatprep.subr.mxu0 %v5656
        %7264 = vmatpush1.msra.mxu0 %v5655
        %7265 = vmatprep.subr.mxu0 %v5658
        %7266 = vmatpush1.msra.mxu0 %v5657
        %7267 = vmatprep.subr.mxu0 %v5660
        %7268 = vmatpush1.msra.mxu0 %v5659
        %7269 = vmatprep.subr.mxu0 %v5662
        %7270 = vmatpush1.msra.mxu0 %v5661
        %7271 = vmatprep.subr.mxu0 %v5664
        %7272 = vmatpush1.msra.mxu0 %v5663
        %7273 = vmatprep.subr.mxu0 %v5666
        %7274 = vmatpush1.msra.mxu0 %v5665
        %7275 = vmatprep.subr.mxu0 %v5668
        %7276 = vmatpush1.msra.mxu0 %v5667
        %7277 = vmatprep.subr.mxu0 %v5670
        %7278 = vmatpush1.msra.mxu0 %v5669
        %7279 = vmatprep.subr.mxu0 %v5672
        %7280 = vmatpush1.msra.mxu0 %v5671
        %7281 = vmatprep.subr.mxu0 0.0
        %7282 = vmatpush1.msra.mxu0 0.0
        %7283 = vmatprep.subr.mxu0 0.0
        %7284 = vmatpush1.msra.mxu0 0.0
        %7285 = vmatprep.subr.mxu0 0.0
        %7286 = vmatpush1.msra.mxu0 0.0
        %7287 = vmatprep.subr.mxu0 0.0
        %7288 = vmatpush1.msra.mxu0 0.0
        %7289 = vmatprep.mubr.f32.mxu0 %v4722
        %7290 = vmatmul.mubr.f32.gmra.mrb[0].mxu0 %v4650
        %v7291 = vpop.f32.mrb[0].mxu0
        %v7292 = vadd.f32 %v7185, %v7291
        %v7293 = vpop.f32.mrb[0].mxu0
        %v7294 = vadd.f32 %v7187, %v7293
        %7295 = vmatprep.mubr.f32.mxu0 %v4725
        %7296 = vmatmul.mubr.f32.gmra.mrb[0].mxu0 %v4652
        %v7297 = vpop.f32.mrb[0].mxu0
        %v7298 = vadd.f32 %v7191, %v7297
        %v7299 = vpop.f32.mrb[0].mxu0
        %v7300 = vadd.f32 %v7193, %v7299
        %7301 = vmatprep.mubr.f32.mxu0 %v4728
        %7302 = vmatmul.mubr.f32.gmra.mrb[0].mxu0 %v4654
        %v7303 = vpop.f32.mrb[0].mxu0
        %v7304 = vadd.f32 %v7197, %v7303
        %v7305 = vpop.f32.mrb[0].mxu0
        %v7306 = vadd.f32 %v7199, %v7305
        %7307 = vmatprep.mubr.f32.mxu0 %v4731
        %7308 = vmatmul.mubr.f32.gmra.mrb[0].mxu0 %v4656
        %v7309 = vpop.f32.mrb[0].mxu0
        %v7310 = vadd.f32 %v7203, %v7309
        %v7311 = vpop.f32.mrb[0].mxu0
        %v7312 = vadd.f32 %v7205, %v7311
        %7313 = vmatprep.mubr.f32.mxu0 %v4734
        %7314 = vmatmul.mubr.f32.gmra.mrb[0].mxu0 %v4658
        %v7315 = vpop.f32.mrb[0].mxu0
        %v7316 = vadd.f32 %v7209, %v7315
        %v7317 = vpop.f32.mrb[0].mxu0
        %v7318 = vadd.f32 %v7211, %v7317
        %7319 = vmatprep.mubr.f32.mxu0 %v4737
        %7320 = vmatmul.mubr.f32.gmra.mrb[0].mxu0 %v4660
        %v7321 = vpop.f32.mrb[0].mxu0
        %v7322 = vadd.f32 %v7215, %v7321
        %v7323 = vpop.f32.mrb[0].mxu0
        %v7324 = vadd.f32 %v7217, %v7323
        %7325 = vmatprep.mubr.f32.mxu0 %v4740
        %7326 = vmatmul.mubr.f32.gmra.mrb[0].mxu0 %v4662
        %v7327 = vpop.f32.mrb[0].mxu0
        %v7328 = vadd.f32 %v7221, %v7327
        %v7329 = vpop.f32.mrb[0].mxu0
        %v7330 = vadd.f32 %v7223, %v7329
        %7331 = vdwg.mxu0
        %7332 = vmatprep.subr.mxu0 %v5946
        %7333 = vmatpush1.msra.mxu0 %v5945
        %7334 = vmatprep.subr.mxu0 %v5948
        %7335 = vmatpush1.msra.mxu0 %v5947
        %7336 = vmatprep.subr.mxu0 %v5950
        %7337 = vmatpush1.msra.mxu0 %v5949
        %7338 = vmatprep.subr.mxu0 %v5952
        %7339 = vmatpush1.msra.mxu0 %v5951
        %7340 = vmatprep.subr.mxu0 %v5954
        %7341 = vmatpush1.msra.mxu0 %v5953
        %7342 = vmatprep.subr.mxu0 %v5956
        %7343 = vmatpush1.msra.mxu0 %v5955
        %7344 = vmatprep.subr.mxu0 %v5958
        %7345 = vmatpush1.msra.mxu0 %v5957
        %7346 = vmatprep.subr.mxu0 %v5960
        %7347 = vmatpush1.msra.mxu0 %v5959
        %7348 = vmatprep.subr.mxu0 %v5962
        %7349 = vmatpush1.msra.mxu0 %v5961
        %7350 = vmatprep.subr.mxu0 %v5964
        %7351 = vmatpush1.msra.mxu0 %v5963
        %7352 = vmatprep.subr.mxu0 %v5966
        %7353 = vmatpush1.msra.mxu0 %v5965
        %7354 = vmatprep.subr.mxu0 %v5968
        %7355 = vmatpush1.msra.mxu0 %v5967
        %7356 = vmatprep.subr.mxu0 %v5970
        %7357 = vmatpush1.msra.mxu0 %v5969
        %7358 = vmatprep.subr.mxu0 %v5972
        %7359 = vmatpush1.msra.mxu0 %v5971
        %7360 = vmatprep.subr.mxu0 %v5974
        %7361 = vmatpush1.msra.mxu0 %v5973
        %7362 = vmatprep.subr.mxu0 %v5976
        %7363 = vmatpush1.msra.mxu0 %v5975
        %7364 = vmatprep.subr.mxu0 %v5978
        %7365 = vmatpush1.msra.mxu0 %v5977
        %7366 = vmatprep.subr.mxu0 %v5980
        %7367 = vmatpush1.msra.mxu0 %v5979
        %7368 = vmatprep.subr.mxu0 %v5982
        %7369 = vmatpush1.msra.mxu0 %v5981
        %7370 = vmatprep.subr.mxu0 %v5984
        %7371 = vmatpush1.msra.mxu0 %v5983
        %7372 = vmatprep.subr.mxu0 %v5986
        %7373 = vmatpush1.msra.mxu0 %v5985
        %7374 = vmatprep.subr.mxu0 %v5988
        %7375 = vmatpush1.msra.mxu0 %v5987
        %7376 = vmatprep.subr.mxu0 %v5990
        %7377 = vmatpush1.msra.mxu0 %v5989
        %7378 = vmatprep.subr.mxu0 %v5992
        %7379 = vmatpush1.msra.mxu0 %v5991
        %7380 = vmatprep.subr.mxu0 %v5994
        %7381 = vmatpush1.msra.mxu0 %v5993
        %7382 = vmatprep.subr.mxu0 %v5996
        %7383 = vmatpush1.msra.mxu0 %v5995
        %7384 = vmatprep.subr.mxu0 %v5998
        %7385 = vmatpush1.msra.mxu0 %v5997
        %7386 = vmatprep.subr.mxu0 %v6000
        %7387 = vmatpush1.msra.mxu0 %v5999
        %7388 = vmatprep.subr.mxu0 0.0
        %7389 = vmatpush1.msra.mxu0 0.0
        %7390 = vmatprep.subr.mxu0 0.0
        %7391 = vmatpush1.msra.mxu0 0.0
        %7392 = vmatprep.subr.mxu0 0.0
        %7393 = vmatpush1.msra.mxu0 0.0
        %7394 = vmatprep.subr.mxu0 0.0
        %7395 = vmatpush1.msra.mxu0 0.0
        %7396 = vmatprep.mubr.f32.mxu0 %v5262
        %7397 = vmatmul.mubr.f32.gmra.mrb[0].mxu0 %v5190
        %v7398 = vpop.f32.mrb[0].mxu0
        %v7399 = vadd.f32 0.0, %v7398
        %v7400 = vpop.f32.mrb[0].mxu0
        %v7401 = vadd.f32 0.0, %v7400
        %7402 = vmatprep.mubr.f32.mxu0 %v5265
        %7403 = vmatmul.mubr.f32.gmra.mrb[0].mxu0 %v5192
        %v7404 = vpop.f32.mrb[0].mxu0
        %v7405 = vadd.f32 0.0, %v7404
        %v7406 = vpop.f32.mrb[0].mxu0
        %v7407 = vadd.f32 0.0, %v7406
        %7408 = vmatprep.mubr.f32.mxu0 %v5268
        %7409 = vmatmul.mubr.f32.gmra.mrb[0].mxu0 %v5194
        %v7410 = vpop.f32.mrb[0].mxu0
        %v7411 = vadd.f32 0.0, %v7410
        %v7412 = vpop.f32.mrb[0].mxu0
        %v7413 = vadd.f32 0.0, %v7412
        %7414 = vmatprep.mubr.f32.mxu0 %v5271
        %7415 = vmatmul.mubr.f32.gmra.mrb[0].mxu0 %v5196
        %v7416 = vpop.f32.mrb[0].mxu0
        %v7417 = vadd.f32 0.0, %v7416
        %v7418 = vpop.f32.mrb[0].mxu0
        %v7419 = vadd.f32 0.0, %v7418
        %7420 = vmatprep.mubr.f32.mxu0 %v5274
        %7421 = vmatmul.mubr.f32.gmra.mrb[0].mxu0 %v5198
        %v7422 = vpop.f32.mrb[0].mxu0
        %v7423 = vadd.f32 0.0, %v7422
        %v7424 = vpop.f32.mrb[0].mxu0
        %v7425 = vadd.f32 0.0, %v7424
        %7426 = vmatprep.mubr.f32.mxu0 %v5277
        %7427 = vmatmul.mubr.f32.gmra.mrb[0].mxu0 %v5200
        %v7428 = vpop.f32.mrb[0].mxu0
        %v7429 = vadd.f32 0.0, %v7428
        %v7430 = vpop.f32.mrb[0].mxu0
        %v7431 = vadd.f32 0.0, %v7430
        %7432 = vmatprep.mubr.f32.mxu0 %v5280
        %7433 = vmatmul.mubr.f32.gmra.mrb[0].mxu0 %v5202
        %v7434 = vpop.f32.mrb[0].mxu0
        %v7435 = vadd.f32 0.0, %v7434
        %v7436 = vpop.f32.mrb[0].mxu0
        %v7437 = vadd.f32 0.0, %v7436
        %7438 = vdwg.mxu0
        %v7439 = vadd.f32 %v7292, %v7399
        %v7440 = vadd.f32 %v7294, %v7401
        %v7441 = vadd.f32 %v7298, %v7405
        %v7442 = vadd.f32 %v7300, %v7407
        %v7443 = vadd.f32 %v7304, %v7411
        %v7444 = vadd.f32 %v7306, %v7413
        %v7445 = vadd.f32 %v7310, %v7417
        %v7446 = vadd.f32 %v7312, %v7419
        %v7447 = vadd.f32 %v7316, %v7423
        %v7448 = vadd.f32 %v7318, %v7425
        %v7449 = vadd.f32 %v7322, %v7429
        %v7450 = vadd.f32 %v7324, %v7431
        %v7451 = vadd.f32 %v7328, %v7435
        %v7452 = vadd.f32 %v7330, %v7437
        %7453 = vmatprep.subr.mxu0 %v6124
        %7454 = vmatpush1.msra.mxu0 %v6123
        %7455 = vmatprep.subr.mxu0 %v6126
        %7456 = vmatpush1.msra.mxu0 %v6125
        %7457 = vmatprep.subr.mxu0 %v6128
        %7458 = vmatpush1.msra.mxu0 %v6127
        %7459 = vmatprep.subr.mxu0 %v6130
        %7460 = vmatpush1.msra.mxu0 %v6129
        %7461 = vmatprep.subr.mxu0 %v6132
        %7462 = vmatpush1.msra.mxu0 %v6131
        %7463 = vmatprep.subr.mxu0 %v6134
        %7464 = vmatpush1.msra.mxu0 %v6133
        %7465 = vmatprep.subr.mxu0 %v6136
        %7466 = vmatpush1.msra.mxu0 %v6135
        %7467 = vmatprep.subr.mxu0 %v6138
        %7468 = vmatpush1.msra.mxu0 %v6137
        %7469 = vmatprep.subr.mxu0 %v6140
        %7470 = vmatpush1.msra.mxu0 %v6139
        %7471 = vmatprep.subr.mxu0 %v6142
        %7472 = vmatpush1.msra.mxu0 %v6141
        %7473 = vmatprep.subr.mxu0 %v6144
        %7474 = vmatpush1.msra.mxu0 %v6143
        %7475 = vmatprep.subr.mxu0 %v6146
        %7476 = vmatpush1.msra.mxu0 %v6145
        %7477 = vmatprep.subr.mxu0 %v6148
        %7478 = vmatpush1.msra.mxu0 %v6147
        %7479 = vmatprep.subr.mxu0 %v6150
        %7480 = vmatpush1.msra.mxu0 %v6149
        %7481 = vmatprep.subr.mxu0 %v6152
        %7482 = vmatpush1.msra.mxu0 %v6151
        %7483 = vmatprep.subr.mxu0 %v6154
        %7484 = vmatpush1.msra.mxu0 %v6153
        %7485 = vmatprep.subr.mxu0 %v6156
        %7486 = vmatpush1.msra.mxu0 %v6155
        %7487 = vmatprep.subr.mxu0 %v6158
        %7488 = vmatpush1.msra.mxu0 %v6157
        %7489 = vmatprep.subr.mxu0 %v6160
        %7490 = vmatpush1.msra.mxu0 %v6159
        %7491 = vmatprep.subr.mxu0 %v6162
        %7492 = vmatpush1.msra.mxu0 %v6161
        %7493 = vmatprep.subr.mxu0 %v6164
        %7494 = vmatpush1.msra.mxu0 %v6163
        %7495 = vmatprep.subr.mxu0 %v6166
        %7496 = vmatpush1.msra.mxu0 %v6165
        %7497 = vmatprep.subr.mxu0 %v6168
        %7498 = vmatpush1.msra.mxu0 %v6167
        %7499 = vmatprep.subr.mxu0 %v6170
        %7500 = vmatpush1.msra.mxu0 %v6169
        %7501 = vmatprep.subr.mxu0 %v6172
        %7502 = vmatpush1.msra.mxu0 %v6171
        %7503 = vmatprep.subr.mxu0 %v6174
        %7504 = vmatpush1.msra.mxu0 %v6173
        %7505 = vmatprep.subr.mxu0 %v6176
        %7506 = vmatpush1.msra.mxu0 %v6175
        %7507 = vmatprep.subr.mxu0 %v6178
        %7508 = vmatpush1.msra.mxu0 %v6177
        %7509 = vmatprep.subr.mxu0 0.0
        %7510 = vmatpush1.msra.mxu0 0.0
        %7511 = vmatprep.subr.mxu0 0.0
        %7512 = vmatpush1.msra.mxu0 0.0
        %7513 = vmatprep.subr.mxu0 0.0
        %7514 = vmatpush1.msra.mxu0 0.0
        %7515 = vmatprep.subr.mxu0 0.0
        %7516 = vmatpush1.msra.mxu0 0.0
        %7517 = vmatprep.mubr.f32.mxu0 %v5475
        %7518 = vmatmul.mubr.f32.gmra.mrb[0].mxu0 %v5403
        %v7519 = vpop.f32.mrb[0].mxu0
        %v7520 = vadd.f32 0.0, %v7519
        %v7521 = vpop.f32.mrb[0].mxu0
        %v7522 = vadd.f32 0.0, %v7521
        %7523 = vmatprep.mubr.f32.mxu0 %v5478
        %7524 = vmatmul.mubr.f32.gmra.mrb[0].mxu0 %v5405
        %v7525 = vpop.f32.mrb[0].mxu0
        %v7526 = vadd.f32 0.0, %v7525
        %v7527 = vpop.f32.mrb[0].mxu0
        %v7528 = vadd.f32 0.0, %v7527
        %7529 = vmatprep.mubr.f32.mxu0 %v5481
        %7530 = vmatmul.mubr.f32.gmra.mrb[0].mxu0 %v5407
        %v7531 = vpop.f32.mrb[0].mxu0
        %v7532 = vadd.f32 0.0, %v7531
        %v7533 = vpop.f32.mrb[0].mxu0
        %v7534 = vadd.f32 0.0, %v7533
        %7535 = vmatprep.mubr.f32.mxu0 %v5484
        %7536 = vmatmul.mubr.f32.gmra.mrb[0].mxu0 %v5409
        %v7537 = vpop.f32.mrb[0].mxu0
        %v7538 = vadd.f32 0.0, %v7537
        %v7539 = vpop.f32.mrb[0].mxu0
        %v7540 = vadd.f32 0.0, %v7539
        %7541 = vmatprep.mubr.f32.mxu0 %v5487
        %7542 = vmatmul.mubr.f32.gmra.mrb[0].mxu0 %v5411
        %v7543 = vpop.f32.mrb[0].mxu0
        %v7544 = vadd.f32 0.0, %v7543
        %v7545 = vpop.f32.mrb[0].mxu0
        %v7546 = vadd.f32 0.0, %v7545
        %7547 = vmatprep.mubr.f32.mxu0 %v5490
        %7548 = vmatmul.mubr.f32.gmra.mrb[0].mxu0 %v5413
        %v7549 = vpop.f32.mrb[0].mxu0
        %v7550 = vadd.f32 0.0, %v7549
        %v7551 = vpop.f32.mrb[0].mxu0
        %v7552 = vadd.f32 0.0, %v7551
        %7553 = vmatprep.mubr.f32.mxu0 %v5493
        %7554 = vmatmul.mubr.f32.gmra.mrb[0].mxu0 %v5415
        %v7555 = vpop.f32.mrb[0].mxu0
        %v7556 = vadd.f32 0.0, %v7555
        %v7557 = vpop.f32.mrb[0].mxu0
        %v7558 = vadd.f32 0.0, %v7557
        %7559 = vdwg.mxu0
        %v7560 = vadd.f32 %v7439, %v7520
        %v7561 = vadd.f32 %v7440, %v7522
        %v7562 = vadd.f32 %v7441, %v7526
        %v7563 = vadd.f32 %v7442, %v7528
        %v7564 = vadd.f32 %v7443, %v7532
        %v7565 = vadd.f32 %v7444, %v7534
        %v7566 = vadd.f32 %v7445, %v7538
        %v7567 = vadd.f32 %v7446, %v7540
        %v7568 = vadd.f32 %v7447, %v7544
        %v7569 = vadd.f32 %v7448, %v7546
        %v7570 = vadd.f32 %v7449, %v7550
        %v7571 = vadd.f32 %v7450, %v7552
        %v7572 = vadd.f32 %v7451, %v7556
        %v7573 = vadd.f32 %v7452, %v7558
        %7574 = vmatprep.subr.mxu0 %v6302
        %7575 = vmatpush1.msra.mxu0 %v6301
        %7576 = vmatprep.subr.mxu0 %v6304
        %7577 = vmatpush1.msra.mxu0 %v6303
        %7578 = vmatprep.subr.mxu0 %v6306
        %7579 = vmatpush1.msra.mxu0 %v6305
        %7580 = vmatprep.subr.mxu0 %v6308
        %7581 = vmatpush1.msra.mxu0 %v6307
        %7582 = vmatprep.subr.mxu0 %v6310
        %7583 = vmatpush1.msra.mxu0 %v6309
        %7584 = vmatprep.subr.mxu0 %v6312
        %7585 = vmatpush1.msra.mxu0 %v6311
        %7586 = vmatprep.subr.mxu0 %v6314
        %7587 = vmatpush1.msra.mxu0 %v6313
        %7588 = vmatprep.subr.mxu0 %v6316
        %7589 = vmatpush1.msra.mxu0 %v6315
        %7590 = vmatprep.subr.mxu0 %v6318
        %7591 = vmatpush1.msra.mxu0 %v6317
        %7592 = vmatprep.subr.mxu0 %v6320
        %7593 = vmatpush1.msra.mxu0 %v6319
        %7594 = vmatprep.subr.mxu0 %v6322
        %7595 = vmatpush1.msra.mxu0 %v6321
        %7596 = vmatprep.subr.mxu0 %v6324
        %7597 = vmatpush1.msra.mxu0 %v6323
        %7598 = vmatprep.subr.mxu0 %v6326
        %7599 = vmatpush1.msra.mxu0 %v6325
        %7600 = vmatprep.subr.mxu0 %v6328
        %7601 = vmatpush1.msra.mxu0 %v6327
        %7602 = vmatprep.subr.mxu0 %v6330
        %7603 = vmatpush1.msra.mxu0 %v6329
        %7604 = vmatprep.subr.mxu0 %v6332
        %7605 = vmatpush1.msra.mxu0 %v6331
        %7606 = vmatprep.subr.mxu0 %v6334
        %7607 = vmatpush1.msra.mxu0 %v6333
        %7608 = vmatprep.subr.mxu0 %v6336
        %7609 = vmatpush1.msra.mxu0 %v6335
        %7610 = vmatprep.subr.mxu0 %v6338
        %7611 = vmatpush1.msra.mxu0 %v6337
        %7612 = vmatprep.subr.mxu0 %v6340
        %7613 = vmatpush1.msra.mxu0 %v6339
        %7614 = vmatprep.subr.mxu0 %v6342
        %7615 = vmatpush1.msra.mxu0 %v6341
        %7616 = vmatprep.subr.mxu0 %v6344
        %7617 = vmatpush1.msra.mxu0 %v6343
        %7618 = vmatprep.subr.mxu0 %v6346
        %7619 = vmatpush1.msra.mxu0 %v6345
        %7620 = vmatprep.subr.mxu0 %v6348
        %7621 = vmatpush1.msra.mxu0 %v6347
        %7622 = vmatprep.subr.mxu0 %v6350
        %7623 = vmatpush1.msra.mxu0 %v6349
        %7624 = vmatprep.subr.mxu0 %v6352
        %7625 = vmatpush1.msra.mxu0 %v6351
        %7626 = vmatprep.subr.mxu0 %v6354
        %7627 = vmatpush1.msra.mxu0 %v6353
        %7628 = vmatprep.subr.mxu0 %v6356
        %7629 = vmatpush1.msra.mxu0 %v6355
        %7630 = vmatprep.subr.mxu0 0.0
        %7631 = vmatpush1.msra.mxu0 0.0
        %7632 = vmatprep.subr.mxu0 0.0
        %7633 = vmatpush1.msra.mxu0 0.0
        %7634 = vmatprep.subr.mxu0 0.0
        %7635 = vmatpush1.msra.mxu0 0.0
        %7636 = vmatprep.subr.mxu0 0.0
        %7637 = vmatpush1.msra.mxu0 0.0
        %7638 = vmatprep.mubr.f32.mxu0 %v6963
        %7639 = vmatmul.mubr.f32.gmra.mrb[0].mxu0 %v6948
        %v7640 = vpop.f32.mrb[0].mxu0
        %v7641 = vadd.f32 0.0, %v7640
        %v7642 = vpop.f32.mrb[0].mxu0
        %v7643 = vadd.f32 0.0, %v7642
        %7644 = vmatprep.mubr.f32.mxu0 %v6966
        %7645 = vmatmul.mubr.f32.gmra.mrb[0].mxu0 %v6950
        %v7646 = vpop.f32.mrb[0].mxu0
        %v7647 = vadd.f32 0.0, %v7646
        %v7648 = vpop.f32.mrb[0].mxu0
        %v7649 = vadd.f32 0.0, %v7648
        %7650 = vmatprep.mubr.f32.mxu0 %v6969
        %7651 = vmatmul.mubr.f32.gmra.mrb[0].mxu0 %v6952
        %v7652 = vpop.f32.mrb[0].mxu0
        %v7653 = vadd.f32 0.0, %v7652
        %v7654 = vpop.f32.mrb[0].mxu0
        %v7655 = vadd.f32 0.0, %v7654
        %7656 = vmatprep.mubr.f32.mxu0 %v6972
        %7657 = vmatmul.mubr.f32.gmra.mrb[0].mxu0 %v6954
        %v7658 = vpop.f32.mrb[0].mxu0
        %v7659 = vadd.f32 0.0, %v7658
        %v7660 = vpop.f32.mrb[0].mxu0
        %v7661 = vadd.f32 0.0, %v7660
        %7662 = vmatprep.mubr.f32.mxu0 %v6975
        %7663 = vmatmul.mubr.f32.gmra.mrb[0].mxu0 %v6956
        %v7664 = vpop.f32.mrb[0].mxu0
        %v7665 = vadd.f32 0.0, %v7664
        %v7666 = vpop.f32.mrb[0].mxu0
        %v7667 = vadd.f32 0.0, %v7666
        %7668 = vmatprep.mubr.f32.mxu0 %v6978
        %7669 = vmatmul.mubr.f32.gmra.mrb[0].mxu0 %v6958
        %v7670 = vpop.f32.mrb[0].mxu0
        %v7671 = vadd.f32 0.0, %v7670
        %v7672 = vpop.f32.mrb[0].mxu0
        %v7673 = vadd.f32 0.0, %v7672
        %7674 = vmatprep.mubr.f32.mxu0 %v6981
        %7675 = vmatmul.mubr.f32.gmra.mrb[0].mxu0 %v6960
        %v7676 = vpop.f32.mrb[0].mxu0
        %v7677 = vadd.f32 0.0, %v7676
        %v7678 = vpop.f32.mrb[0].mxu0
        %v7679 = vadd.f32 0.0, %v7678
        %7680 = vdwg.mxu0
        %v7681 = vadd.f32 %v7560, %v7641
        %v7682 = vadd.f32 %v7561, %v7643
        %v7683 = vadd.f32 %v7562, %v7647
        %v7684 = vadd.f32 %v7563, %v7649
        %v7685 = vadd.f32 %v7564, %v7653
        %v7686 = vadd.f32 %v7565, %v7655
        %v7687 = vadd.f32 %v7566, %v7659
        %v7688 = vadd.f32 %v7567, %v7661
        %v7689 = vadd.f32 %v7568, %v7665
        %v7690 = vadd.f32 %v7569, %v7667
        %v7691 = vadd.f32 %v7570, %v7671
        %v7692 = vadd.f32 %v7571, %v7673
        %v7693 = vadd.f32 %v7572, %v7677
        %v7694 = vadd.f32 %v7573, %v7679
        %v7695 = vmax.f32 %v7104, %v7681
        %v7696 = vmax.f32 %v7105, %v7682
        %v7697 = vmax.f32 %v7106, %v7683
        %v7698 = vmax.f32 %v7107, %v7684
        %v7699 = vmax.f32 %v7108, %v7685
        %v7700 = vmax.f32 %v7109, %v7686
        %v7701 = vmax.f32 %v7110, %v7687
        %v7702 = vmax.f32 %v7111, %v7688
        %v7703 = vmax.f32 %v7112, %v7689
        %v7704 = vmax.f32 %v7113, %v7690
        %v7705 = vmax.f32 %v7114, %v7691
        %v7706 = vmax.f32 %v7115, %v7692
        %v7707 = vmax.f32 %v7116, %v7693
        %v7708 = vmax.f32 %v7117, %v7694
        %v7709 = vld [vmem:[%s4] sm:$0x3]
        %v7711 = vlaneseq
        %v7712 = vshrl.u32 %v7711, 7
        %v7713 = vsub.s32 0, %v7712
        %v7714 = vrot.slane %v7709, %v7713
        %v7715 = vlaneseq
        %v7716 = vshrl.u32 %v7715, 7
        %v7717 = vsub.s32 1, %v7716
        %v7718 = vrot.slane %v7709, %v7717
        %v7721 = vadd.f32 %v7695, %v7714
        %v7722 = vadd.f32 %v7696, %v7718
        %v7723 = vadd.f32 %v7697, %v7714
        %v7724 = vadd.f32 %v7698, %v7718
        %v7725 = vadd.f32 %v7699, %v7714
        %v7726 = vadd.f32 %v7700, %v7718
        %v7727 = vadd.f32 %v7701, %v7714
        %v7728 = vadd.f32 %v7702, %v7718
        %v7729 = vadd.f32 %v7703, %v7714
        %v7730 = vadd.f32 %v7704, %v7718
        %v7731 = vadd.f32 %v7705, %v7714
        %v7732 = vadd.f32 %v7706, %v7718
        %v7733 = vadd.f32 %v7707, %v7714
        %v7734 = vadd.f32 %v7708, %v7718
        %v7735 = vmax.f32 %v7721, 0.0
        %v7736 = vmax.f32 %v7722, 0.0
        %v7737 = vmax.f32 %v7723, 0.0
        %v7738 = vmax.f32 %v7724, 0.0
        %v7739 = vmax.f32 %v7725, 0.0
        %v7740 = vmax.f32 %v7726, 0.0
        %v7741 = vmax.f32 %v7727, 0.0
        %v7742 = vmax.f32 %v7728, 0.0
        %v7743 = vmax.f32 %v7729, 0.0
        %v7744 = vmax.f32 %v7730, 0.0
        %v7745 = vmax.f32 %v7731, 0.0
        %v7746 = vmax.f32 %v7732, 0.0
        %v7747 = vmax.f32 %v7733, 0.0
        %v7748 = vmax.f32 %v7734, 0.0
        %7749 = vst [vmem:[%s452] sm:$0xff] %v7735
        %7750 = vst.msk [vmem:[%s452 + $0x8] sm:$0xff] %vm487, %v7736
        %7751 = vst [vmem:[%s452 + $0x10] sm:$0xff] %v7737
        %7752 = vst.msk [vmem:[%s452 + $0x18] sm:$0xff] %vm487, %v7738
        %7753 = vst [vmem:[%s452 + $0x20] sm:$0xff] %v7739
        %7754 = vst.msk [vmem:[%s452 + $0x28] sm:$0xff] %vm487, %v7740
        %7755 = vst [vmem:[%s452 + $0x30] sm:$0xff] %v7741
        %7756 = vst.msk [vmem:[%s452 + $0x38] sm:$0xff] %vm487, %v7742
        %7757 = vst [vmem:[%s452 + $0x40] sm:$0xff] %v7743
        %7758 = vst.msk [vmem:[%s452 + $0x48] sm:$0xff] %vm487, %v7744
        %7759 = vst [vmem:[%s452 + $0x50] sm:$0xff] %v7745
        %7760 = vst.msk [vmem:[%s452 + $0x58] sm:$0xff] %vm487, %v7746
        %7761 = vst [vmem:[%s452 + $0x60] sm:$0xff] %v7747
        %7762 = vst.msk [vmem:[%s452 + $0x68] sm:$0xff] %vm487, %v7748
        %v7763 = vld [vmem:[%s5] sm:$0xff]
        %v7764 = vld [vmem:[%s5 + $0x8] sm:$0xff]
        %v7765 = vld [vmem:[%s5 + $0x10] sm:$0xff]
        %v7766 = vld [vmem:[%s5 + $0x18] sm:$0xff]
        %v7767 = vld [vmem:[%s5 + $0x20] sm:$0xff]
        %v7768 = vld [vmem:[%s5 + $0x28] sm:$0xff]
        %v7769 = vld [vmem:[%s5 + $0x30] sm:$0xff]
        %v7770 = vld [vmem:[%s5 + $0x38] sm:$0xff]
        %v7771 = vld [vmem:[%s5 + $0x40] sm:$0xff]
        %v7772 = vld [vmem:[%s5 + $0x48] sm:$0xff]
        %v7773 = vld [vmem:[%s5 + $0x50] sm:$0xff]
        %v7774 = vld [vmem:[%s5 + $0x58] sm:$0xff]
        %v7775 = vld [vmem:[%s5 + $0x60] sm:$0xff]
        %v7776 = vld [vmem:[%s5 + $0x68] sm:$0xff]
        %v7777 = vld [vmem:[%s5 + $0x70] sm:$0xff]
        %v7778 = vld [vmem:[%s5 + $0x78] sm:$0xff]
        %v7779 = vld [vmem:[%s5 + $0x80] sm:$0xff]
        %v7780 = vld [vmem:[%s5 + $0x88] sm:$0xff]
        %v7781 = vld [vmem:[%s5 + $0x90] sm:$0xff]
        %v7782 = vld [vmem:[%s5 + $0x98] sm:$0xff]
        %v7783 = vld [vmem:[%s5 + $0xa0] sm:$0xff]
        %v7784 = vld [vmem:[%s5 + $0xa8] sm:$0xff]
        %v7785 = vld [vmem:[%s5 + $0xb0] sm:$0xff]
        %v7786 = vld [vmem:[%s5 + $0xb8] sm:$0xff]
        %v7787 = vld [vmem:[%s5 + $0xc0] sm:$0xff]
        %v7788 = vld [vmem:[%s5 + $0xc8] sm:$0xff]
        %v7789 = vld [vmem:[%s5 + $0xd0] sm:$0xff]
        %v7790 = vld [vmem:[%s5 + $0xd8] sm:$0xff]
        %s7791 = scalar_lea.vmem %s5, 224
        %v7792 = vld [vmem:[%s7791] sm:$0xff]
        %v7793 = vld [vmem:[%s7791 + $0x8] sm:$0xff]
        %v7794 = vld [vmem:[%s7791 + $0x10] sm:$0xff]
        %v7795 = vld [vmem:[%s7791 + $0x18] sm:$0xff]
        %v7796 = vld [vmem:[%s7791 + $0x20] sm:$0xff]
        %v7797 = vld [vmem:[%s7791 + $0x28] sm:$0xff]
        %v7798 = vld [vmem:[%s7791 + $0x30] sm:$0xff]
        %v7799 = vld [vmem:[%s7791 + $0x38] sm:$0xff]
        %v7800 = vld [vmem:[%s7791 + $0x40] sm:$0xff]
        %v7801 = vld [vmem:[%s7791 + $0x48] sm:$0xff]
        %v7802 = vld [vmem:[%s7791 + $0x50] sm:$0xff]
        %v7803 = vld [vmem:[%s7791 + $0x58] sm:$0xff]
        %v7804 = vld [vmem:[%s7791 + $0x60] sm:$0xff]
        %v7805 = vld [vmem:[%s7791 + $0x68] sm:$0xff]
        %v7806 = vld [vmem:[%s7791 + $0x70] sm:$0xff]
        %v7807 = vld [vmem:[%s7791 + $0x78] sm:$0xff]
        %v7808 = vld [vmem:[%s7791 + $0x80] sm:$0xff]
        %v7809 = vld [vmem:[%s7791 + $0x88] sm:$0xff]
        %v7810 = vld [vmem:[%s7791 + $0x90] sm:$0xff]
        %v7811 = vld [vmem:[%s7791 + $0x98] sm:$0xff]
        %v7812 = vld [vmem:[%s7791 + $0xa0] sm:$0xff]
        %v7813 = vld [vmem:[%s7791 + $0xa8] sm:$0xff]
        %v7814 = vld [vmem:[%s7791 + $0xb0] sm:$0xff]
        %v7815 = vld [vmem:[%s7791 + $0xb8] sm:$0xff]
        %v7816 = vld [vmem:[%s7791 + $0xc0] sm:$0xff]
        %v7817 = vld [vmem:[%s7791 + $0xc8] sm:$0xff]
        %v7818 = vld [vmem:[%s7791 + $0xd0] sm:$0xff]
        %v7819 = vld [vmem:[%s7791 + $0xd8] sm:$0xff]
        %v7821 = vsel %vm487, %v7738, 0
        %7823 = vmatprep.subr.mxu0 0.0
        %7824 = vmatpush1.msra.mxu0 %v7792
        %7825 = vmatprep.subr.mxu0 0.0
        %7826 = vmatpush1.msra.mxu0 %v7793
        %7827 = vmatprep.subr.mxu0 0.0
        %7828 = vmatpush1.msra.mxu0 %v7794
        %7829 = vmatprep.subr.mxu0 0.0
        %7830 = vmatpush1.msra.mxu0 %v7795
        %7831 = vmatprep.subr.mxu0 0.0
        %7832 = vmatpush1.msra.mxu0 %v7796
        %7833 = vmatprep.subr.mxu0 0.0
        %7834 = vmatpush1.msra.mxu0 %v7797
        %7835 = vmatprep.subr.mxu0 0.0
        %7836 = vmatpush1.msra.mxu0 %v7798
        %7837 = vmatprep.subr.mxu0 0.0
        %7838 = vmatpush1.msra.mxu0 %v7799
        %7839 = vmatprep.subr.mxu0 0.0
        %7840 = vmatpush1.msra.mxu0 %v7800
        %7841 = vmatprep.subr.mxu0 0.0
        %7842 = vmatpush1.msra.mxu0 %v7801
        %7843 = vmatprep.subr.mxu0 0.0
        %7844 = vmatpush1.msra.mxu0 %v7802
        %7845 = vmatprep.subr.mxu0 0.0
        %7846 = vmatpush1.msra.mxu0 %v7803
        %7847 = vmatprep.subr.mxu0 0.0
        %7848 = vmatpush1.msra.mxu0 %v7804
        %7849 = vmatprep.subr.mxu0 0.0
        %7850 = vmatpush1.msra.mxu0 %v7805
        %7851 = vmatprep.subr.mxu0 0.0
        %7852 = vmatpush1.msra.mxu0 %v7806
        %7853 = vmatprep.subr.mxu0 0.0
        %7854 = vmatpush1.msra.mxu0 %v7807
        %7855 = vmatprep.subr.mxu0 0.0
        %7856 = vmatpush1.msra.mxu0 %v7808
        %7857 = vmatprep.subr.mxu0 0.0
        %7858 = vmatpush1.msra.mxu0 %v7809
        %7859 = vmatprep.subr.mxu0 0.0
        %7860 = vmatpush1.msra.mxu0 %v7810
        %7861 = vmatprep.subr.mxu0 0.0
        %7862 = vmatpush1.msra.mxu0 %v7811
        %7863 = vmatprep.subr.mxu0 0.0
        %7864 = vmatpush1.msra.mxu0 %v7812
        %7865 = vmatprep.subr.mxu0 0.0
        %7866 = vmatpush1.msra.mxu0 %v7813
        %7867 = vmatprep.subr.mxu0 0.0
        %7868 = vmatpush1.msra.mxu0 %v7814
        %7869 = vmatprep.subr.mxu0 0.0
        %7870 = vmatpush1.msra.mxu0 %v7815
        %7871 = vmatprep.subr.mxu0 0.0
        %7872 = vmatpush1.msra.mxu0 %v7816
        %7873 = vmatprep.subr.mxu0 0.0
        %7874 = vmatpush1.msra.mxu0 %v7817
        %7875 = vmatprep.subr.mxu0 0.0
        %7876 = vmatpush1.msra.mxu0 %v7818
        %7877 = vmatprep.subr.mxu0 0.0
        %7878 = vmatpush1.msra.mxu0 %v7819
        %7879 = vmatprep.subr.mxu0 0.0
        %7880 = vmatpush1.msra.mxu0 0.0
        %7881 = vmatprep.subr.mxu0 0.0
        %7882 = vmatpush1.msra.mxu0 0.0
        %7883 = vmatprep.subr.mxu0 0.0
        %7884 = vmatpush1.msra.mxu0 0.0
        %7885 = vmatprep.subr.mxu0 0.0
        %7886 = vmatpush1.msra.mxu0 0.0
        %7887 = vmatprep.mubr.f32.mxu0 %v7821
        %7888 = vmatmul.mubr.f32.gmra.mrb[0].mxu0 %v7737
        %v7889 = vpop.f32.mrb[0].mxu0
        %v7890 = vadd.f32 0.0, %v7889
        %v7891 = vpop.f32.mrb[0].mxu0
        %7892 = vdwg.mxu0
        %v7894 = vsel %vm487, %v7736, 0
        %7896 = vmatprep.subr.mxu0 0.0
        %7897 = vmatpush1.msra.mxu0 %v7763
        %7898 = vmatprep.subr.mxu0 0.0
        %7899 = vmatpush1.msra.mxu0 %v7764
        %7900 = vmatprep.subr.mxu0 0.0
        %7901 = vmatpush1.msra.mxu0 %v7765
        %7902 = vmatprep.subr.mxu0 0.0
        %7903 = vmatpush1.msra.mxu0 %v7766
        %7904 = vmatprep.subr.mxu0 0.0
        %7905 = vmatpush1.msra.mxu0 %v7767
        %7906 = vmatprep.subr.mxu0 0.0
        %7907 = vmatpush1.msra.mxu0 %v7768
        %7908 = vmatprep.subr.mxu0 0.0
        %7909 = vmatpush1.msra.mxu0 %v7769
        %7910 = vmatprep.subr.mxu0 0.0
        %7911 = vmatpush1.msra.mxu0 %v7770
        %7912 = vmatprep.subr.mxu0 0.0
        %7913 = vmatpush1.msra.mxu0 %v7771
        %7914 = vmatprep.subr.mxu0 0.0
        %7915 = vmatpush1.msra.mxu0 %v7772
        %7916 = vmatprep.subr.mxu0 0.0
        %7917 = vmatpush1.msra.mxu0 %v7773
        %7918 = vmatprep.subr.mxu0 0.0
        %7919 = vmatpush1.msra.mxu0 %v7774
        %7920 = vmatprep.subr.mxu0 0.0
        %7921 = vmatpush1.msra.mxu0 %v7775
        %7922 = vmatprep.subr.mxu0 0.0
        %7923 = vmatpush1.msra.mxu0 %v7776
        %7924 = vmatprep.subr.mxu0 0.0
        %7925 = vmatpush1.msra.mxu0 %v7777
        %7926 = vmatprep.subr.mxu0 0.0
        %7927 = vmatpush1.msra.mxu0 %v7778
        %7928 = vmatprep.subr.mxu0 0.0
        %7929 = vmatpush1.msra.mxu0 %v7779
        %7930 = vmatprep.subr.mxu0 0.0
        %7931 = vmatpush1.msra.mxu0 %v7780
        %7932 = vmatprep.subr.mxu0 0.0
        %7933 = vmatpush1.msra.mxu0 %v7781
        %7934 = vmatprep.subr.mxu0 0.0
        %7935 = vmatpush1.msra.mxu0 %v7782
        %7936 = vmatprep.subr.mxu0 0.0
        %7937 = vmatpush1.msra.mxu0 %v7783
        %7938 = vmatprep.subr.mxu0 0.0
        %7939 = vmatpush1.msra.mxu0 %v7784
        %7940 = vmatprep.subr.mxu0 0.0
        %7941 = vmatpush1.msra.mxu0 %v7785
        %7942 = vmatprep.subr.mxu0 0.0
        %7943 = vmatpush1.msra.mxu0 %v7786
        %7944 = vmatprep.subr.mxu0 0.0
        %7945 = vmatpush1.msra.mxu0 %v7787
        %7946 = vmatprep.subr.mxu0 0.0
        %7947 = vmatpush1.msra.mxu0 %v7788
        %7948 = vmatprep.subr.mxu0 0.0
        %7949 = vmatpush1.msra.mxu0 %v7789
        %7950 = vmatprep.subr.mxu0 0.0
        %7951 = vmatpush1.msra.mxu0 %v7790
        %7952 = vmatprep.subr.mxu0 0.0
        %7953 = vmatpush1.msra.mxu0 0.0
        %7954 = vmatprep.subr.mxu0 0.0
        %7955 = vmatpush1.msra.mxu0 0.0
        %7956 = vmatprep.subr.mxu0 0.0
        %7957 = vmatpush1.msra.mxu0 0.0
        %7958 = vmatprep.subr.mxu0 0.0
        %7959 = vmatpush1.msra.mxu0 0.0
        %7960 = vmatprep.mubr.f32.mxu0 %v7894
        %7961 = vmatmul.mubr.f32.gmra.mrb[0].mxu0 %v7735
        %v7962 = vpop.f32.mrb[0].mxu0
        %v7963 = vadd.f32 %v7890, %v7962
        %v7964 = vpop.f32.mrb[0].mxu0
        %7965 = vdwg.mxu0
        %s7966 = scalar_lea.vmem %s5, 448
        %v7967 = vld [vmem:[%s7966] sm:$0xff]
        %v7968 = vld [vmem:[%s7966 + $0x8] sm:$0xff]
        %v7969 = vld [vmem:[%s7966 + $0x10] sm:$0xff]
        %v7970 = vld [vmem:[%s7966 + $0x18] sm:$0xff]
        %v7971 = vld [vmem:[%s7966 + $0x20] sm:$0xff]
        %v7972 = vld [vmem:[%s7966 + $0x28] sm:$0xff]
        %v7973 = vld [vmem:[%s7966 + $0x30] sm:$0xff]
        %v7974 = vld [vmem:[%s7966 + $0x38] sm:$0xff]
        %v7975 = vld [vmem:[%s7966 + $0x40] sm:$0xff]
        %v7976 = vld [vmem:[%s7966 + $0x48] sm:$0xff]
        %v7977 = vld [vmem:[%s7966 + $0x50] sm:$0xff]
        %v7978 = vld [vmem:[%s7966 + $0x58] sm:$0xff]
        %v7979 = vld [vmem:[%s7966 + $0x60] sm:$0xff]
        %v7980 = vld [vmem:[%s7966 + $0x68] sm:$0xff]
        %v7981 = vld [vmem:[%s7966 + $0x70] sm:$0xff]
        %v7982 = vld [vmem:[%s7966 + $0x78] sm:$0xff]
        %v7983 = vld [vmem:[%s7966 + $0x80] sm:$0xff]
        %v7984 = vld [vmem:[%s7966 + $0x88] sm:$0xff]
        %v7985 = vld [vmem:[%s7966 + $0x90] sm:$0xff]
        %v7986 = vld [vmem:[%s7966 + $0x98] sm:$0xff]
        %v7987 = vld [vmem:[%s7966 + $0xa0] sm:$0xff]
        %v7988 = vld [vmem:[%s7966 + $0xa8] sm:$0xff]
        %v7989 = vld [vmem:[%s7966 + $0xb0] sm:$0xff]
        %v7990 = vld [vmem:[%s7966 + $0xb8] sm:$0xff]
        %v7991 = vld [vmem:[%s7966 + $0xc0] sm:$0xff]
        %v7992 = vld [vmem:[%s7966 + $0xc8] sm:$0xff]
        %v7993 = vld [vmem:[%s7966 + $0xd0] sm:$0xff]
        %v7994 = vld [vmem:[%s7966 + $0xd8] sm:$0xff]
        %v7996 = vsel %vm487, %v7740, 0
        %7998 = vmatprep.subr.mxu0 0.0
        %7999 = vmatpush1.msra.mxu0 %v7967
        %8000 = vmatprep.subr.mxu0 0.0
        %8001 = vmatpush1.msra.mxu0 %v7968
        %8002 = vmatprep.subr.mxu0 0.0
        %8003 = vmatpush1.msra.mxu0 %v7969
        %8004 = vmatprep.subr.mxu0 0.0
        %8005 = vmatpush1.msra.mxu0 %v7970
        %8006 = vmatprep.subr.mxu0 0.0
        %8007 = vmatpush1.msra.mxu0 %v7971
        %8008 = vmatprep.subr.mxu0 0.0
        %8009 = vmatpush1.msra.mxu0 %v7972
        %8010 = vmatprep.subr.mxu0 0.0
        %8011 = vmatpush1.msra.mxu0 %v7973
        %8012 = vmatprep.subr.mxu0 0.0
        %8013 = vmatpush1.msra.mxu0 %v7974
        %8014 = vmatprep.subr.mxu0 0.0
        %8015 = vmatpush1.msra.mxu0 %v7975
        %8016 = vmatprep.subr.mxu0 0.0
        %8017 = vmatpush1.msra.mxu0 %v7976
        %8018 = vmatprep.subr.mxu0 0.0
        %8019 = vmatpush1.msra.mxu0 %v7977
        %8020 = vmatprep.subr.mxu0 0.0
        %8021 = vmatpush1.msra.mxu0 %v7978
        %8022 = vmatprep.subr.mxu0 0.0
        %8023 = vmatpush1.msra.mxu0 %v7979
        %8024 = vmatprep.subr.mxu0 0.0
        %8025 = vmatpush1.msra.mxu0 %v7980
        %8026 = vmatprep.subr.mxu0 0.0
        %8027 = vmatpush1.msra.mxu0 %v7981
        %8028 = vmatprep.subr.mxu0 0.0
        %8029 = vmatpush1.msra.mxu0 %v7982
        %8030 = vmatprep.subr.mxu0 0.0
        %8031 = vmatpush1.msra.mxu0 %v7983
        %8032 = vmatprep.subr.mxu0 0.0
        %8033 = vmatpush1.msra.mxu0 %v7984
        %8034 = vmatprep.subr.mxu0 0.0
        %8035 = vmatpush1.msra.mxu0 %v7985
        %8036 = vmatprep.subr.mxu0 0.0
        %8037 = vmatpush1.msra.mxu0 %v7986
        %8038 = vmatprep.subr.mxu0 0.0
        %8039 = vmatpush1.msra.mxu0 %v7987
        %8040 = vmatprep.subr.mxu0 0.0
        %8041 = vmatpush1.msra.mxu0 %v7988
        %8042 = vmatprep.subr.mxu0 0.0
        %8043 = vmatpush1.msra.mxu0 %v7989
        %8044 = vmatprep.subr.mxu0 0.0
        %8045 = vmatpush1.msra.mxu0 %v7990
        %8046 = vmatprep.subr.mxu0 0.0
        %8047 = vmatpush1.msra.mxu0 %v7991
        %8048 = vmatprep.subr.mxu0 0.0
        %8049 = vmatpush1.msra.mxu0 %v7992
        %8050 = vmatprep.subr.mxu0 0.0
        %8051 = vmatpush1.msra.mxu0 %v7993
        %8052 = vmatprep.subr.mxu0 0.0
        %8053 = vmatpush1.msra.mxu0 %v7994
        %8054 = vmatprep.subr.mxu0 0.0
        %8055 = vmatpush1.msra.mxu0 0.0
        %8056 = vmatprep.subr.mxu0 0.0
        %8057 = vmatpush1.msra.mxu0 0.0
        %8058 = vmatprep.subr.mxu0 0.0
        %8059 = vmatpush1.msra.mxu0 0.0
        %8060 = vmatprep.subr.mxu0 0.0
        %8061 = vmatpush1.msra.mxu0 0.0
        %8062 = vmatprep.mubr.f32.mxu0 %v7996
        %8063 = vmatmul.mubr.f32.gmra.mrb[0].mxu0 %v7739
        %v8064 = vpop.f32.mrb[0].mxu0
        %v8065 = vadd.f32 0.0, %v8064
        %v8066 = vpop.f32.mrb[0].mxu0
        %8067 = vdwg.mxu0
        %v8068 = vadd.f32 %v7963, %v8065
        %s8069 = scalar_lea.vmem %s5, 672
        %v8070 = vld [vmem:[%s8069] sm:$0xff]
        %v8071 = vld [vmem:[%s8069 + $0x8] sm:$0xff]
        %v8072 = vld [vmem:[%s8069 + $0x10] sm:$0xff]
        %v8073 = vld [vmem:[%s8069 + $0x18] sm:$0xff]
        %v8074 = vld [vmem:[%s8069 + $0x20] sm:$0xff]
        %v8075 = vld [vmem:[%s8069 + $0x28] sm:$0xff]
        %v8076 = vld [vmem:[%s8069 + $0x30] sm:$0xff]
        %v8077 = vld [vmem:[%s8069 + $0x38] sm:$0xff]
        %v8078 = vld [vmem:[%s8069 + $0x40] sm:$0xff]
        %v8079 = vld [vmem:[%s8069 + $0x48] sm:$0xff]
        %v8080 = vld [vmem:[%s8069 + $0x50] sm:$0xff]
        %v8081 = vld [vmem:[%s8069 + $0x58] sm:$0xff]
        %v8082 = vld [vmem:[%s8069 + $0x60] sm:$0xff]
        %v8083 = vld [vmem:[%s8069 + $0x68] sm:$0xff]
        %v8084 = vld [vmem:[%s8069 + $0x70] sm:$0xff]
        %v8085 = vld [vmem:[%s8069 + $0x78] sm:$0xff]
        %v8086 = vld [vmem:[%s8069 + $0x80] sm:$0xff]
        %v8087 = vld [vmem:[%s8069 + $0x88] sm:$0xff]
        %v8088 = vld [vmem:[%s8069 + $0x90] sm:$0xff]
        %v8089 = vld [vmem:[%s8069 + $0x98] sm:$0xff]
        %v8090 = vld [vmem:[%s8069 + $0xa0] sm:$0xff]
        %v8091 = vld [vmem:[%s8069 + $0xa8] sm:$0xff]
        %v8092 = vld [vmem:[%s8069 + $0xb0] sm:$0xff]
        %v8093 = vld [vmem:[%s8069 + $0xb8] sm:$0xff]
        %v8094 = vld [vmem:[%s8069 + $0xc0] sm:$0xff]
        %v8095 = vld [vmem:[%s8069 + $0xc8] sm:$0xff]
        %v8096 = vld [vmem:[%s8069 + $0xd0] sm:$0xff]
        %v8097 = vld [vmem:[%s8069 + $0xd8] sm:$0xff]
        %v8099 = vsel %vm487, %v7742, 0
        %8101 = vmatprep.subr.mxu0 0.0
        %8102 = vmatpush1.msra.mxu0 %v8070
        %8103 = vmatprep.subr.mxu0 0.0
        %8104 = vmatpush1.msra.mxu0 %v8071
        %8105 = vmatprep.subr.mxu0 0.0
        %8106 = vmatpush1.msra.mxu0 %v8072
        %8107 = vmatprep.subr.mxu0 0.0
        %8108 = vmatpush1.msra.mxu0 %v8073
        %8109 = vmatprep.subr.mxu0 0.0
        %8110 = vmatpush1.msra.mxu0 %v8074
        %8111 = vmatprep.subr.mxu0 0.0
        %8112 = vmatpush1.msra.mxu0 %v8075
        %8113 = vmatprep.subr.mxu0 0.0
        %8114 = vmatpush1.msra.mxu0 %v8076
        %8115 = vmatprep.subr.mxu0 0.0
        %8116 = vmatpush1.msra.mxu0 %v8077
        %8117 = vmatprep.subr.mxu0 0.0
        %8118 = vmatpush1.msra.mxu0 %v8078
        %8119 = vmatprep.subr.mxu0 0.0
        %8120 = vmatpush1.msra.mxu0 %v8079
        %8121 = vmatprep.subr.mxu0 0.0
        %8122 = vmatpush1.msra.mxu0 %v8080
        %8123 = vmatprep.subr.mxu0 0.0
        %8124 = vmatpush1.msra.mxu0 %v8081
        %8125 = vmatprep.subr.mxu0 0.0
        %8126 = vmatpush1.msra.mxu0 %v8082
        %8127 = vmatprep.subr.mxu0 0.0
        %8128 = vmatpush1.msra.mxu0 %v8083
        %8129 = vmatprep.subr.mxu0 0.0
        %8130 = vmatpush1.msra.mxu0 %v8084
        %8131 = vmatprep.subr.mxu0 0.0
        %8132 = vmatpush1.msra.mxu0 %v8085
        %8133 = vmatprep.subr.mxu0 0.0
        %8134 = vmatpush1.msra.mxu0 %v8086
        %8135 = vmatprep.subr.mxu0 0.0
        %8136 = vmatpush1.msra.mxu0 %v8087
        %8137 = vmatprep.subr.mxu0 0.0
        %8138 = vmatpush1.msra.mxu0 %v8088
        %8139 = vmatprep.subr.mxu0 0.0
        %8140 = vmatpush1.msra.mxu0 %v8089
        %8141 = vmatprep.subr.mxu0 0.0
        %8142 = vmatpush1.msra.mxu0 %v8090
        %8143 = vmatprep.subr.mxu0 0.0
        %8144 = vmatpush1.msra.mxu0 %v8091
        %8145 = vmatprep.subr.mxu0 0.0
        %8146 = vmatpush1.msra.mxu0 %v8092
        %8147 = vmatprep.subr.mxu0 0.0
        %8148 = vmatpush1.msra.mxu0 %v8093
        %8149 = vmatprep.subr.mxu0 0.0
        %8150 = vmatpush1.msra.mxu0 %v8094
        %8151 = vmatprep.subr.mxu0 0.0
        %8152 = vmatpush1.msra.mxu0 %v8095
        %8153 = vmatprep.subr.mxu0 0.0
        %8154 = vmatpush1.msra.mxu0 %v8096
        %8155 = vmatprep.subr.mxu0 0.0
        %8156 = vmatpush1.msra.mxu0 %v8097
        %8157 = vmatprep.subr.mxu0 0.0
        %8158 = vmatpush1.msra.mxu0 0.0
        %8159 = vmatprep.subr.mxu0 0.0
        %8160 = vmatpush1.msra.mxu0 0.0
        %8161 = vmatprep.subr.mxu0 0.0
        %8162 = vmatpush1.msra.mxu0 0.0
        %8163 = vmatprep.subr.mxu0 0.0
        %8164 = vmatpush1.msra.mxu0 0.0
        %8165 = vmatprep.mubr.f32.mxu0 %v8099
        %8166 = vmatmul.mubr.f32.gmra.mrb[0].mxu0 %v7741
        %v8167 = vpop.f32.mrb[0].mxu0
        %v8168 = vadd.f32 0.0, %v8167
        %v8169 = vpop.f32.mrb[0].mxu0
        %8170 = vdwg.mxu0
        %v8171 = vadd.f32 %v8068, %v8168
        %s8172 = scalar_lea.vmem %s5, 896
        %v8173 = vld [vmem:[%s8172] sm:$0xff]
        %v8174 = vld [vmem:[%s8172 + $0x8] sm:$0xff]
        %v8175 = vld [vmem:[%s8172 + $0x10] sm:$0xff]
        %v8176 = vld [vmem:[%s8172 + $0x18] sm:$0xff]
        %v8177 = vld [vmem:[%s8172 + $0x20] sm:$0xff]
        %v8178 = vld [vmem:[%s8172 + $0x28] sm:$0xff]
        %v8179 = vld [vmem:[%s8172 + $0x30] sm:$0xff]
        %v8180 = vld [vmem:[%s8172 + $0x38] sm:$0xff]
        %v8181 = vld [vmem:[%s8172 + $0x40] sm:$0xff]
        %v8182 = vld [vmem:[%s8172 + $0x48] sm:$0xff]
        %v8183 = vld [vmem:[%s8172 + $0x50] sm:$0xff]
        %v8184 = vld [vmem:[%s8172 + $0x58] sm:$0xff]
        %v8185 = vld [vmem:[%s8172 + $0x60] sm:$0xff]
        %v8186 = vld [vmem:[%s8172 + $0x68] sm:$0xff]
        %v8187 = vld [vmem:[%s8172 + $0x70] sm:$0xff]
        %v8188 = vld [vmem:[%s8172 + $0x78] sm:$0xff]
        %v8189 = vld [vmem:[%s8172 + $0x80] sm:$0xff]
        %v8190 = vld [vmem:[%s8172 + $0x88] sm:$0xff]
        %v8191 = vld [vmem:[%s8172 + $0x90] sm:$0xff]
        %v8192 = vld [vmem:[%s8172 + $0x98] sm:$0xff]
        %v8193 = vld [vmem:[%s8172 + $0xa0] sm:$0xff]
        %v8194 = vld [vmem:[%s8172 + $0xa8] sm:$0xff]
        %v8195 = vld [vmem:[%s8172 + $0xb0] sm:$0xff]
        %v8196 = vld [vmem:[%s8172 + $0xb8] sm:$0xff]
        %v8197 = vld [vmem:[%s8172 + $0xc0] sm:$0xff]
        %v8198 = vld [vmem:[%s8172 + $0xc8] sm:$0xff]
        %v8199 = vld [vmem:[%s8172 + $0xd0] sm:$0xff]
        %v8200 = vld [vmem:[%s8172 + $0xd8] sm:$0xff]
        %v8202 = vsel %vm487, %v7744, 0
        %8204 = vmatprep.subr.mxu0 0.0
        %8205 = vmatpush1.msra.mxu0 %v8173
        %8206 = vmatprep.subr.mxu0 0.0
        %8207 = vmatpush1.msra.mxu0 %v8174
        %8208 = vmatprep.subr.mxu0 0.0
        %8209 = vmatpush1.msra.mxu0 %v8175
        %8210 = vmatprep.subr.mxu0 0.0
        %8211 = vmatpush1.msra.mxu0 %v8176
        %8212 = vmatprep.subr.mxu0 0.0
        %8213 = vmatpush1.msra.mxu0 %v8177
        %8214 = vmatprep.subr.mxu0 0.0
        %8215 = vmatpush1.msra.mxu0 %v8178
        %8216 = vmatprep.subr.mxu0 0.0
        %8217 = vmatpush1.msra.mxu0 %v8179
        %8218 = vmatprep.subr.mxu0 0.0
        %8219 = vmatpush1.msra.mxu0 %v8180
        %8220 = vmatprep.subr.mxu0 0.0
        %8221 = vmatpush1.msra.mxu0 %v8181
        %8222 = vmatprep.subr.mxu0 0.0
        %8223 = vmatpush1.msra.mxu0 %v8182
        %8224 = vmatprep.subr.mxu0 0.0
        %8225 = vmatpush1.msra.mxu0 %v8183
        %8226 = vmatprep.subr.mxu0 0.0
        %8227 = vmatpush1.msra.mxu0 %v8184
        %8228 = vmatprep.subr.mxu0 0.0
        %8229 = vmatpush1.msra.mxu0 %v8185
        %8230 = vmatprep.subr.mxu0 0.0
        %8231 = vmatpush1.msra.mxu0 %v8186
        %8232 = vmatprep.subr.mxu0 0.0
        %8233 = vmatpush1.msra.mxu0 %v8187
        %8234 = vmatprep.subr.mxu0 0.0
        %8235 = vmatpush1.msra.mxu0 %v8188
        %8236 = vmatprep.subr.mxu0 0.0
        %8237 = vmatpush1.msra.mxu0 %v8189
        %8238 = vmatprep.subr.mxu0 0.0
        %8239 = vmatpush1.msra.mxu0 %v8190
        %8240 = vmatprep.subr.mxu0 0.0
        %8241 = vmatpush1.msra.mxu0 %v8191
        %8242 = vmatprep.subr.mxu0 0.0
        %8243 = vmatpush1.msra.mxu0 %v8192
        %8244 = vmatprep.subr.mxu0 0.0
        %8245 = vmatpush1.msra.mxu0 %v8193
        %8246 = vmatprep.subr.mxu0 0.0
        %8247 = vmatpush1.msra.mxu0 %v8194
        %8248 = vmatprep.subr.mxu0 0.0
        %8249 = vmatpush1.msra.mxu0 %v8195
        %8250 = vmatprep.subr.mxu0 0.0
        %8251 = vmatpush1.msra.mxu0 %v8196
        %8252 = vmatprep.subr.mxu0 0.0
        %8253 = vmatpush1.msra.mxu0 %v8197
        %8254 = vmatprep.subr.mxu0 0.0
        %8255 = vmatpush1.msra.mxu0 %v8198
        %8256 = vmatprep.subr.mxu0 0.0
        %8257 = vmatpush1.msra.mxu0 %v8199
        %8258 = vmatprep.subr.mxu0 0.0
        %8259 = vmatpush1.msra.mxu0 %v8200
        %8260 = vmatprep.subr.mxu0 0.0
        %8261 = vmatpush1.msra.mxu0 0.0
        %8262 = vmatprep.subr.mxu0 0.0
        %8263 = vmatpush1.msra.mxu0 0.0
        %8264 = vmatprep.subr.mxu0 0.0
        %8265 = vmatpush1.msra.mxu0 0.0
        %8266 = vmatprep.subr.mxu0 0.0
        %8267 = vmatpush1.msra.mxu0 0.0
        %8268 = vmatprep.mubr.f32.mxu0 %v8202
        %8269 = vmatmul.mubr.f32.gmra.mrb[0].mxu0 %v7743
        %v8270 = vpop.f32.mrb[0].mxu0
        %v8271 = vadd.f32 0.0, %v8270
        %v8272 = vpop.f32.mrb[0].mxu0
        %8273 = vdwg.mxu0
        %v8274 = vadd.f32 %v8171, %v8271
        %s8275 = scalar_lea.vmem %s5, 1120
        %v8276 = vld [vmem:[%s8275] sm:$0xff]
        %v8277 = vld [vmem:[%s8275 + $0x8] sm:$0xff]
        %v8278 = vld [vmem:[%s8275 + $0x10] sm:$0xff]
        %v8279 = vld [vmem:[%s8275 + $0x18] sm:$0xff]
        %v8280 = vld [vmem:[%s8275 + $0x20] sm:$0xff]
        %v8281 = vld [vmem:[%s8275 + $0x28] sm:$0xff]
        %v8282 = vld [vmem:[%s8275 + $0x30] sm:$0xff]
        %v8283 = vld [vmem:[%s8275 + $0x38] sm:$0xff]
        %v8284 = vld [vmem:[%s8275 + $0x40] sm:$0xff]
        %v8285 = vld [vmem:[%s8275 + $0x48] sm:$0xff]
        %v8286 = vld [vmem:[%s8275 + $0x50] sm:$0xff]
        %v8287 = vld [vmem:[%s8275 + $0x58] sm:$0xff]
        %v8288 = vld [vmem:[%s8275 + $0x60] sm:$0xff]
        %v8289 = vld [vmem:[%s8275 + $0x68] sm:$0xff]
        %v8290 = vld [vmem:[%s8275 + $0x70] sm:$0xff]
        %v8291 = vld [vmem:[%s8275 + $0x78] sm:$0xff]
        %v8292 = vld [vmem:[%s8275 + $0x80] sm:$0xff]
        %v8293 = vld [vmem:[%s8275 + $0x88] sm:$0xff]
        %v8294 = vld [vmem:[%s8275 + $0x90] sm:$0xff]
        %v8295 = vld [vmem:[%s8275 + $0x98] sm:$0xff]
        %v8296 = vld [vmem:[%s8275 + $0xa0] sm:$0xff]
        %v8297 = vld [vmem:[%s8275 + $0xa8] sm:$0xff]
        %v8298 = vld [vmem:[%s8275 + $0xb0] sm:$0xff]
        %v8299 = vld [vmem:[%s8275 + $0xb8] sm:$0xff]
        %v8300 = vld [vmem:[%s8275 + $0xc0] sm:$0xff]
        %v8301 = vld [vmem:[%s8275 + $0xc8] sm:$0xff]
        %v8302 = vld [vmem:[%s8275 + $0xd0] sm:$0xff]
        %v8303 = vld [vmem:[%s8275 + $0xd8] sm:$0xff]
        %v8305 = vsel %vm487, %v7746, 0
        %8307 = vmatprep.subr.mxu0 0.0
        %8308 = vmatpush1.msra.mxu0 %v8276
        %8309 = vmatprep.subr.mxu0 0.0
        %8310 = vmatpush1.msra.mxu0 %v8277
        %8311 = vmatprep.subr.mxu0 0.0
        %8312 = vmatpush1.msra.mxu0 %v8278
        %8313 = vmatprep.subr.mxu0 0.0
        %8314 = vmatpush1.msra.mxu0 %v8279
        %8315 = vmatprep.subr.mxu0 0.0
        %8316 = vmatpush1.msra.mxu0 %v8280
        %8317 = vmatprep.subr.mxu0 0.0
        %8318 = vmatpush1.msra.mxu0 %v8281
        %8319 = vmatprep.subr.mxu0 0.0
        %8320 = vmatpush1.msra.mxu0 %v8282
        %8321 = vmatprep.subr.mxu0 0.0
        %8322 = vmatpush1.msra.mxu0 %v8283
        %8323 = vmatprep.subr.mxu0 0.0
        %8324 = vmatpush1.msra.mxu0 %v8284
        %8325 = vmatprep.subr.mxu0 0.0
        %8326 = vmatpush1.msra.mxu0 %v8285
        %8327 = vmatprep.subr.mxu0 0.0
        %8328 = vmatpush1.msra.mxu0 %v8286
        %8329 = vmatprep.subr.mxu0 0.0
        %8330 = vmatpush1.msra.mxu0 %v8287
        %8331 = vmatprep.subr.mxu0 0.0
        %8332 = vmatpush1.msra.mxu0 %v8288
        %8333 = vmatprep.subr.mxu0 0.0
        %8334 = vmatpush1.msra.mxu0 %v8289
        %8335 = vmatprep.subr.mxu0 0.0
        %8336 = vmatpush1.msra.mxu0 %v8290
        %8337 = vmatprep.subr.mxu0 0.0
        %8338 = vmatpush1.msra.mxu0 %v8291
        %8339 = vmatprep.subr.mxu0 0.0
        %8340 = vmatpush1.msra.mxu0 %v8292
        %8341 = vmatprep.subr.mxu0 0.0
        %8342 = vmatpush1.msra.mxu0 %v8293
        %8343 = vmatprep.subr.mxu0 0.0
        %8344 = vmatpush1.msra.mxu0 %v8294
        %8345 = vmatprep.subr.mxu0 0.0
        %8346 = vmatpush1.msra.mxu0 %v8295
        %8347 = vmatprep.subr.mxu0 0.0
        %8348 = vmatpush1.msra.mxu0 %v8296
        %8349 = vmatprep.subr.mxu0 0.0
        %8350 = vmatpush1.msra.mxu0 %v8297
        %8351 = vmatprep.subr.mxu0 0.0
        %8352 = vmatpush1.msra.mxu0 %v8298
        %8353 = vmatprep.subr.mxu0 0.0
        %8354 = vmatpush1.msra.mxu0 %v8299
        %8355 = vmatprep.subr.mxu0 0.0
        %8356 = vmatpush1.msra.mxu0 %v8300
        %8357 = vmatprep.subr.mxu0 0.0
        %8358 = vmatpush1.msra.mxu0 %v8301
        %8359 = vmatprep.subr.mxu0 0.0
        %8360 = vmatpush1.msra.mxu0 %v8302
        %8361 = vmatprep.subr.mxu0 0.0
        %8362 = vmatpush1.msra.mxu0 %v8303
        %8363 = vmatprep.subr.mxu0 0.0
        %8364 = vmatpush1.msra.mxu0 0.0
        %8365 = vmatprep.subr.mxu0 0.0
        %8366 = vmatpush1.msra.mxu0 0.0
        %8367 = vmatprep.subr.mxu0 0.0
        %8368 = vmatpush1.msra.mxu0 0.0
        %8369 = vmatprep.subr.mxu0 0.0
        %8370 = vmatpush1.msra.mxu0 0.0
        %8371 = vmatprep.mubr.f32.mxu0 %v8305
        %8372 = vmatmul.mubr.f32.gmra.mrb[0].mxu0 %v7745
        %v8373 = vpop.f32.mrb[0].mxu0
        %v8374 = vadd.f32 0.0, %v8373
        %v8375 = vpop.f32.mrb[0].mxu0
        %8376 = vdwg.mxu0
        %v8377 = vadd.f32 %v8274, %v8374
        %s8378 = scalar_lea.vmem %s5, 1344
        %v8379 = vld [vmem:[%s8378] sm:$0xff]
        %v8380 = vld [vmem:[%s8378 + $0x8] sm:$0xff]
        %v8381 = vld [vmem:[%s8378 + $0x10] sm:$0xff]
        %v8382 = vld [vmem:[%s8378 + $0x18] sm:$0xff]
        %v8383 = vld [vmem:[%s8378 + $0x20] sm:$0xff]
        %v8384 = vld [vmem:[%s8378 + $0x28] sm:$0xff]
        %v8385 = vld [vmem:[%s8378 + $0x30] sm:$0xff]
        %v8386 = vld [vmem:[%s8378 + $0x38] sm:$0xff]
        %v8387 = vld [vmem:[%s8378 + $0x40] sm:$0xff]
        %v8388 = vld [vmem:[%s8378 + $0x48] sm:$0xff]
        %v8389 = vld [vmem:[%s8378 + $0x50] sm:$0xff]
        %v8390 = vld [vmem:[%s8378 + $0x58] sm:$0xff]
        %v8391 = vld [vmem:[%s8378 + $0x60] sm:$0xff]
        %v8392 = vld [vmem:[%s8378 + $0x68] sm:$0xff]
        %v8393 = vld [vmem:[%s8378 + $0x70] sm:$0xff]
        %v8394 = vld [vmem:[%s8378 + $0x78] sm:$0xff]
        %v8395 = vld [vmem:[%s8378 + $0x80] sm:$0xff]
        %v8396 = vld [vmem:[%s8378 + $0x88] sm:$0xff]
        %v8397 = vld [vmem:[%s8378 + $0x90] sm:$0xff]
        %v8398 = vld [vmem:[%s8378 + $0x98] sm:$0xff]
        %v8399 = vld [vmem:[%s8378 + $0xa0] sm:$0xff]
        %v8400 = vld [vmem:[%s8378 + $0xa8] sm:$0xff]
        %v8401 = vld [vmem:[%s8378 + $0xb0] sm:$0xff]
        %v8402 = vld [vmem:[%s8378 + $0xb8] sm:$0xff]
        %v8403 = vld [vmem:[%s8378 + $0xc0] sm:$0xff]
        %v8404 = vld [vmem:[%s8378 + $0xc8] sm:$0xff]
        %v8405 = vld [vmem:[%s8378 + $0xd0] sm:$0xff]
        %v8406 = vld [vmem:[%s8378 + $0xd8] sm:$0xff]
        %v8408 = vsel %vm487, %v7748, 0
        %8410 = vmatprep.subr.mxu0 0.0
        %8411 = vmatpush1.msra.mxu0 %v8379
        %8412 = vmatprep.subr.mxu0 0.0
        %8413 = vmatpush1.msra.mxu0 %v8380
        %8414 = vmatprep.subr.mxu0 0.0
        %8415 = vmatpush1.msra.mxu0 %v8381
        %8416 = vmatprep.subr.mxu0 0.0
        %8417 = vmatpush1.msra.mxu0 %v8382
        %8418 = vmatprep.subr.mxu0 0.0
        %8419 = vmatpush1.msra.mxu0 %v8383
        %8420 = vmatprep.subr.mxu0 0.0
        %8421 = vmatpush1.msra.mxu0 %v8384
        %8422 = vmatprep.subr.mxu0 0.0
        %8423 = vmatpush1.msra.mxu0 %v8385
        %8424 = vmatprep.subr.mxu0 0.0
        %8425 = vmatpush1.msra.mxu0 %v8386
        %8426 = vmatprep.subr.mxu0 0.0
        %8427 = vmatpush1.msra.mxu0 %v8387
        %8428 = vmatprep.subr.mxu0 0.0
        %8429 = vmatpush1.msra.mxu0 %v8388
        %8430 = vmatprep.subr.mxu0 0.0
        %8431 = vmatpush1.msra.mxu0 %v8389
        %8432 = vmatprep.subr.mxu0 0.0
        %8433 = vmatpush1.msra.mxu0 %v8390
        %8434 = vmatprep.subr.mxu0 0.0
        %8435 = vmatpush1.msra.mxu0 %v8391
        %8436 = vmatprep.subr.mxu0 0.0
        %8437 = vmatpush1.msra.mxu0 %v8392
        %8438 = vmatprep.subr.mxu0 0.0
        %8439 = vmatpush1.msra.mxu0 %v8393
        %8440 = vmatprep.subr.mxu0 0.0
        %8441 = vmatpush1.msra.mxu0 %v8394
        %8442 = vmatprep.subr.mxu0 0.0
        %8443 = vmatpush1.msra.mxu0 %v8395
        %8444 = vmatprep.subr.mxu0 0.0
        %8445 = vmatpush1.msra.mxu0 %v8396
        %8446 = vmatprep.subr.mxu0 0.0
        %8447 = vmatpush1.msra.mxu0 %v8397
        %8448 = vmatprep.subr.mxu0 0.0
        %8449 = vmatpush1.msra.mxu0 %v8398
        %8450 = vmatprep.subr.mxu0 0.0
        %8451 = vmatpush1.msra.mxu0 %v8399
        %8452 = vmatprep.subr.mxu0 0.0
        %8453 = vmatpush1.msra.mxu0 %v8400
        %8454 = vmatprep.subr.mxu0 0.0
        %8455 = vmatpush1.msra.mxu0 %v8401
        %8456 = vmatprep.subr.mxu0 0.0
        %8457 = vmatpush1.msra.mxu0 %v8402
        %8458 = vmatprep.subr.mxu0 0.0
        %8459 = vmatpush1.msra.mxu0 %v8403
        %8460 = vmatprep.subr.mxu0 0.0
        %8461 = vmatpush1.msra.mxu0 %v8404
        %8462 = vmatprep.subr.mxu0 0.0
        %8463 = vmatpush1.msra.mxu0 %v8405
        %8464 = vmatprep.subr.mxu0 0.0
        %8465 = vmatpush1.msra.mxu0 %v8406
        %8466 = vmatprep.subr.mxu0 0.0
        %8467 = vmatpush1.msra.mxu0 0.0
        %8468 = vmatprep.subr.mxu0 0.0
        %8469 = vmatpush1.msra.mxu0 0.0
        %8470 = vmatprep.subr.mxu0 0.0
        %8471 = vmatpush1.msra.mxu0 0.0
        %8472 = vmatprep.subr.mxu0 0.0
        %8473 = vmatpush1.msra.mxu0 0.0
        %8474 = vmatprep.mubr.f32.mxu0 %v8408
        %8475 = vmatmul.mubr.f32.gmra.mrb[0].mxu0 %v7747
        %v8476 = vpop.f32.mrb[0].mxu0
        %v8477 = vadd.f32 0.0, %v8476
        %v8478 = vpop.f32.mrb[0].mxu0
        %8479 = vdwg.mxu0
        %v8480 = vadd.f32 %v8377, %v8477
        %v8481 = vld [vmem:[%s6] sm:$0x1]
        %v8483 = vlaneseq
        %v8484 = vshrl.u32 %v8483, 7
        %v8485 = vsub.s32 0, %v8484
        %v8486 = vrot.slane %v8481, %v8485
        %v8488 = vadd.f32 %v8480, %v8486
        %8489 = vst [vmem:[%s446] sm:$0xff] %v8488
        %s8490 = sand.u32 %s183, 1
        %s8491 = scalar_lea.sflag [#allocation8], %s8490
        %s8492 = sand.u32 %s183, 1
        %s8493 = smul.addr %s8492, 8
        %s8494 = scalar_lea.vmem [#allocation7], %s8493
        %s8495 = sand.u32 %s209, 1
        %s8496 = sand.u32 %s209, 1
        %s8497 = smul.addr %s8496, 112
        %s8498 = scalar_lea.vmem [#allocation9], %s8497
        // Predicated region
        $region87: #{cnn_forward.1} parent=81 // pred_check
          %p8499 = pneg %p193
        $region88: #{cnn_forward.1} parent=81 // pred_check_branch
          %8501 = sbr.rel (%p8499) target = $region90
        $region89: #{cnn_forward.1} parent=81 // pred_region
          %s8503 = ssub.s32 128, 128
          %8504 = vsyncadd %s8491, %s8503
          %s8505 = smul.addr %s23, 128
          %s8506 = scalar_lea.hbm %s7, %s8505
          %s8508 = sshll.u32 %s8494, 4
          %s8509 = int_to_ptr.vmem [resolvable:$true] %s8508
          %8511 = dma.vmem_to_hbm [thread:$0]  %s8509, 128, %s8506, %s8491
        $region90: #{cnn_forward.1} parent=81 // pred_fallthru
          _
        // Predicated region
        $region91: #{cnn_forward.1} parent=81 // pred_check
          %p8512 = pneg %p219
        $region92: #{cnn_forward.1} parent=81 // pred_check_branch
          %8514 = sbr.rel (%p8512) target = $region94
        $region93: #{cnn_forward.1} parent=81 // pred_region
          %s8515 = smul.addr %s23, 2
          %s8516 = smul.addr %s8515, 8
          %s8517 = scalar_lea.vmem %s8, %s8516
          // Predicated region
          $region95: #{cnn_forward.1} parent=93 // pred_check
            _
          $region96: #{cnn_forward.1} parent=93 // pred_check_branch
            %8519 = sbr.rel (0) target = $region98
          $region97: #{cnn_forward.1} parent=93 // pred_region
            // Predicated region
            $region99: #{cnn_forward.1} parent=97 // pred_check
              _
            $region100: #{cnn_forward.1} parent=97 // pred_check_branch
              %8521 = sbr.rel (0) target = $region102
            $region101: #{cnn_forward.1} parent=97 // pred_region
              loop: start=0, step=1, limit=1
              $region103: #{cnn_forward.1} parent=101 // loop_pre_header
                _
              $region104: #{cnn_forward.1} parent=101 // loop_header
                %s8523 = sphi 0, %s8527
                %p8524 = scmp.ge.s32.totalorder %s8523, 1
                %s8528 = sphi %s8498, %s8498
                %s8529 = sphi %s8517, %s8517
              $region105: #{cnn_forward.1} parent=101 // loop_header_branch
                %8526 = sbr.rel (%p8524) target = $region109
              $region106: #{cnn_forward.1} parent=101 // loop_body
                %v8530 = vld [vmem:[%s8528] sm:$0xff]
                %8531 = vst [vmem:[%s8529] sm:$0xff] %v8530
                %v8532 = vld [vmem:[%s8528 + $0x8] sm:$0xff]
                %8533 = vst [vmem:[%s8529 + $0x8] sm:$0xff] %v8532
                %v8534 = vld [vmem:[%s8528 + $0x10] sm:$0xff]
                %8535 = vst [vmem:[%s8529 + $0x20] sm:$0xff] %v8534
                %v8536 = vld [vmem:[%s8528 + $0x18] sm:$0xff]
                %8537 = vst [vmem:[%s8529 + $0x28] sm:$0xff] %v8536
                %v8538 = vld [vmem:[%s8528 + $0x20] sm:$0xff]
                %8539 = vst [vmem:[%s8529 + $0x40] sm:$0xff] %v8538
                %v8540 = vld [vmem:[%s8528 + $0x28] sm:$0xff]
                %8541 = vst [vmem:[%s8529 + $0x48] sm:$0xff] %v8540
                %v8542 = vld [vmem:[%s8528 + $0x30] sm:$0xff]
                %8543 = vst [vmem:[%s8529 + $0x60] sm:$0xff] %v8542
                %v8544 = vld [vmem:[%s8528 + $0x38] sm:$0xff]
                %8545 = vst [vmem:[%s8529 + $0x68] sm:$0xff] %v8544
                %v8546 = vld [vmem:[%s8528 + $0x40] sm:$0xff]
                %8547 = vst [vmem:[%s8529 + $0x80] sm:$0xff] %v8546
                %v8548 = vld [vmem:[%s8528 + $0x48] sm:$0xff]
                %8549 = vst [vmem:[%s8529 + $0x88] sm:$0xff] %v8548
                %v8550 = vld [vmem:[%s8528 + $0x50] sm:$0xff]
                %8551 = vst [vmem:[%s8529 + $0xa0] sm:$0xff] %v8550
                %v8552 = vld [vmem:[%s8528 + $0x58] sm:$0xff]
                %8553 = vst [vmem:[%s8529 + $0xa8] sm:$0xff] %v8552
                %v8554 = vld [vmem:[%s8528 + $0x60] sm:$0xff]
                %8555 = vst [vmem:[%s8529 + $0xc0] sm:$0xff] %v8554
                %v8556 = vld [vmem:[%s8528 + $0x68] sm:$0xff]
                %8557 = vst [vmem:[%s8529 + $0xc8] sm:$0xff] %v8556
              $region107: #{cnn_forward.1} parent=101 // loop_footer
                %s8527 = sadd.s32 1, %s8523
              $region108: #{cnn_forward.1} parent=101 // loop_footer_branch
                %8522 = sbr.rel target = $region104
              $region109: #{cnn_forward.1} parent=101 // loop_exit
                _
            $region102: #{cnn_forward.1} parent=97 // pred_fallthru
              _
            // Predicated region
            $region110: #{cnn_forward.1} parent=97 // pred_check
              _
            $region111: #{cnn_forward.1} parent=97 // pred_check_branch
              %8559 = sbr.rel target = $region113
            $region112: #{cnn_forward.1} parent=97 // pred_region
              _
            $region113: #{cnn_forward.1} parent=97 // pred_fallthru
              _
          $region98: #{cnn_forward.1} parent=93 // pred_fallthru
            _
          %8560 = vnop
        $region94: #{cnn_forward.1} parent=81 // pred_fallthru
          _
      $region82: #{cnn_forward.1} parent=5 // pred_fallthru
        _
      %p8561 = scmp.le.s32.totalorder 2, %s18
      // Predicated region
      $region114: #{cnn_forward.1} parent=5 // pred_check
        %p8562 = pneg %p8561
      $region115: #{cnn_forward.1} parent=5 // pred_check_branch
        %8564 = sbr.rel (%p8562) target = $region117
      $region116: #{cnn_forward.1} parent=5 // pred_region
        %s8565 = ssub.s32 %s18, 2
        // Predicated region
        $region118: #{cnn_forward.1} parent=116 // pred_check
          %p8566 = pneg %p199
        $region119: #{cnn_forward.1} parent=116 // pred_check_branch
          %8568 = sbr.rel (%p8566) target = $region121
        $region120: #{cnn_forward.1} parent=116 // pred_region
          %s8569 = sand.u32 %s184, 1
          %s8570 = scalar_lea.sflag [#allocation8], %s8569
          %s8571 = sand.u32 %s184, 1
          %s8572 = smul.addr %s8571, 8
          %s8573 = scalar_lea.vmem [#allocation7], %s8572
          %8574 = dma.done %s8570, 128
        $region121: #{cnn_forward.1} parent=116 // pred_fallthru
          _
        // Predicated region
        $region122: #{cnn_forward.1} parent=116 // pred_check
          %p8575 = pneg %p225
        $region123: #{cnn_forward.1} parent=116 // pred_check_branch
          %8577 = sbr.rel (%p8575) target = $region125
        $region124: #{cnn_forward.1} parent=116 // pred_region
          %s8578 = sand.u32 %s210, 1
          %s8579 = sand.u32 %s210, 1
          %s8580 = smul.addr %s8579, 112
          %s8581 = scalar_lea.vmem [#allocation9], %s8580
        $region125: #{cnn_forward.1} parent=116 // pred_fallthru
          _
      $region117: #{cnn_forward.1} parent=5 // pred_fallthru
        _
    $region6: #{cnn_forward.1} parent=1 // loop_footer
      %s22 = sadd.s32 1, %s18
    $region7: #{cnn_forward.1} parent=1 // loop_footer_branch
      %17 = sbr.rel target = $region3
    $region8: #{cnn_forward.1} parent=1 // loop_exit
      _
    %8582 = vsyncpa [#allocation8], 1
    %s8583 = scalar_lea.sflag [#allocation8], 1
    %8584 = vsyncpa %s8583, 1

</llo_original>
